<compile_context>
chip_gen: v7x
topology: tpu7x:2x2x1
jax: 0.10.0
libtpu: 0.0.40
codegen_flags: <defaults>
</compile_context>

<pallas_src>
import math

import jax
import jax.numpy as jnp
from jax import lax
from jax.experimental import pallas as pl
from jax.experimental.pallas import tpu as pltpu


def _largest_divisor_leq(n: int, cap: int) -> int:
    cap = max(1, min(n, cap))
    for d in range(cap, 0, -1):
        if n % d == 0:
            return d
    return 1


def _make_spatt_kernel(K: int, P: int, Bb: int, H: int, W: int):
    def kernel(x_ref, t_ref, o_ref, xr_ref):
        # x_ref : VMEM (Bb, H, W)          raw input block
        # t_ref : VMEM (K, W, W) f32       banded Toeplitz taps (width conv + col pad)
        # o_ref : VMEM (Bb, H, W)          output block
        # xr_ref: VMEM (Bb, H + 2P, W) f32 scratch: x with zero row halo
        x = x_ref[...].astype(jnp.float32)

        # Re-zero the row halo every step (scratch persists across grid steps and is
        # per-core under megacore); interior rows are fully overwritten below.
        if P > 0:
            zero_halo = jnp.zeros((Bb, P, W), jnp.float32)
            xr_ref[:, :P, :] = zero_halo
            xr_ref[:, P + H:, :] = zero_halo
        xr_ref[:, P:P + H, :] = x

        for b in range(Bb):                     # small static batch loop
            acc = jnp.zeros((H, W), jnp.float32)
            for di in range(K):                 # K sublane-offset slabs -> K MXU matmuls
                slab = xr_ref[b, pl.ds(di, H), :]            # (H, W)
                acc = acc + jnp.dot(
                    slab, t_ref[di],
                    precision=lax.Precision.HIGHEST,
                    preferred_element_type=jnp.float32)
            att = jax.nn.sigmoid(acc)
            o_ref[b] = (x[b] * att).astype(o_ref.dtype)

    return kernel


def spatt_forward(x, conv_weight, padding: int = 3):
    """Pallas implementation of spatt.forward.

    x:           (B, H, W)
    conv_weight: (1, 2, K, K) with K = 2*padding + 1 (Conv2d(2, 1, K, padding, bias=False))
    returns:     (B, H, W) = x * sigmoid(conv2d(cat([x, x], ch), conv_weight, same-pad))
    """
    B, H, W = x.shape
    P = padding
    K = 2 * P + 1
    assert conv_weight.shape == (1, 2, K, K), conv_weight.shape

    # Exact 2-channel -> 1-channel reduction (both conv input channels are copies of x).
    w_eff = (conv_weight[0, 0] + conv_weight[0, 1]).astype(jnp.float32)        # (K, K)

    # Banded Toeplitz matrices: T[di, c, j] = w_eff[di, c - j + P] inside the band,
    # 0 outside.  Encodes the width-direction conv AND its "same" zero-padding, so
    # acc[i, j] = sum_di (x_rowpadded[i + di, :] @ T[di])[j].
    c = jnp.arange(W)[:, None]
    j = jnp.arange(W)[None, :]
    band = c - j + P                                                           # (W, W)
    valid = (band >= 0) & (band < K)
    t_mats = jnp.where(valid[None, :, :],
                       w_eff[:, jnp.clip(band, 0, K - 1)],
                       0.0).astype(jnp.float32)                                # (K, W, W)

    # Images per grid step: amortize per-step overhead, keep the double-buffered
    # in/out/scratch working set small (v7x: 64 MiB VMEM, 32 MiB default scoped),
    # and keep the static per-image loop short.
    itemsize = jnp.dtype(x.dtype).itemsize
    per_image_bytes = max(1, H * W * itemsize)
    bb_cap = min(8, max(1, (2 << 20) // per_image_bytes))
    Bb = _largest_divisor_leq(B, bb_cap)

    flops = 2 * B * H * K * W * W + 3 * B * H * W          # K matmuls/image + epilogue
    bytes_accessed = 2 * B * H * W * itemsize + K * W * W * 4

    out = pl.pallas_call(
        _make_spatt_kernel(K, P, Bb, H, W),
        out_shape=jax.ShapeDtypeStruct((B, H, W), x.dtype),
        grid_spec=pltpu.PrefetchScalarGridSpec(
            num_scalar_prefetch=0,
            grid=(B // Bb,),
            in_specs=[
                # One batch-block of raw (unpadded) images per grid step.
                pl.BlockSpec((Bb, H, W), lambda b: (b, 0, 0)),
                # Constant Toeplitz tap stack: same block every step (fetched once).
                pl.BlockSpec((K, W, W), lambda b: (0, 0, 0)),
            ],
            out_specs=pl.BlockSpec((Bb, H, W), lambda b: (b, 0, 0)),
            scratch_shapes=[pltpu.VMEM((Bb, H + 2 * P, W), jnp.float32)],
        ),
        compiler_params=pltpu.CompilerParams(
            dimension_semantics=("parallel",),
        ),
        cost_estimate=pl.CostEstimate(
            flops=flops,
            transcendentals=B * H * W,
            bytes_accessed=bytes_accessed,
        ),
    )(x, t_mats)

    return out


if __name__ == "__main__":
    B, H, W = 2, 16, 16
    padding = 3
    K = 2 * padding + 1

    key = jax.random.PRNGKey(0)
    kx, kw = jax.random.split(key)
    x = jax.random.normal(kx, (B, H, W), dtype=jnp.float32)

    # Conv2d(2, 1, K, padding=padding, bias=False) weight, kaiming-uniform-like bound.
    fan_in = 2 * K * K
    bound = 1.0 / math.sqrt(fan_in)
    w = jax.random.uniform(kw, (1, 2, K, K), minval=-bound, maxval=bound, dtype=jnp.float32)

    out = spatt_forward(x, w, padding=padding)
    out = jax.block_until_ready(out)

    # Pure-JAX reference mirroring the PyTorch forward literally.
    xc = x[:, None, :, :]                                  # (B, 1, H, W)
    avg = jnp.mean(xc, axis=1, keepdims=True)
    mx = jnp.max(xc, axis=1, keepdims=True)
    xt = jnp.concatenate([avg, mx], axis=1)                # (B, 2, H, W)
    conv = lax.conv_general_dilated(
        xt, w,
        window_strides=(1, 1),
        padding=[(padding, padding), (padding, padding)],
        dimension_numbers=("NCHW", "OIHW", "NCHW"),
        precision=lax.Precision.HIGHEST,
    )
    ref = x * jax.nn.sigmoid(conv)[:, 0]

    assert out.shape == x.shape, (out.shape, x.shape)
    assert out.dtype == x.dtype, (out.dtype, x.dtype)
    max_err = jnp.max(jnp.abs(out - ref))
    # Tolerance covers MXU f32 matmul pass rounding (values are O(1)).
    assert jnp.allclose(out, ref, atol=1e-3, rtol=1e-3), f"mismatch vs reference, max err {max_err}"

    print("KERNEL_OK")
</pallas_src>

<mosaic_0001>
module attributes {stable_mosaic.version = 11 : i64} {
  func.func @kernel(%arg0: i32, %arg1: memref<2x16x16xf32, #tpu.memory_space<vmem>>, %arg2: memref<7x16x16xf32, #tpu.memory_space<vmem>>, %arg3: memref<2x16x16xf32, #tpu.memory_space<vmem>>, %arg4: memref<2x22x16xf32, #tpu.memory_space<vmem>>) attributes {dimension_semantics = [#tpu.dimension_semantics<parallel>], iteration_bounds = array<i64: 1>, scalar_prefetch = 0 : i64, scratch_operands = 1 : i64, tpu.core_type = #tpu.core_type<tc>, window_params = [{transform_indices = @transform_0, window_bounds = array<i64: 2, 16, 16>}, {pipeline_mode = #tpu.pipeline_mode<synchronous>, transform_indices = @transform_1, window_bounds = array<i64: 7, 16, 16>}, {transform_indices = @transform_2, window_bounds = array<i64: 2, 16, 16>}]} {
    %c0 = arith.constant 0 : index
    %c0_0 = arith.constant 0 : index
    %c0_1 = arith.constant 0 : index
    %0 = vector.load %arg1[%c0, %c0_0, %c0_1] : memref<2x16x16xf32, #tpu.memory_space<vmem>>, vector<2x16x16xf32>
    %cst = arith.constant 0.000000e+00 : f32
    %1 = vector.broadcast %cst : f32 to vector<2x3x16xf32>
    %c0_2 = arith.constant 0 : index
    %c0_3 = arith.constant 0 : index
    %c0_4 = arith.constant 0 : index
    %2 = vector.load %arg4[%c0_2, %c0_3, %c0_4] : memref<2x22x16xf32, #tpu.memory_space<vmem>>, vector<2x3x16xf32>
    tpu.vector_store %arg4[%c0_2, %c0_3, %c0_4], %1 {strides = array<i32>} : memref<2x22x16xf32, #tpu.memory_space<vmem>>, vector<2x3x16xf32>,
    %c0_5 = arith.constant 0 : index
    %c19 = arith.constant 19 : index
    %c0_6 = arith.constant 0 : index
    %3 = vector.load %arg4[%c0_5, %c19, %c0_6] : memref<2x22x16xf32, #tpu.memory_space<vmem>>, vector<2x3x16xf32>
    tpu.vector_store %arg4[%c0_5, %c19, %c0_6], %1 {strides = array<i32>} : memref<2x22x16xf32, #tpu.memory_space<vmem>>, vector<2x3x16xf32>,
    %c0_7 = arith.constant 0 : index
    %c3 = arith.constant 3 : index
    %c0_8 = arith.constant 0 : index
    %4 = vector.load %arg4[%c0_7, %c3, %c0_8] : memref<2x22x16xf32, #tpu.memory_space<vmem>>, vector<2x16x16xf32>
    tpu.vector_store %arg4[%c0_7, %c3, %c0_8], %0 {strides = array<i32>} : memref<2x22x16xf32, #tpu.memory_space<vmem>>, vector<2x16x16xf32>,
    %cst_9 = arith.constant 0.000000e+00 : f32
    %5 = vector.broadcast %cst_9 : f32 to vector<16x16xf32>
    %c0_10 = arith.constant 0 : index
    %c0_11 = arith.constant 0 : index
    %c0_12 = arith.constant 0 : index
    %6 = vector.load %arg4[%c0_10, %c0_11, %c0_12] : memref<2x22x16xf32, #tpu.memory_space<vmem>>, vector<1x16x16xf32>
    %7 = vector.shape_cast %6 : vector<1x16x16xf32> to vector<16x16xf32>
    %c0_13 = arith.constant 0 : index
    %c0_14 = arith.constant 0 : index
    %c0_15 = arith.constant 0 : index
    %8 = vector.load %arg2[%c0_13, %c0_14, %c0_15] : memref<7x16x16xf32, #tpu.memory_space<vmem>>, vector<1x16x16xf32>
    %9 = vector.shape_cast %8 : vector<1x16x16xf32> to vector<16x16xf32>
    %cst_16 = arith.constant dense<0.000000e+00> : vector<16x16xf32>
    %10 = tpu.matmul %7, %9, %cst_16 {dimension_numbers = #tpu.dot_dimension_numbers<[1], [0], [0], [1], [0, 0, 1, 1], [], []>, precision = #tpu.contract_precision<fp32>} : vector<16x16xf32>, vector<16x16xf32>, vector<16x16xf32> -> vector<16x16xf32>
    %11 = arith.addf %5, %10 : vector<16x16xf32>
    %c0_17 = arith.constant 0 : index
    %c1 = arith.constant 1 : index
    %c0_18 = arith.constant 0 : index
    %12 = vector.load %arg4[%c0_17, %c1, %c0_18] : memref<2x22x16xf32, #tpu.memory_space<vmem>>, vector<1x16x16xf32>
    %13 = vector.shape_cast %12 : vector<1x16x16xf32> to vector<16x16xf32>
    %c1_19 = arith.constant 1 : index
    %c0_20 = arith.constant 0 : index
    %c0_21 = arith.constant 0 : index
    %14 = vector.load %arg2[%c1_19, %c0_20, %c0_21] : memref<7x16x16xf32, #tpu.memory_space<vmem>>, vector<1x16x16xf32>
    %15 = vector.shape_cast %14 : vector<1x16x16xf32> to vector<16x16xf32>
    %cst_22 = arith.constant dense<0.000000e+00> : vector<16x16xf32>
    %16 = tpu.matmul %13, %15, %cst_22 {dimension_numbers = #tpu.dot_dimension_numbers<[1], [0], [0], [1], [0, 0, 1, 1], [], []>, precision = #tpu.contract_precision<fp32>} : vector<16x16xf32>, vector<16x16xf32>, vector<16x16xf32> -> vector<16x16xf32>
    %17 = arith.addf %11, %16 : vector<16x16xf32>
    %c0_23 = arith.constant 0 : index
    %c2 = arith.constant 2 : index
    %c0_24 = arith.constant 0 : index
    %18 = vector.load %arg4[%c0_23, %c2, %c0_24] : memref<2x22x16xf32, #tpu.memory_space<vmem>>, vector<1x16x16xf32>
    %19 = vector.shape_cast %18 : vector<1x16x16xf32> to vector<16x16xf32>
    %c2_25 = arith.constant 2 : index
    %c0_26 = arith.constant 0 : index
    %c0_27 = arith.constant 0 : index
    %20 = vector.load %arg2[%c2_25, %c0_26, %c0_27] : memref<7x16x16xf32, #tpu.memory_space<vmem>>, vector<1x16x16xf32>
    %21 = vector.shape_cast %20 : vector<1x16x16xf32> to vector<16x16xf32>
    %cst_28 = arith.constant dense<0.000000e+00> : vector<16x16xf32>
    %22 = tpu.matmul %19, %21, %cst_28 {dimension_numbers = #tpu.dot_dimension_numbers<[1], [0], [0], [1], [0, 0, 1, 1], [], []>, precision = #tpu.contract_precision<fp32>} : vector<16x16xf32>, vector<16x16xf32>, vector<16x16xf32> -> vector<16x16xf32>
    %23 = arith.addf %17, %22 : vector<16x16xf32>
    %c0_29 = arith.constant 0 : index
    %c3_30 = arith.constant 3 : index
    %c0_31 = arith.constant 0 : index
    %24 = vector.load %arg4[%c0_29, %c3_30, %c0_31] : memref<2x22x16xf32, #tpu.memory_space<vmem>>, vector<1x16x16xf32>
    %25 = vector.shape_cast %24 : vector<1x16x16xf32> to vector<16x16xf32>
    %c3_32 = arith.constant 3 : index
    %c0_33 = arith.constant 0 : index
    %c0_34 = arith.constant 0 : index
    %26 = vector.load %arg2[%c3_32, %c0_33, %c0_34] : memref<7x16x16xf32, #tpu.memory_space<vmem>>, vector<1x16x16xf32>
    %27 = vector.shape_cast %26 : vector<1x16x16xf32> to vector<16x16xf32>
    %cst_35 = arith.constant dense<0.000000e+00> : vector<16x16xf32>
    %28 = tpu.matmul %25, %27, %cst_35 {dimension_numbers = #tpu.dot_dimension_numbers<[1], [0], [0], [1], [0, 0, 1, 1], [], []>, precision = #tpu.contract_precision<fp32>} : vector<16x16xf32>, vector<16x16xf32>, vector<16x16xf32> -> vector<16x16xf32>
    %29 = arith.addf %23, %28 : vector<16x16xf32>
    %c0_36 = arith.constant 0 : index
    %c4 = arith.constant 4 : index
    %c0_37 = arith.constant 0 : index
    %30 = vector.load %arg4[%c0_36, %c4, %c0_37] : memref<2x22x16xf32, #tpu.memory_space<vmem>>, vector<1x16x16xf32>
    %31 = vector.shape_cast %30 : vector<1x16x16xf32> to vector<16x16xf32>
    %c4_38 = arith.constant 4 : index
    %c0_39 = arith.constant 0 : index
    %c0_40 = arith.constant 0 : index
    %32 = vector.load %arg2[%c4_38, %c0_39, %c0_40] : memref<7x16x16xf32, #tpu.memory_space<vmem>>, vector<1x16x16xf32>
    %33 = vector.shape_cast %32 : vector<1x16x16xf32> to vector<16x16xf32>
    %cst_41 = arith.constant dense<0.000000e+00> : vector<16x16xf32>
    %34 = tpu.matmul %31, %33, %cst_41 {dimension_numbers = #tpu.dot_dimension_numbers<[1], [0], [0], [1], [0, 0, 1, 1], [], []>, precision = #tpu.contract_precision<fp32>} : vector<16x16xf32>, vector<16x16xf32>, vector<16x16xf32> -> vector<16x16xf32>
    %35 = arith.addf %29, %34 : vector<16x16xf32>
    %c0_42 = arith.constant 0 : index
    %c5 = arith.constant 5 : index
    %c0_43 = arith.constant 0 : index
    %36 = vector.load %arg4[%c0_42, %c5, %c0_43] : memref<2x22x16xf32, #tpu.memory_space<vmem>>, vector<1x16x16xf32>
    %37 = vector.shape_cast %36 : vector<1x16x16xf32> to vector<16x16xf32>
    %c5_44 = arith.constant 5 : index
    %c0_45 = arith.constant 0 : index
    %c0_46 = arith.constant 0 : index
    %38 = vector.load %arg2[%c5_44, %c0_45, %c0_46] : memref<7x16x16xf32, #tpu.memory_space<vmem>>, vector<1x16x16xf32>
    %39 = vector.shape_cast %38 : vector<1x16x16xf32> to vector<16x16xf32>
    %cst_47 = arith.constant dense<0.000000e+00> : vector<16x16xf32>
    %40 = tpu.matmul %37, %39, %cst_47 {dimension_numbers = #tpu.dot_dimension_numbers<[1], [0], [0], [1], [0, 0, 1, 1], [], []>, precision = #tpu.contract_precision<fp32>} : vector<16x16xf32>, vector<16x16xf32>, vector<16x16xf32> -> vector<16x16xf32>
    %41 = arith.addf %35, %40 : vector<16x16xf32>
    %c0_48 = arith.constant 0 : index
    %c6 = arith.constant 6 : index
    %c0_49 = arith.constant 0 : index
    %42 = vector.load %arg4[%c0_48, %c6, %c0_49] : memref<2x22x16xf32, #tpu.memory_space<vmem>>, vector<1x16x16xf32>
    %43 = vector.shape_cast %42 : vector<1x16x16xf32> to vector<16x16xf32>
    %c6_50 = arith.constant 6 : index
    %c0_51 = arith.constant 0 : index
    %c0_52 = arith.constant 0 : index
    %44 = vector.load %arg2[%c6_50, %c0_51, %c0_52] : memref<7x16x16xf32, #tpu.memory_space<vmem>>, vector<1x16x16xf32>
    %45 = vector.shape_cast %44 : vector<1x16x16xf32> to vector<16x16xf32>
    %cst_53 = arith.constant dense<0.000000e+00> : vector<16x16xf32>
    %46 = tpu.matmul %43, %45, %cst_53 {dimension_numbers = #tpu.dot_dimension_numbers<[1], [0], [0], [1], [0, 0, 1, 1], [], []>, precision = #tpu.contract_precision<fp32>} : vector<16x16xf32>, vector<16x16xf32>, vector<16x16xf32> -> vector<16x16xf32>
    %47 = arith.addf %41, %46 : vector<16x16xf32>
    %48 = arith.negf %47 : vector<16x16xf32>
    %49 = math.exp %48 : vector<16x16xf32>
    %cst_54 = arith.constant 1.000000e+00 : f32
    %50 = vector.broadcast %cst_54 : f32 to vector<16x16xf32>
    %51 = arith.addf %50, %49 : vector<16x16xf32>
    %52 = arith.divf %50, %51 : vector<16x16xf32>
    %53 = vector.extract_strided_slice %0 {offsets = [0, 0, 0], sizes = [1, 16, 16], strides = [1, 1, 1]} : vector<2x16x16xf32> to vector<1x16x16xf32>
    %54 = vector.shape_cast %53 : vector<1x16x16xf32> to vector<16x16xf32>
    %55 = arith.mulf %54, %52 : vector<16x16xf32>
    %c0_55 = arith.constant 0 : index
    %c0_56 = arith.constant 0 : index
    %c0_57 = arith.constant 0 : index
    %56 = vector.load %arg3[%c0_55, %c0_56, %c0_57] : memref<2x16x16xf32, #tpu.memory_space<vmem>>, vector<1x16x16xf32>
    %57 = vector.shape_cast %56 : vector<1x16x16xf32> to vector<16x16xf32>
    %58 = vector.shape_cast %55 : vector<16x16xf32> to vector<1x16x16xf32>
    tpu.vector_store %arg3[%c0_55, %c0_56, %c0_57], %58 {strides = array<i32>} : memref<2x16x16xf32, #tpu.memory_space<vmem>>, vector<1x16x16xf32>,
    %cst_58 = arith.constant 0.000000e+00 : f32
    %59 = vector.broadcast %cst_58 : f32 to vector<16x16xf32>
    %c1_59 = arith.constant 1 : index
    %c0_60 = arith.constant 0 : index
    %c0_61 = arith.constant 0 : index
    %60 = vector.load %arg4[%c1_59, %c0_60, %c0_61] : memref<2x22x16xf32, #tpu.memory_space<vmem>>, vector<1x16x16xf32>
    %61 = vector.shape_cast %60 : vector<1x16x16xf32> to vector<16x16xf32>
    %c0_62 = arith.constant 0 : index
    %c0_63 = arith.constant 0 : index
    %c0_64 = arith.constant 0 : index
    %62 = vector.load %arg2[%c0_62, %c0_63, %c0_64] : memref<7x16x16xf32, #tpu.memory_space<vmem>>, vector<1x16x16xf32>
    %63 = vector.shape_cast %62 : vector<1x16x16xf32> to vector<16x16xf32>
    %cst_65 = arith.constant dense<0.000000e+00> : vector<16x16xf32>
    %64 = tpu.matmul %61, %63, %cst_65 {dimension_numbers = #tpu.dot_dimension_numbers<[1], [0], [0], [1], [0, 0, 1, 1], [], []>, precision = #tpu.contract_precision<fp32>} : vector<16x16xf32>, vector<16x16xf32>, vector<16x16xf32> -> vector<16x16xf32>
    %65 = arith.addf %59, %64 : vector<16x16xf32>
    %c1_66 = arith.constant 1 : index
    %c1_67 = arith.constant 1 : index
    %c0_68 = arith.constant 0 : index
    %66 = vector.load %arg4[%c1_66, %c1_67, %c0_68] : memref<2x22x16xf32, #tpu.memory_space<vmem>>, vector<1x16x16xf32>
    %67 = vector.shape_cast %66 : vector<1x16x16xf32> to vector<16x16xf32>
    %c1_69 = arith.constant 1 : index
    %c0_70 = arith.constant 0 : index
    %c0_71 = arith.constant 0 : index
    %68 = vector.load %arg2[%c1_69, %c0_70, %c0_71] : memref<7x16x16xf32, #tpu.memory_space<vmem>>, vector<1x16x16xf32>
    %69 = vector.shape_cast %68 : vector<1x16x16xf32> to vector<16x16xf32>
    %cst_72 = arith.constant dense<0.000000e+00> : vector<16x16xf32>
    %70 = tpu.matmul %67, %69, %cst_72 {dimension_numbers = #tpu.dot_dimension_numbers<[1], [0], [0], [1], [0, 0, 1, 1], [], []>, precision = #tpu.contract_precision<fp32>} : vector<16x16xf32>, vector<16x16xf32>, vector<16x16xf32> -> vector<16x16xf32>
    %71 = arith.addf %65, %70 : vector<16x16xf32>
    %c1_73 = arith.constant 1 : index
    %c2_74 = arith.constant 2 : index
    %c0_75 = arith.constant 0 : index
    %72 = vector.load %arg4[%c1_73, %c2_74, %c0_75] : memref<2x22x16xf32, #tpu.memory_space<vmem>>, vector<1x16x16xf32>
    %73 = vector.shape_cast %72 : vector<1x16x16xf32> to vector<16x16xf32>
    %c2_76 = arith.constant 2 : index
    %c0_77 = arith.constant 0 : index
    %c0_78 = arith.constant 0 : index
    %74 = vector.load %arg2[%c2_76, %c0_77, %c0_78] : memref<7x16x16xf32, #tpu.memory_space<vmem>>, vector<1x16x16xf32>
    %75 = vector.shape_cast %74 : vector<1x16x16xf32> to vector<16x16xf32>
    %cst_79 = arith.constant dense<0.000000e+00> : vector<16x16xf32>
    %76 = tpu.matmul %73, %75, %cst_79 {dimension_numbers = #tpu.dot_dimension_numbers<[1], [0], [0], [1], [0, 0, 1, 1], [], []>, precision = #tpu.contract_precision<fp32>} : vector<16x16xf32>, vector<16x16xf32>, vector<16x16xf32> -> vector<16x16xf32>
    %77 = arith.addf %71, %76 : vector<16x16xf32>
    %c1_80 = arith.constant 1 : index
    %c3_81 = arith.constant 3 : index
    %c0_82 = arith.constant 0 : index
    %78 = vector.load %arg4[%c1_80, %c3_81, %c0_82] : memref<2x22x16xf32, #tpu.memory_space<vmem>>, vector<1x16x16xf32>
    %79 = vector.shape_cast %78 : vector<1x16x16xf32> to vector<16x16xf32>
    %c3_83 = arith.constant 3 : index
    %c0_84 = arith.constant 0 : index
    %c0_85 = arith.constant 0 : index
    %80 = vector.load %arg2[%c3_83, %c0_84, %c0_85] : memref<7x16x16xf32, #tpu.memory_space<vmem>>, vector<1x16x16xf32>
    %81 = vector.shape_cast %80 : vector<1x16x16xf32> to vector<16x16xf32>
    %cst_86 = arith.constant dense<0.000000e+00> : vector<16x16xf32>
    %82 = tpu.matmul %79, %81, %cst_86 {dimension_numbers = #tpu.dot_dimension_numbers<[1], [0], [0], [1], [0, 0, 1, 1], [], []>, precision = #tpu.contract_precision<fp32>} : vector<16x16xf32>, vector<16x16xf32>, vector<16x16xf32> -> vector<16x16xf32>
    %83 = arith.addf %77, %82 : vector<16x16xf32>
    %c1_87 = arith.constant 1 : index
    %c4_88 = arith.constant 4 : index
    %c0_89 = arith.constant 0 : index
    %84 = vector.load %arg4[%c1_87, %c4_88, %c0_89] : memref<2x22x16xf32, #tpu.memory_space<vmem>>, vector<1x16x16xf32>
    %85 = vector.shape_cast %84 : vector<1x16x16xf32> to vector<16x16xf32>
    %c4_90 = arith.constant 4 : index
    %c0_91 = arith.constant 0 : index
    %c0_92 = arith.constant 0 : index
    %86 = vector.load %arg2[%c4_90, %c0_91, %c0_92] : memref<7x16x16xf32, #tpu.memory_space<vmem>>, vector<1x16x16xf32>
    %87 = vector.shape_cast %86 : vector<1x16x16xf32> to vector<16x16xf32>
    %cst_93 = arith.constant dense<0.000000e+00> : vector<16x16xf32>
    %88 = tpu.matmul %85, %87, %cst_93 {dimension_numbers = #tpu.dot_dimension_numbers<[1], [0], [0], [1], [0, 0, 1, 1], [], []>, precision = #tpu.contract_precision<fp32>} : vector<16x16xf32>, vector<16x16xf32>, vector<16x16xf32> -> vector<16x16xf32>
    %89 = arith.addf %83, %88 : vector<16x16xf32>
    %c1_94 = arith.constant 1 : index
    %c5_95 = arith.constant 5 : index
    %c0_96 = arith.constant 0 : index
    %90 = vector.load %arg4[%c1_94, %c5_95, %c0_96] : memref<2x22x16xf32, #tpu.memory_space<vmem>>, vector<1x16x16xf32>
    %91 = vector.shape_cast %90 : vector<1x16x16xf32> to vector<16x16xf32>
    %c5_97 = arith.constant 5 : index
    %c0_98 = arith.constant 0 : index
    %c0_99 = arith.constant 0 : index
    %92 = vector.load %arg2[%c5_97, %c0_98, %c0_99] : memref<7x16x16xf32, #tpu.memory_space<vmem>>, vector<1x16x16xf32>
    %93 = vector.shape_cast %92 : vector<1x16x16xf32> to vector<16x16xf32>
    %cst_100 = arith.constant dense<0.000000e+00> : vector<16x16xf32>
    %94 = tpu.matmul %91, %93, %cst_100 {dimension_numbers = #tpu.dot_dimension_numbers<[1], [0], [0], [1], [0, 0, 1, 1], [], []>, precision = #tpu.contract_precision<fp32>} : vector<16x16xf32>, vector<16x16xf32>, vector<16x16xf32> -> vector<16x16xf32>
    %95 = arith.addf %89, %94 : vector<16x16xf32>
    %c1_101 = arith.constant 1 : index
    %c6_102 = arith.constant 6 : index
    %c0_103 = arith.constant 0 : index
    %96 = vector.load %arg4[%c1_101, %c6_102, %c0_103] : memref<2x22x16xf32, #tpu.memory_space<vmem>>, vector<1x16x16xf32>
    %97 = vector.shape_cast %96 : vector<1x16x16xf32> to vector<16x16xf32>
    %c6_104 = arith.constant 6 : index
    %c0_105 = arith.constant 0 : index
    %c0_106 = arith.constant 0 : index
    %98 = vector.load %arg2[%c6_104, %c0_105, %c0_106] : memref<7x16x16xf32, #tpu.memory_space<vmem>>, vector<1x16x16xf32>
    %99 = vector.shape_cast %98 : vector<1x16x16xf32> to vector<16x16xf32>
    %cst_107 = arith.constant dense<0.000000e+00> : vector<16x16xf32>
    %100 = tpu.matmul %97, %99, %cst_107 {dimension_numbers = #tpu.dot_dimension_numbers<[1], [0], [0], [1], [0, 0, 1, 1], [], []>, precision = #tpu.contract_precision<fp32>} : vector<16x16xf32>, vector<16x16xf32>, vector<16x16xf32> -> vector<16x16xf32>
    %101 = arith.addf %95, %100 : vector<16x16xf32>
    %102 = arith.negf %101 : vector<16x16xf32>
    %103 = math.exp %102 : vector<16x16xf32>
    %cst_108 = arith.constant 1.000000e+00 : f32
    %104 = vector.broadcast %cst_108 : f32 to vector<16x16xf32>
    %105 = arith.addf %104, %103 : vector<16x16xf32>
    %106 = arith.divf %104, %105 : vector<16x16xf32>
    %107 = vector.extract_strided_slice %0 {offsets = [1, 0, 0], sizes = [1, 16, 16], strides = [1, 1, 1]} : vector<2x16x16xf32> to vector<1x16x16xf32>
    %108 = vector.shape_cast %107 : vector<1x16x16xf32> to vector<16x16xf32>
    %109 = arith.mulf %108, %106 : vector<16x16xf32>
    %c1_109 = arith.constant 1 : index
    %c0_110 = arith.constant 0 : index
    %c0_111 = arith.constant 0 : index
    %110 = vector.load %arg3[%c1_109, %c0_110, %c0_111] : memref<2x16x16xf32, #tpu.memory_space<vmem>>, vector<1x16x16xf32>
    %111 = vector.shape_cast %110 : vector<1x16x16xf32> to vector<16x16xf32>
    %112 = vector.shape_cast %109 : vector<16x16xf32> to vector<1x16x16xf32>
    tpu.vector_store %arg3[%c1_109, %c0_110, %c0_111], %112 {strides = array<i32>} : memref<2x16x16xf32, #tpu.memory_space<vmem>>, vector<1x16x16xf32>,
    return
  }
  func.func @transform_0(%arg0: i32) -> (i32, i32, i32) {
    %c0_i32 = arith.constant 0 : i32
    %c0_i32_0 = arith.constant 0 : i32
    %c0_i32_1 = arith.constant 0 : i32
    return %arg0, %c0_i32, %c0_i32_0 : i32, i32, i32
  }
  func.func @transform_1(%arg0: i32) -> (i32, i32, i32) {
    %c0_i32 = arith.constant 0 : i32
    %c0_i32_0 = arith.constant 0 : i32
    %c0_i32_1 = arith.constant 0 : i32
    %c0_i32_2 = arith.constant 0 : i32
    return %c0_i32, %c0_i32_0, %c0_i32_1 : i32, i32, i32
  }
  func.func @transform_2(%arg0: i32) -> (i32, i32, i32) {
    %c0_i32 = arith.constant 0 : i32
    %c0_i32_0 = arith.constant 0 : i32
    %c0_i32_1 = arith.constant 0 : i32
    return %arg0, %c0_i32, %c0_i32_0 : i32, i32, i32
  }
}

</mosaic_0001>

<llo_original>
// kernel: tpu_custom_call.1
$region0: #{tpu_custom_call.1}
  #allocation0 [shape = 'u32[]', space=smem, size = 0x4, offset = 0x4, fixed_abs, tag = 'smem constant byte address 0x4 - core index']
  #allocation1 [shape = 'u32[144,128]{1,0:T(1,128)}', space=vmem, size = 0x12000, scoped, tag = 'internal scratch']
  #allocation2 [shape = 'f32[2,22,16]{2,1,0:T(8,128)}', space=vmem, size = 0x6000, scoped, tag = 'scratch operand']
  %s0 = inlined_call_operand.hbm [shape: f32[2,16,16], index: 0, kind: input, shape index: {}]
  %s1 = inlined_call_operand.hbm [shape: f32[7,16,16], index: 1, kind: input, shape index: {}]
  %s2 = inlined_call_operand.hbm [shape: f32[2,16,16], index: 2, kind: output, shape index: {}]
  %s3 = sld [smem:[#allocation0]]
  $region26: #{tpu_custom_call.1} parent=0
    _
  %s5 = ssub.s32 1, %s3
  %s6 = scalar_select 0, %s5, %s3
  $region1: #{tpu_custom_call.1} parent=0
    #allocation3 [shape = 'u8[16384]{0}', space=vmem, size = 0x4000, scoped, tag = 'input window, operand 0, single buffered']
    #allocation4 [shape = 's32[1]{0}', space=sflag, size = 0x4, scoped, tag = 'scoped memory for tpu_custom_call.1']
    #allocation5 [shape = 's32[1]{0}', space=sflag, size = 0x4, scoped, tag = 'scoped memory for tpu_custom_call.1']
    #allocation6 [shape = 'u8[57344]{0}', space=vmem, size = 0xe000, scoped, tag = 'input window, operand 1, single buffered']
    #allocation7 [shape = 's32[1]{0}', space=sflag, size = 0x4, scoped, tag = 'scoped memory for tpu_custom_call.1']
    #allocation8 [shape = 'u8[16384]{0}', space=vmem, size = 0x4000, scoped, tag = 'output window, operand 0, single buffered']
    %7 = vsyncpa [#allocation4], 0
    %8 = vsyncpa [#allocation7], 0
    %9 = vsyncpa [#allocation5], 0
    // Predicated region
    $region2: #{tpu_custom_call.1} parent=1 // pred_check
      _
    $region3: #{tpu_custom_call.1} parent=1 // pred_check_branch
      %11 = sbr.rel (0) target = $region5
    $region4: #{tpu_custom_call.1} parent=1 // pred_region
      %s13 = ssub.s32 512, 512
      %14 = vsyncadd [#allocation4], %s13
      %s15 = sshll.u32 [#allocation3], 4
      %s16 = int_to_ptr.vmem [resolvable:$true] %s15
      %21 = dma.hbm_to_vmem [thread:$0]  %s0, 512, %s16, [#allocation4], 128, 128, 8
    $region5: #{tpu_custom_call.1} parent=1 // pred_fallthru
      _
    // Predicated region
    $region6: #{tpu_custom_call.1} parent=1 // pred_check
      _
    $region7: #{tpu_custom_call.1} parent=1 // pred_check_branch
      %23 = sbr.rel (0) target = $region9
    $region8: #{tpu_custom_call.1} parent=1 // pred_region
      %s25 = ssub.s32 1792, 1792
      %26 = vsyncadd [#allocation7], %s25
      %s27 = sshll.u32 [#allocation6], 4
      %s28 = int_to_ptr.vmem [resolvable:$true] %s27
      %33 = dma.hbm_to_vmem [thread:$0]  %s1, 1792, %s28, [#allocation7], 128, 128, 8
    $region9: #{tpu_custom_call.1} parent=1 // pred_fallthru
      _
    // Predicated region
    $region10: #{tpu_custom_call.1} parent=1 // pred_check
      _
    $region11: #{tpu_custom_call.1} parent=1 // pred_check_branch
      %35 = sbr.rel (0) target = $region13
    $region12: #{tpu_custom_call.1} parent=1 // pred_region
      %36 = dma.done [#allocation4], 512
    $region13: #{tpu_custom_call.1} parent=1 // pred_fallthru
      _
    // Predicated region
    $region14: #{tpu_custom_call.1} parent=1 // pred_check
      _
    $region15: #{tpu_custom_call.1} parent=1 // pred_check_branch
      %38 = sbr.rel (0) target = $region17
    $region16: #{tpu_custom_call.1} parent=1 // pred_region
      %39 = dma.done [#allocation7], 1792
    $region17: #{tpu_custom_call.1} parent=1 // pred_fallthru
      _
    %v40 = vld [vmem:[#allocation3] sm:$0xff]
    %v41 = vld [vmem:[#allocation3 + $0x8] sm:$0xff]
    %v42 = vld [vmem:[#allocation3 + $0x10] sm:$0xff]
    %v43 = vld [vmem:[#allocation3 + $0x18] sm:$0xff]
    %vm44 = vcmask 124928
    %45 = vst.msk [vmem:[#allocation2] sm:$0x7] %vm44, 0.0
    %46 = vst.msk [vmem:[#allocation2 + $0x18] sm:$0x7] %vm44, 0.0
    %47 = vst.msk [vmem:[#allocation2 + $0x13] sm:$0x7] %vm44, 0.0
    %48 = vst.msk [vmem:[#allocation2 + $0x2b] sm:$0x7] %vm44, 0.0
    %vm49 = vcmask 130048
    %50 = vst.msk [vmem:[#allocation2 + $0x3] sm:$0xff] %vm49, %v40
    %51 = vst.msk [vmem:[#allocation2 + $0xb] sm:$0xff] %vm49, %v41
    %52 = vst.msk [vmem:[#allocation2 + $0x1b] sm:$0xff] %vm49, %v42
    %53 = vst.msk [vmem:[#allocation2 + $0x23] sm:$0xff] %vm49, %v43
    %v54 = vld [vmem:[#allocation2] sm:$0xff]
    %v55 = vld [vmem:[#allocation2 + $0x8] sm:$0xff]
    %v56 = vld [vmem:[#allocation6] sm:$0xff]
    %v57 = vld [vmem:[#allocation6 + $0x8] sm:$0xff]
    %v58 = vld [vmem:[#allocation2 + $0x1] sm:$0xff]
    %v59 = vld [vmem:[#allocation2 + $0x9] sm:$0xff]
    %s60 = scalar_lea.vmem [#allocation6], 16
    %v61 = vld [vmem:[%s60] sm:$0xff]
    %v62 = vld [vmem:[%s60 + $0x8] sm:$0xff]
    %v64 = vsel %vm49, %v58, 0
    %v67 = vsel %vm49, %v59, 0
    %69 = vmatprep.subr.mxu0 0.0
    %v70 = vand.u32 %v61, 4294901760
    %71 = vmatpush1.msra.mxu0 %v70
    %72 = vmatprep.subr.mxu0 0.0
    %v73 = vand.u32 %v62, 4294901760
    %74 = vmatpush1.msra.mxu0 %v73
    %75 = vmatprep.subr.mxu0 0.0
    %76 = vmatpush1.msra.mxu0 0.0
    %77 = vmatprep.subr.mxu0 0.0
    %78 = vmatpush1.msra.mxu0 0.0
    %79 = vmatprep.subr.mxu0 0.0
    %80 = vmatpush1.msra.mxu0 0.0
    %81 = vmatprep.subr.mxu0 0.0
    %82 = vmatpush1.msra.mxu0 0.0
    %83 = vmatprep.subr.mxu0 0.0
    %84 = vmatpush1.msra.mxu0 0.0
    %85 = vmatprep.subr.mxu0 0.0
    %86 = vmatpush1.msra.mxu0 0.0
    %87 = vmatprep.subr.mxu0 0.0
    %88 = vmatpush1.msra.mxu0 0.0
    %89 = vmatprep.subr.mxu0 0.0
    %90 = vmatpush1.msra.mxu0 0.0
    %91 = vmatprep.subr.mxu0 0.0
    %92 = vmatpush1.msra.mxu0 0.0
    %93 = vmatprep.subr.mxu0 0.0
    %94 = vmatpush1.msra.mxu0 0.0
    %95 = vmatprep.subr.mxu0 0.0
    %96 = vmatpush1.msra.mxu0 0.0
    %97 = vmatprep.subr.mxu0 0.0
    %98 = vmatpush1.msra.mxu0 0.0
    %99 = vmatprep.subr.mxu0 0.0
    %100 = vmatpush1.msra.mxu0 0.0
    %101 = vmatprep.subr.mxu0 0.0
    %102 = vmatpush1.msra.mxu0 0.0
    %103 = vmatprep.subr.mxu0 0.0
    %104 = vmatpush1.msra.mxu0 0.0
    %105 = vmatprep.subr.mxu0 0.0
    %106 = vmatpush1.msra.mxu0 0.0
    %107 = vmatprep.subr.mxu0 0.0
    %108 = vmatpush1.msra.mxu0 0.0
    %109 = vmatprep.subr.mxu0 0.0
    %110 = vmatpush1.msra.mxu0 0.0
    %111 = vmatprep.subr.mxu0 0.0
    %112 = vmatpush1.msra.mxu0 0.0
    %113 = vmatprep.subr.mxu0 0.0
    %114 = vmatpush1.msra.mxu0 0.0
    %115 = vmatprep.subr.mxu0 0.0
    %116 = vmatpush1.msra.mxu0 0.0
    %117 = vmatprep.subr.mxu0 0.0
    %118 = vmatpush1.msra.mxu0 0.0
    %119 = vmatprep.subr.mxu0 0.0
    %120 = vmatpush1.msra.mxu0 0.0
    %121 = vmatprep.subr.mxu0 0.0
    %122 = vmatpush1.msra.mxu0 0.0
    %123 = vmatprep.subr.mxu0 0.0
    %124 = vmatpush1.msra.mxu0 0.0
    %125 = vmatprep.subr.mxu0 0.0
    %126 = vmatpush1.msra.mxu0 0.0
    %127 = vmatprep.subr.mxu0 0.0
    %128 = vmatpush1.msra.mxu0 0.0
    %129 = vmatprep.subr.mxu0 0.0
    %130 = vmatpush1.msra.mxu0 0.0
    %131 = vmatprep.subr.mxu0 0.0
    %132 = vmatpush1.msra.mxu0 0.0
    %133 = vmatprep.subr.mxu0 0.0
    %134 = vmatpush1.msra.mxu0 0.0
    %135 = vmatprep.mubr.f32.mxu0 0.0
    %v136 = vand.u32 %v64, 4294901760
    %v137 = vsub.f32 %v64, %v136
    %v138 = vand.u32 %v137, 4294901760
    %v139 = vsub.f32 %v137, %v138
    %v140 = vand.u32 %v139, 4294901760
    %141 = vmatmul.mubr.f32.gmra.mrb[0].mxu0 %v140
    %v142 = vpop.f32.mrb[0].mxu0
    %v143 = vadd.f32 0.0, %v142
    %v144 = vpop.f32.mrb[0].mxu0
    %145 = vmatprep.mubr.f32.mxu0 0.0
    %v146 = vand.u32 %v67, 4294901760
    %v147 = vsub.f32 %v67, %v146
    %v148 = vand.u32 %v147, 4294901760
    %v149 = vsub.f32 %v147, %v148
    %v150 = vand.u32 %v149, 4294901760
    %151 = vmatmul.mubr.f32.gmra.mrb[0].mxu0 %v150
    %v152 = vpop.f32.mrb[0].mxu0
    %v153 = vadd.f32 0.0, %v152
    %v154 = vpop.f32.mrb[0].mxu0
    %155 = vdwg.mxu0
    %156 = vmatprep.subr.mxu0 0.0
    %v157 = vand.u32 %v61, 4294901760
    %v158 = vsub.f32 %v61, %v157
    %v159 = vand.u32 %v158, 4294901760
    %v160 = vsub.f32 %v158, %v159
    %v161 = vand.u32 %v160, 4294901760
    %162 = vmatpush1.msra.mxu0 %v161
    %163 = vmatprep.subr.mxu0 0.0
    %v164 = vand.u32 %v62, 4294901760
    %v165 = vsub.f32 %v62, %v164
    %v166 = vand.u32 %v165, 4294901760
    %v167 = vsub.f32 %v165, %v166
    %v168 = vand.u32 %v167, 4294901760
    %169 = vmatpush1.msra.mxu0 %v168
    %170 = vmatprep.subr.mxu0 0.0
    %171 = vmatpush1.msra.mxu0 0.0
    %172 = vmatprep.subr.mxu0 0.0
    %173 = vmatpush1.msra.mxu0 0.0
    %174 = vmatprep.subr.mxu0 0.0
    %175 = vmatpush1.msra.mxu0 0.0
    %176 = vmatprep.subr.mxu0 0.0
    %177 = vmatpush1.msra.mxu0 0.0
    %178 = vmatprep.subr.mxu0 0.0
    %179 = vmatpush1.msra.mxu0 0.0
    %180 = vmatprep.subr.mxu0 0.0
    %181 = vmatpush1.msra.mxu0 0.0
    %182 = vmatprep.subr.mxu0 0.0
    %183 = vmatpush1.msra.mxu0 0.0
    %184 = vmatprep.subr.mxu0 0.0
    %185 = vmatpush1.msra.mxu0 0.0
    %186 = vmatprep.subr.mxu0 0.0
    %187 = vmatpush1.msra.mxu0 0.0
    %188 = vmatprep.subr.mxu0 0.0
    %189 = vmatpush1.msra.mxu0 0.0
    %190 = vmatprep.subr.mxu0 0.0
    %191 = vmatpush1.msra.mxu0 0.0
    %192 = vmatprep.subr.mxu0 0.0
    %193 = vmatpush1.msra.mxu0 0.0
    %194 = vmatprep.subr.mxu0 0.0
    %195 = vmatpush1.msra.mxu0 0.0
    %196 = vmatprep.subr.mxu0 0.0
    %197 = vmatpush1.msra.mxu0 0.0
    %198 = vmatprep.subr.mxu0 0.0
    %199 = vmatpush1.msra.mxu0 0.0
    %200 = vmatprep.subr.mxu0 0.0
    %201 = vmatpush1.msra.mxu0 0.0
    %202 = vmatprep.subr.mxu0 0.0
    %203 = vmatpush1.msra.mxu0 0.0
    %204 = vmatprep.subr.mxu0 0.0
    %205 = vmatpush1.msra.mxu0 0.0
    %206 = vmatprep.subr.mxu0 0.0
    %207 = vmatpush1.msra.mxu0 0.0
    %208 = vmatprep.subr.mxu0 0.0
    %209 = vmatpush1.msra.mxu0 0.0
    %210 = vmatprep.subr.mxu0 0.0
    %211 = vmatpush1.msra.mxu0 0.0
    %212 = vmatprep.subr.mxu0 0.0
    %213 = vmatpush1.msra.mxu0 0.0
    %214 = vmatprep.subr.mxu0 0.0
    %215 = vmatpush1.msra.mxu0 0.0
    %216 = vmatprep.subr.mxu0 0.0
    %217 = vmatpush1.msra.mxu0 0.0
    %218 = vmatprep.subr.mxu0 0.0
    %219 = vmatpush1.msra.mxu0 0.0
    %220 = vmatprep.subr.mxu0 0.0
    %221 = vmatpush1.msra.mxu0 0.0
    %222 = vmatprep.subr.mxu0 0.0
    %223 = vmatpush1.msra.mxu0 0.0
    %224 = vmatprep.subr.mxu0 0.0
    %225 = vmatpush1.msra.mxu0 0.0
    %226 = vmatprep.subr.mxu0 0.0
    %227 = vmatpush1.msra.mxu0 0.0
    %228 = vmatprep.subr.mxu0 0.0
    %229 = vmatpush1.msra.mxu0 0.0
    %230 = vmatprep.mubr.f32.mxu0 0.0
    %v231 = vand.u32 %v64, 4294901760
    %232 = vmatmul.mubr.f32.gmra.mrb[0].mxu0 %v231
    %v233 = vpop.f32.mrb[0].mxu0
    %v234 = vadd.f32 %v143, %v233
    %v235 = vpop.f32.mrb[0].mxu0
    %236 = vmatprep.mubr.f32.mxu0 0.0
    %v237 = vand.u32 %v67, 4294901760
    %238 = vmatmul.mubr.f32.gmra.mrb[0].mxu0 %v237
    %v239 = vpop.f32.mrb[0].mxu0
    %v240 = vadd.f32 %v153, %v239
    %v241 = vpop.f32.mrb[0].mxu0
    %242 = vdwg.mxu0
    %243 = vmatprep.subr.mxu0 0.0
    %v244 = vand.u32 %v61, 4294901760
    %v245 = vsub.f32 %v61, %v244
    %246 = vmatpush1.msra.mxu0 %v245
    %247 = vmatprep.subr.mxu0 0.0
    %v248 = vand.u32 %v62, 4294901760
    %v249 = vsub.f32 %v62, %v248
    %250 = vmatpush1.msra.mxu0 %v249
    %251 = vmatprep.subr.mxu0 0.0
    %252 = vmatpush1.msra.mxu0 0.0
    %253 = vmatprep.subr.mxu0 0.0
    %254 = vmatpush1.msra.mxu0 0.0
    %255 = vmatprep.subr.mxu0 0.0
    %256 = vmatpush1.msra.mxu0 0.0
    %257 = vmatprep.subr.mxu0 0.0
    %258 = vmatpush1.msra.mxu0 0.0
    %259 = vmatprep.subr.mxu0 0.0
    %260 = vmatpush1.msra.mxu0 0.0
    %261 = vmatprep.subr.mxu0 0.0
    %262 = vmatpush1.msra.mxu0 0.0
    %263 = vmatprep.subr.mxu0 0.0
    %264 = vmatpush1.msra.mxu0 0.0
    %265 = vmatprep.subr.mxu0 0.0
    %266 = vmatpush1.msra.mxu0 0.0
    %267 = vmatprep.subr.mxu0 0.0
    %268 = vmatpush1.msra.mxu0 0.0
    %269 = vmatprep.subr.mxu0 0.0
    %270 = vmatpush1.msra.mxu0 0.0
    %271 = vmatprep.subr.mxu0 0.0
    %272 = vmatpush1.msra.mxu0 0.0
    %273 = vmatprep.subr.mxu0 0.0
    %274 = vmatpush1.msra.mxu0 0.0
    %275 = vmatprep.subr.mxu0 0.0
    %276 = vmatpush1.msra.mxu0 0.0
    %277 = vmatprep.subr.mxu0 0.0
    %278 = vmatpush1.msra.mxu0 0.0
    %279 = vmatprep.subr.mxu0 0.0
    %280 = vmatpush1.msra.mxu0 0.0
    %281 = vmatprep.subr.mxu0 0.0
    %282 = vmatpush1.msra.mxu0 0.0
    %283 = vmatprep.subr.mxu0 0.0
    %284 = vmatpush1.msra.mxu0 0.0
    %285 = vmatprep.subr.mxu0 0.0
    %286 = vmatpush1.msra.mxu0 0.0
    %287 = vmatprep.subr.mxu0 0.0
    %288 = vmatpush1.msra.mxu0 0.0
    %289 = vmatprep.subr.mxu0 0.0
    %290 = vmatpush1.msra.mxu0 0.0
    %291 = vmatprep.subr.mxu0 0.0
    %292 = vmatpush1.msra.mxu0 0.0
    %293 = vmatprep.subr.mxu0 0.0
    %294 = vmatpush1.msra.mxu0 0.0
    %295 = vmatprep.subr.mxu0 0.0
    %296 = vmatpush1.msra.mxu0 0.0
    %297 = vmatprep.subr.mxu0 0.0
    %298 = vmatpush1.msra.mxu0 0.0
    %299 = vmatprep.subr.mxu0 0.0
    %300 = vmatpush1.msra.mxu0 0.0
    %301 = vmatprep.subr.mxu0 0.0
    %302 = vmatpush1.msra.mxu0 0.0
    %303 = vmatprep.subr.mxu0 0.0
    %304 = vmatpush1.msra.mxu0 0.0
    %305 = vmatprep.subr.mxu0 0.0
    %306 = vmatpush1.msra.mxu0 0.0
    %307 = vmatprep.subr.mxu0 0.0
    %308 = vmatpush1.msra.mxu0 0.0
    %309 = vmatprep.subr.mxu0 0.0
    %310 = vmatpush1.msra.mxu0 0.0
    %311 = vmatprep.mubr.f32.mxu0 0.0
    %v312 = vand.u32 %v64, 4294901760
    %v313 = vsub.f32 %v64, %v312
    %314 = vmatmul.mubr.f32.gmra.mrb[0].mxu0 %v313
    %v315 = vpop.f32.mrb[0].mxu0
    %v316 = vadd.f32 %v234, %v315
    %v317 = vpop.f32.mrb[0].mxu0
    %318 = vmatprep.mubr.f32.mxu0 0.0
    %v319 = vand.u32 %v67, 4294901760
    %v320 = vsub.f32 %v67, %v319
    %321 = vmatmul.mubr.f32.gmra.mrb[0].mxu0 %v320
    %v322 = vpop.f32.mrb[0].mxu0
    %v323 = vadd.f32 %v240, %v322
    %v324 = vpop.f32.mrb[0].mxu0
    %325 = vdwg.mxu0
    %326 = vmatprep.subr.mxu0 0.0
    %v327 = vand.u32 %v61, 4294901760
    %328 = vmatpush1.msra.mxu0 %v327
    %329 = vmatprep.subr.mxu0 0.0
    %v330 = vand.u32 %v62, 4294901760
    %331 = vmatpush1.msra.mxu0 %v330
    %332 = vmatprep.subr.mxu0 0.0
    %333 = vmatpush1.msra.mxu0 0.0
    %334 = vmatprep.subr.mxu0 0.0
    %335 = vmatpush1.msra.mxu0 0.0
    %336 = vmatprep.subr.mxu0 0.0
    %337 = vmatpush1.msra.mxu0 0.0
    %338 = vmatprep.subr.mxu0 0.0
    %339 = vmatpush1.msra.mxu0 0.0
    %340 = vmatprep.subr.mxu0 0.0
    %341 = vmatpush1.msra.mxu0 0.0
    %342 = vmatprep.subr.mxu0 0.0
    %343 = vmatpush1.msra.mxu0 0.0
    %344 = vmatprep.subr.mxu0 0.0
    %345 = vmatpush1.msra.mxu0 0.0
    %346 = vmatprep.subr.mxu0 0.0
    %347 = vmatpush1.msra.mxu0 0.0
    %348 = vmatprep.subr.mxu0 0.0
    %349 = vmatpush1.msra.mxu0 0.0
    %350 = vmatprep.subr.mxu0 0.0
    %351 = vmatpush1.msra.mxu0 0.0
    %352 = vmatprep.subr.mxu0 0.0
    %353 = vmatpush1.msra.mxu0 0.0
    %354 = vmatprep.subr.mxu0 0.0
    %355 = vmatpush1.msra.mxu0 0.0
    %356 = vmatprep.subr.mxu0 0.0
    %357 = vmatpush1.msra.mxu0 0.0
    %358 = vmatprep.subr.mxu0 0.0
    %359 = vmatpush1.msra.mxu0 0.0
    %360 = vmatprep.subr.mxu0 0.0
    %361 = vmatpush1.msra.mxu0 0.0
    %362 = vmatprep.subr.mxu0 0.0
    %363 = vmatpush1.msra.mxu0 0.0
    %364 = vmatprep.subr.mxu0 0.0
    %365 = vmatpush1.msra.mxu0 0.0
    %366 = vmatprep.subr.mxu0 0.0
    %367 = vmatpush1.msra.mxu0 0.0
    %368 = vmatprep.subr.mxu0 0.0
    %369 = vmatpush1.msra.mxu0 0.0
    %370 = vmatprep.subr.mxu0 0.0
    %371 = vmatpush1.msra.mxu0 0.0
    %372 = vmatprep.subr.mxu0 0.0
    %373 = vmatpush1.msra.mxu0 0.0
    %374 = vmatprep.subr.mxu0 0.0
    %375 = vmatpush1.msra.mxu0 0.0
    %376 = vmatprep.subr.mxu0 0.0
    %377 = vmatpush1.msra.mxu0 0.0
    %378 = vmatprep.subr.mxu0 0.0
    %379 = vmatpush1.msra.mxu0 0.0
    %380 = vmatprep.subr.mxu0 0.0
    %381 = vmatpush1.msra.mxu0 0.0
    %382 = vmatprep.subr.mxu0 0.0
    %383 = vmatpush1.msra.mxu0 0.0
    %384 = vmatprep.subr.mxu0 0.0
    %385 = vmatpush1.msra.mxu0 0.0
    %386 = vmatprep.subr.mxu0 0.0
    %387 = vmatpush1.msra.mxu0 0.0
    %388 = vmatprep.subr.mxu0 0.0
    %389 = vmatpush1.msra.mxu0 0.0
    %390 = vmatprep.subr.mxu0 0.0
    %391 = vmatpush1.msra.mxu0 0.0
    %392 = vmatprep.mubr.f32.mxu0 0.0
    %v393 = vand.u32 %v64, 4294901760
    %v394 = vsub.f32 %v64, %v393
    %v395 = vand.u32 %v394, 4294901760
    %396 = vmatmul.mubr.f32.gmra.mrb[0].mxu0 %v395
    %v397 = vpop.f32.mrb[0].mxu0
    %v398 = vadd.f32 %v316, %v397
    %v399 = vpop.f32.mrb[0].mxu0
    %400 = vmatprep.mubr.f32.mxu0 0.0
    %v401 = vand.u32 %v67, 4294901760
    %v402 = vsub.f32 %v67, %v401
    %v403 = vand.u32 %v402, 4294901760
    %404 = vmatmul.mubr.f32.gmra.mrb[0].mxu0 %v403
    %v405 = vpop.f32.mrb[0].mxu0
    %v406 = vadd.f32 %v323, %v405
    %v407 = vpop.f32.mrb[0].mxu0
    %408 = vdwg.mxu0
    %409 = vmatprep.subr.mxu0 0.0
    %v410 = vand.u32 %v61, 4294901760
    %v411 = vsub.f32 %v61, %v410
    %v412 = vand.u32 %v411, 4294901760
    %413 = vmatpush1.msra.mxu0 %v412
    %414 = vmatprep.subr.mxu0 0.0
    %v415 = vand.u32 %v62, 4294901760
    %v416 = vsub.f32 %v62, %v415
    %v417 = vand.u32 %v416, 4294901760
    %418 = vmatpush1.msra.mxu0 %v417
    %419 = vmatprep.subr.mxu0 0.0
    %420 = vmatpush1.msra.mxu0 0.0
    %421 = vmatprep.subr.mxu0 0.0
    %422 = vmatpush1.msra.mxu0 0.0
    %423 = vmatprep.subr.mxu0 0.0
    %424 = vmatpush1.msra.mxu0 0.0
    %425 = vmatprep.subr.mxu0 0.0
    %426 = vmatpush1.msra.mxu0 0.0
    %427 = vmatprep.subr.mxu0 0.0
    %428 = vmatpush1.msra.mxu0 0.0
    %429 = vmatprep.subr.mxu0 0.0
    %430 = vmatpush1.msra.mxu0 0.0
    %431 = vmatprep.subr.mxu0 0.0
    %432 = vmatpush1.msra.mxu0 0.0
    %433 = vmatprep.subr.mxu0 0.0
    %434 = vmatpush1.msra.mxu0 0.0
    %435 = vmatprep.subr.mxu0 0.0
    %436 = vmatpush1.msra.mxu0 0.0
    %437 = vmatprep.subr.mxu0 0.0
    %438 = vmatpush1.msra.mxu0 0.0
    %439 = vmatprep.subr.mxu0 0.0
    %440 = vmatpush1.msra.mxu0 0.0
    %441 = vmatprep.subr.mxu0 0.0
    %442 = vmatpush1.msra.mxu0 0.0
    %443 = vmatprep.subr.mxu0 0.0
    %444 = vmatpush1.msra.mxu0 0.0
    %445 = vmatprep.subr.mxu0 0.0
    %446 = vmatpush1.msra.mxu0 0.0
    %447 = vmatprep.subr.mxu0 0.0
    %448 = vmatpush1.msra.mxu0 0.0
    %449 = vmatprep.subr.mxu0 0.0
    %450 = vmatpush1.msra.mxu0 0.0
    %451 = vmatprep.subr.mxu0 0.0
    %452 = vmatpush1.msra.mxu0 0.0
    %453 = vmatprep.subr.mxu0 0.0
    %454 = vmatpush1.msra.mxu0 0.0
    %455 = vmatprep.subr.mxu0 0.0
    %456 = vmatpush1.msra.mxu0 0.0
    %457 = vmatprep.subr.mxu0 0.0
    %458 = vmatpush1.msra.mxu0 0.0
    %459 = vmatprep.subr.mxu0 0.0
    %460 = vmatpush1.msra.mxu0 0.0
    %461 = vmatprep.subr.mxu0 0.0
    %462 = vmatpush1.msra.mxu0 0.0
    %463 = vmatprep.subr.mxu0 0.0
    %464 = vmatpush1.msra.mxu0 0.0
    %465 = vmatprep.subr.mxu0 0.0
    %466 = vmatpush1.msra.mxu0 0.0
    %467 = vmatprep.subr.mxu0 0.0
    %468 = vmatpush1.msra.mxu0 0.0
    %469 = vmatprep.subr.mxu0 0.0
    %470 = vmatpush1.msra.mxu0 0.0
    %471 = vmatprep.subr.mxu0 0.0
    %472 = vmatpush1.msra.mxu0 0.0
    %473 = vmatprep.subr.mxu0 0.0
    %474 = vmatpush1.msra.mxu0 0.0
    %475 = vmatprep.subr.mxu0 0.0
    %476 = vmatpush1.msra.mxu0 0.0
    %477 = vmatprep.subr.mxu0 0.0
    %478 = vmatpush1.msra.mxu0 0.0
    %479 = vmatprep.mubr.f32.mxu0 0.0
    %v480 = vand.u32 %v64, 4294901760
    %481 = vmatmul.mubr.f32.gmra.mrb[0].mxu0 %v480
    %v482 = vpop.f32.mrb[0].mxu0
    %v483 = vadd.f32 %v398, %v482
    %v484 = vpop.f32.mrb[0].mxu0
    %485 = vmatprep.mubr.f32.mxu0 0.0
    %v486 = vand.u32 %v67, 4294901760
    %487 = vmatmul.mubr.f32.gmra.mrb[0].mxu0 %v486
    %v488 = vpop.f32.mrb[0].mxu0
    %v489 = vadd.f32 %v406, %v488
    %v490 = vpop.f32.mrb[0].mxu0
    %491 = vdwg.mxu0
    %492 = vmatprep.subr.mxu0 0.0
    %v493 = vand.u32 %v61, 4294901760
    %494 = vmatpush1.msra.mxu0 %v493
    %495 = vmatprep.subr.mxu0 0.0
    %v496 = vand.u32 %v62, 4294901760
    %497 = vmatpush1.msra.mxu0 %v496
    %498 = vmatprep.subr.mxu0 0.0
    %499 = vmatpush1.msra.mxu0 0.0
    %500 = vmatprep.subr.mxu0 0.0
    %501 = vmatpush1.msra.mxu0 0.0
    %502 = vmatprep.subr.mxu0 0.0
    %503 = vmatpush1.msra.mxu0 0.0
    %504 = vmatprep.subr.mxu0 0.0
    %505 = vmatpush1.msra.mxu0 0.0
    %506 = vmatprep.subr.mxu0 0.0
    %507 = vmatpush1.msra.mxu0 0.0
    %508 = vmatprep.subr.mxu0 0.0
    %509 = vmatpush1.msra.mxu0 0.0
    %510 = vmatprep.subr.mxu0 0.0
    %511 = vmatpush1.msra.mxu0 0.0
    %512 = vmatprep.subr.mxu0 0.0
    %513 = vmatpush1.msra.mxu0 0.0
    %514 = vmatprep.subr.mxu0 0.0
    %515 = vmatpush1.msra.mxu0 0.0
    %516 = vmatprep.subr.mxu0 0.0
    %517 = vmatpush1.msra.mxu0 0.0
    %518 = vmatprep.subr.mxu0 0.0
    %519 = vmatpush1.msra.mxu0 0.0
    %520 = vmatprep.subr.mxu0 0.0
    %521 = vmatpush1.msra.mxu0 0.0
    %522 = vmatprep.subr.mxu0 0.0
    %523 = vmatpush1.msra.mxu0 0.0
    %524 = vmatprep.subr.mxu0 0.0
    %525 = vmatpush1.msra.mxu0 0.0
    %526 = vmatprep.subr.mxu0 0.0
    %527 = vmatpush1.msra.mxu0 0.0
    %528 = vmatprep.subr.mxu0 0.0
    %529 = vmatpush1.msra.mxu0 0.0
    %530 = vmatprep.subr.mxu0 0.0
    %531 = vmatpush1.msra.mxu0 0.0
    %532 = vmatprep.subr.mxu0 0.0
    %533 = vmatpush1.msra.mxu0 0.0
    %534 = vmatprep.subr.mxu0 0.0
    %535 = vmatpush1.msra.mxu0 0.0
    %536 = vmatprep.subr.mxu0 0.0
    %537 = vmatpush1.msra.mxu0 0.0
    %538 = vmatprep.subr.mxu0 0.0
    %539 = vmatpush1.msra.mxu0 0.0
    %540 = vmatprep.subr.mxu0 0.0
    %541 = vmatpush1.msra.mxu0 0.0
    %542 = vmatprep.subr.mxu0 0.0
    %543 = vmatpush1.msra.mxu0 0.0
    %544 = vmatprep.subr.mxu0 0.0
    %545 = vmatpush1.msra.mxu0 0.0
    %546 = vmatprep.subr.mxu0 0.0
    %547 = vmatpush1.msra.mxu0 0.0
    %548 = vmatprep.subr.mxu0 0.0
    %549 = vmatpush1.msra.mxu0 0.0
    %550 = vmatprep.subr.mxu0 0.0
    %551 = vmatpush1.msra.mxu0 0.0
    %552 = vmatprep.subr.mxu0 0.0
    %553 = vmatpush1.msra.mxu0 0.0
    %554 = vmatprep.subr.mxu0 0.0
    %555 = vmatpush1.msra.mxu0 0.0
    %556 = vmatprep.subr.mxu0 0.0
    %557 = vmatpush1.msra.mxu0 0.0
    %558 = vmatprep.mubr.f32.mxu0 0.0
    %v559 = vand.u32 %v64, 4294901760
    %560 = vmatmul.mubr.f32.gmra.mrb[0].mxu0 %v559
    %v561 = vpop.f32.mrb[0].mxu0
    %v562 = vadd.f32 %v483, %v561
    %v563 = vpop.f32.mrb[0].mxu0
    %564 = vmatprep.mubr.f32.mxu0 0.0
    %v565 = vand.u32 %v67, 4294901760
    %566 = vmatmul.mubr.f32.gmra.mrb[0].mxu0 %v565
    %v567 = vpop.f32.mrb[0].mxu0
    %v568 = vadd.f32 %v489, %v567
    %v569 = vpop.f32.mrb[0].mxu0
    %570 = vdwg.mxu0
    %v572 = vsel %vm49, %v54, 0
    %v575 = vsel %vm49, %v55, 0
    %577 = vmatprep.subr.mxu0 0.0
    %v578 = vand.u32 %v56, 4294901760
    %579 = vmatpush1.msra.mxu0 %v578
    %580 = vmatprep.subr.mxu0 0.0
    %v581 = vand.u32 %v57, 4294901760
    %582 = vmatpush1.msra.mxu0 %v581
    %583 = vmatprep.subr.mxu0 0.0
    %584 = vmatpush1.msra.mxu0 0.0
    %585 = vmatprep.subr.mxu0 0.0
    %586 = vmatpush1.msra.mxu0 0.0
    %587 = vmatprep.subr.mxu0 0.0
    %588 = vmatpush1.msra.mxu0 0.0
    %589 = vmatprep.subr.mxu0 0.0
    %590 = vmatpush1.msra.mxu0 0.0
    %591 = vmatprep.subr.mxu0 0.0
    %592 = vmatpush1.msra.mxu0 0.0
    %593 = vmatprep.subr.mxu0 0.0
    %594 = vmatpush1.msra.mxu0 0.0
    %595 = vmatprep.subr.mxu0 0.0
    %596 = vmatpush1.msra.mxu0 0.0
    %597 = vmatprep.subr.mxu0 0.0
    %598 = vmatpush1.msra.mxu0 0.0
    %599 = vmatprep.subr.mxu0 0.0
    %600 = vmatpush1.msra.mxu0 0.0
    %601 = vmatprep.subr.mxu0 0.0
    %602 = vmatpush1.msra.mxu0 0.0
    %603 = vmatprep.subr.mxu0 0.0
    %604 = vmatpush1.msra.mxu0 0.0
    %605 = vmatprep.subr.mxu0 0.0
    %606 = vmatpush1.msra.mxu0 0.0
    %607 = vmatprep.subr.mxu0 0.0
    %608 = vmatpush1.msra.mxu0 0.0
    %609 = vmatprep.subr.mxu0 0.0
    %610 = vmatpush1.msra.mxu0 0.0
    %611 = vmatprep.subr.mxu0 0.0
    %612 = vmatpush1.msra.mxu0 0.0
    %613 = vmatprep.subr.mxu0 0.0
    %614 = vmatpush1.msra.mxu0 0.0
    %615 = vmatprep.subr.mxu0 0.0
    %616 = vmatpush1.msra.mxu0 0.0
    %617 = vmatprep.subr.mxu0 0.0
    %618 = vmatpush1.msra.mxu0 0.0
    %619 = vmatprep.subr.mxu0 0.0
    %620 = vmatpush1.msra.mxu0 0.0
    %621 = vmatprep.subr.mxu0 0.0
    %622 = vmatpush1.msra.mxu0 0.0
    %623 = vmatprep.subr.mxu0 0.0
    %624 = vmatpush1.msra.mxu0 0.0
    %625 = vmatprep.subr.mxu0 0.0
    %626 = vmatpush1.msra.mxu0 0.0
    %627 = vmatprep.subr.mxu0 0.0
    %628 = vmatpush1.msra.mxu0 0.0
    %629 = vmatprep.subr.mxu0 0.0
    %630 = vmatpush1.msra.mxu0 0.0
    %631 = vmatprep.subr.mxu0 0.0
    %632 = vmatpush1.msra.mxu0 0.0
    %633 = vmatprep.subr.mxu0 0.0
    %634 = vmatpush1.msra.mxu0 0.0
    %635 = vmatprep.subr.mxu0 0.0
    %636 = vmatpush1.msra.mxu0 0.0
    %637 = vmatprep.subr.mxu0 0.0
    %638 = vmatpush1.msra.mxu0 0.0
    %639 = vmatprep.subr.mxu0 0.0
    %640 = vmatpush1.msra.mxu0 0.0
    %641 = vmatprep.subr.mxu0 0.0
    %642 = vmatpush1.msra.mxu0 0.0
    %643 = vmatprep.mubr.f32.mxu0 0.0
    %v644 = vand.u32 %v572, 4294901760
    %v645 = vsub.f32 %v572, %v644
    %v646 = vand.u32 %v645, 4294901760
    %v647 = vsub.f32 %v645, %v646
    %v648 = vand.u32 %v647, 4294901760
    %649 = vmatmul.mubr.f32.gmra.mrb[0].mxu0 %v648
    %v650 = vpop.f32.mrb[0].mxu0
    %v651 = vadd.f32 %v562, %v650
    %v652 = vpop.f32.mrb[0].mxu0
    %653 = vmatprep.mubr.f32.mxu0 0.0
    %v654 = vand.u32 %v575, 4294901760
    %v655 = vsub.f32 %v575, %v654
    %v656 = vand.u32 %v655, 4294901760
    %v657 = vsub.f32 %v655, %v656
    %v658 = vand.u32 %v657, 4294901760
    %659 = vmatmul.mubr.f32.gmra.mrb[0].mxu0 %v658
    %v660 = vpop.f32.mrb[0].mxu0
    %v661 = vadd.f32 %v568, %v660
    %v662 = vpop.f32.mrb[0].mxu0
    %663 = vdwg.mxu0
    %664 = vmatprep.subr.mxu0 0.0
    %v665 = vand.u32 %v56, 4294901760
    %v666 = vsub.f32 %v56, %v665
    %v667 = vand.u32 %v666, 4294901760
    %v668 = vsub.f32 %v666, %v667
    %v669 = vand.u32 %v668, 4294901760
    %670 = vmatpush1.msra.mxu0 %v669
    %671 = vmatprep.subr.mxu0 0.0
    %v672 = vand.u32 %v57, 4294901760
    %v673 = vsub.f32 %v57, %v672
    %v674 = vand.u32 %v673, 4294901760
    %v675 = vsub.f32 %v673, %v674
    %v676 = vand.u32 %v675, 4294901760
    %677 = vmatpush1.msra.mxu0 %v676
    %678 = vmatprep.subr.mxu0 0.0
    %679 = vmatpush1.msra.mxu0 0.0
    %680 = vmatprep.subr.mxu0 0.0
    %681 = vmatpush1.msra.mxu0 0.0
    %682 = vmatprep.subr.mxu0 0.0
    %683 = vmatpush1.msra.mxu0 0.0
    %684 = vmatprep.subr.mxu0 0.0
    %685 = vmatpush1.msra.mxu0 0.0
    %686 = vmatprep.subr.mxu0 0.0
    %687 = vmatpush1.msra.mxu0 0.0
    %688 = vmatprep.subr.mxu0 0.0
    %689 = vmatpush1.msra.mxu0 0.0
    %690 = vmatprep.subr.mxu0 0.0
    %691 = vmatpush1.msra.mxu0 0.0
    %692 = vmatprep.subr.mxu0 0.0
    %693 = vmatpush1.msra.mxu0 0.0
    %694 = vmatprep.subr.mxu0 0.0
    %695 = vmatpush1.msra.mxu0 0.0
    %696 = vmatprep.subr.mxu0 0.0
    %697 = vmatpush1.msra.mxu0 0.0
    %698 = vmatprep.subr.mxu0 0.0
    %699 = vmatpush1.msra.mxu0 0.0
    %700 = vmatprep.subr.mxu0 0.0
    %701 = vmatpush1.msra.mxu0 0.0
    %702 = vmatprep.subr.mxu0 0.0
    %703 = vmatpush1.msra.mxu0 0.0
    %704 = vmatprep.subr.mxu0 0.0
    %705 = vmatpush1.msra.mxu0 0.0
    %706 = vmatprep.subr.mxu0 0.0
    %707 = vmatpush1.msra.mxu0 0.0
    %708 = vmatprep.subr.mxu0 0.0
    %709 = vmatpush1.msra.mxu0 0.0
    %710 = vmatprep.subr.mxu0 0.0
    %711 = vmatpush1.msra.mxu0 0.0
    %712 = vmatprep.subr.mxu0 0.0
    %713 = vmatpush1.msra.mxu0 0.0
    %714 = vmatprep.subr.mxu0 0.0
    %715 = vmatpush1.msra.mxu0 0.0
    %716 = vmatprep.subr.mxu0 0.0
    %717 = vmatpush1.msra.mxu0 0.0
    %718 = vmatprep.subr.mxu0 0.0
    %719 = vmatpush1.msra.mxu0 0.0
    %720 = vmatprep.subr.mxu0 0.0
    %721 = vmatpush1.msra.mxu0 0.0
    %722 = vmatprep.subr.mxu0 0.0
    %723 = vmatpush1.msra.mxu0 0.0
    %724 = vmatprep.subr.mxu0 0.0
    %725 = vmatpush1.msra.mxu0 0.0
    %726 = vmatprep.subr.mxu0 0.0
    %727 = vmatpush1.msra.mxu0 0.0
    %728 = vmatprep.subr.mxu0 0.0
    %729 = vmatpush1.msra.mxu0 0.0
    %730 = vmatprep.subr.mxu0 0.0
    %731 = vmatpush1.msra.mxu0 0.0
    %732 = vmatprep.subr.mxu0 0.0
    %733 = vmatpush1.msra.mxu0 0.0
    %734 = vmatprep.subr.mxu0 0.0
    %735 = vmatpush1.msra.mxu0 0.0
    %736 = vmatprep.subr.mxu0 0.0
    %737 = vmatpush1.msra.mxu0 0.0
    %738 = vmatprep.mubr.f32.mxu0 0.0
    %v739 = vand.u32 %v572, 4294901760
    %740 = vmatmul.mubr.f32.gmra.mrb[0].mxu0 %v739
    %v741 = vpop.f32.mrb[0].mxu0
    %v742 = vadd.f32 %v651, %v741
    %v743 = vpop.f32.mrb[0].mxu0
    %744 = vmatprep.mubr.f32.mxu0 0.0
    %v745 = vand.u32 %v575, 4294901760
    %746 = vmatmul.mubr.f32.gmra.mrb[0].mxu0 %v745
    %v747 = vpop.f32.mrb[0].mxu0
    %v748 = vadd.f32 %v661, %v747
    %v749 = vpop.f32.mrb[0].mxu0
    %750 = vdwg.mxu0
    %751 = vmatprep.subr.mxu0 0.0
    %v752 = vand.u32 %v56, 4294901760
    %v753 = vsub.f32 %v56, %v752
    %754 = vmatpush1.msra.mxu0 %v753
    %755 = vmatprep.subr.mxu0 0.0
    %v756 = vand.u32 %v57, 4294901760
    %v757 = vsub.f32 %v57, %v756
    %758 = vmatpush1.msra.mxu0 %v757
    %759 = vmatprep.subr.mxu0 0.0
    %760 = vmatpush1.msra.mxu0 0.0
    %761 = vmatprep.subr.mxu0 0.0
    %762 = vmatpush1.msra.mxu0 0.0
    %763 = vmatprep.subr.mxu0 0.0
    %764 = vmatpush1.msra.mxu0 0.0
    %765 = vmatprep.subr.mxu0 0.0
    %766 = vmatpush1.msra.mxu0 0.0
    %767 = vmatprep.subr.mxu0 0.0
    %768 = vmatpush1.msra.mxu0 0.0
    %769 = vmatprep.subr.mxu0 0.0
    %770 = vmatpush1.msra.mxu0 0.0
    %771 = vmatprep.subr.mxu0 0.0
    %772 = vmatpush1.msra.mxu0 0.0
    %773 = vmatprep.subr.mxu0 0.0
    %774 = vmatpush1.msra.mxu0 0.0
    %775 = vmatprep.subr.mxu0 0.0
    %776 = vmatpush1.msra.mxu0 0.0
    %777 = vmatprep.subr.mxu0 0.0
    %778 = vmatpush1.msra.mxu0 0.0
    %779 = vmatprep.subr.mxu0 0.0
    %780 = vmatpush1.msra.mxu0 0.0
    %781 = vmatprep.subr.mxu0 0.0
    %782 = vmatpush1.msra.mxu0 0.0
    %783 = vmatprep.subr.mxu0 0.0
    %784 = vmatpush1.msra.mxu0 0.0
    %785 = vmatprep.subr.mxu0 0.0
    %786 = vmatpush1.msra.mxu0 0.0
    %787 = vmatprep.subr.mxu0 0.0
    %788 = vmatpush1.msra.mxu0 0.0
    %789 = vmatprep.subr.mxu0 0.0
    %790 = vmatpush1.msra.mxu0 0.0
    %791 = vmatprep.subr.mxu0 0.0
    %792 = vmatpush1.msra.mxu0 0.0
    %793 = vmatprep.subr.mxu0 0.0
    %794 = vmatpush1.msra.mxu0 0.0
    %795 = vmatprep.subr.mxu0 0.0
    %796 = vmatpush1.msra.mxu0 0.0
    %797 = vmatprep.subr.mxu0 0.0
    %798 = vmatpush1.msra.mxu0 0.0
    %799 = vmatprep.subr.mxu0 0.0
    %800 = vmatpush1.msra.mxu0 0.0
    %801 = vmatprep.subr.mxu0 0.0
    %802 = vmatpush1.msra.mxu0 0.0
    %803 = vmatprep.subr.mxu0 0.0
    %804 = vmatpush1.msra.mxu0 0.0
    %805 = vmatprep.subr.mxu0 0.0
    %806 = vmatpush1.msra.mxu0 0.0
    %807 = vmatprep.subr.mxu0 0.0
    %808 = vmatpush1.msra.mxu0 0.0
    %809 = vmatprep.subr.mxu0 0.0
    %810 = vmatpush1.msra.mxu0 0.0
    %811 = vmatprep.subr.mxu0 0.0
    %812 = vmatpush1.msra.mxu0 0.0
    %813 = vmatprep.subr.mxu0 0.0
    %814 = vmatpush1.msra.mxu0 0.0
    %815 = vmatprep.subr.mxu0 0.0
    %816 = vmatpush1.msra.mxu0 0.0
    %817 = vmatprep.subr.mxu0 0.0
    %818 = vmatpush1.msra.mxu0 0.0
    %819 = vmatprep.mubr.f32.mxu0 0.0
    %v820 = vand.u32 %v572, 4294901760
    %v821 = vsub.f32 %v572, %v820
    %822 = vmatmul.mubr.f32.gmra.mrb[0].mxu0 %v821
    %v823 = vpop.f32.mrb[0].mxu0
    %v824 = vadd.f32 %v742, %v823
    %v825 = vpop.f32.mrb[0].mxu0
    %826 = vmatprep.mubr.f32.mxu0 0.0
    %v827 = vand.u32 %v575, 4294901760
    %v828 = vsub.f32 %v575, %v827
    %829 = vmatmul.mubr.f32.gmra.mrb[0].mxu0 %v828
    %v830 = vpop.f32.mrb[0].mxu0
    %v831 = vadd.f32 %v748, %v830
    %v832 = vpop.f32.mrb[0].mxu0
    %833 = vdwg.mxu0
    %834 = vmatprep.subr.mxu0 0.0
    %v835 = vand.u32 %v56, 4294901760
    %836 = vmatpush1.msra.mxu0 %v835
    %837 = vmatprep.subr.mxu0 0.0
    %v838 = vand.u32 %v57, 4294901760
    %839 = vmatpush1.msra.mxu0 %v838
    %840 = vmatprep.subr.mxu0 0.0
    %841 = vmatpush1.msra.mxu0 0.0
    %842 = vmatprep.subr.mxu0 0.0
    %843 = vmatpush1.msra.mxu0 0.0
    %844 = vmatprep.subr.mxu0 0.0
    %845 = vmatpush1.msra.mxu0 0.0
    %846 = vmatprep.subr.mxu0 0.0
    %847 = vmatpush1.msra.mxu0 0.0
    %848 = vmatprep.subr.mxu0 0.0
    %849 = vmatpush1.msra.mxu0 0.0
    %850 = vmatprep.subr.mxu0 0.0
    %851 = vmatpush1.msra.mxu0 0.0
    %852 = vmatprep.subr.mxu0 0.0
    %853 = vmatpush1.msra.mxu0 0.0
    %854 = vmatprep.subr.mxu0 0.0
    %855 = vmatpush1.msra.mxu0 0.0
    %856 = vmatprep.subr.mxu0 0.0
    %857 = vmatpush1.msra.mxu0 0.0
    %858 = vmatprep.subr.mxu0 0.0
    %859 = vmatpush1.msra.mxu0 0.0
    %860 = vmatprep.subr.mxu0 0.0
    %861 = vmatpush1.msra.mxu0 0.0
    %862 = vmatprep.subr.mxu0 0.0
    %863 = vmatpush1.msra.mxu0 0.0
    %864 = vmatprep.subr.mxu0 0.0
    %865 = vmatpush1.msra.mxu0 0.0
    %866 = vmatprep.subr.mxu0 0.0
    %867 = vmatpush1.msra.mxu0 0.0
    %868 = vmatprep.subr.mxu0 0.0
    %869 = vmatpush1.msra.mxu0 0.0
    %870 = vmatprep.subr.mxu0 0.0
    %871 = vmatpush1.msra.mxu0 0.0
    %872 = vmatprep.subr.mxu0 0.0
    %873 = vmatpush1.msra.mxu0 0.0
    %874 = vmatprep.subr.mxu0 0.0
    %875 = vmatpush1.msra.mxu0 0.0
    %876 = vmatprep.subr.mxu0 0.0
    %877 = vmatpush1.msra.mxu0 0.0
    %878 = vmatprep.subr.mxu0 0.0
    %879 = vmatpush1.msra.mxu0 0.0
    %880 = vmatprep.subr.mxu0 0.0
    %881 = vmatpush1.msra.mxu0 0.0
    %882 = vmatprep.subr.mxu0 0.0
    %883 = vmatpush1.msra.mxu0 0.0
    %884 = vmatprep.subr.mxu0 0.0
    %885 = vmatpush1.msra.mxu0 0.0
    %886 = vmatprep.subr.mxu0 0.0
    %887 = vmatpush1.msra.mxu0 0.0
    %888 = vmatprep.subr.mxu0 0.0
    %889 = vmatpush1.msra.mxu0 0.0
    %890 = vmatprep.subr.mxu0 0.0
    %891 = vmatpush1.msra.mxu0 0.0
    %892 = vmatprep.subr.mxu0 0.0
    %893 = vmatpush1.msra.mxu0 0.0
    %894 = vmatprep.subr.mxu0 0.0
    %895 = vmatpush1.msra.mxu0 0.0
    %896 = vmatprep.subr.mxu0 0.0
    %897 = vmatpush1.msra.mxu0 0.0
    %898 = vmatprep.subr.mxu0 0.0
    %899 = vmatpush1.msra.mxu0 0.0
    %900 = vmatprep.mubr.f32.mxu0 0.0
    %v901 = vand.u32 %v572, 4294901760
    %v902 = vsub.f32 %v572, %v901
    %v903 = vand.u32 %v902, 4294901760
    %904 = vmatmul.mubr.f32.gmra.mrb[0].mxu0 %v903
    %v905 = vpop.f32.mrb[0].mxu0
    %v906 = vadd.f32 %v824, %v905
    %v907 = vpop.f32.mrb[0].mxu0
    %908 = vmatprep.mubr.f32.mxu0 0.0
    %v909 = vand.u32 %v575, 4294901760
    %v910 = vsub.f32 %v575, %v909
    %v911 = vand.u32 %v910, 4294901760
    %912 = vmatmul.mubr.f32.gmra.mrb[0].mxu0 %v911
    %v913 = vpop.f32.mrb[0].mxu0
    %v914 = vadd.f32 %v831, %v913
    %v915 = vpop.f32.mrb[0].mxu0
    %916 = vdwg.mxu0
    %917 = vmatprep.subr.mxu0 0.0
    %v918 = vand.u32 %v56, 4294901760
    %v919 = vsub.f32 %v56, %v918
    %v920 = vand.u32 %v919, 4294901760
    %921 = vmatpush1.msra.mxu0 %v920
    %922 = vmatprep.subr.mxu0 0.0
    %v923 = vand.u32 %v57, 4294901760
    %v924 = vsub.f32 %v57, %v923
    %v925 = vand.u32 %v924, 4294901760
    %926 = vmatpush1.msra.mxu0 %v925
    %927 = vmatprep.subr.mxu0 0.0
    %928 = vmatpush1.msra.mxu0 0.0
    %929 = vmatprep.subr.mxu0 0.0
    %930 = vmatpush1.msra.mxu0 0.0
    %931 = vmatprep.subr.mxu0 0.0
    %932 = vmatpush1.msra.mxu0 0.0
    %933 = vmatprep.subr.mxu0 0.0
    %934 = vmatpush1.msra.mxu0 0.0
    %935 = vmatprep.subr.mxu0 0.0
    %936 = vmatpush1.msra.mxu0 0.0
    %937 = vmatprep.subr.mxu0 0.0
    %938 = vmatpush1.msra.mxu0 0.0
    %939 = vmatprep.subr.mxu0 0.0
    %940 = vmatpush1.msra.mxu0 0.0
    %941 = vmatprep.subr.mxu0 0.0
    %942 = vmatpush1.msra.mxu0 0.0
    %943 = vmatprep.subr.mxu0 0.0
    %944 = vmatpush1.msra.mxu0 0.0
    %945 = vmatprep.subr.mxu0 0.0
    %946 = vmatpush1.msra.mxu0 0.0
    %947 = vmatprep.subr.mxu0 0.0
    %948 = vmatpush1.msra.mxu0 0.0
    %949 = vmatprep.subr.mxu0 0.0
    %950 = vmatpush1.msra.mxu0 0.0
    %951 = vmatprep.subr.mxu0 0.0
    %952 = vmatpush1.msra.mxu0 0.0
    %953 = vmatprep.subr.mxu0 0.0
    %954 = vmatpush1.msra.mxu0 0.0
    %955 = vmatprep.subr.mxu0 0.0
    %956 = vmatpush1.msra.mxu0 0.0
    %957 = vmatprep.subr.mxu0 0.0
    %958 = vmatpush1.msra.mxu0 0.0
    %959 = vmatprep.subr.mxu0 0.0
    %960 = vmatpush1.msra.mxu0 0.0
    %961 = vmatprep.subr.mxu0 0.0
    %962 = vmatpush1.msra.mxu0 0.0
    %963 = vmatprep.subr.mxu0 0.0
    %964 = vmatpush1.msra.mxu0 0.0
    %965 = vmatprep.subr.mxu0 0.0
    %966 = vmatpush1.msra.mxu0 0.0
    %967 = vmatprep.subr.mxu0 0.0
    %968 = vmatpush1.msra.mxu0 0.0
    %969 = vmatprep.subr.mxu0 0.0
    %970 = vmatpush1.msra.mxu0 0.0
    %971 = vmatprep.subr.mxu0 0.0
    %972 = vmatpush1.msra.mxu0 0.0
    %973 = vmatprep.subr.mxu0 0.0
    %974 = vmatpush1.msra.mxu0 0.0
    %975 = vmatprep.subr.mxu0 0.0
    %976 = vmatpush1.msra.mxu0 0.0
    %977 = vmatprep.subr.mxu0 0.0
    %978 = vmatpush1.msra.mxu0 0.0
    %979 = vmatprep.subr.mxu0 0.0
    %980 = vmatpush1.msra.mxu0 0.0
    %981 = vmatprep.subr.mxu0 0.0
    %982 = vmatpush1.msra.mxu0 0.0
    %983 = vmatprep.subr.mxu0 0.0
    %984 = vmatpush1.msra.mxu0 0.0
    %985 = vmatprep.subr.mxu0 0.0
    %986 = vmatpush1.msra.mxu0 0.0
    %987 = vmatprep.mubr.f32.mxu0 0.0
    %v988 = vand.u32 %v572, 4294901760
    %989 = vmatmul.mubr.f32.gmra.mrb[0].mxu0 %v988
    %v990 = vpop.f32.mrb[0].mxu0
    %v991 = vadd.f32 %v906, %v990
    %v992 = vpop.f32.mrb[0].mxu0
    %993 = vmatprep.mubr.f32.mxu0 0.0
    %v994 = vand.u32 %v575, 4294901760
    %995 = vmatmul.mubr.f32.gmra.mrb[0].mxu0 %v994
    %v996 = vpop.f32.mrb[0].mxu0
    %v997 = vadd.f32 %v914, %v996
    %v998 = vpop.f32.mrb[0].mxu0
    %999 = vdwg.mxu0
    %1000 = vmatprep.subr.mxu0 0.0
    %v1001 = vand.u32 %v56, 4294901760
    %1002 = vmatpush1.msra.mxu0 %v1001
    %1003 = vmatprep.subr.mxu0 0.0
    %v1004 = vand.u32 %v57, 4294901760
    %1005 = vmatpush1.msra.mxu0 %v1004
    %1006 = vmatprep.subr.mxu0 0.0
    %1007 = vmatpush1.msra.mxu0 0.0
    %1008 = vmatprep.subr.mxu0 0.0
    %1009 = vmatpush1.msra.mxu0 0.0
    %1010 = vmatprep.subr.mxu0 0.0
    %1011 = vmatpush1.msra.mxu0 0.0
    %1012 = vmatprep.subr.mxu0 0.0
    %1013 = vmatpush1.msra.mxu0 0.0
    %1014 = vmatprep.subr.mxu0 0.0
    %1015 = vmatpush1.msra.mxu0 0.0
    %1016 = vmatprep.subr.mxu0 0.0
    %1017 = vmatpush1.msra.mxu0 0.0
    %1018 = vmatprep.subr.mxu0 0.0
    %1019 = vmatpush1.msra.mxu0 0.0
    %1020 = vmatprep.subr.mxu0 0.0
    %1021 = vmatpush1.msra.mxu0 0.0
    %1022 = vmatprep.subr.mxu0 0.0
    %1023 = vmatpush1.msra.mxu0 0.0
    %1024 = vmatprep.subr.mxu0 0.0
    %1025 = vmatpush1.msra.mxu0 0.0
    %1026 = vmatprep.subr.mxu0 0.0
    %1027 = vmatpush1.msra.mxu0 0.0
    %1028 = vmatprep.subr.mxu0 0.0
    %1029 = vmatpush1.msra.mxu0 0.0
    %1030 = vmatprep.subr.mxu0 0.0
    %1031 = vmatpush1.msra.mxu0 0.0
    %1032 = vmatprep.subr.mxu0 0.0
    %1033 = vmatpush1.msra.mxu0 0.0
    %1034 = vmatprep.subr.mxu0 0.0
    %1035 = vmatpush1.msra.mxu0 0.0
    %1036 = vmatprep.subr.mxu0 0.0
    %1037 = vmatpush1.msra.mxu0 0.0
    %1038 = vmatprep.subr.mxu0 0.0
    %1039 = vmatpush1.msra.mxu0 0.0
    %1040 = vmatprep.subr.mxu0 0.0
    %1041 = vmatpush1.msra.mxu0 0.0
    %1042 = vmatprep.subr.mxu0 0.0
    %1043 = vmatpush1.msra.mxu0 0.0
    %1044 = vmatprep.subr.mxu0 0.0
    %1045 = vmatpush1.msra.mxu0 0.0
    %1046 = vmatprep.subr.mxu0 0.0
    %1047 = vmatpush1.msra.mxu0 0.0
    %1048 = vmatprep.subr.mxu0 0.0
    %1049 = vmatpush1.msra.mxu0 0.0
    %1050 = vmatprep.subr.mxu0 0.0
    %1051 = vmatpush1.msra.mxu0 0.0
    %1052 = vmatprep.subr.mxu0 0.0
    %1053 = vmatpush1.msra.mxu0 0.0
    %1054 = vmatprep.subr.mxu0 0.0
    %1055 = vmatpush1.msra.mxu0 0.0
    %1056 = vmatprep.subr.mxu0 0.0
    %1057 = vmatpush1.msra.mxu0 0.0
    %1058 = vmatprep.subr.mxu0 0.0
    %1059 = vmatpush1.msra.mxu0 0.0
    %1060 = vmatprep.subr.mxu0 0.0
    %1061 = vmatpush1.msra.mxu0 0.0
    %1062 = vmatprep.subr.mxu0 0.0
    %1063 = vmatpush1.msra.mxu0 0.0
    %1064 = vmatprep.subr.mxu0 0.0
    %1065 = vmatpush1.msra.mxu0 0.0
    %1066 = vmatprep.mubr.f32.mxu0 0.0
    %v1067 = vand.u32 %v572, 4294901760
    %1068 = vmatmul.mubr.f32.gmra.mrb[0].mxu0 %v1067
    %v1069 = vpop.f32.mrb[0].mxu0
    %v1070 = vadd.f32 %v991, %v1069
    %v1071 = vpop.f32.mrb[0].mxu0
    %1072 = vmatprep.mubr.f32.mxu0 0.0
    %v1073 = vand.u32 %v575, 4294901760
    %1074 = vmatmul.mubr.f32.gmra.mrb[0].mxu0 %v1073
    %v1075 = vpop.f32.mrb[0].mxu0
    %v1076 = vadd.f32 %v997, %v1075
    %v1077 = vpop.f32.mrb[0].mxu0
    %1078 = vdwg.mxu0
    %v1079 = vld [vmem:[#allocation2 + $0x2] sm:$0xff]
    %v1080 = vld [vmem:[#allocation2 + $0xa] sm:$0xff]
    %s1081 = scalar_lea.vmem [#allocation6], 32
    %v1082 = vld [vmem:[%s1081] sm:$0xff]
    %v1083 = vld [vmem:[%s1081 + $0x8] sm:$0xff]
    %v1085 = vsel %vm49, %v1079, 0
    %v1088 = vsel %vm49, %v1080, 0
    %1090 = vmatprep.subr.mxu0 0.0
    %v1091 = vand.u32 %v1082, 4294901760
    %1092 = vmatpush1.msra.mxu0 %v1091
    %1093 = vmatprep.subr.mxu0 0.0
    %v1094 = vand.u32 %v1083, 4294901760
    %1095 = vmatpush1.msra.mxu0 %v1094
    %1096 = vmatprep.subr.mxu0 0.0
    %1097 = vmatpush1.msra.mxu0 0.0
    %1098 = vmatprep.subr.mxu0 0.0
    %1099 = vmatpush1.msra.mxu0 0.0
    %1100 = vmatprep.subr.mxu0 0.0
    %1101 = vmatpush1.msra.mxu0 0.0
    %1102 = vmatprep.subr.mxu0 0.0
    %1103 = vmatpush1.msra.mxu0 0.0
    %1104 = vmatprep.subr.mxu0 0.0
    %1105 = vmatpush1.msra.mxu0 0.0
    %1106 = vmatprep.subr.mxu0 0.0
    %1107 = vmatpush1.msra.mxu0 0.0
    %1108 = vmatprep.subr.mxu0 0.0
    %1109 = vmatpush1.msra.mxu0 0.0
    %1110 = vmatprep.subr.mxu0 0.0
    %1111 = vmatpush1.msra.mxu0 0.0
    %1112 = vmatprep.subr.mxu0 0.0
    %1113 = vmatpush1.msra.mxu0 0.0
    %1114 = vmatprep.subr.mxu0 0.0
    %1115 = vmatpush1.msra.mxu0 0.0
    %1116 = vmatprep.subr.mxu0 0.0
    %1117 = vmatpush1.msra.mxu0 0.0
    %1118 = vmatprep.subr.mxu0 0.0
    %1119 = vmatpush1.msra.mxu0 0.0
    %1120 = vmatprep.subr.mxu0 0.0
    %1121 = vmatpush1.msra.mxu0 0.0
    %1122 = vmatprep.subr.mxu0 0.0
    %1123 = vmatpush1.msra.mxu0 0.0
    %1124 = vmatprep.subr.mxu0 0.0
    %1125 = vmatpush1.msra.mxu0 0.0
    %1126 = vmatprep.subr.mxu0 0.0
    %1127 = vmatpush1.msra.mxu0 0.0
    %1128 = vmatprep.subr.mxu0 0.0
    %1129 = vmatpush1.msra.mxu0 0.0
    %1130 = vmatprep.subr.mxu0 0.0
    %1131 = vmatpush1.msra.mxu0 0.0
    %1132 = vmatprep.subr.mxu0 0.0
    %1133 = vmatpush1.msra.mxu0 0.0
    %1134 = vmatprep.subr.mxu0 0.0
    %1135 = vmatpush1.msra.mxu0 0.0
    %1136 = vmatprep.subr.mxu0 0.0
    %1137 = vmatpush1.msra.mxu0 0.0
    %1138 = vmatprep.subr.mxu0 0.0
    %1139 = vmatpush1.msra.mxu0 0.0
    %1140 = vmatprep.subr.mxu0 0.0
    %1141 = vmatpush1.msra.mxu0 0.0
    %1142 = vmatprep.subr.mxu0 0.0
    %1143 = vmatpush1.msra.mxu0 0.0
    %1144 = vmatprep.subr.mxu0 0.0
    %1145 = vmatpush1.msra.mxu0 0.0
    %1146 = vmatprep.subr.mxu0 0.0
    %1147 = vmatpush1.msra.mxu0 0.0
    %1148 = vmatprep.subr.mxu0 0.0
    %1149 = vmatpush1.msra.mxu0 0.0
    %1150 = vmatprep.subr.mxu0 0.0
    %1151 = vmatpush1.msra.mxu0 0.0
    %1152 = vmatprep.subr.mxu0 0.0
    %1153 = vmatpush1.msra.mxu0 0.0
    %1154 = vmatprep.subr.mxu0 0.0
    %1155 = vmatpush1.msra.mxu0 0.0
    %1156 = vmatprep.mubr.f32.mxu0 0.0
    %v1157 = vand.u32 %v1085, 4294901760
    %v1158 = vsub.f32 %v1085, %v1157
    %v1159 = vand.u32 %v1158, 4294901760
    %v1160 = vsub.f32 %v1158, %v1159
    %v1161 = vand.u32 %v1160, 4294901760
    %1162 = vmatmul.mubr.f32.gmra.mrb[0].mxu0 %v1161
    %v1163 = vpop.f32.mrb[0].mxu0
    %v1164 = vadd.f32 0.0, %v1163
    %v1165 = vpop.f32.mrb[0].mxu0
    %1166 = vmatprep.mubr.f32.mxu0 0.0
    %v1167 = vand.u32 %v1088, 4294901760
    %v1168 = vsub.f32 %v1088, %v1167
    %v1169 = vand.u32 %v1168, 4294901760
    %v1170 = vsub.f32 %v1168, %v1169
    %v1171 = vand.u32 %v1170, 4294901760
    %1172 = vmatmul.mubr.f32.gmra.mrb[0].mxu0 %v1171
    %v1173 = vpop.f32.mrb[0].mxu0
    %v1174 = vadd.f32 0.0, %v1173
    %v1175 = vpop.f32.mrb[0].mxu0
    %1176 = vdwg.mxu0
    %1177 = vmatprep.subr.mxu0 0.0
    %v1178 = vand.u32 %v1082, 4294901760
    %v1179 = vsub.f32 %v1082, %v1178
    %v1180 = vand.u32 %v1179, 4294901760
    %v1181 = vsub.f32 %v1179, %v1180
    %v1182 = vand.u32 %v1181, 4294901760
    %1183 = vmatpush1.msra.mxu0 %v1182
    %1184 = vmatprep.subr.mxu0 0.0
    %v1185 = vand.u32 %v1083, 4294901760
    %v1186 = vsub.f32 %v1083, %v1185
    %v1187 = vand.u32 %v1186, 4294901760
    %v1188 = vsub.f32 %v1186, %v1187
    %v1189 = vand.u32 %v1188, 4294901760
    %1190 = vmatpush1.msra.mxu0 %v1189
    %1191 = vmatprep.subr.mxu0 0.0
    %1192 = vmatpush1.msra.mxu0 0.0
    %1193 = vmatprep.subr.mxu0 0.0
    %1194 = vmatpush1.msra.mxu0 0.0
    %1195 = vmatprep.subr.mxu0 0.0
    %1196 = vmatpush1.msra.mxu0 0.0
    %1197 = vmatprep.subr.mxu0 0.0
    %1198 = vmatpush1.msra.mxu0 0.0
    %1199 = vmatprep.subr.mxu0 0.0
    %1200 = vmatpush1.msra.mxu0 0.0
    %1201 = vmatprep.subr.mxu0 0.0
    %1202 = vmatpush1.msra.mxu0 0.0
    %1203 = vmatprep.subr.mxu0 0.0
    %1204 = vmatpush1.msra.mxu0 0.0
    %1205 = vmatprep.subr.mxu0 0.0
    %1206 = vmatpush1.msra.mxu0 0.0
    %1207 = vmatprep.subr.mxu0 0.0
    %1208 = vmatpush1.msra.mxu0 0.0
    %1209 = vmatprep.subr.mxu0 0.0
    %1210 = vmatpush1.msra.mxu0 0.0
    %1211 = vmatprep.subr.mxu0 0.0
    %1212 = vmatpush1.msra.mxu0 0.0
    %1213 = vmatprep.subr.mxu0 0.0
    %1214 = vmatpush1.msra.mxu0 0.0
    %1215 = vmatprep.subr.mxu0 0.0
    %1216 = vmatpush1.msra.mxu0 0.0
    %1217 = vmatprep.subr.mxu0 0.0
    %1218 = vmatpush1.msra.mxu0 0.0
    %1219 = vmatprep.subr.mxu0 0.0
    %1220 = vmatpush1.msra.mxu0 0.0
    %1221 = vmatprep.subr.mxu0 0.0
    %1222 = vmatpush1.msra.mxu0 0.0
    %1223 = vmatprep.subr.mxu0 0.0
    %1224 = vmatpush1.msra.mxu0 0.0
    %1225 = vmatprep.subr.mxu0 0.0
    %1226 = vmatpush1.msra.mxu0 0.0
    %1227 = vmatprep.subr.mxu0 0.0
    %1228 = vmatpush1.msra.mxu0 0.0
    %1229 = vmatprep.subr.mxu0 0.0
    %1230 = vmatpush1.msra.mxu0 0.0
    %1231 = vmatprep.subr.mxu0 0.0
    %1232 = vmatpush1.msra.mxu0 0.0
    %1233 = vmatprep.subr.mxu0 0.0
    %1234 = vmatpush1.msra.mxu0 0.0
    %1235 = vmatprep.subr.mxu0 0.0
    %1236 = vmatpush1.msra.mxu0 0.0
    %1237 = vmatprep.subr.mxu0 0.0
    %1238 = vmatpush1.msra.mxu0 0.0
    %1239 = vmatprep.subr.mxu0 0.0
    %1240 = vmatpush1.msra.mxu0 0.0
    %1241 = vmatprep.subr.mxu0 0.0
    %1242 = vmatpush1.msra.mxu0 0.0
    %1243 = vmatprep.subr.mxu0 0.0
    %1244 = vmatpush1.msra.mxu0 0.0
    %1245 = vmatprep.subr.mxu0 0.0
    %1246 = vmatpush1.msra.mxu0 0.0
    %1247 = vmatprep.subr.mxu0 0.0
    %1248 = vmatpush1.msra.mxu0 0.0
    %1249 = vmatprep.subr.mxu0 0.0
    %1250 = vmatpush1.msra.mxu0 0.0
    %1251 = vmatprep.mubr.f32.mxu0 0.0
    %v1252 = vand.u32 %v1085, 4294901760
    %1253 = vmatmul.mubr.f32.gmra.mrb[0].mxu0 %v1252
    %v1254 = vpop.f32.mrb[0].mxu0
    %v1255 = vadd.f32 %v1164, %v1254
    %v1256 = vpop.f32.mrb[0].mxu0
    %1257 = vmatprep.mubr.f32.mxu0 0.0
    %v1258 = vand.u32 %v1088, 4294901760
    %1259 = vmatmul.mubr.f32.gmra.mrb[0].mxu0 %v1258
    %v1260 = vpop.f32.mrb[0].mxu0
    %v1261 = vadd.f32 %v1174, %v1260
    %v1262 = vpop.f32.mrb[0].mxu0
    %1263 = vdwg.mxu0
    %1264 = vmatprep.subr.mxu0 0.0
    %v1265 = vand.u32 %v1082, 4294901760
    %v1266 = vsub.f32 %v1082, %v1265
    %1267 = vmatpush1.msra.mxu0 %v1266
    %1268 = vmatprep.subr.mxu0 0.0
    %v1269 = vand.u32 %v1083, 4294901760
    %v1270 = vsub.f32 %v1083, %v1269
    %1271 = vmatpush1.msra.mxu0 %v1270
    %1272 = vmatprep.subr.mxu0 0.0
    %1273 = vmatpush1.msra.mxu0 0.0
    %1274 = vmatprep.subr.mxu0 0.0
    %1275 = vmatpush1.msra.mxu0 0.0
    %1276 = vmatprep.subr.mxu0 0.0
    %1277 = vmatpush1.msra.mxu0 0.0
    %1278 = vmatprep.subr.mxu0 0.0
    %1279 = vmatpush1.msra.mxu0 0.0
    %1280 = vmatprep.subr.mxu0 0.0
    %1281 = vmatpush1.msra.mxu0 0.0
    %1282 = vmatprep.subr.mxu0 0.0
    %1283 = vmatpush1.msra.mxu0 0.0
    %1284 = vmatprep.subr.mxu0 0.0
    %1285 = vmatpush1.msra.mxu0 0.0
    %1286 = vmatprep.subr.mxu0 0.0
    %1287 = vmatpush1.msra.mxu0 0.0
    %1288 = vmatprep.subr.mxu0 0.0
    %1289 = vmatpush1.msra.mxu0 0.0
    %1290 = vmatprep.subr.mxu0 0.0
    %1291 = vmatpush1.msra.mxu0 0.0
    %1292 = vmatprep.subr.mxu0 0.0
    %1293 = vmatpush1.msra.mxu0 0.0
    %1294 = vmatprep.subr.mxu0 0.0
    %1295 = vmatpush1.msra.mxu0 0.0
    %1296 = vmatprep.subr.mxu0 0.0
    %1297 = vmatpush1.msra.mxu0 0.0
    %1298 = vmatprep.subr.mxu0 0.0
    %1299 = vmatpush1.msra.mxu0 0.0
    %1300 = vmatprep.subr.mxu0 0.0
    %1301 = vmatpush1.msra.mxu0 0.0
    %1302 = vmatprep.subr.mxu0 0.0
    %1303 = vmatpush1.msra.mxu0 0.0
    %1304 = vmatprep.subr.mxu0 0.0
    %1305 = vmatpush1.msra.mxu0 0.0
    %1306 = vmatprep.subr.mxu0 0.0
    %1307 = vmatpush1.msra.mxu0 0.0
    %1308 = vmatprep.subr.mxu0 0.0
    %1309 = vmatpush1.msra.mxu0 0.0
    %1310 = vmatprep.subr.mxu0 0.0
    %1311 = vmatpush1.msra.mxu0 0.0
    %1312 = vmatprep.subr.mxu0 0.0
    %1313 = vmatpush1.msra.mxu0 0.0
    %1314 = vmatprep.subr.mxu0 0.0
    %1315 = vmatpush1.msra.mxu0 0.0
    %1316 = vmatprep.subr.mxu0 0.0
    %1317 = vmatpush1.msra.mxu0 0.0
    %1318 = vmatprep.subr.mxu0 0.0
    %1319 = vmatpush1.msra.mxu0 0.0
    %1320 = vmatprep.subr.mxu0 0.0
    %1321 = vmatpush1.msra.mxu0 0.0
    %1322 = vmatprep.subr.mxu0 0.0
    %1323 = vmatpush1.msra.mxu0 0.0
    %1324 = vmatprep.subr.mxu0 0.0
    %1325 = vmatpush1.msra.mxu0 0.0
    %1326 = vmatprep.subr.mxu0 0.0
    %1327 = vmatpush1.msra.mxu0 0.0
    %1328 = vmatprep.subr.mxu0 0.0
    %1329 = vmatpush1.msra.mxu0 0.0
    %1330 = vmatprep.subr.mxu0 0.0
    %1331 = vmatpush1.msra.mxu0 0.0
    %1332 = vmatprep.mubr.f32.mxu0 0.0
    %v1333 = vand.u32 %v1085, 4294901760
    %v1334 = vsub.f32 %v1085, %v1333
    %1335 = vmatmul.mubr.f32.gmra.mrb[0].mxu0 %v1334
    %v1336 = vpop.f32.mrb[0].mxu0
    %v1337 = vadd.f32 %v1255, %v1336
    %v1338 = vpop.f32.mrb[0].mxu0
    %1339 = vmatprep.mubr.f32.mxu0 0.0
    %v1340 = vand.u32 %v1088, 4294901760
    %v1341 = vsub.f32 %v1088, %v1340
    %1342 = vmatmul.mubr.f32.gmra.mrb[0].mxu0 %v1341
    %v1343 = vpop.f32.mrb[0].mxu0
    %v1344 = vadd.f32 %v1261, %v1343
    %v1345 = vpop.f32.mrb[0].mxu0
    %1346 = vdwg.mxu0
    %1347 = vmatprep.subr.mxu0 0.0
    %v1348 = vand.u32 %v1082, 4294901760
    %1349 = vmatpush1.msra.mxu0 %v1348
    %1350 = vmatprep.subr.mxu0 0.0
    %v1351 = vand.u32 %v1083, 4294901760
    %1352 = vmatpush1.msra.mxu0 %v1351
    %1353 = vmatprep.subr.mxu0 0.0
    %1354 = vmatpush1.msra.mxu0 0.0
    %1355 = vmatprep.subr.mxu0 0.0
    %1356 = vmatpush1.msra.mxu0 0.0
    %1357 = vmatprep.subr.mxu0 0.0
    %1358 = vmatpush1.msra.mxu0 0.0
    %1359 = vmatprep.subr.mxu0 0.0
    %1360 = vmatpush1.msra.mxu0 0.0
    %1361 = vmatprep.subr.mxu0 0.0
    %1362 = vmatpush1.msra.mxu0 0.0
    %1363 = vmatprep.subr.mxu0 0.0
    %1364 = vmatpush1.msra.mxu0 0.0
    %1365 = vmatprep.subr.mxu0 0.0
    %1366 = vmatpush1.msra.mxu0 0.0
    %1367 = vmatprep.subr.mxu0 0.0
    %1368 = vmatpush1.msra.mxu0 0.0
    %1369 = vmatprep.subr.mxu0 0.0
    %1370 = vmatpush1.msra.mxu0 0.0
    %1371 = vmatprep.subr.mxu0 0.0
    %1372 = vmatpush1.msra.mxu0 0.0
    %1373 = vmatprep.subr.mxu0 0.0
    %1374 = vmatpush1.msra.mxu0 0.0
    %1375 = vmatprep.subr.mxu0 0.0
    %1376 = vmatpush1.msra.mxu0 0.0
    %1377 = vmatprep.subr.mxu0 0.0
    %1378 = vmatpush1.msra.mxu0 0.0
    %1379 = vmatprep.subr.mxu0 0.0
    %1380 = vmatpush1.msra.mxu0 0.0
    %1381 = vmatprep.subr.mxu0 0.0
    %1382 = vmatpush1.msra.mxu0 0.0
    %1383 = vmatprep.subr.mxu0 0.0
    %1384 = vmatpush1.msra.mxu0 0.0
    %1385 = vmatprep.subr.mxu0 0.0
    %1386 = vmatpush1.msra.mxu0 0.0
    %1387 = vmatprep.subr.mxu0 0.0
    %1388 = vmatpush1.msra.mxu0 0.0
    %1389 = vmatprep.subr.mxu0 0.0
    %1390 = vmatpush1.msra.mxu0 0.0
    %1391 = vmatprep.subr.mxu0 0.0
    %1392 = vmatpush1.msra.mxu0 0.0
    %1393 = vmatprep.subr.mxu0 0.0
    %1394 = vmatpush1.msra.mxu0 0.0
    %1395 = vmatprep.subr.mxu0 0.0
    %1396 = vmatpush1.msra.mxu0 0.0
    %1397 = vmatprep.subr.mxu0 0.0
    %1398 = vmatpush1.msra.mxu0 0.0
    %1399 = vmatprep.subr.mxu0 0.0
    %1400 = vmatpush1.msra.mxu0 0.0
    %1401 = vmatprep.subr.mxu0 0.0
    %1402 = vmatpush1.msra.mxu0 0.0
    %1403 = vmatprep.subr.mxu0 0.0
    %1404 = vmatpush1.msra.mxu0 0.0
    %1405 = vmatprep.subr.mxu0 0.0
    %1406 = vmatpush1.msra.mxu0 0.0
    %1407 = vmatprep.subr.mxu0 0.0
    %1408 = vmatpush1.msra.mxu0 0.0
    %1409 = vmatprep.subr.mxu0 0.0
    %1410 = vmatpush1.msra.mxu0 0.0
    %1411 = vmatprep.subr.mxu0 0.0
    %1412 = vmatpush1.msra.mxu0 0.0
    %1413 = vmatprep.mubr.f32.mxu0 0.0
    %v1414 = vand.u32 %v1085, 4294901760
    %v1415 = vsub.f32 %v1085, %v1414
    %v1416 = vand.u32 %v1415, 4294901760
    %1417 = vmatmul.mubr.f32.gmra.mrb[0].mxu0 %v1416
    %v1418 = vpop.f32.mrb[0].mxu0
    %v1419 = vadd.f32 %v1337, %v1418
    %v1420 = vpop.f32.mrb[0].mxu0
    %1421 = vmatprep.mubr.f32.mxu0 0.0
    %v1422 = vand.u32 %v1088, 4294901760
    %v1423 = vsub.f32 %v1088, %v1422
    %v1424 = vand.u32 %v1423, 4294901760
    %1425 = vmatmul.mubr.f32.gmra.mrb[0].mxu0 %v1424
    %v1426 = vpop.f32.mrb[0].mxu0
    %v1427 = vadd.f32 %v1344, %v1426
    %v1428 = vpop.f32.mrb[0].mxu0
    %1429 = vdwg.mxu0
    %1430 = vmatprep.subr.mxu0 0.0
    %v1431 = vand.u32 %v1082, 4294901760
    %v1432 = vsub.f32 %v1082, %v1431
    %v1433 = vand.u32 %v1432, 4294901760
    %1434 = vmatpush1.msra.mxu0 %v1433
    %1435 = vmatprep.subr.mxu0 0.0
    %v1436 = vand.u32 %v1083, 4294901760
    %v1437 = vsub.f32 %v1083, %v1436
    %v1438 = vand.u32 %v1437, 4294901760
    %1439 = vmatpush1.msra.mxu0 %v1438
    %1440 = vmatprep.subr.mxu0 0.0
    %1441 = vmatpush1.msra.mxu0 0.0
    %1442 = vmatprep.subr.mxu0 0.0
    %1443 = vmatpush1.msra.mxu0 0.0
    %1444 = vmatprep.subr.mxu0 0.0
    %1445 = vmatpush1.msra.mxu0 0.0
    %1446 = vmatprep.subr.mxu0 0.0
    %1447 = vmatpush1.msra.mxu0 0.0
    %1448 = vmatprep.subr.mxu0 0.0
    %1449 = vmatpush1.msra.mxu0 0.0
    %1450 = vmatprep.subr.mxu0 0.0
    %1451 = vmatpush1.msra.mxu0 0.0
    %1452 = vmatprep.subr.mxu0 0.0
    %1453 = vmatpush1.msra.mxu0 0.0
    %1454 = vmatprep.subr.mxu0 0.0
    %1455 = vmatpush1.msra.mxu0 0.0
    %1456 = vmatprep.subr.mxu0 0.0
    %1457 = vmatpush1.msra.mxu0 0.0
    %1458 = vmatprep.subr.mxu0 0.0
    %1459 = vmatpush1.msra.mxu0 0.0
    %1460 = vmatprep.subr.mxu0 0.0
    %1461 = vmatpush1.msra.mxu0 0.0
    %1462 = vmatprep.subr.mxu0 0.0
    %1463 = vmatpush1.msra.mxu0 0.0
    %1464 = vmatprep.subr.mxu0 0.0
    %1465 = vmatpush1.msra.mxu0 0.0
    %1466 = vmatprep.subr.mxu0 0.0
    %1467 = vmatpush1.msra.mxu0 0.0
    %1468 = vmatprep.subr.mxu0 0.0
    %1469 = vmatpush1.msra.mxu0 0.0
    %1470 = vmatprep.subr.mxu0 0.0
    %1471 = vmatpush1.msra.mxu0 0.0
    %1472 = vmatprep.subr.mxu0 0.0
    %1473 = vmatpush1.msra.mxu0 0.0
    %1474 = vmatprep.subr.mxu0 0.0
    %1475 = vmatpush1.msra.mxu0 0.0
    %1476 = vmatprep.subr.mxu0 0.0
    %1477 = vmatpush1.msra.mxu0 0.0
    %1478 = vmatprep.subr.mxu0 0.0
    %1479 = vmatpush1.msra.mxu0 0.0
    %1480 = vmatprep.subr.mxu0 0.0
    %1481 = vmatpush1.msra.mxu0 0.0
    %1482 = vmatprep.subr.mxu0 0.0
    %1483 = vmatpush1.msra.mxu0 0.0
    %1484 = vmatprep.subr.mxu0 0.0
    %1485 = vmatpush1.msra.mxu0 0.0
    %1486 = vmatprep.subr.mxu0 0.0
    %1487 = vmatpush1.msra.mxu0 0.0
    %1488 = vmatprep.subr.mxu0 0.0
    %1489 = vmatpush1.msra.mxu0 0.0
    %1490 = vmatprep.subr.mxu0 0.0
    %1491 = vmatpush1.msra.mxu0 0.0
    %1492 = vmatprep.subr.mxu0 0.0
    %1493 = vmatpush1.msra.mxu0 0.0
    %1494 = vmatprep.subr.mxu0 0.0
    %1495 = vmatpush1.msra.mxu0 0.0
    %1496 = vmatprep.subr.mxu0 0.0
    %1497 = vmatpush1.msra.mxu0 0.0
    %1498 = vmatprep.subr.mxu0 0.0
    %1499 = vmatpush1.msra.mxu0 0.0
    %1500 = vmatprep.mubr.f32.mxu0 0.0
    %v1501 = vand.u32 %v1085, 4294901760
    %1502 = vmatmul.mubr.f32.gmra.mrb[0].mxu0 %v1501
    %v1503 = vpop.f32.mrb[0].mxu0
    %v1504 = vadd.f32 %v1419, %v1503
    %v1505 = vpop.f32.mrb[0].mxu0
    %1506 = vmatprep.mubr.f32.mxu0 0.0
    %v1507 = vand.u32 %v1088, 4294901760
    %1508 = vmatmul.mubr.f32.gmra.mrb[0].mxu0 %v1507
    %v1509 = vpop.f32.mrb[0].mxu0
    %v1510 = vadd.f32 %v1427, %v1509
    %v1511 = vpop.f32.mrb[0].mxu0
    %1512 = vdwg.mxu0
    %1513 = vmatprep.subr.mxu0 0.0
    %v1514 = vand.u32 %v1082, 4294901760
    %1515 = vmatpush1.msra.mxu0 %v1514
    %1516 = vmatprep.subr.mxu0 0.0
    %v1517 = vand.u32 %v1083, 4294901760
    %1518 = vmatpush1.msra.mxu0 %v1517
    %1519 = vmatprep.subr.mxu0 0.0
    %1520 = vmatpush1.msra.mxu0 0.0
    %1521 = vmatprep.subr.mxu0 0.0
    %1522 = vmatpush1.msra.mxu0 0.0
    %1523 = vmatprep.subr.mxu0 0.0
    %1524 = vmatpush1.msra.mxu0 0.0
    %1525 = vmatprep.subr.mxu0 0.0
    %1526 = vmatpush1.msra.mxu0 0.0
    %1527 = vmatprep.subr.mxu0 0.0
    %1528 = vmatpush1.msra.mxu0 0.0
    %1529 = vmatprep.subr.mxu0 0.0
    %1530 = vmatpush1.msra.mxu0 0.0
    %1531 = vmatprep.subr.mxu0 0.0
    %1532 = vmatpush1.msra.mxu0 0.0
    %1533 = vmatprep.subr.mxu0 0.0
    %1534 = vmatpush1.msra.mxu0 0.0
    %1535 = vmatprep.subr.mxu0 0.0
    %1536 = vmatpush1.msra.mxu0 0.0
    %1537 = vmatprep.subr.mxu0 0.0
    %1538 = vmatpush1.msra.mxu0 0.0
    %1539 = vmatprep.subr.mxu0 0.0
    %1540 = vmatpush1.msra.mxu0 0.0
    %1541 = vmatprep.subr.mxu0 0.0
    %1542 = vmatpush1.msra.mxu0 0.0
    %1543 = vmatprep.subr.mxu0 0.0
    %1544 = vmatpush1.msra.mxu0 0.0
    %1545 = vmatprep.subr.mxu0 0.0
    %1546 = vmatpush1.msra.mxu0 0.0
    %1547 = vmatprep.subr.mxu0 0.0
    %1548 = vmatpush1.msra.mxu0 0.0
    %1549 = vmatprep.subr.mxu0 0.0
    %1550 = vmatpush1.msra.mxu0 0.0
    %1551 = vmatprep.subr.mxu0 0.0
    %1552 = vmatpush1.msra.mxu0 0.0
    %1553 = vmatprep.subr.mxu0 0.0
    %1554 = vmatpush1.msra.mxu0 0.0
    %1555 = vmatprep.subr.mxu0 0.0
    %1556 = vmatpush1.msra.mxu0 0.0
    %1557 = vmatprep.subr.mxu0 0.0
    %1558 = vmatpush1.msra.mxu0 0.0
    %1559 = vmatprep.subr.mxu0 0.0
    %1560 = vmatpush1.msra.mxu0 0.0
    %1561 = vmatprep.subr.mxu0 0.0
    %1562 = vmatpush1.msra.mxu0 0.0
    %1563 = vmatprep.subr.mxu0 0.0
    %1564 = vmatpush1.msra.mxu0 0.0
    %1565 = vmatprep.subr.mxu0 0.0
    %1566 = vmatpush1.msra.mxu0 0.0
    %1567 = vmatprep.subr.mxu0 0.0
    %1568 = vmatpush1.msra.mxu0 0.0
    %1569 = vmatprep.subr.mxu0 0.0
    %1570 = vmatpush1.msra.mxu0 0.0
    %1571 = vmatprep.subr.mxu0 0.0
    %1572 = vmatpush1.msra.mxu0 0.0
    %1573 = vmatprep.subr.mxu0 0.0
    %1574 = vmatpush1.msra.mxu0 0.0
    %1575 = vmatprep.subr.mxu0 0.0
    %1576 = vmatpush1.msra.mxu0 0.0
    %1577 = vmatprep.subr.mxu0 0.0
    %1578 = vmatpush1.msra.mxu0 0.0
    %1579 = vmatprep.mubr.f32.mxu0 0.0
    %v1580 = vand.u32 %v1085, 4294901760
    %1581 = vmatmul.mubr.f32.gmra.mrb[0].mxu0 %v1580
    %v1582 = vpop.f32.mrb[0].mxu0
    %v1583 = vadd.f32 %v1504, %v1582
    %v1584 = vpop.f32.mrb[0].mxu0
    %1585 = vmatprep.mubr.f32.mxu0 0.0
    %v1586 = vand.u32 %v1088, 4294901760
    %1587 = vmatmul.mubr.f32.gmra.mrb[0].mxu0 %v1586
    %v1588 = vpop.f32.mrb[0].mxu0
    %v1589 = vadd.f32 %v1510, %v1588
    %v1590 = vpop.f32.mrb[0].mxu0
    %1591 = vdwg.mxu0
    %v1592 = vadd.f32 %v1070, %v1583
    %v1593 = vadd.f32 %v1076, %v1589
    %v1594 = vld [vmem:[#allocation2 + $0x3] sm:$0xff]
    %v1595 = vld [vmem:[#allocation2 + $0xb] sm:$0xff]
    %s1596 = scalar_lea.vmem [#allocation6], 48
    %v1597 = vld [vmem:[%s1596] sm:$0xff]
    %v1598 = vld [vmem:[%s1596 + $0x8] sm:$0xff]
    %v1600 = vsel %vm49, %v1594, 0
    %v1603 = vsel %vm49, %v1595, 0
    %1605 = vmatprep.subr.mxu0 0.0
    %v1606 = vand.u32 %v1597, 4294901760
    %1607 = vmatpush1.msra.mxu0 %v1606
    %1608 = vmatprep.subr.mxu0 0.0
    %v1609 = vand.u32 %v1598, 4294901760
    %1610 = vmatpush1.msra.mxu0 %v1609
    %1611 = vmatprep.subr.mxu0 0.0
    %1612 = vmatpush1.msra.mxu0 0.0
    %1613 = vmatprep.subr.mxu0 0.0
    %1614 = vmatpush1.msra.mxu0 0.0
    %1615 = vmatprep.subr.mxu0 0.0
    %1616 = vmatpush1.msra.mxu0 0.0
    %1617 = vmatprep.subr.mxu0 0.0
    %1618 = vmatpush1.msra.mxu0 0.0
    %1619 = vmatprep.subr.mxu0 0.0
    %1620 = vmatpush1.msra.mxu0 0.0
    %1621 = vmatprep.subr.mxu0 0.0
    %1622 = vmatpush1.msra.mxu0 0.0
    %1623 = vmatprep.subr.mxu0 0.0
    %1624 = vmatpush1.msra.mxu0 0.0
    %1625 = vmatprep.subr.mxu0 0.0
    %1626 = vmatpush1.msra.mxu0 0.0
    %1627 = vmatprep.subr.mxu0 0.0
    %1628 = vmatpush1.msra.mxu0 0.0
    %1629 = vmatprep.subr.mxu0 0.0
    %1630 = vmatpush1.msra.mxu0 0.0
    %1631 = vmatprep.subr.mxu0 0.0
    %1632 = vmatpush1.msra.mxu0 0.0
    %1633 = vmatprep.subr.mxu0 0.0
    %1634 = vmatpush1.msra.mxu0 0.0
    %1635 = vmatprep.subr.mxu0 0.0
    %1636 = vmatpush1.msra.mxu0 0.0
    %1637 = vmatprep.subr.mxu0 0.0
    %1638 = vmatpush1.msra.mxu0 0.0
    %1639 = vmatprep.subr.mxu0 0.0
    %1640 = vmatpush1.msra.mxu0 0.0
    %1641 = vmatprep.subr.mxu0 0.0
    %1642 = vmatpush1.msra.mxu0 0.0
    %1643 = vmatprep.subr.mxu0 0.0
    %1644 = vmatpush1.msra.mxu0 0.0
    %1645 = vmatprep.subr.mxu0 0.0
    %1646 = vmatpush1.msra.mxu0 0.0
    %1647 = vmatprep.subr.mxu0 0.0
    %1648 = vmatpush1.msra.mxu0 0.0
    %1649 = vmatprep.subr.mxu0 0.0
    %1650 = vmatpush1.msra.mxu0 0.0
    %1651 = vmatprep.subr.mxu0 0.0
    %1652 = vmatpush1.msra.mxu0 0.0
    %1653 = vmatprep.subr.mxu0 0.0
    %1654 = vmatpush1.msra.mxu0 0.0
    %1655 = vmatprep.subr.mxu0 0.0
    %1656 = vmatpush1.msra.mxu0 0.0
    %1657 = vmatprep.subr.mxu0 0.0
    %1658 = vmatpush1.msra.mxu0 0.0
    %1659 = vmatprep.subr.mxu0 0.0
    %1660 = vmatpush1.msra.mxu0 0.0
    %1661 = vmatprep.subr.mxu0 0.0
    %1662 = vmatpush1.msra.mxu0 0.0
    %1663 = vmatprep.subr.mxu0 0.0
    %1664 = vmatpush1.msra.mxu0 0.0
    %1665 = vmatprep.subr.mxu0 0.0
    %1666 = vmatpush1.msra.mxu0 0.0
    %1667 = vmatprep.subr.mxu0 0.0
    %1668 = vmatpush1.msra.mxu0 0.0
    %1669 = vmatprep.subr.mxu0 0.0
    %1670 = vmatpush1.msra.mxu0 0.0
    %1671 = vmatprep.mubr.f32.mxu0 0.0
    %v1672 = vand.u32 %v1600, 4294901760
    %v1673 = vsub.f32 %v1600, %v1672
    %v1674 = vand.u32 %v1673, 4294901760
    %v1675 = vsub.f32 %v1673, %v1674
    %v1676 = vand.u32 %v1675, 4294901760
    %1677 = vmatmul.mubr.f32.gmra.mrb[0].mxu0 %v1676
    %v1678 = vpop.f32.mrb[0].mxu0
    %v1679 = vadd.f32 0.0, %v1678
    %v1680 = vpop.f32.mrb[0].mxu0
    %1681 = vmatprep.mubr.f32.mxu0 0.0
    %v1682 = vand.u32 %v1603, 4294901760
    %v1683 = vsub.f32 %v1603, %v1682
    %v1684 = vand.u32 %v1683, 4294901760
    %v1685 = vsub.f32 %v1683, %v1684
    %v1686 = vand.u32 %v1685, 4294901760
    %1687 = vmatmul.mubr.f32.gmra.mrb[0].mxu0 %v1686
    %v1688 = vpop.f32.mrb[0].mxu0
    %v1689 = vadd.f32 0.0, %v1688
    %v1690 = vpop.f32.mrb[0].mxu0
    %1691 = vdwg.mxu0
    %1692 = vmatprep.subr.mxu0 0.0
    %v1693 = vand.u32 %v1597, 4294901760
    %v1694 = vsub.f32 %v1597, %v1693
    %v1695 = vand.u32 %v1694, 4294901760
    %v1696 = vsub.f32 %v1694, %v1695
    %v1697 = vand.u32 %v1696, 4294901760
    %1698 = vmatpush1.msra.mxu0 %v1697
    %1699 = vmatprep.subr.mxu0 0.0
    %v1700 = vand.u32 %v1598, 4294901760
    %v1701 = vsub.f32 %v1598, %v1700
    %v1702 = vand.u32 %v1701, 4294901760
    %v1703 = vsub.f32 %v1701, %v1702
    %v1704 = vand.u32 %v1703, 4294901760
    %1705 = vmatpush1.msra.mxu0 %v1704
    %1706 = vmatprep.subr.mxu0 0.0
    %1707 = vmatpush1.msra.mxu0 0.0
    %1708 = vmatprep.subr.mxu0 0.0
    %1709 = vmatpush1.msra.mxu0 0.0
    %1710 = vmatprep.subr.mxu0 0.0
    %1711 = vmatpush1.msra.mxu0 0.0
    %1712 = vmatprep.subr.mxu0 0.0
    %1713 = vmatpush1.msra.mxu0 0.0
    %1714 = vmatprep.subr.mxu0 0.0
    %1715 = vmatpush1.msra.mxu0 0.0
    %1716 = vmatprep.subr.mxu0 0.0
    %1717 = vmatpush1.msra.mxu0 0.0
    %1718 = vmatprep.subr.mxu0 0.0
    %1719 = vmatpush1.msra.mxu0 0.0
    %1720 = vmatprep.subr.mxu0 0.0
    %1721 = vmatpush1.msra.mxu0 0.0
    %1722 = vmatprep.subr.mxu0 0.0
    %1723 = vmatpush1.msra.mxu0 0.0
    %1724 = vmatprep.subr.mxu0 0.0
    %1725 = vmatpush1.msra.mxu0 0.0
    %1726 = vmatprep.subr.mxu0 0.0
    %1727 = vmatpush1.msra.mxu0 0.0
    %1728 = vmatprep.subr.mxu0 0.0
    %1729 = vmatpush1.msra.mxu0 0.0
    %1730 = vmatprep.subr.mxu0 0.0
    %1731 = vmatpush1.msra.mxu0 0.0
    %1732 = vmatprep.subr.mxu0 0.0
    %1733 = vmatpush1.msra.mxu0 0.0
    %1734 = vmatprep.subr.mxu0 0.0
    %1735 = vmatpush1.msra.mxu0 0.0
    %1736 = vmatprep.subr.mxu0 0.0
    %1737 = vmatpush1.msra.mxu0 0.0
    %1738 = vmatprep.subr.mxu0 0.0
    %1739 = vmatpush1.msra.mxu0 0.0
    %1740 = vmatprep.subr.mxu0 0.0
    %1741 = vmatpush1.msra.mxu0 0.0
    %1742 = vmatprep.subr.mxu0 0.0
    %1743 = vmatpush1.msra.mxu0 0.0
    %1744 = vmatprep.subr.mxu0 0.0
    %1745 = vmatpush1.msra.mxu0 0.0
    %1746 = vmatprep.subr.mxu0 0.0
    %1747 = vmatpush1.msra.mxu0 0.0
    %1748 = vmatprep.subr.mxu0 0.0
    %1749 = vmatpush1.msra.mxu0 0.0
    %1750 = vmatprep.subr.mxu0 0.0
    %1751 = vmatpush1.msra.mxu0 0.0
    %1752 = vmatprep.subr.mxu0 0.0
    %1753 = vmatpush1.msra.mxu0 0.0
    %1754 = vmatprep.subr.mxu0 0.0
    %1755 = vmatpush1.msra.mxu0 0.0
    %1756 = vmatprep.subr.mxu0 0.0
    %1757 = vmatpush1.msra.mxu0 0.0
    %1758 = vmatprep.subr.mxu0 0.0
    %1759 = vmatpush1.msra.mxu0 0.0
    %1760 = vmatprep.subr.mxu0 0.0
    %1761 = vmatpush1.msra.mxu0 0.0
    %1762 = vmatprep.subr.mxu0 0.0
    %1763 = vmatpush1.msra.mxu0 0.0
    %1764 = vmatprep.subr.mxu0 0.0
    %1765 = vmatpush1.msra.mxu0 0.0
    %1766 = vmatprep.mubr.f32.mxu0 0.0
    %v1767 = vand.u32 %v1600, 4294901760
    %1768 = vmatmul.mubr.f32.gmra.mrb[0].mxu0 %v1767
    %v1769 = vpop.f32.mrb[0].mxu0
    %v1770 = vadd.f32 %v1679, %v1769
    %v1771 = vpop.f32.mrb[0].mxu0
    %1772 = vmatprep.mubr.f32.mxu0 0.0
    %v1773 = vand.u32 %v1603, 4294901760
    %1774 = vmatmul.mubr.f32.gmra.mrb[0].mxu0 %v1773
    %v1775 = vpop.f32.mrb[0].mxu0
    %v1776 = vadd.f32 %v1689, %v1775
    %v1777 = vpop.f32.mrb[0].mxu0
    %1778 = vdwg.mxu0
    %1779 = vmatprep.subr.mxu0 0.0
    %v1780 = vand.u32 %v1597, 4294901760
    %v1781 = vsub.f32 %v1597, %v1780
    %1782 = vmatpush1.msra.mxu0 %v1781
    %1783 = vmatprep.subr.mxu0 0.0
    %v1784 = vand.u32 %v1598, 4294901760
    %v1785 = vsub.f32 %v1598, %v1784
    %1786 = vmatpush1.msra.mxu0 %v1785
    %1787 = vmatprep.subr.mxu0 0.0
    %1788 = vmatpush1.msra.mxu0 0.0
    %1789 = vmatprep.subr.mxu0 0.0
    %1790 = vmatpush1.msra.mxu0 0.0
    %1791 = vmatprep.subr.mxu0 0.0
    %1792 = vmatpush1.msra.mxu0 0.0
    %1793 = vmatprep.subr.mxu0 0.0
    %1794 = vmatpush1.msra.mxu0 0.0
    %1795 = vmatprep.subr.mxu0 0.0
    %1796 = vmatpush1.msra.mxu0 0.0
    %1797 = vmatprep.subr.mxu0 0.0
    %1798 = vmatpush1.msra.mxu0 0.0
    %1799 = vmatprep.subr.mxu0 0.0
    %1800 = vmatpush1.msra.mxu0 0.0
    %1801 = vmatprep.subr.mxu0 0.0
    %1802 = vmatpush1.msra.mxu0 0.0
    %1803 = vmatprep.subr.mxu0 0.0
    %1804 = vmatpush1.msra.mxu0 0.0
    %1805 = vmatprep.subr.mxu0 0.0
    %1806 = vmatpush1.msra.mxu0 0.0
    %1807 = vmatprep.subr.mxu0 0.0
    %1808 = vmatpush1.msra.mxu0 0.0
    %1809 = vmatprep.subr.mxu0 0.0
    %1810 = vmatpush1.msra.mxu0 0.0
    %1811 = vmatprep.subr.mxu0 0.0
    %1812 = vmatpush1.msra.mxu0 0.0
    %1813 = vmatprep.subr.mxu0 0.0
    %1814 = vmatpush1.msra.mxu0 0.0
    %1815 = vmatprep.subr.mxu0 0.0
    %1816 = vmatpush1.msra.mxu0 0.0
    %1817 = vmatprep.subr.mxu0 0.0
    %1818 = vmatpush1.msra.mxu0 0.0
    %1819 = vmatprep.subr.mxu0 0.0
    %1820 = vmatpush1.msra.mxu0 0.0
    %1821 = vmatprep.subr.mxu0 0.0
    %1822 = vmatpush1.msra.mxu0 0.0
    %1823 = vmatprep.subr.mxu0 0.0
    %1824 = vmatpush1.msra.mxu0 0.0
    %1825 = vmatprep.subr.mxu0 0.0
    %1826 = vmatpush1.msra.mxu0 0.0
    %1827 = vmatprep.subr.mxu0 0.0
    %1828 = vmatpush1.msra.mxu0 0.0
    %1829 = vmatprep.subr.mxu0 0.0
    %1830 = vmatpush1.msra.mxu0 0.0
    %1831 = vmatprep.subr.mxu0 0.0
    %1832 = vmatpush1.msra.mxu0 0.0
    %1833 = vmatprep.subr.mxu0 0.0
    %1834 = vmatpush1.msra.mxu0 0.0
    %1835 = vmatprep.subr.mxu0 0.0
    %1836 = vmatpush1.msra.mxu0 0.0
    %1837 = vmatprep.subr.mxu0 0.0
    %1838 = vmatpush1.msra.mxu0 0.0
    %1839 = vmatprep.subr.mxu0 0.0
    %1840 = vmatpush1.msra.mxu0 0.0
    %1841 = vmatprep.subr.mxu0 0.0
    %1842 = vmatpush1.msra.mxu0 0.0
    %1843 = vmatprep.subr.mxu0 0.0
    %1844 = vmatpush1.msra.mxu0 0.0
    %1845 = vmatprep.subr.mxu0 0.0
    %1846 = vmatpush1.msra.mxu0 0.0
    %1847 = vmatprep.mubr.f32.mxu0 0.0
    %v1848 = vand.u32 %v1600, 4294901760
    %v1849 = vsub.f32 %v1600, %v1848
    %1850 = vmatmul.mubr.f32.gmra.mrb[0].mxu0 %v1849
    %v1851 = vpop.f32.mrb[0].mxu0
    %v1852 = vadd.f32 %v1770, %v1851
    %v1853 = vpop.f32.mrb[0].mxu0
    %1854 = vmatprep.mubr.f32.mxu0 0.0
    %v1855 = vand.u32 %v1603, 4294901760
    %v1856 = vsub.f32 %v1603, %v1855
    %1857 = vmatmul.mubr.f32.gmra.mrb[0].mxu0 %v1856
    %v1858 = vpop.f32.mrb[0].mxu0
    %v1859 = vadd.f32 %v1776, %v1858
    %v1860 = vpop.f32.mrb[0].mxu0
    %1861 = vdwg.mxu0
    %1862 = vmatprep.subr.mxu0 0.0
    %v1863 = vand.u32 %v1597, 4294901760
    %1864 = vmatpush1.msra.mxu0 %v1863
    %1865 = vmatprep.subr.mxu0 0.0
    %v1866 = vand.u32 %v1598, 4294901760
    %1867 = vmatpush1.msra.mxu0 %v1866
    %1868 = vmatprep.subr.mxu0 0.0
    %1869 = vmatpush1.msra.mxu0 0.0
    %1870 = vmatprep.subr.mxu0 0.0
    %1871 = vmatpush1.msra.mxu0 0.0
    %1872 = vmatprep.subr.mxu0 0.0
    %1873 = vmatpush1.msra.mxu0 0.0
    %1874 = vmatprep.subr.mxu0 0.0
    %1875 = vmatpush1.msra.mxu0 0.0
    %1876 = vmatprep.subr.mxu0 0.0
    %1877 = vmatpush1.msra.mxu0 0.0
    %1878 = vmatprep.subr.mxu0 0.0
    %1879 = vmatpush1.msra.mxu0 0.0
    %1880 = vmatprep.subr.mxu0 0.0
    %1881 = vmatpush1.msra.mxu0 0.0
    %1882 = vmatprep.subr.mxu0 0.0
    %1883 = vmatpush1.msra.mxu0 0.0
    %1884 = vmatprep.subr.mxu0 0.0
    %1885 = vmatpush1.msra.mxu0 0.0
    %1886 = vmatprep.subr.mxu0 0.0
    %1887 = vmatpush1.msra.mxu0 0.0
    %1888 = vmatprep.subr.mxu0 0.0
    %1889 = vmatpush1.msra.mxu0 0.0
    %1890 = vmatprep.subr.mxu0 0.0
    %1891 = vmatpush1.msra.mxu0 0.0
    %1892 = vmatprep.subr.mxu0 0.0
    %1893 = vmatpush1.msra.mxu0 0.0
    %1894 = vmatprep.subr.mxu0 0.0
    %1895 = vmatpush1.msra.mxu0 0.0
    %1896 = vmatprep.subr.mxu0 0.0
    %1897 = vmatpush1.msra.mxu0 0.0
    %1898 = vmatprep.subr.mxu0 0.0
    %1899 = vmatpush1.msra.mxu0 0.0
    %1900 = vmatprep.subr.mxu0 0.0
    %1901 = vmatpush1.msra.mxu0 0.0
    %1902 = vmatprep.subr.mxu0 0.0
    %1903 = vmatpush1.msra.mxu0 0.0
    %1904 = vmatprep.subr.mxu0 0.0
    %1905 = vmatpush1.msra.mxu0 0.0
    %1906 = vmatprep.subr.mxu0 0.0
    %1907 = vmatpush1.msra.mxu0 0.0
    %1908 = vmatprep.subr.mxu0 0.0
    %1909 = vmatpush1.msra.mxu0 0.0
    %1910 = vmatprep.subr.mxu0 0.0
    %1911 = vmatpush1.msra.mxu0 0.0
    %1912 = vmatprep.subr.mxu0 0.0
    %1913 = vmatpush1.msra.mxu0 0.0
    %1914 = vmatprep.subr.mxu0 0.0
    %1915 = vmatpush1.msra.mxu0 0.0
    %1916 = vmatprep.subr.mxu0 0.0
    %1917 = vmatpush1.msra.mxu0 0.0
    %1918 = vmatprep.subr.mxu0 0.0
    %1919 = vmatpush1.msra.mxu0 0.0
    %1920 = vmatprep.subr.mxu0 0.0
    %1921 = vmatpush1.msra.mxu0 0.0
    %1922 = vmatprep.subr.mxu0 0.0
    %1923 = vmatpush1.msra.mxu0 0.0
    %1924 = vmatprep.subr.mxu0 0.0
    %1925 = vmatpush1.msra.mxu0 0.0
    %1926 = vmatprep.subr.mxu0 0.0
    %1927 = vmatpush1.msra.mxu0 0.0
    %1928 = vmatprep.mubr.f32.mxu0 0.0
    %v1929 = vand.u32 %v1600, 4294901760
    %v1930 = vsub.f32 %v1600, %v1929
    %v1931 = vand.u32 %v1930, 4294901760
    %1932 = vmatmul.mubr.f32.gmra.mrb[0].mxu0 %v1931
    %v1933 = vpop.f32.mrb[0].mxu0
    %v1934 = vadd.f32 %v1852, %v1933
    %v1935 = vpop.f32.mrb[0].mxu0
    %1936 = vmatprep.mubr.f32.mxu0 0.0
    %v1937 = vand.u32 %v1603, 4294901760
    %v1938 = vsub.f32 %v1603, %v1937
    %v1939 = vand.u32 %v1938, 4294901760
    %1940 = vmatmul.mubr.f32.gmra.mrb[0].mxu0 %v1939
    %v1941 = vpop.f32.mrb[0].mxu0
    %v1942 = vadd.f32 %v1859, %v1941
    %v1943 = vpop.f32.mrb[0].mxu0
    %1944 = vdwg.mxu0
    %1945 = vmatprep.subr.mxu0 0.0
    %v1946 = vand.u32 %v1597, 4294901760
    %v1947 = vsub.f32 %v1597, %v1946
    %v1948 = vand.u32 %v1947, 4294901760
    %1949 = vmatpush1.msra.mxu0 %v1948
    %1950 = vmatprep.subr.mxu0 0.0
    %v1951 = vand.u32 %v1598, 4294901760
    %v1952 = vsub.f32 %v1598, %v1951
    %v1953 = vand.u32 %v1952, 4294901760
    %1954 = vmatpush1.msra.mxu0 %v1953
    %1955 = vmatprep.subr.mxu0 0.0
    %1956 = vmatpush1.msra.mxu0 0.0
    %1957 = vmatprep.subr.mxu0 0.0
    %1958 = vmatpush1.msra.mxu0 0.0
    %1959 = vmatprep.subr.mxu0 0.0
    %1960 = vmatpush1.msra.mxu0 0.0
    %1961 = vmatprep.subr.mxu0 0.0
    %1962 = vmatpush1.msra.mxu0 0.0
    %1963 = vmatprep.subr.mxu0 0.0
    %1964 = vmatpush1.msra.mxu0 0.0
    %1965 = vmatprep.subr.mxu0 0.0
    %1966 = vmatpush1.msra.mxu0 0.0
    %1967 = vmatprep.subr.mxu0 0.0
    %1968 = vmatpush1.msra.mxu0 0.0
    %1969 = vmatprep.subr.mxu0 0.0
    %1970 = vmatpush1.msra.mxu0 0.0
    %1971 = vmatprep.subr.mxu0 0.0
    %1972 = vmatpush1.msra.mxu0 0.0
    %1973 = vmatprep.subr.mxu0 0.0
    %1974 = vmatpush1.msra.mxu0 0.0
    %1975 = vmatprep.subr.mxu0 0.0
    %1976 = vmatpush1.msra.mxu0 0.0
    %1977 = vmatprep.subr.mxu0 0.0
    %1978 = vmatpush1.msra.mxu0 0.0
    %1979 = vmatprep.subr.mxu0 0.0
    %1980 = vmatpush1.msra.mxu0 0.0
    %1981 = vmatprep.subr.mxu0 0.0
    %1982 = vmatpush1.msra.mxu0 0.0
    %1983 = vmatprep.subr.mxu0 0.0
    %1984 = vmatpush1.msra.mxu0 0.0
    %1985 = vmatprep.subr.mxu0 0.0
    %1986 = vmatpush1.msra.mxu0 0.0
    %1987 = vmatprep.subr.mxu0 0.0
    %1988 = vmatpush1.msra.mxu0 0.0
    %1989 = vmatprep.subr.mxu0 0.0
    %1990 = vmatpush1.msra.mxu0 0.0
    %1991 = vmatprep.subr.mxu0 0.0
    %1992 = vmatpush1.msra.mxu0 0.0
    %1993 = vmatprep.subr.mxu0 0.0
    %1994 = vmatpush1.msra.mxu0 0.0
    %1995 = vmatprep.subr.mxu0 0.0
    %1996 = vmatpush1.msra.mxu0 0.0
    %1997 = vmatprep.subr.mxu0 0.0
    %1998 = vmatpush1.msra.mxu0 0.0
    %1999 = vmatprep.subr.mxu0 0.0
    %2000 = vmatpush1.msra.mxu0 0.0
    %2001 = vmatprep.subr.mxu0 0.0
    %2002 = vmatpush1.msra.mxu0 0.0
    %2003 = vmatprep.subr.mxu0 0.0
    %2004 = vmatpush1.msra.mxu0 0.0
    %2005 = vmatprep.subr.mxu0 0.0
    %2006 = vmatpush1.msra.mxu0 0.0
    %2007 = vmatprep.subr.mxu0 0.0
    %2008 = vmatpush1.msra.mxu0 0.0
    %2009 = vmatprep.subr.mxu0 0.0
    %2010 = vmatpush1.msra.mxu0 0.0
    %2011 = vmatprep.subr.mxu0 0.0
    %2012 = vmatpush1.msra.mxu0 0.0
    %2013 = vmatprep.subr.mxu0 0.0
    %2014 = vmatpush1.msra.mxu0 0.0
    %2015 = vmatprep.mubr.f32.mxu0 0.0
    %v2016 = vand.u32 %v1600, 4294901760
    %2017 = vmatmul.mubr.f32.gmra.mrb[0].mxu0 %v2016
    %v2018 = vpop.f32.mrb[0].mxu0
    %v2019 = vadd.f32 %v1934, %v2018
    %v2020 = vpop.f32.mrb[0].mxu0
    %2021 = vmatprep.mubr.f32.mxu0 0.0
    %v2022 = vand.u32 %v1603, 4294901760
    %2023 = vmatmul.mubr.f32.gmra.mrb[0].mxu0 %v2022
    %v2024 = vpop.f32.mrb[0].mxu0
    %v2025 = vadd.f32 %v1942, %v2024
    %v2026 = vpop.f32.mrb[0].mxu0
    %2027 = vdwg.mxu0
    %2028 = vmatprep.subr.mxu0 0.0
    %v2029 = vand.u32 %v1597, 4294901760
    %2030 = vmatpush1.msra.mxu0 %v2029
    %2031 = vmatprep.subr.mxu0 0.0
    %v2032 = vand.u32 %v1598, 4294901760
    %2033 = vmatpush1.msra.mxu0 %v2032
    %2034 = vmatprep.subr.mxu0 0.0
    %2035 = vmatpush1.msra.mxu0 0.0
    %2036 = vmatprep.subr.mxu0 0.0
    %2037 = vmatpush1.msra.mxu0 0.0
    %2038 = vmatprep.subr.mxu0 0.0
    %2039 = vmatpush1.msra.mxu0 0.0
    %2040 = vmatprep.subr.mxu0 0.0
    %2041 = vmatpush1.msra.mxu0 0.0
    %2042 = vmatprep.subr.mxu0 0.0
    %2043 = vmatpush1.msra.mxu0 0.0
    %2044 = vmatprep.subr.mxu0 0.0
    %2045 = vmatpush1.msra.mxu0 0.0
    %2046 = vmatprep.subr.mxu0 0.0
    %2047 = vmatpush1.msra.mxu0 0.0
    %2048 = vmatprep.subr.mxu0 0.0
    %2049 = vmatpush1.msra.mxu0 0.0
    %2050 = vmatprep.subr.mxu0 0.0
    %2051 = vmatpush1.msra.mxu0 0.0
    %2052 = vmatprep.subr.mxu0 0.0
    %2053 = vmatpush1.msra.mxu0 0.0
    %2054 = vmatprep.subr.mxu0 0.0
    %2055 = vmatpush1.msra.mxu0 0.0
    %2056 = vmatprep.subr.mxu0 0.0
    %2057 = vmatpush1.msra.mxu0 0.0
    %2058 = vmatprep.subr.mxu0 0.0
    %2059 = vmatpush1.msra.mxu0 0.0
    %2060 = vmatprep.subr.mxu0 0.0
    %2061 = vmatpush1.msra.mxu0 0.0
    %2062 = vmatprep.subr.mxu0 0.0
    %2063 = vmatpush1.msra.mxu0 0.0
    %2064 = vmatprep.subr.mxu0 0.0
    %2065 = vmatpush1.msra.mxu0 0.0
    %2066 = vmatprep.subr.mxu0 0.0
    %2067 = vmatpush1.msra.mxu0 0.0
    %2068 = vmatprep.subr.mxu0 0.0
    %2069 = vmatpush1.msra.mxu0 0.0
    %2070 = vmatprep.subr.mxu0 0.0
    %2071 = vmatpush1.msra.mxu0 0.0
    %2072 = vmatprep.subr.mxu0 0.0
    %2073 = vmatpush1.msra.mxu0 0.0
    %2074 = vmatprep.subr.mxu0 0.0
    %2075 = vmatpush1.msra.mxu0 0.0
    %2076 = vmatprep.subr.mxu0 0.0
    %2077 = vmatpush1.msra.mxu0 0.0
    %2078 = vmatprep.subr.mxu0 0.0
    %2079 = vmatpush1.msra.mxu0 0.0
    %2080 = vmatprep.subr.mxu0 0.0
    %2081 = vmatpush1.msra.mxu0 0.0
    %2082 = vmatprep.subr.mxu0 0.0
    %2083 = vmatpush1.msra.mxu0 0.0
    %2084 = vmatprep.subr.mxu0 0.0
    %2085 = vmatpush1.msra.mxu0 0.0
    %2086 = vmatprep.subr.mxu0 0.0
    %2087 = vmatpush1.msra.mxu0 0.0
    %2088 = vmatprep.subr.mxu0 0.0
    %2089 = vmatpush1.msra.mxu0 0.0
    %2090 = vmatprep.subr.mxu0 0.0
    %2091 = vmatpush1.msra.mxu0 0.0
    %2092 = vmatprep.subr.mxu0 0.0
    %2093 = vmatpush1.msra.mxu0 0.0
    %2094 = vmatprep.mubr.f32.mxu0 0.0
    %v2095 = vand.u32 %v1600, 4294901760
    %2096 = vmatmul.mubr.f32.gmra.mrb[0].mxu0 %v2095
    %v2097 = vpop.f32.mrb[0].mxu0
    %v2098 = vadd.f32 %v2019, %v2097
    %v2099 = vpop.f32.mrb[0].mxu0
    %2100 = vmatprep.mubr.f32.mxu0 0.0
    %v2101 = vand.u32 %v1603, 4294901760
    %2102 = vmatmul.mubr.f32.gmra.mrb[0].mxu0 %v2101
    %v2103 = vpop.f32.mrb[0].mxu0
    %v2104 = vadd.f32 %v2025, %v2103
    %v2105 = vpop.f32.mrb[0].mxu0
    %2106 = vdwg.mxu0
    %v2107 = vadd.f32 %v1592, %v2098
    %v2108 = vadd.f32 %v1593, %v2104
    %v2109 = vld [vmem:[#allocation2 + $0x4] sm:$0xff]
    %v2110 = vld [vmem:[#allocation2 + $0xc] sm:$0xff]
    %s2111 = scalar_lea.vmem [#allocation6], 64
    %v2112 = vld [vmem:[%s2111] sm:$0xff]
    %v2113 = vld [vmem:[%s2111 + $0x8] sm:$0xff]
    %v2115 = vsel %vm49, %v2109, 0
    %v2118 = vsel %vm49, %v2110, 0
    %2120 = vmatprep.subr.mxu0 0.0
    %v2121 = vand.u32 %v2112, 4294901760
    %2122 = vmatpush1.msra.mxu0 %v2121
    %2123 = vmatprep.subr.mxu0 0.0
    %v2124 = vand.u32 %v2113, 4294901760
    %2125 = vmatpush1.msra.mxu0 %v2124
    %2126 = vmatprep.subr.mxu0 0.0
    %2127 = vmatpush1.msra.mxu0 0.0
    %2128 = vmatprep.subr.mxu0 0.0
    %2129 = vmatpush1.msra.mxu0 0.0
    %2130 = vmatprep.subr.mxu0 0.0
    %2131 = vmatpush1.msra.mxu0 0.0
    %2132 = vmatprep.subr.mxu0 0.0
    %2133 = vmatpush1.msra.mxu0 0.0
    %2134 = vmatprep.subr.mxu0 0.0
    %2135 = vmatpush1.msra.mxu0 0.0
    %2136 = vmatprep.subr.mxu0 0.0
    %2137 = vmatpush1.msra.mxu0 0.0
    %2138 = vmatprep.subr.mxu0 0.0
    %2139 = vmatpush1.msra.mxu0 0.0
    %2140 = vmatprep.subr.mxu0 0.0
    %2141 = vmatpush1.msra.mxu0 0.0
    %2142 = vmatprep.subr.mxu0 0.0
    %2143 = vmatpush1.msra.mxu0 0.0
    %2144 = vmatprep.subr.mxu0 0.0
    %2145 = vmatpush1.msra.mxu0 0.0
    %2146 = vmatprep.subr.mxu0 0.0
    %2147 = vmatpush1.msra.mxu0 0.0
    %2148 = vmatprep.subr.mxu0 0.0
    %2149 = vmatpush1.msra.mxu0 0.0
    %2150 = vmatprep.subr.mxu0 0.0
    %2151 = vmatpush1.msra.mxu0 0.0
    %2152 = vmatprep.subr.mxu0 0.0
    %2153 = vmatpush1.msra.mxu0 0.0
    %2154 = vmatprep.subr.mxu0 0.0
    %2155 = vmatpush1.msra.mxu0 0.0
    %2156 = vmatprep.subr.mxu0 0.0
    %2157 = vmatpush1.msra.mxu0 0.0
    %2158 = vmatprep.subr.mxu0 0.0
    %2159 = vmatpush1.msra.mxu0 0.0
    %2160 = vmatprep.subr.mxu0 0.0
    %2161 = vmatpush1.msra.mxu0 0.0
    %2162 = vmatprep.subr.mxu0 0.0
    %2163 = vmatpush1.msra.mxu0 0.0
    %2164 = vmatprep.subr.mxu0 0.0
    %2165 = vmatpush1.msra.mxu0 0.0
    %2166 = vmatprep.subr.mxu0 0.0
    %2167 = vmatpush1.msra.mxu0 0.0
    %2168 = vmatprep.subr.mxu0 0.0
    %2169 = vmatpush1.msra.mxu0 0.0
    %2170 = vmatprep.subr.mxu0 0.0
    %2171 = vmatpush1.msra.mxu0 0.0
    %2172 = vmatprep.subr.mxu0 0.0
    %2173 = vmatpush1.msra.mxu0 0.0
    %2174 = vmatprep.subr.mxu0 0.0
    %2175 = vmatpush1.msra.mxu0 0.0
    %2176 = vmatprep.subr.mxu0 0.0
    %2177 = vmatpush1.msra.mxu0 0.0
    %2178 = vmatprep.subr.mxu0 0.0
    %2179 = vmatpush1.msra.mxu0 0.0
    %2180 = vmatprep.subr.mxu0 0.0
    %2181 = vmatpush1.msra.mxu0 0.0
    %2182 = vmatprep.subr.mxu0 0.0
    %2183 = vmatpush1.msra.mxu0 0.0
    %2184 = vmatprep.subr.mxu0 0.0
    %2185 = vmatpush1.msra.mxu0 0.0
    %2186 = vmatprep.mubr.f32.mxu0 0.0
    %v2187 = vand.u32 %v2115, 4294901760
    %v2188 = vsub.f32 %v2115, %v2187
    %v2189 = vand.u32 %v2188, 4294901760
    %v2190 = vsub.f32 %v2188, %v2189
    %v2191 = vand.u32 %v2190, 4294901760
    %2192 = vmatmul.mubr.f32.gmra.mrb[0].mxu0 %v2191
    %v2193 = vpop.f32.mrb[0].mxu0
    %v2194 = vadd.f32 0.0, %v2193
    %v2195 = vpop.f32.mrb[0].mxu0
    %2196 = vmatprep.mubr.f32.mxu0 0.0
    %v2197 = vand.u32 %v2118, 4294901760
    %v2198 = vsub.f32 %v2118, %v2197
    %v2199 = vand.u32 %v2198, 4294901760
    %v2200 = vsub.f32 %v2198, %v2199
    %v2201 = vand.u32 %v2200, 4294901760
    %2202 = vmatmul.mubr.f32.gmra.mrb[0].mxu0 %v2201
    %v2203 = vpop.f32.mrb[0].mxu0
    %v2204 = vadd.f32 0.0, %v2203
    %v2205 = vpop.f32.mrb[0].mxu0
    %2206 = vdwg.mxu0
    %2207 = vmatprep.subr.mxu0 0.0
    %v2208 = vand.u32 %v2112, 4294901760
    %v2209 = vsub.f32 %v2112, %v2208
    %v2210 = vand.u32 %v2209, 4294901760
    %v2211 = vsub.f32 %v2209, %v2210
    %v2212 = vand.u32 %v2211, 4294901760
    %2213 = vmatpush1.msra.mxu0 %v2212
    %2214 = vmatprep.subr.mxu0 0.0
    %v2215 = vand.u32 %v2113, 4294901760
    %v2216 = vsub.f32 %v2113, %v2215
    %v2217 = vand.u32 %v2216, 4294901760
    %v2218 = vsub.f32 %v2216, %v2217
    %v2219 = vand.u32 %v2218, 4294901760
    %2220 = vmatpush1.msra.mxu0 %v2219
    %2221 = vmatprep.subr.mxu0 0.0
    %2222 = vmatpush1.msra.mxu0 0.0
    %2223 = vmatprep.subr.mxu0 0.0
    %2224 = vmatpush1.msra.mxu0 0.0
    %2225 = vmatprep.subr.mxu0 0.0
    %2226 = vmatpush1.msra.mxu0 0.0
    %2227 = vmatprep.subr.mxu0 0.0
    %2228 = vmatpush1.msra.mxu0 0.0
    %2229 = vmatprep.subr.mxu0 0.0
    %2230 = vmatpush1.msra.mxu0 0.0
    %2231 = vmatprep.subr.mxu0 0.0
    %2232 = vmatpush1.msra.mxu0 0.0
    %2233 = vmatprep.subr.mxu0 0.0
    %2234 = vmatpush1.msra.mxu0 0.0
    %2235 = vmatprep.subr.mxu0 0.0
    %2236 = vmatpush1.msra.mxu0 0.0
    %2237 = vmatprep.subr.mxu0 0.0
    %2238 = vmatpush1.msra.mxu0 0.0
    %2239 = vmatprep.subr.mxu0 0.0
    %2240 = vmatpush1.msra.mxu0 0.0
    %2241 = vmatprep.subr.mxu0 0.0
    %2242 = vmatpush1.msra.mxu0 0.0
    %2243 = vmatprep.subr.mxu0 0.0
    %2244 = vmatpush1.msra.mxu0 0.0
    %2245 = vmatprep.subr.mxu0 0.0
    %2246 = vmatpush1.msra.mxu0 0.0
    %2247 = vmatprep.subr.mxu0 0.0
    %2248 = vmatpush1.msra.mxu0 0.0
    %2249 = vmatprep.subr.mxu0 0.0
    %2250 = vmatpush1.msra.mxu0 0.0
    %2251 = vmatprep.subr.mxu0 0.0
    %2252 = vmatpush1.msra.mxu0 0.0
    %2253 = vmatprep.subr.mxu0 0.0
    %2254 = vmatpush1.msra.mxu0 0.0
    %2255 = vmatprep.subr.mxu0 0.0
    %2256 = vmatpush1.msra.mxu0 0.0
    %2257 = vmatprep.subr.mxu0 0.0
    %2258 = vmatpush1.msra.mxu0 0.0
    %2259 = vmatprep.subr.mxu0 0.0
    %2260 = vmatpush1.msra.mxu0 0.0
    %2261 = vmatprep.subr.mxu0 0.0
    %2262 = vmatpush1.msra.mxu0 0.0
    %2263 = vmatprep.subr.mxu0 0.0
    %2264 = vmatpush1.msra.mxu0 0.0
    %2265 = vmatprep.subr.mxu0 0.0
    %2266 = vmatpush1.msra.mxu0 0.0
    %2267 = vmatprep.subr.mxu0 0.0
    %2268 = vmatpush1.msra.mxu0 0.0
    %2269 = vmatprep.subr.mxu0 0.0
    %2270 = vmatpush1.msra.mxu0 0.0
    %2271 = vmatprep.subr.mxu0 0.0
    %2272 = vmatpush1.msra.mxu0 0.0
    %2273 = vmatprep.subr.mxu0 0.0
    %2274 = vmatpush1.msra.mxu0 0.0
    %2275 = vmatprep.subr.mxu0 0.0
    %2276 = vmatpush1.msra.mxu0 0.0
    %2277 = vmatprep.subr.mxu0 0.0
    %2278 = vmatpush1.msra.mxu0 0.0
    %2279 = vmatprep.subr.mxu0 0.0
    %2280 = vmatpush1.msra.mxu0 0.0
    %2281 = vmatprep.mubr.f32.mxu0 0.0
    %v2282 = vand.u32 %v2115, 4294901760
    %2283 = vmatmul.mubr.f32.gmra.mrb[0].mxu0 %v2282
    %v2284 = vpop.f32.mrb[0].mxu0
    %v2285 = vadd.f32 %v2194, %v2284
    %v2286 = vpop.f32.mrb[0].mxu0
    %2287 = vmatprep.mubr.f32.mxu0 0.0
    %v2288 = vand.u32 %v2118, 4294901760
    %2289 = vmatmul.mubr.f32.gmra.mrb[0].mxu0 %v2288
    %v2290 = vpop.f32.mrb[0].mxu0
    %v2291 = vadd.f32 %v2204, %v2290
    %v2292 = vpop.f32.mrb[0].mxu0
    %2293 = vdwg.mxu0
    %2294 = vmatprep.subr.mxu0 0.0
    %v2295 = vand.u32 %v2112, 4294901760
    %v2296 = vsub.f32 %v2112, %v2295
    %2297 = vmatpush1.msra.mxu0 %v2296
    %2298 = vmatprep.subr.mxu0 0.0
    %v2299 = vand.u32 %v2113, 4294901760
    %v2300 = vsub.f32 %v2113, %v2299
    %2301 = vmatpush1.msra.mxu0 %v2300
    %2302 = vmatprep.subr.mxu0 0.0
    %2303 = vmatpush1.msra.mxu0 0.0
    %2304 = vmatprep.subr.mxu0 0.0
    %2305 = vmatpush1.msra.mxu0 0.0
    %2306 = vmatprep.subr.mxu0 0.0
    %2307 = vmatpush1.msra.mxu0 0.0
    %2308 = vmatprep.subr.mxu0 0.0
    %2309 = vmatpush1.msra.mxu0 0.0
    %2310 = vmatprep.subr.mxu0 0.0
    %2311 = vmatpush1.msra.mxu0 0.0
    %2312 = vmatprep.subr.mxu0 0.0
    %2313 = vmatpush1.msra.mxu0 0.0
    %2314 = vmatprep.subr.mxu0 0.0
    %2315 = vmatpush1.msra.mxu0 0.0
    %2316 = vmatprep.subr.mxu0 0.0
    %2317 = vmatpush1.msra.mxu0 0.0
    %2318 = vmatprep.subr.mxu0 0.0
    %2319 = vmatpush1.msra.mxu0 0.0
    %2320 = vmatprep.subr.mxu0 0.0
    %2321 = vmatpush1.msra.mxu0 0.0
    %2322 = vmatprep.subr.mxu0 0.0
    %2323 = vmatpush1.msra.mxu0 0.0
    %2324 = vmatprep.subr.mxu0 0.0
    %2325 = vmatpush1.msra.mxu0 0.0
    %2326 = vmatprep.subr.mxu0 0.0
    %2327 = vmatpush1.msra.mxu0 0.0
    %2328 = vmatprep.subr.mxu0 0.0
    %2329 = vmatpush1.msra.mxu0 0.0
    %2330 = vmatprep.subr.mxu0 0.0
    %2331 = vmatpush1.msra.mxu0 0.0
    %2332 = vmatprep.subr.mxu0 0.0
    %2333 = vmatpush1.msra.mxu0 0.0
    %2334 = vmatprep.subr.mxu0 0.0
    %2335 = vmatpush1.msra.mxu0 0.0
    %2336 = vmatprep.subr.mxu0 0.0
    %2337 = vmatpush1.msra.mxu0 0.0
    %2338 = vmatprep.subr.mxu0 0.0
    %2339 = vmatpush1.msra.mxu0 0.0
    %2340 = vmatprep.subr.mxu0 0.0
    %2341 = vmatpush1.msra.mxu0 0.0
    %2342 = vmatprep.subr.mxu0 0.0
    %2343 = vmatpush1.msra.mxu0 0.0
    %2344 = vmatprep.subr.mxu0 0.0
    %2345 = vmatpush1.msra.mxu0 0.0
    %2346 = vmatprep.subr.mxu0 0.0
    %2347 = vmatpush1.msra.mxu0 0.0
    %2348 = vmatprep.subr.mxu0 0.0
    %2349 = vmatpush1.msra.mxu0 0.0
    %2350 = vmatprep.subr.mxu0 0.0
    %2351 = vmatpush1.msra.mxu0 0.0
    %2352 = vmatprep.subr.mxu0 0.0
    %2353 = vmatpush1.msra.mxu0 0.0
    %2354 = vmatprep.subr.mxu0 0.0
    %2355 = vmatpush1.msra.mxu0 0.0
    %2356 = vmatprep.subr.mxu0 0.0
    %2357 = vmatpush1.msra.mxu0 0.0
    %2358 = vmatprep.subr.mxu0 0.0
    %2359 = vmatpush1.msra.mxu0 0.0
    %2360 = vmatprep.subr.mxu0 0.0
    %2361 = vmatpush1.msra.mxu0 0.0
    %2362 = vmatprep.mubr.f32.mxu0 0.0
    %v2363 = vand.u32 %v2115, 4294901760
    %v2364 = vsub.f32 %v2115, %v2363
    %2365 = vmatmul.mubr.f32.gmra.mrb[0].mxu0 %v2364
    %v2366 = vpop.f32.mrb[0].mxu0
    %v2367 = vadd.f32 %v2285, %v2366
    %v2368 = vpop.f32.mrb[0].mxu0
    %2369 = vmatprep.mubr.f32.mxu0 0.0
    %v2370 = vand.u32 %v2118, 4294901760
    %v2371 = vsub.f32 %v2118, %v2370
    %2372 = vmatmul.mubr.f32.gmra.mrb[0].mxu0 %v2371
    %v2373 = vpop.f32.mrb[0].mxu0
    %v2374 = vadd.f32 %v2291, %v2373
    %v2375 = vpop.f32.mrb[0].mxu0
    %2376 = vdwg.mxu0
    %2377 = vmatprep.subr.mxu0 0.0
    %v2378 = vand.u32 %v2112, 4294901760
    %2379 = vmatpush1.msra.mxu0 %v2378
    %2380 = vmatprep.subr.mxu0 0.0
    %v2381 = vand.u32 %v2113, 4294901760
    %2382 = vmatpush1.msra.mxu0 %v2381
    %2383 = vmatprep.subr.mxu0 0.0
    %2384 = vmatpush1.msra.mxu0 0.0
    %2385 = vmatprep.subr.mxu0 0.0
    %2386 = vmatpush1.msra.mxu0 0.0
    %2387 = vmatprep.subr.mxu0 0.0
    %2388 = vmatpush1.msra.mxu0 0.0
    %2389 = vmatprep.subr.mxu0 0.0
    %2390 = vmatpush1.msra.mxu0 0.0
    %2391 = vmatprep.subr.mxu0 0.0
    %2392 = vmatpush1.msra.mxu0 0.0
    %2393 = vmatprep.subr.mxu0 0.0
    %2394 = vmatpush1.msra.mxu0 0.0
    %2395 = vmatprep.subr.mxu0 0.0
    %2396 = vmatpush1.msra.mxu0 0.0
    %2397 = vmatprep.subr.mxu0 0.0
    %2398 = vmatpush1.msra.mxu0 0.0
    %2399 = vmatprep.subr.mxu0 0.0
    %2400 = vmatpush1.msra.mxu0 0.0
    %2401 = vmatprep.subr.mxu0 0.0
    %2402 = vmatpush1.msra.mxu0 0.0
    %2403 = vmatprep.subr.mxu0 0.0
    %2404 = vmatpush1.msra.mxu0 0.0
    %2405 = vmatprep.subr.mxu0 0.0
    %2406 = vmatpush1.msra.mxu0 0.0
    %2407 = vmatprep.subr.mxu0 0.0
    %2408 = vmatpush1.msra.mxu0 0.0
    %2409 = vmatprep.subr.mxu0 0.0
    %2410 = vmatpush1.msra.mxu0 0.0
    %2411 = vmatprep.subr.mxu0 0.0
    %2412 = vmatpush1.msra.mxu0 0.0
    %2413 = vmatprep.subr.mxu0 0.0
    %2414 = vmatpush1.msra.mxu0 0.0
    %2415 = vmatprep.subr.mxu0 0.0
    %2416 = vmatpush1.msra.mxu0 0.0
    %2417 = vmatprep.subr.mxu0 0.0
    %2418 = vmatpush1.msra.mxu0 0.0
    %2419 = vmatprep.subr.mxu0 0.0
    %2420 = vmatpush1.msra.mxu0 0.0
    %2421 = vmatprep.subr.mxu0 0.0
    %2422 = vmatpush1.msra.mxu0 0.0
    %2423 = vmatprep.subr.mxu0 0.0
    %2424 = vmatpush1.msra.mxu0 0.0
    %2425 = vmatprep.subr.mxu0 0.0
    %2426 = vmatpush1.msra.mxu0 0.0
    %2427 = vmatprep.subr.mxu0 0.0
    %2428 = vmatpush1.msra.mxu0 0.0
    %2429 = vmatprep.subr.mxu0 0.0
    %2430 = vmatpush1.msra.mxu0 0.0
    %2431 = vmatprep.subr.mxu0 0.0
    %2432 = vmatpush1.msra.mxu0 0.0
    %2433 = vmatprep.subr.mxu0 0.0
    %2434 = vmatpush1.msra.mxu0 0.0
    %2435 = vmatprep.subr.mxu0 0.0
    %2436 = vmatpush1.msra.mxu0 0.0
    %2437 = vmatprep.subr.mxu0 0.0
    %2438 = vmatpush1.msra.mxu0 0.0
    %2439 = vmatprep.subr.mxu0 0.0
    %2440 = vmatpush1.msra.mxu0 0.0
    %2441 = vmatprep.subr.mxu0 0.0
    %2442 = vmatpush1.msra.mxu0 0.0
    %2443 = vmatprep.mubr.f32.mxu0 0.0
    %v2444 = vand.u32 %v2115, 4294901760
    %v2445 = vsub.f32 %v2115, %v2444
    %v2446 = vand.u32 %v2445, 4294901760
    %2447 = vmatmul.mubr.f32.gmra.mrb[0].mxu0 %v2446
    %v2448 = vpop.f32.mrb[0].mxu0
    %v2449 = vadd.f32 %v2367, %v2448
    %v2450 = vpop.f32.mrb[0].mxu0
    %2451 = vmatprep.mubr.f32.mxu0 0.0
    %v2452 = vand.u32 %v2118, 4294901760
    %v2453 = vsub.f32 %v2118, %v2452
    %v2454 = vand.u32 %v2453, 4294901760
    %2455 = vmatmul.mubr.f32.gmra.mrb[0].mxu0 %v2454
    %v2456 = vpop.f32.mrb[0].mxu0
    %v2457 = vadd.f32 %v2374, %v2456
    %v2458 = vpop.f32.mrb[0].mxu0
    %2459 = vdwg.mxu0
    %2460 = vmatprep.subr.mxu0 0.0
    %v2461 = vand.u32 %v2112, 4294901760
    %v2462 = vsub.f32 %v2112, %v2461
    %v2463 = vand.u32 %v2462, 4294901760
    %2464 = vmatpush1.msra.mxu0 %v2463
    %2465 = vmatprep.subr.mxu0 0.0
    %v2466 = vand.u32 %v2113, 4294901760
    %v2467 = vsub.f32 %v2113, %v2466
    %v2468 = vand.u32 %v2467, 4294901760
    %2469 = vmatpush1.msra.mxu0 %v2468
    %2470 = vmatprep.subr.mxu0 0.0
    %2471 = vmatpush1.msra.mxu0 0.0
    %2472 = vmatprep.subr.mxu0 0.0
    %2473 = vmatpush1.msra.mxu0 0.0
    %2474 = vmatprep.subr.mxu0 0.0
    %2475 = vmatpush1.msra.mxu0 0.0
    %2476 = vmatprep.subr.mxu0 0.0
    %2477 = vmatpush1.msra.mxu0 0.0
    %2478 = vmatprep.subr.mxu0 0.0
    %2479 = vmatpush1.msra.mxu0 0.0
    %2480 = vmatprep.subr.mxu0 0.0
    %2481 = vmatpush1.msra.mxu0 0.0
    %2482 = vmatprep.subr.mxu0 0.0
    %2483 = vmatpush1.msra.mxu0 0.0
    %2484 = vmatprep.subr.mxu0 0.0
    %2485 = vmatpush1.msra.mxu0 0.0
    %2486 = vmatprep.subr.mxu0 0.0
    %2487 = vmatpush1.msra.mxu0 0.0
    %2488 = vmatprep.subr.mxu0 0.0
    %2489 = vmatpush1.msra.mxu0 0.0
    %2490 = vmatprep.subr.mxu0 0.0
    %2491 = vmatpush1.msra.mxu0 0.0
    %2492 = vmatprep.subr.mxu0 0.0
    %2493 = vmatpush1.msra.mxu0 0.0
    %2494 = vmatprep.subr.mxu0 0.0
    %2495 = vmatpush1.msra.mxu0 0.0
    %2496 = vmatprep.subr.mxu0 0.0
    %2497 = vmatpush1.msra.mxu0 0.0
    %2498 = vmatprep.subr.mxu0 0.0
    %2499 = vmatpush1.msra.mxu0 0.0
    %2500 = vmatprep.subr.mxu0 0.0
    %2501 = vmatpush1.msra.mxu0 0.0
    %2502 = vmatprep.subr.mxu0 0.0
    %2503 = vmatpush1.msra.mxu0 0.0
    %2504 = vmatprep.subr.mxu0 0.0
    %2505 = vmatpush1.msra.mxu0 0.0
    %2506 = vmatprep.subr.mxu0 0.0
    %2507 = vmatpush1.msra.mxu0 0.0
    %2508 = vmatprep.subr.mxu0 0.0
    %2509 = vmatpush1.msra.mxu0 0.0
    %2510 = vmatprep.subr.mxu0 0.0
    %2511 = vmatpush1.msra.mxu0 0.0
    %2512 = vmatprep.subr.mxu0 0.0
    %2513 = vmatpush1.msra.mxu0 0.0
    %2514 = vmatprep.subr.mxu0 0.0
    %2515 = vmatpush1.msra.mxu0 0.0
    %2516 = vmatprep.subr.mxu0 0.0
    %2517 = vmatpush1.msra.mxu0 0.0
    %2518 = vmatprep.subr.mxu0 0.0
    %2519 = vmatpush1.msra.mxu0 0.0
    %2520 = vmatprep.subr.mxu0 0.0
    %2521 = vmatpush1.msra.mxu0 0.0
    %2522 = vmatprep.subr.mxu0 0.0
    %2523 = vmatpush1.msra.mxu0 0.0
    %2524 = vmatprep.subr.mxu0 0.0
    %2525 = vmatpush1.msra.mxu0 0.0
    %2526 = vmatprep.subr.mxu0 0.0
    %2527 = vmatpush1.msra.mxu0 0.0
    %2528 = vmatprep.subr.mxu0 0.0
    %2529 = vmatpush1.msra.mxu0 0.0
    %2530 = vmatprep.mubr.f32.mxu0 0.0
    %v2531 = vand.u32 %v2115, 4294901760
    %2532 = vmatmul.mubr.f32.gmra.mrb[0].mxu0 %v2531
    %v2533 = vpop.f32.mrb[0].mxu0
    %v2534 = vadd.f32 %v2449, %v2533
    %v2535 = vpop.f32.mrb[0].mxu0
    %2536 = vmatprep.mubr.f32.mxu0 0.0
    %v2537 = vand.u32 %v2118, 4294901760
    %2538 = vmatmul.mubr.f32.gmra.mrb[0].mxu0 %v2537
    %v2539 = vpop.f32.mrb[0].mxu0
    %v2540 = vadd.f32 %v2457, %v2539
    %v2541 = vpop.f32.mrb[0].mxu0
    %2542 = vdwg.mxu0
    %2543 = vmatprep.subr.mxu0 0.0
    %v2544 = vand.u32 %v2112, 4294901760
    %2545 = vmatpush1.msra.mxu0 %v2544
    %2546 = vmatprep.subr.mxu0 0.0
    %v2547 = vand.u32 %v2113, 4294901760
    %2548 = vmatpush1.msra.mxu0 %v2547
    %2549 = vmatprep.subr.mxu0 0.0
    %2550 = vmatpush1.msra.mxu0 0.0
    %2551 = vmatprep.subr.mxu0 0.0
    %2552 = vmatpush1.msra.mxu0 0.0
    %2553 = vmatprep.subr.mxu0 0.0
    %2554 = vmatpush1.msra.mxu0 0.0
    %2555 = vmatprep.subr.mxu0 0.0
    %2556 = vmatpush1.msra.mxu0 0.0
    %2557 = vmatprep.subr.mxu0 0.0
    %2558 = vmatpush1.msra.mxu0 0.0
    %2559 = vmatprep.subr.mxu0 0.0
    %2560 = vmatpush1.msra.mxu0 0.0
    %2561 = vmatprep.subr.mxu0 0.0
    %2562 = vmatpush1.msra.mxu0 0.0
    %2563 = vmatprep.subr.mxu0 0.0
    %2564 = vmatpush1.msra.mxu0 0.0
    %2565 = vmatprep.subr.mxu0 0.0
    %2566 = vmatpush1.msra.mxu0 0.0
    %2567 = vmatprep.subr.mxu0 0.0
    %2568 = vmatpush1.msra.mxu0 0.0
    %2569 = vmatprep.subr.mxu0 0.0
    %2570 = vmatpush1.msra.mxu0 0.0
    %2571 = vmatprep.subr.mxu0 0.0
    %2572 = vmatpush1.msra.mxu0 0.0
    %2573 = vmatprep.subr.mxu0 0.0
    %2574 = vmatpush1.msra.mxu0 0.0
    %2575 = vmatprep.subr.mxu0 0.0
    %2576 = vmatpush1.msra.mxu0 0.0
    %2577 = vmatprep.subr.mxu0 0.0
    %2578 = vmatpush1.msra.mxu0 0.0
    %2579 = vmatprep.subr.mxu0 0.0
    %2580 = vmatpush1.msra.mxu0 0.0
    %2581 = vmatprep.subr.mxu0 0.0
    %2582 = vmatpush1.msra.mxu0 0.0
    %2583 = vmatprep.subr.mxu0 0.0
    %2584 = vmatpush1.msra.mxu0 0.0
    %2585 = vmatprep.subr.mxu0 0.0
    %2586 = vmatpush1.msra.mxu0 0.0
    %2587 = vmatprep.subr.mxu0 0.0
    %2588 = vmatpush1.msra.mxu0 0.0
    %2589 = vmatprep.subr.mxu0 0.0
    %2590 = vmatpush1.msra.mxu0 0.0
    %2591 = vmatprep.subr.mxu0 0.0
    %2592 = vmatpush1.msra.mxu0 0.0
    %2593 = vmatprep.subr.mxu0 0.0
    %2594 = vmatpush1.msra.mxu0 0.0
    %2595 = vmatprep.subr.mxu0 0.0
    %2596 = vmatpush1.msra.mxu0 0.0
    %2597 = vmatprep.subr.mxu0 0.0
    %2598 = vmatpush1.msra.mxu0 0.0
    %2599 = vmatprep.subr.mxu0 0.0
    %2600 = vmatpush1.msra.mxu0 0.0
    %2601 = vmatprep.subr.mxu0 0.0
    %2602 = vmatpush1.msra.mxu0 0.0
    %2603 = vmatprep.subr.mxu0 0.0
    %2604 = vmatpush1.msra.mxu0 0.0
    %2605 = vmatprep.subr.mxu0 0.0
    %2606 = vmatpush1.msra.mxu0 0.0
    %2607 = vmatprep.subr.mxu0 0.0
    %2608 = vmatpush1.msra.mxu0 0.0
    %2609 = vmatprep.mubr.f32.mxu0 0.0
    %v2610 = vand.u32 %v2115, 4294901760
    %2611 = vmatmul.mubr.f32.gmra.mrb[0].mxu0 %v2610
    %v2612 = vpop.f32.mrb[0].mxu0
    %v2613 = vadd.f32 %v2534, %v2612
    %v2614 = vpop.f32.mrb[0].mxu0
    %2615 = vmatprep.mubr.f32.mxu0 0.0
    %v2616 = vand.u32 %v2118, 4294901760
    %2617 = vmatmul.mubr.f32.gmra.mrb[0].mxu0 %v2616
    %v2618 = vpop.f32.mrb[0].mxu0
    %v2619 = vadd.f32 %v2540, %v2618
    %v2620 = vpop.f32.mrb[0].mxu0
    %2621 = vdwg.mxu0
    %v2622 = vadd.f32 %v2107, %v2613
    %v2623 = vadd.f32 %v2108, %v2619
    %v2624 = vld [vmem:[#allocation2 + $0x5] sm:$0xff]
    %v2625 = vld [vmem:[#allocation2 + $0xd] sm:$0xff]
    %s2626 = scalar_lea.vmem [#allocation6], 80
    %v2627 = vld [vmem:[%s2626] sm:$0xff]
    %v2628 = vld [vmem:[%s2626 + $0x8] sm:$0xff]
    %v2630 = vsel %vm49, %v2624, 0
    %v2633 = vsel %vm49, %v2625, 0
    %2635 = vmatprep.subr.mxu0 0.0
    %v2636 = vand.u32 %v2627, 4294901760
    %2637 = vmatpush1.msra.mxu0 %v2636
    %2638 = vmatprep.subr.mxu0 0.0
    %v2639 = vand.u32 %v2628, 4294901760
    %2640 = vmatpush1.msra.mxu0 %v2639
    %2641 = vmatprep.subr.mxu0 0.0
    %2642 = vmatpush1.msra.mxu0 0.0
    %2643 = vmatprep.subr.mxu0 0.0
    %2644 = vmatpush1.msra.mxu0 0.0
    %2645 = vmatprep.subr.mxu0 0.0
    %2646 = vmatpush1.msra.mxu0 0.0
    %2647 = vmatprep.subr.mxu0 0.0
    %2648 = vmatpush1.msra.mxu0 0.0
    %2649 = vmatprep.subr.mxu0 0.0
    %2650 = vmatpush1.msra.mxu0 0.0
    %2651 = vmatprep.subr.mxu0 0.0
    %2652 = vmatpush1.msra.mxu0 0.0
    %2653 = vmatprep.subr.mxu0 0.0
    %2654 = vmatpush1.msra.mxu0 0.0
    %2655 = vmatprep.subr.mxu0 0.0
    %2656 = vmatpush1.msra.mxu0 0.0
    %2657 = vmatprep.subr.mxu0 0.0
    %2658 = vmatpush1.msra.mxu0 0.0
    %2659 = vmatprep.subr.mxu0 0.0
    %2660 = vmatpush1.msra.mxu0 0.0
    %2661 = vmatprep.subr.mxu0 0.0
    %2662 = vmatpush1.msra.mxu0 0.0
    %2663 = vmatprep.subr.mxu0 0.0
    %2664 = vmatpush1.msra.mxu0 0.0
    %2665 = vmatprep.subr.mxu0 0.0
    %2666 = vmatpush1.msra.mxu0 0.0
    %2667 = vmatprep.subr.mxu0 0.0
    %2668 = vmatpush1.msra.mxu0 0.0
    %2669 = vmatprep.subr.mxu0 0.0
    %2670 = vmatpush1.msra.mxu0 0.0
    %2671 = vmatprep.subr.mxu0 0.0
    %2672 = vmatpush1.msra.mxu0 0.0
    %2673 = vmatprep.subr.mxu0 0.0
    %2674 = vmatpush1.msra.mxu0 0.0
    %2675 = vmatprep.subr.mxu0 0.0
    %2676 = vmatpush1.msra.mxu0 0.0
    %2677 = vmatprep.subr.mxu0 0.0
    %2678 = vmatpush1.msra.mxu0 0.0
    %2679 = vmatprep.subr.mxu0 0.0
    %2680 = vmatpush1.msra.mxu0 0.0
    %2681 = vmatprep.subr.mxu0 0.0
    %2682 = vmatpush1.msra.mxu0 0.0
    %2683 = vmatprep.subr.mxu0 0.0
    %2684 = vmatpush1.msra.mxu0 0.0
    %2685 = vmatprep.subr.mxu0 0.0
    %2686 = vmatpush1.msra.mxu0 0.0
    %2687 = vmatprep.subr.mxu0 0.0
    %2688 = vmatpush1.msra.mxu0 0.0
    %2689 = vmatprep.subr.mxu0 0.0
    %2690 = vmatpush1.msra.mxu0 0.0
    %2691 = vmatprep.subr.mxu0 0.0
    %2692 = vmatpush1.msra.mxu0 0.0
    %2693 = vmatprep.subr.mxu0 0.0
    %2694 = vmatpush1.msra.mxu0 0.0
    %2695 = vmatprep.subr.mxu0 0.0
    %2696 = vmatpush1.msra.mxu0 0.0
    %2697 = vmatprep.subr.mxu0 0.0
    %2698 = vmatpush1.msra.mxu0 0.0
    %2699 = vmatprep.subr.mxu0 0.0
    %2700 = vmatpush1.msra.mxu0 0.0
    %2701 = vmatprep.mubr.f32.mxu0 0.0
    %v2702 = vand.u32 %v2630, 4294901760
    %v2703 = vsub.f32 %v2630, %v2702
    %v2704 = vand.u32 %v2703, 4294901760
    %v2705 = vsub.f32 %v2703, %v2704
    %v2706 = vand.u32 %v2705, 4294901760
    %2707 = vmatmul.mubr.f32.gmra.mrb[0].mxu0 %v2706
    %v2708 = vpop.f32.mrb[0].mxu0
    %v2709 = vadd.f32 0.0, %v2708
    %v2710 = vpop.f32.mrb[0].mxu0
    %2711 = vmatprep.mubr.f32.mxu0 0.0
    %v2712 = vand.u32 %v2633, 4294901760
    %v2713 = vsub.f32 %v2633, %v2712
    %v2714 = vand.u32 %v2713, 4294901760
    %v2715 = vsub.f32 %v2713, %v2714
    %v2716 = vand.u32 %v2715, 4294901760
    %2717 = vmatmul.mubr.f32.gmra.mrb[0].mxu0 %v2716
    %v2718 = vpop.f32.mrb[0].mxu0
    %v2719 = vadd.f32 0.0, %v2718
    %v2720 = vpop.f32.mrb[0].mxu0
    %2721 = vdwg.mxu0
    %2722 = vmatprep.subr.mxu0 0.0
    %v2723 = vand.u32 %v2627, 4294901760
    %v2724 = vsub.f32 %v2627, %v2723
    %v2725 = vand.u32 %v2724, 4294901760
    %v2726 = vsub.f32 %v2724, %v2725
    %v2727 = vand.u32 %v2726, 4294901760
    %2728 = vmatpush1.msra.mxu0 %v2727
    %2729 = vmatprep.subr.mxu0 0.0
    %v2730 = vand.u32 %v2628, 4294901760
    %v2731 = vsub.f32 %v2628, %v2730
    %v2732 = vand.u32 %v2731, 4294901760
    %v2733 = vsub.f32 %v2731, %v2732
    %v2734 = vand.u32 %v2733, 4294901760
    %2735 = vmatpush1.msra.mxu0 %v2734
    %2736 = vmatprep.subr.mxu0 0.0
    %2737 = vmatpush1.msra.mxu0 0.0
    %2738 = vmatprep.subr.mxu0 0.0
    %2739 = vmatpush1.msra.mxu0 0.0
    %2740 = vmatprep.subr.mxu0 0.0
    %2741 = vmatpush1.msra.mxu0 0.0
    %2742 = vmatprep.subr.mxu0 0.0
    %2743 = vmatpush1.msra.mxu0 0.0
    %2744 = vmatprep.subr.mxu0 0.0
    %2745 = vmatpush1.msra.mxu0 0.0
    %2746 = vmatprep.subr.mxu0 0.0
    %2747 = vmatpush1.msra.mxu0 0.0
    %2748 = vmatprep.subr.mxu0 0.0
    %2749 = vmatpush1.msra.mxu0 0.0
    %2750 = vmatprep.subr.mxu0 0.0
    %2751 = vmatpush1.msra.mxu0 0.0
    %2752 = vmatprep.subr.mxu0 0.0
    %2753 = vmatpush1.msra.mxu0 0.0
    %2754 = vmatprep.subr.mxu0 0.0
    %2755 = vmatpush1.msra.mxu0 0.0
    %2756 = vmatprep.subr.mxu0 0.0
    %2757 = vmatpush1.msra.mxu0 0.0
    %2758 = vmatprep.subr.mxu0 0.0
    %2759 = vmatpush1.msra.mxu0 0.0
    %2760 = vmatprep.subr.mxu0 0.0
    %2761 = vmatpush1.msra.mxu0 0.0
    %2762 = vmatprep.subr.mxu0 0.0
    %2763 = vmatpush1.msra.mxu0 0.0
    %2764 = vmatprep.subr.mxu0 0.0
    %2765 = vmatpush1.msra.mxu0 0.0
    %2766 = vmatprep.subr.mxu0 0.0
    %2767 = vmatpush1.msra.mxu0 0.0
    %2768 = vmatprep.subr.mxu0 0.0
    %2769 = vmatpush1.msra.mxu0 0.0
    %2770 = vmatprep.subr.mxu0 0.0
    %2771 = vmatpush1.msra.mxu0 0.0
    %2772 = vmatprep.subr.mxu0 0.0
    %2773 = vmatpush1.msra.mxu0 0.0
    %2774 = vmatprep.subr.mxu0 0.0
    %2775 = vmatpush1.msra.mxu0 0.0
    %2776 = vmatprep.subr.mxu0 0.0
    %2777 = vmatpush1.msra.mxu0 0.0
    %2778 = vmatprep.subr.mxu0 0.0
    %2779 = vmatpush1.msra.mxu0 0.0
    %2780 = vmatprep.subr.mxu0 0.0
    %2781 = vmatpush1.msra.mxu0 0.0
    %2782 = vmatprep.subr.mxu0 0.0
    %2783 = vmatpush1.msra.mxu0 0.0
    %2784 = vmatprep.subr.mxu0 0.0
    %2785 = vmatpush1.msra.mxu0 0.0
    %2786 = vmatprep.subr.mxu0 0.0
    %2787 = vmatpush1.msra.mxu0 0.0
    %2788 = vmatprep.subr.mxu0 0.0
    %2789 = vmatpush1.msra.mxu0 0.0
    %2790 = vmatprep.subr.mxu0 0.0
    %2791 = vmatpush1.msra.mxu0 0.0
    %2792 = vmatprep.subr.mxu0 0.0
    %2793 = vmatpush1.msra.mxu0 0.0
    %2794 = vmatprep.subr.mxu0 0.0
    %2795 = vmatpush1.msra.mxu0 0.0
    %2796 = vmatprep.mubr.f32.mxu0 0.0
    %v2797 = vand.u32 %v2630, 4294901760
    %2798 = vmatmul.mubr.f32.gmra.mrb[0].mxu0 %v2797
    %v2799 = vpop.f32.mrb[0].mxu0
    %v2800 = vadd.f32 %v2709, %v2799
    %v2801 = vpop.f32.mrb[0].mxu0
    %2802 = vmatprep.mubr.f32.mxu0 0.0
    %v2803 = vand.u32 %v2633, 4294901760
    %2804 = vmatmul.mubr.f32.gmra.mrb[0].mxu0 %v2803
    %v2805 = vpop.f32.mrb[0].mxu0
    %v2806 = vadd.f32 %v2719, %v2805
    %v2807 = vpop.f32.mrb[0].mxu0
    %2808 = vdwg.mxu0
    %2809 = vmatprep.subr.mxu0 0.0
    %v2810 = vand.u32 %v2627, 4294901760
    %v2811 = vsub.f32 %v2627, %v2810
    %2812 = vmatpush1.msra.mxu0 %v2811
    %2813 = vmatprep.subr.mxu0 0.0
    %v2814 = vand.u32 %v2628, 4294901760
    %v2815 = vsub.f32 %v2628, %v2814
    %2816 = vmatpush1.msra.mxu0 %v2815
    %2817 = vmatprep.subr.mxu0 0.0
    %2818 = vmatpush1.msra.mxu0 0.0
    %2819 = vmatprep.subr.mxu0 0.0
    %2820 = vmatpush1.msra.mxu0 0.0
    %2821 = vmatprep.subr.mxu0 0.0
    %2822 = vmatpush1.msra.mxu0 0.0
    %2823 = vmatprep.subr.mxu0 0.0
    %2824 = vmatpush1.msra.mxu0 0.0
    %2825 = vmatprep.subr.mxu0 0.0
    %2826 = vmatpush1.msra.mxu0 0.0
    %2827 = vmatprep.subr.mxu0 0.0
    %2828 = vmatpush1.msra.mxu0 0.0
    %2829 = vmatprep.subr.mxu0 0.0
    %2830 = vmatpush1.msra.mxu0 0.0
    %2831 = vmatprep.subr.mxu0 0.0
    %2832 = vmatpush1.msra.mxu0 0.0
    %2833 = vmatprep.subr.mxu0 0.0
    %2834 = vmatpush1.msra.mxu0 0.0
    %2835 = vmatprep.subr.mxu0 0.0
    %2836 = vmatpush1.msra.mxu0 0.0
    %2837 = vmatprep.subr.mxu0 0.0
    %2838 = vmatpush1.msra.mxu0 0.0
    %2839 = vmatprep.subr.mxu0 0.0
    %2840 = vmatpush1.msra.mxu0 0.0
    %2841 = vmatprep.subr.mxu0 0.0
    %2842 = vmatpush1.msra.mxu0 0.0
    %2843 = vmatprep.subr.mxu0 0.0
    %2844 = vmatpush1.msra.mxu0 0.0
    %2845 = vmatprep.subr.mxu0 0.0
    %2846 = vmatpush1.msra.mxu0 0.0
    %2847 = vmatprep.subr.mxu0 0.0
    %2848 = vmatpush1.msra.mxu0 0.0
    %2849 = vmatprep.subr.mxu0 0.0
    %2850 = vmatpush1.msra.mxu0 0.0
    %2851 = vmatprep.subr.mxu0 0.0
    %2852 = vmatpush1.msra.mxu0 0.0
    %2853 = vmatprep.subr.mxu0 0.0
    %2854 = vmatpush1.msra.mxu0 0.0
    %2855 = vmatprep.subr.mxu0 0.0
    %2856 = vmatpush1.msra.mxu0 0.0
    %2857 = vmatprep.subr.mxu0 0.0
    %2858 = vmatpush1.msra.mxu0 0.0
    %2859 = vmatprep.subr.mxu0 0.0
    %2860 = vmatpush1.msra.mxu0 0.0
    %2861 = vmatprep.subr.mxu0 0.0
    %2862 = vmatpush1.msra.mxu0 0.0
    %2863 = vmatprep.subr.mxu0 0.0
    %2864 = vmatpush1.msra.mxu0 0.0
    %2865 = vmatprep.subr.mxu0 0.0
    %2866 = vmatpush1.msra.mxu0 0.0
    %2867 = vmatprep.subr.mxu0 0.0
    %2868 = vmatpush1.msra.mxu0 0.0
    %2869 = vmatprep.subr.mxu0 0.0
    %2870 = vmatpush1.msra.mxu0 0.0
    %2871 = vmatprep.subr.mxu0 0.0
    %2872 = vmatpush1.msra.mxu0 0.0
    %2873 = vmatprep.subr.mxu0 0.0
    %2874 = vmatpush1.msra.mxu0 0.0
    %2875 = vmatprep.subr.mxu0 0.0
    %2876 = vmatpush1.msra.mxu0 0.0
    %2877 = vmatprep.mubr.f32.mxu0 0.0
    %v2878 = vand.u32 %v2630, 4294901760
    %v2879 = vsub.f32 %v2630, %v2878
    %2880 = vmatmul.mubr.f32.gmra.mrb[0].mxu0 %v2879
    %v2881 = vpop.f32.mrb[0].mxu0
    %v2882 = vadd.f32 %v2800, %v2881
    %v2883 = vpop.f32.mrb[0].mxu0
    %2884 = vmatprep.mubr.f32.mxu0 0.0
    %v2885 = vand.u32 %v2633, 4294901760
    %v2886 = vsub.f32 %v2633, %v2885
    %2887 = vmatmul.mubr.f32.gmra.mrb[0].mxu0 %v2886
    %v2888 = vpop.f32.mrb[0].mxu0
    %v2889 = vadd.f32 %v2806, %v2888
    %v2890 = vpop.f32.mrb[0].mxu0
    %2891 = vdwg.mxu0
    %2892 = vmatprep.subr.mxu0 0.0
    %v2893 = vand.u32 %v2627, 4294901760
    %2894 = vmatpush1.msra.mxu0 %v2893
    %2895 = vmatprep.subr.mxu0 0.0
    %v2896 = vand.u32 %v2628, 4294901760
    %2897 = vmatpush1.msra.mxu0 %v2896
    %2898 = vmatprep.subr.mxu0 0.0
    %2899 = vmatpush1.msra.mxu0 0.0
    %2900 = vmatprep.subr.mxu0 0.0
    %2901 = vmatpush1.msra.mxu0 0.0
    %2902 = vmatprep.subr.mxu0 0.0
    %2903 = vmatpush1.msra.mxu0 0.0
    %2904 = vmatprep.subr.mxu0 0.0
    %2905 = vmatpush1.msra.mxu0 0.0
    %2906 = vmatprep.subr.mxu0 0.0
    %2907 = vmatpush1.msra.mxu0 0.0
    %2908 = vmatprep.subr.mxu0 0.0
    %2909 = vmatpush1.msra.mxu0 0.0
    %2910 = vmatprep.subr.mxu0 0.0
    %2911 = vmatpush1.msra.mxu0 0.0
    %2912 = vmatprep.subr.mxu0 0.0
    %2913 = vmatpush1.msra.mxu0 0.0
    %2914 = vmatprep.subr.mxu0 0.0
    %2915 = vmatpush1.msra.mxu0 0.0
    %2916 = vmatprep.subr.mxu0 0.0
    %2917 = vmatpush1.msra.mxu0 0.0
    %2918 = vmatprep.subr.mxu0 0.0
    %2919 = vmatpush1.msra.mxu0 0.0
    %2920 = vmatprep.subr.mxu0 0.0
    %2921 = vmatpush1.msra.mxu0 0.0
    %2922 = vmatprep.subr.mxu0 0.0
    %2923 = vmatpush1.msra.mxu0 0.0
    %2924 = vmatprep.subr.mxu0 0.0
    %2925 = vmatpush1.msra.mxu0 0.0
    %2926 = vmatprep.subr.mxu0 0.0
    %2927 = vmatpush1.msra.mxu0 0.0
    %2928 = vmatprep.subr.mxu0 0.0
    %2929 = vmatpush1.msra.mxu0 0.0
    %2930 = vmatprep.subr.mxu0 0.0
    %2931 = vmatpush1.msra.mxu0 0.0
    %2932 = vmatprep.subr.mxu0 0.0
    %2933 = vmatpush1.msra.mxu0 0.0
    %2934 = vmatprep.subr.mxu0 0.0
    %2935 = vmatpush1.msra.mxu0 0.0
    %2936 = vmatprep.subr.mxu0 0.0
    %2937 = vmatpush1.msra.mxu0 0.0
    %2938 = vmatprep.subr.mxu0 0.0
    %2939 = vmatpush1.msra.mxu0 0.0
    %2940 = vmatprep.subr.mxu0 0.0
    %2941 = vmatpush1.msra.mxu0 0.0
    %2942 = vmatprep.subr.mxu0 0.0
    %2943 = vmatpush1.msra.mxu0 0.0
    %2944 = vmatprep.subr.mxu0 0.0
    %2945 = vmatpush1.msra.mxu0 0.0
    %2946 = vmatprep.subr.mxu0 0.0
    %2947 = vmatpush1.msra.mxu0 0.0
    %2948 = vmatprep.subr.mxu0 0.0
    %2949 = vmatpush1.msra.mxu0 0.0
    %2950 = vmatprep.subr.mxu0 0.0
    %2951 = vmatpush1.msra.mxu0 0.0
    %2952 = vmatprep.subr.mxu0 0.0
    %2953 = vmatpush1.msra.mxu0 0.0
    %2954 = vmatprep.subr.mxu0 0.0
    %2955 = vmatpush1.msra.mxu0 0.0
    %2956 = vmatprep.subr.mxu0 0.0
    %2957 = vmatpush1.msra.mxu0 0.0
    %2958 = vmatprep.mubr.f32.mxu0 0.0
    %v2959 = vand.u32 %v2630, 4294901760
    %v2960 = vsub.f32 %v2630, %v2959
    %v2961 = vand.u32 %v2960, 4294901760
    %2962 = vmatmul.mubr.f32.gmra.mrb[0].mxu0 %v2961
    %v2963 = vpop.f32.mrb[0].mxu0
    %v2964 = vadd.f32 %v2882, %v2963
    %v2965 = vpop.f32.mrb[0].mxu0
    %2966 = vmatprep.mubr.f32.mxu0 0.0
    %v2967 = vand.u32 %v2633, 4294901760
    %v2968 = vsub.f32 %v2633, %v2967
    %v2969 = vand.u32 %v2968, 4294901760
    %2970 = vmatmul.mubr.f32.gmra.mrb[0].mxu0 %v2969
    %v2971 = vpop.f32.mrb[0].mxu0
    %v2972 = vadd.f32 %v2889, %v2971
    %v2973 = vpop.f32.mrb[0].mxu0
    %2974 = vdwg.mxu0
    %2975 = vmatprep.subr.mxu0 0.0
    %v2976 = vand.u32 %v2627, 4294901760
    %v2977 = vsub.f32 %v2627, %v2976
    %v2978 = vand.u32 %v2977, 4294901760
    %2979 = vmatpush1.msra.mxu0 %v2978
    %2980 = vmatprep.subr.mxu0 0.0
    %v2981 = vand.u32 %v2628, 4294901760
    %v2982 = vsub.f32 %v2628, %v2981
    %v2983 = vand.u32 %v2982, 4294901760
    %2984 = vmatpush1.msra.mxu0 %v2983
    %2985 = vmatprep.subr.mxu0 0.0
    %2986 = vmatpush1.msra.mxu0 0.0
    %2987 = vmatprep.subr.mxu0 0.0
    %2988 = vmatpush1.msra.mxu0 0.0
    %2989 = vmatprep.subr.mxu0 0.0
    %2990 = vmatpush1.msra.mxu0 0.0
    %2991 = vmatprep.subr.mxu0 0.0
    %2992 = vmatpush1.msra.mxu0 0.0
    %2993 = vmatprep.subr.mxu0 0.0
    %2994 = vmatpush1.msra.mxu0 0.0
    %2995 = vmatprep.subr.mxu0 0.0
    %2996 = vmatpush1.msra.mxu0 0.0
    %2997 = vmatprep.subr.mxu0 0.0
    %2998 = vmatpush1.msra.mxu0 0.0
    %2999 = vmatprep.subr.mxu0 0.0
    %3000 = vmatpush1.msra.mxu0 0.0
    %3001 = vmatprep.subr.mxu0 0.0
    %3002 = vmatpush1.msra.mxu0 0.0
    %3003 = vmatprep.subr.mxu0 0.0
    %3004 = vmatpush1.msra.mxu0 0.0
    %3005 = vmatprep.subr.mxu0 0.0
    %3006 = vmatpush1.msra.mxu0 0.0
    %3007 = vmatprep.subr.mxu0 0.0
    %3008 = vmatpush1.msra.mxu0 0.0
    %3009 = vmatprep.subr.mxu0 0.0
    %3010 = vmatpush1.msra.mxu0 0.0
    %3011 = vmatprep.subr.mxu0 0.0
    %3012 = vmatpush1.msra.mxu0 0.0
    %3013 = vmatprep.subr.mxu0 0.0
    %3014 = vmatpush1.msra.mxu0 0.0
    %3015 = vmatprep.subr.mxu0 0.0
    %3016 = vmatpush1.msra.mxu0 0.0
    %3017 = vmatprep.subr.mxu0 0.0
    %3018 = vmatpush1.msra.mxu0 0.0
    %3019 = vmatprep.subr.mxu0 0.0
    %3020 = vmatpush1.msra.mxu0 0.0
    %3021 = vmatprep.subr.mxu0 0.0
    %3022 = vmatpush1.msra.mxu0 0.0
    %3023 = vmatprep.subr.mxu0 0.0
    %3024 = vmatpush1.msra.mxu0 0.0
    %3025 = vmatprep.subr.mxu0 0.0
    %3026 = vmatpush1.msra.mxu0 0.0
    %3027 = vmatprep.subr.mxu0 0.0
    %3028 = vmatpush1.msra.mxu0 0.0
    %3029 = vmatprep.subr.mxu0 0.0
    %3030 = vmatpush1.msra.mxu0 0.0
    %3031 = vmatprep.subr.mxu0 0.0
    %3032 = vmatpush1.msra.mxu0 0.0
    %3033 = vmatprep.subr.mxu0 0.0
    %3034 = vmatpush1.msra.mxu0 0.0
    %3035 = vmatprep.subr.mxu0 0.0
    %3036 = vmatpush1.msra.mxu0 0.0
    %3037 = vmatprep.subr.mxu0 0.0
    %3038 = vmatpush1.msra.mxu0 0.0
    %3039 = vmatprep.subr.mxu0 0.0
    %3040 = vmatpush1.msra.mxu0 0.0
    %3041 = vmatprep.subr.mxu0 0.0
    %3042 = vmatpush1.msra.mxu0 0.0
    %3043 = vmatprep.subr.mxu0 0.0
    %3044 = vmatpush1.msra.mxu0 0.0
    %3045 = vmatprep.mubr.f32.mxu0 0.0
    %v3046 = vand.u32 %v2630, 4294901760
    %3047 = vmatmul.mubr.f32.gmra.mrb[0].mxu0 %v3046
    %v3048 = vpop.f32.mrb[0].mxu0
    %v3049 = vadd.f32 %v2964, %v3048
    %v3050 = vpop.f32.mrb[0].mxu0
    %3051 = vmatprep.mubr.f32.mxu0 0.0
    %v3052 = vand.u32 %v2633, 4294901760
    %3053 = vmatmul.mubr.f32.gmra.mrb[0].mxu0 %v3052
    %v3054 = vpop.f32.mrb[0].mxu0
    %v3055 = vadd.f32 %v2972, %v3054
    %v3056 = vpop.f32.mrb[0].mxu0
    %3057 = vdwg.mxu0
    %3058 = vmatprep.subr.mxu0 0.0
    %v3059 = vand.u32 %v2627, 4294901760
    %3060 = vmatpush1.msra.mxu0 %v3059
    %3061 = vmatprep.subr.mxu0 0.0
    %v3062 = vand.u32 %v2628, 4294901760
    %3063 = vmatpush1.msra.mxu0 %v3062
    %3064 = vmatprep.subr.mxu0 0.0
    %3065 = vmatpush1.msra.mxu0 0.0
    %3066 = vmatprep.subr.mxu0 0.0
    %3067 = vmatpush1.msra.mxu0 0.0
    %3068 = vmatprep.subr.mxu0 0.0
    %3069 = vmatpush1.msra.mxu0 0.0
    %3070 = vmatprep.subr.mxu0 0.0
    %3071 = vmatpush1.msra.mxu0 0.0
    %3072 = vmatprep.subr.mxu0 0.0
    %3073 = vmatpush1.msra.mxu0 0.0
    %3074 = vmatprep.subr.mxu0 0.0
    %3075 = vmatpush1.msra.mxu0 0.0
    %3076 = vmatprep.subr.mxu0 0.0
    %3077 = vmatpush1.msra.mxu0 0.0
    %3078 = vmatprep.subr.mxu0 0.0
    %3079 = vmatpush1.msra.mxu0 0.0
    %3080 = vmatprep.subr.mxu0 0.0
    %3081 = vmatpush1.msra.mxu0 0.0
    %3082 = vmatprep.subr.mxu0 0.0
    %3083 = vmatpush1.msra.mxu0 0.0
    %3084 = vmatprep.subr.mxu0 0.0
    %3085 = vmatpush1.msra.mxu0 0.0
    %3086 = vmatprep.subr.mxu0 0.0
    %3087 = vmatpush1.msra.mxu0 0.0
    %3088 = vmatprep.subr.mxu0 0.0
    %3089 = vmatpush1.msra.mxu0 0.0
    %3090 = vmatprep.subr.mxu0 0.0
    %3091 = vmatpush1.msra.mxu0 0.0
    %3092 = vmatprep.subr.mxu0 0.0
    %3093 = vmatpush1.msra.mxu0 0.0
    %3094 = vmatprep.subr.mxu0 0.0
    %3095 = vmatpush1.msra.mxu0 0.0
    %3096 = vmatprep.subr.mxu0 0.0
    %3097 = vmatpush1.msra.mxu0 0.0
    %3098 = vmatprep.subr.mxu0 0.0
    %3099 = vmatpush1.msra.mxu0 0.0
    %3100 = vmatprep.subr.mxu0 0.0
    %3101 = vmatpush1.msra.mxu0 0.0
    %3102 = vmatprep.subr.mxu0 0.0
    %3103 = vmatpush1.msra.mxu0 0.0
    %3104 = vmatprep.subr.mxu0 0.0
    %3105 = vmatpush1.msra.mxu0 0.0
    %3106 = vmatprep.subr.mxu0 0.0
    %3107 = vmatpush1.msra.mxu0 0.0
    %3108 = vmatprep.subr.mxu0 0.0
    %3109 = vmatpush1.msra.mxu0 0.0
    %3110 = vmatprep.subr.mxu0 0.0
    %3111 = vmatpush1.msra.mxu0 0.0
    %3112 = vmatprep.subr.mxu0 0.0
    %3113 = vmatpush1.msra.mxu0 0.0
    %3114 = vmatprep.subr.mxu0 0.0
    %3115 = vmatpush1.msra.mxu0 0.0
    %3116 = vmatprep.subr.mxu0 0.0
    %3117 = vmatpush1.msra.mxu0 0.0
    %3118 = vmatprep.subr.mxu0 0.0
    %3119 = vmatpush1.msra.mxu0 0.0
    %3120 = vmatprep.subr.mxu0 0.0
    %3121 = vmatpush1.msra.mxu0 0.0
    %3122 = vmatprep.subr.mxu0 0.0
    %3123 = vmatpush1.msra.mxu0 0.0
    %3124 = vmatprep.mubr.f32.mxu0 0.0
    %v3125 = vand.u32 %v2630, 4294901760
    %3126 = vmatmul.mubr.f32.gmra.mrb[0].mxu0 %v3125
    %v3127 = vpop.f32.mrb[0].mxu0
    %v3128 = vadd.f32 %v3049, %v3127
    %v3129 = vpop.f32.mrb[0].mxu0
    %3130 = vmatprep.mubr.f32.mxu0 0.0
    %v3131 = vand.u32 %v2633, 4294901760
    %3132 = vmatmul.mubr.f32.gmra.mrb[0].mxu0 %v3131
    %v3133 = vpop.f32.mrb[0].mxu0
    %v3134 = vadd.f32 %v3055, %v3133
    %v3135 = vpop.f32.mrb[0].mxu0
    %3136 = vdwg.mxu0
    %v3137 = vadd.f32 %v2622, %v3128
    %v3138 = vadd.f32 %v2623, %v3134
    %v3139 = vld [vmem:[#allocation2 + $0x6] sm:$0xff]
    %v3140 = vld [vmem:[#allocation2 + $0xe] sm:$0xff]
    %s3141 = scalar_lea.vmem [#allocation6], 96
    %v3142 = vld [vmem:[%s3141] sm:$0xff]
    %v3143 = vld [vmem:[%s3141 + $0x8] sm:$0xff]
    %v3145 = vsel %vm49, %v3139, 0
    %v3148 = vsel %vm49, %v3140, 0
    %3150 = vmatprep.subr.mxu0 0.0
    %v3151 = vand.u32 %v3142, 4294901760
    %3152 = vmatpush1.msra.mxu0 %v3151
    %3153 = vmatprep.subr.mxu0 0.0
    %v3154 = vand.u32 %v3143, 4294901760
    %3155 = vmatpush1.msra.mxu0 %v3154
    %3156 = vmatprep.subr.mxu0 0.0
    %3157 = vmatpush1.msra.mxu0 0.0
    %3158 = vmatprep.subr.mxu0 0.0
    %3159 = vmatpush1.msra.mxu0 0.0
    %3160 = vmatprep.subr.mxu0 0.0
    %3161 = vmatpush1.msra.mxu0 0.0
    %3162 = vmatprep.subr.mxu0 0.0
    %3163 = vmatpush1.msra.mxu0 0.0
    %3164 = vmatprep.subr.mxu0 0.0
    %3165 = vmatpush1.msra.mxu0 0.0
    %3166 = vmatprep.subr.mxu0 0.0
    %3167 = vmatpush1.msra.mxu0 0.0
    %3168 = vmatprep.subr.mxu0 0.0
    %3169 = vmatpush1.msra.mxu0 0.0
    %3170 = vmatprep.subr.mxu0 0.0
    %3171 = vmatpush1.msra.mxu0 0.0
    %3172 = vmatprep.subr.mxu0 0.0
    %3173 = vmatpush1.msra.mxu0 0.0
    %3174 = vmatprep.subr.mxu0 0.0
    %3175 = vmatpush1.msra.mxu0 0.0
    %3176 = vmatprep.subr.mxu0 0.0
    %3177 = vmatpush1.msra.mxu0 0.0
    %3178 = vmatprep.subr.mxu0 0.0
    %3179 = vmatpush1.msra.mxu0 0.0
    %3180 = vmatprep.subr.mxu0 0.0
    %3181 = vmatpush1.msra.mxu0 0.0
    %3182 = vmatprep.subr.mxu0 0.0
    %3183 = vmatpush1.msra.mxu0 0.0
    %3184 = vmatprep.subr.mxu0 0.0
    %3185 = vmatpush1.msra.mxu0 0.0
    %3186 = vmatprep.subr.mxu0 0.0
    %3187 = vmatpush1.msra.mxu0 0.0
    %3188 = vmatprep.subr.mxu0 0.0
    %3189 = vmatpush1.msra.mxu0 0.0
    %3190 = vmatprep.subr.mxu0 0.0
    %3191 = vmatpush1.msra.mxu0 0.0
    %3192 = vmatprep.subr.mxu0 0.0
    %3193 = vmatpush1.msra.mxu0 0.0
    %3194 = vmatprep.subr.mxu0 0.0
    %3195 = vmatpush1.msra.mxu0 0.0
    %3196 = vmatprep.subr.mxu0 0.0
    %3197 = vmatpush1.msra.mxu0 0.0
    %3198 = vmatprep.subr.mxu0 0.0
    %3199 = vmatpush1.msra.mxu0 0.0
    %3200 = vmatprep.subr.mxu0 0.0
    %3201 = vmatpush1.msra.mxu0 0.0
    %3202 = vmatprep.subr.mxu0 0.0
    %3203 = vmatpush1.msra.mxu0 0.0
    %3204 = vmatprep.subr.mxu0 0.0
    %3205 = vmatpush1.msra.mxu0 0.0
    %3206 = vmatprep.subr.mxu0 0.0
    %3207 = vmatpush1.msra.mxu0 0.0
    %3208 = vmatprep.subr.mxu0 0.0
    %3209 = vmatpush1.msra.mxu0 0.0
    %3210 = vmatprep.subr.mxu0 0.0
    %3211 = vmatpush1.msra.mxu0 0.0
    %3212 = vmatprep.subr.mxu0 0.0
    %3213 = vmatpush1.msra.mxu0 0.0
    %3214 = vmatprep.subr.mxu0 0.0
    %3215 = vmatpush1.msra.mxu0 0.0
    %3216 = vmatprep.mubr.f32.mxu0 0.0
    %v3217 = vand.u32 %v3145, 4294901760
    %v3218 = vsub.f32 %v3145, %v3217
    %v3219 = vand.u32 %v3218, 4294901760
    %v3220 = vsub.f32 %v3218, %v3219
    %v3221 = vand.u32 %v3220, 4294901760
    %3222 = vmatmul.mubr.f32.gmra.mrb[0].mxu0 %v3221
    %v3223 = vpop.f32.mrb[0].mxu0
    %v3224 = vadd.f32 0.0, %v3223
    %v3225 = vpop.f32.mrb[0].mxu0
    %3226 = vmatprep.mubr.f32.mxu0 0.0
    %v3227 = vand.u32 %v3148, 4294901760
    %v3228 = vsub.f32 %v3148, %v3227
    %v3229 = vand.u32 %v3228, 4294901760
    %v3230 = vsub.f32 %v3228, %v3229
    %v3231 = vand.u32 %v3230, 4294901760
    %3232 = vmatmul.mubr.f32.gmra.mrb[0].mxu0 %v3231
    %v3233 = vpop.f32.mrb[0].mxu0
    %v3234 = vadd.f32 0.0, %v3233
    %v3235 = vpop.f32.mrb[0].mxu0
    %3236 = vdwg.mxu0
    %3237 = vmatprep.subr.mxu0 0.0
    %v3238 = vand.u32 %v3142, 4294901760
    %v3239 = vsub.f32 %v3142, %v3238
    %v3240 = vand.u32 %v3239, 4294901760
    %v3241 = vsub.f32 %v3239, %v3240
    %v3242 = vand.u32 %v3241, 4294901760
    %3243 = vmatpush1.msra.mxu0 %v3242
    %3244 = vmatprep.subr.mxu0 0.0
    %v3245 = vand.u32 %v3143, 4294901760
    %v3246 = vsub.f32 %v3143, %v3245
    %v3247 = vand.u32 %v3246, 4294901760
    %v3248 = vsub.f32 %v3246, %v3247
    %v3249 = vand.u32 %v3248, 4294901760
    %3250 = vmatpush1.msra.mxu0 %v3249
    %3251 = vmatprep.subr.mxu0 0.0
    %3252 = vmatpush1.msra.mxu0 0.0
    %3253 = vmatprep.subr.mxu0 0.0
    %3254 = vmatpush1.msra.mxu0 0.0
    %3255 = vmatprep.subr.mxu0 0.0
    %3256 = vmatpush1.msra.mxu0 0.0
    %3257 = vmatprep.subr.mxu0 0.0
    %3258 = vmatpush1.msra.mxu0 0.0
    %3259 = vmatprep.subr.mxu0 0.0
    %3260 = vmatpush1.msra.mxu0 0.0
    %3261 = vmatprep.subr.mxu0 0.0
    %3262 = vmatpush1.msra.mxu0 0.0
    %3263 = vmatprep.subr.mxu0 0.0
    %3264 = vmatpush1.msra.mxu0 0.0
    %3265 = vmatprep.subr.mxu0 0.0
    %3266 = vmatpush1.msra.mxu0 0.0
    %3267 = vmatprep.subr.mxu0 0.0
    %3268 = vmatpush1.msra.mxu0 0.0
    %3269 = vmatprep.subr.mxu0 0.0
    %3270 = vmatpush1.msra.mxu0 0.0
    %3271 = vmatprep.subr.mxu0 0.0
    %3272 = vmatpush1.msra.mxu0 0.0
    %3273 = vmatprep.subr.mxu0 0.0
    %3274 = vmatpush1.msra.mxu0 0.0
    %3275 = vmatprep.subr.mxu0 0.0
    %3276 = vmatpush1.msra.mxu0 0.0
    %3277 = vmatprep.subr.mxu0 0.0
    %3278 = vmatpush1.msra.mxu0 0.0
    %3279 = vmatprep.subr.mxu0 0.0
    %3280 = vmatpush1.msra.mxu0 0.0
    %3281 = vmatprep.subr.mxu0 0.0
    %3282 = vmatpush1.msra.mxu0 0.0
    %3283 = vmatprep.subr.mxu0 0.0
    %3284 = vmatpush1.msra.mxu0 0.0
    %3285 = vmatprep.subr.mxu0 0.0
    %3286 = vmatpush1.msra.mxu0 0.0
    %3287 = vmatprep.subr.mxu0 0.0
    %3288 = vmatpush1.msra.mxu0 0.0
    %3289 = vmatprep.subr.mxu0 0.0
    %3290 = vmatpush1.msra.mxu0 0.0
    %3291 = vmatprep.subr.mxu0 0.0
    %3292 = vmatpush1.msra.mxu0 0.0
    %3293 = vmatprep.subr.mxu0 0.0
    %3294 = vmatpush1.msra.mxu0 0.0
    %3295 = vmatprep.subr.mxu0 0.0
    %3296 = vmatpush1.msra.mxu0 0.0
    %3297 = vmatprep.subr.mxu0 0.0
    %3298 = vmatpush1.msra.mxu0 0.0
    %3299 = vmatprep.subr.mxu0 0.0
    %3300 = vmatpush1.msra.mxu0 0.0
    %3301 = vmatprep.subr.mxu0 0.0
    %3302 = vmatpush1.msra.mxu0 0.0
    %3303 = vmatprep.subr.mxu0 0.0
    %3304 = vmatpush1.msra.mxu0 0.0
    %3305 = vmatprep.subr.mxu0 0.0
    %3306 = vmatpush1.msra.mxu0 0.0
    %3307 = vmatprep.subr.mxu0 0.0
    %3308 = vmatpush1.msra.mxu0 0.0
    %3309 = vmatprep.subr.mxu0 0.0
    %3310 = vmatpush1.msra.mxu0 0.0
    %3311 = vmatprep.mubr.f32.mxu0 0.0
    %v3312 = vand.u32 %v3145, 4294901760
    %3313 = vmatmul.mubr.f32.gmra.mrb[0].mxu0 %v3312
    %v3314 = vpop.f32.mrb[0].mxu0
    %v3315 = vadd.f32 %v3224, %v3314
    %v3316 = vpop.f32.mrb[0].mxu0
    %3317 = vmatprep.mubr.f32.mxu0 0.0
    %v3318 = vand.u32 %v3148, 4294901760
    %3319 = vmatmul.mubr.f32.gmra.mrb[0].mxu0 %v3318
    %v3320 = vpop.f32.mrb[0].mxu0
    %v3321 = vadd.f32 %v3234, %v3320
    %v3322 = vpop.f32.mrb[0].mxu0
    %3323 = vdwg.mxu0
    %3324 = vmatprep.subr.mxu0 0.0
    %v3325 = vand.u32 %v3142, 4294901760
    %v3326 = vsub.f32 %v3142, %v3325
    %3327 = vmatpush1.msra.mxu0 %v3326
    %3328 = vmatprep.subr.mxu0 0.0
    %v3329 = vand.u32 %v3143, 4294901760
    %v3330 = vsub.f32 %v3143, %v3329
    %3331 = vmatpush1.msra.mxu0 %v3330
    %3332 = vmatprep.subr.mxu0 0.0
    %3333 = vmatpush1.msra.mxu0 0.0
    %3334 = vmatprep.subr.mxu0 0.0
    %3335 = vmatpush1.msra.mxu0 0.0
    %3336 = vmatprep.subr.mxu0 0.0
    %3337 = vmatpush1.msra.mxu0 0.0
    %3338 = vmatprep.subr.mxu0 0.0
    %3339 = vmatpush1.msra.mxu0 0.0
    %3340 = vmatprep.subr.mxu0 0.0
    %3341 = vmatpush1.msra.mxu0 0.0
    %3342 = vmatprep.subr.mxu0 0.0
    %3343 = vmatpush1.msra.mxu0 0.0
    %3344 = vmatprep.subr.mxu0 0.0
    %3345 = vmatpush1.msra.mxu0 0.0
    %3346 = vmatprep.subr.mxu0 0.0
    %3347 = vmatpush1.msra.mxu0 0.0
    %3348 = vmatprep.subr.mxu0 0.0
    %3349 = vmatpush1.msra.mxu0 0.0
    %3350 = vmatprep.subr.mxu0 0.0
    %3351 = vmatpush1.msra.mxu0 0.0
    %3352 = vmatprep.subr.mxu0 0.0
    %3353 = vmatpush1.msra.mxu0 0.0
    %3354 = vmatprep.subr.mxu0 0.0
    %3355 = vmatpush1.msra.mxu0 0.0
    %3356 = vmatprep.subr.mxu0 0.0
    %3357 = vmatpush1.msra.mxu0 0.0
    %3358 = vmatprep.subr.mxu0 0.0
    %3359 = vmatpush1.msra.mxu0 0.0
    %3360 = vmatprep.subr.mxu0 0.0
    %3361 = vmatpush1.msra.mxu0 0.0
    %3362 = vmatprep.subr.mxu0 0.0
    %3363 = vmatpush1.msra.mxu0 0.0
    %3364 = vmatprep.subr.mxu0 0.0
    %3365 = vmatpush1.msra.mxu0 0.0
    %3366 = vmatprep.subr.mxu0 0.0
    %3367 = vmatpush1.msra.mxu0 0.0
    %3368 = vmatprep.subr.mxu0 0.0
    %3369 = vmatpush1.msra.mxu0 0.0
    %3370 = vmatprep.subr.mxu0 0.0
    %3371 = vmatpush1.msra.mxu0 0.0
    %3372 = vmatprep.subr.mxu0 0.0
    %3373 = vmatpush1.msra.mxu0 0.0
    %3374 = vmatprep.subr.mxu0 0.0
    %3375 = vmatpush1.msra.mxu0 0.0
    %3376 = vmatprep.subr.mxu0 0.0
    %3377 = vmatpush1.msra.mxu0 0.0
    %3378 = vmatprep.subr.mxu0 0.0
    %3379 = vmatpush1.msra.mxu0 0.0
    %3380 = vmatprep.subr.mxu0 0.0
    %3381 = vmatpush1.msra.mxu0 0.0
    %3382 = vmatprep.subr.mxu0 0.0
    %3383 = vmatpush1.msra.mxu0 0.0
    %3384 = vmatprep.subr.mxu0 0.0
    %3385 = vmatpush1.msra.mxu0 0.0
    %3386 = vmatprep.subr.mxu0 0.0
    %3387 = vmatpush1.msra.mxu0 0.0
    %3388 = vmatprep.subr.mxu0 0.0
    %3389 = vmatpush1.msra.mxu0 0.0
    %3390 = vmatprep.subr.mxu0 0.0
    %3391 = vmatpush1.msra.mxu0 0.0
    %3392 = vmatprep.mubr.f32.mxu0 0.0
    %v3393 = vand.u32 %v3145, 4294901760
    %v3394 = vsub.f32 %v3145, %v3393
    %3395 = vmatmul.mubr.f32.gmra.mrb[0].mxu0 %v3394
    %v3396 = vpop.f32.mrb[0].mxu0
    %v3397 = vadd.f32 %v3315, %v3396
    %v3398 = vpop.f32.mrb[0].mxu0
    %3399 = vmatprep.mubr.f32.mxu0 0.0
    %v3400 = vand.u32 %v3148, 4294901760
    %v3401 = vsub.f32 %v3148, %v3400
    %3402 = vmatmul.mubr.f32.gmra.mrb[0].mxu0 %v3401
    %v3403 = vpop.f32.mrb[0].mxu0
    %v3404 = vadd.f32 %v3321, %v3403
    %v3405 = vpop.f32.mrb[0].mxu0
    %3406 = vdwg.mxu0
    %3407 = vmatprep.subr.mxu0 0.0
    %v3408 = vand.u32 %v3142, 4294901760
    %3409 = vmatpush1.msra.mxu0 %v3408
    %3410 = vmatprep.subr.mxu0 0.0
    %v3411 = vand.u32 %v3143, 4294901760
    %3412 = vmatpush1.msra.mxu0 %v3411
    %3413 = vmatprep.subr.mxu0 0.0
    %3414 = vmatpush1.msra.mxu0 0.0
    %3415 = vmatprep.subr.mxu0 0.0
    %3416 = vmatpush1.msra.mxu0 0.0
    %3417 = vmatprep.subr.mxu0 0.0
    %3418 = vmatpush1.msra.mxu0 0.0
    %3419 = vmatprep.subr.mxu0 0.0
    %3420 = vmatpush1.msra.mxu0 0.0
    %3421 = vmatprep.subr.mxu0 0.0
    %3422 = vmatpush1.msra.mxu0 0.0
    %3423 = vmatprep.subr.mxu0 0.0
    %3424 = vmatpush1.msra.mxu0 0.0
    %3425 = vmatprep.subr.mxu0 0.0
    %3426 = vmatpush1.msra.mxu0 0.0
    %3427 = vmatprep.subr.mxu0 0.0
    %3428 = vmatpush1.msra.mxu0 0.0
    %3429 = vmatprep.subr.mxu0 0.0
    %3430 = vmatpush1.msra.mxu0 0.0
    %3431 = vmatprep.subr.mxu0 0.0
    %3432 = vmatpush1.msra.mxu0 0.0
    %3433 = vmatprep.subr.mxu0 0.0
    %3434 = vmatpush1.msra.mxu0 0.0
    %3435 = vmatprep.subr.mxu0 0.0
    %3436 = vmatpush1.msra.mxu0 0.0
    %3437 = vmatprep.subr.mxu0 0.0
    %3438 = vmatpush1.msra.mxu0 0.0
    %3439 = vmatprep.subr.mxu0 0.0
    %3440 = vmatpush1.msra.mxu0 0.0
    %3441 = vmatprep.subr.mxu0 0.0
    %3442 = vmatpush1.msra.mxu0 0.0
    %3443 = vmatprep.subr.mxu0 0.0
    %3444 = vmatpush1.msra.mxu0 0.0
    %3445 = vmatprep.subr.mxu0 0.0
    %3446 = vmatpush1.msra.mxu0 0.0
    %3447 = vmatprep.subr.mxu0 0.0
    %3448 = vmatpush1.msra.mxu0 0.0
    %3449 = vmatprep.subr.mxu0 0.0
    %3450 = vmatpush1.msra.mxu0 0.0
    %3451 = vmatprep.subr.mxu0 0.0
    %3452 = vmatpush1.msra.mxu0 0.0
    %3453 = vmatprep.subr.mxu0 0.0
    %3454 = vmatpush1.msra.mxu0 0.0
    %3455 = vmatprep.subr.mxu0 0.0
    %3456 = vmatpush1.msra.mxu0 0.0
    %3457 = vmatprep.subr.mxu0 0.0
    %3458 = vmatpush1.msra.mxu0 0.0
    %3459 = vmatprep.subr.mxu0 0.0
    %3460 = vmatpush1.msra.mxu0 0.0
    %3461 = vmatprep.subr.mxu0 0.0
    %3462 = vmatpush1.msra.mxu0 0.0
    %3463 = vmatprep.subr.mxu0 0.0
    %3464 = vmatpush1.msra.mxu0 0.0
    %3465 = vmatprep.subr.mxu0 0.0
    %3466 = vmatpush1.msra.mxu0 0.0
    %3467 = vmatprep.subr.mxu0 0.0
    %3468 = vmatpush1.msra.mxu0 0.0
    %3469 = vmatprep.subr.mxu0 0.0
    %3470 = vmatpush1.msra.mxu0 0.0
    %3471 = vmatprep.subr.mxu0 0.0
    %3472 = vmatpush1.msra.mxu0 0.0
    %3473 = vmatprep.mubr.f32.mxu0 0.0
    %v3474 = vand.u32 %v3145, 4294901760
    %v3475 = vsub.f32 %v3145, %v3474
    %v3476 = vand.u32 %v3475, 4294901760
    %3477 = vmatmul.mubr.f32.gmra.mrb[0].mxu0 %v3476
    %v3478 = vpop.f32.mrb[0].mxu0
    %v3479 = vadd.f32 %v3397, %v3478
    %v3480 = vpop.f32.mrb[0].mxu0
    %3481 = vmatprep.mubr.f32.mxu0 0.0
    %v3482 = vand.u32 %v3148, 4294901760
    %v3483 = vsub.f32 %v3148, %v3482
    %v3484 = vand.u32 %v3483, 4294901760
    %3485 = vmatmul.mubr.f32.gmra.mrb[0].mxu0 %v3484
    %v3486 = vpop.f32.mrb[0].mxu0
    %v3487 = vadd.f32 %v3404, %v3486
    %v3488 = vpop.f32.mrb[0].mxu0
    %3489 = vdwg.mxu0
    %3490 = vmatprep.subr.mxu0 0.0
    %v3491 = vand.u32 %v3142, 4294901760
    %v3492 = vsub.f32 %v3142, %v3491
    %v3493 = vand.u32 %v3492, 4294901760
    %3494 = vmatpush1.msra.mxu0 %v3493
    %3495 = vmatprep.subr.mxu0 0.0
    %v3496 = vand.u32 %v3143, 4294901760
    %v3497 = vsub.f32 %v3143, %v3496
    %v3498 = vand.u32 %v3497, 4294901760
    %3499 = vmatpush1.msra.mxu0 %v3498
    %3500 = vmatprep.subr.mxu0 0.0
    %3501 = vmatpush1.msra.mxu0 0.0
    %3502 = vmatprep.subr.mxu0 0.0
    %3503 = vmatpush1.msra.mxu0 0.0
    %3504 = vmatprep.subr.mxu0 0.0
    %3505 = vmatpush1.msra.mxu0 0.0
    %3506 = vmatprep.subr.mxu0 0.0
    %3507 = vmatpush1.msra.mxu0 0.0
    %3508 = vmatprep.subr.mxu0 0.0
    %3509 = vmatpush1.msra.mxu0 0.0
    %3510 = vmatprep.subr.mxu0 0.0
    %3511 = vmatpush1.msra.mxu0 0.0
    %3512 = vmatprep.subr.mxu0 0.0
    %3513 = vmatpush1.msra.mxu0 0.0
    %3514 = vmatprep.subr.mxu0 0.0
    %3515 = vmatpush1.msra.mxu0 0.0
    %3516 = vmatprep.subr.mxu0 0.0
    %3517 = vmatpush1.msra.mxu0 0.0
    %3518 = vmatprep.subr.mxu0 0.0
    %3519 = vmatpush1.msra.mxu0 0.0
    %3520 = vmatprep.subr.mxu0 0.0
    %3521 = vmatpush1.msra.mxu0 0.0
    %3522 = vmatprep.subr.mxu0 0.0
    %3523 = vmatpush1.msra.mxu0 0.0
    %3524 = vmatprep.subr.mxu0 0.0
    %3525 = vmatpush1.msra.mxu0 0.0
    %3526 = vmatprep.subr.mxu0 0.0
    %3527 = vmatpush1.msra.mxu0 0.0
    %3528 = vmatprep.subr.mxu0 0.0
    %3529 = vmatpush1.msra.mxu0 0.0
    %3530 = vmatprep.subr.mxu0 0.0
    %3531 = vmatpush1.msra.mxu0 0.0
    %3532 = vmatprep.subr.mxu0 0.0
    %3533 = vmatpush1.msra.mxu0 0.0
    %3534 = vmatprep.subr.mxu0 0.0
    %3535 = vmatpush1.msra.mxu0 0.0
    %3536 = vmatprep.subr.mxu0 0.0
    %3537 = vmatpush1.msra.mxu0 0.0
    %3538 = vmatprep.subr.mxu0 0.0
    %3539 = vmatpush1.msra.mxu0 0.0
    %3540 = vmatprep.subr.mxu0 0.0
    %3541 = vmatpush1.msra.mxu0 0.0
    %3542 = vmatprep.subr.mxu0 0.0
    %3543 = vmatpush1.msra.mxu0 0.0
    %3544 = vmatprep.subr.mxu0 0.0
    %3545 = vmatpush1.msra.mxu0 0.0
    %3546 = vmatprep.subr.mxu0 0.0
    %3547 = vmatpush1.msra.mxu0 0.0
    %3548 = vmatprep.subr.mxu0 0.0
    %3549 = vmatpush1.msra.mxu0 0.0
    %3550 = vmatprep.subr.mxu0 0.0
    %3551 = vmatpush1.msra.mxu0 0.0
    %3552 = vmatprep.subr.mxu0 0.0
    %3553 = vmatpush1.msra.mxu0 0.0
    %3554 = vmatprep.subr.mxu0 0.0
    %3555 = vmatpush1.msra.mxu0 0.0
    %3556 = vmatprep.subr.mxu0 0.0
    %3557 = vmatpush1.msra.mxu0 0.0
    %3558 = vmatprep.subr.mxu0 0.0
    %3559 = vmatpush1.msra.mxu0 0.0
    %3560 = vmatprep.mubr.f32.mxu0 0.0
    %v3561 = vand.u32 %v3145, 4294901760
    %3562 = vmatmul.mubr.f32.gmra.mrb[0].mxu0 %v3561
    %v3563 = vpop.f32.mrb[0].mxu0
    %v3564 = vadd.f32 %v3479, %v3563
    %v3565 = vpop.f32.mrb[0].mxu0
    %3566 = vmatprep.mubr.f32.mxu0 0.0
    %v3567 = vand.u32 %v3148, 4294901760
    %3568 = vmatmul.mubr.f32.gmra.mrb[0].mxu0 %v3567
    %v3569 = vpop.f32.mrb[0].mxu0
    %v3570 = vadd.f32 %v3487, %v3569
    %v3571 = vpop.f32.mrb[0].mxu0
    %3572 = vdwg.mxu0
    %3573 = vmatprep.subr.mxu0 0.0
    %v3574 = vand.u32 %v3142, 4294901760
    %3575 = vmatpush1.msra.mxu0 %v3574
    %3576 = vmatprep.subr.mxu0 0.0
    %v3577 = vand.u32 %v3143, 4294901760
    %3578 = vmatpush1.msra.mxu0 %v3577
    %3579 = vmatprep.subr.mxu0 0.0
    %3580 = vmatpush1.msra.mxu0 0.0
    %3581 = vmatprep.subr.mxu0 0.0
    %3582 = vmatpush1.msra.mxu0 0.0
    %3583 = vmatprep.subr.mxu0 0.0
    %3584 = vmatpush1.msra.mxu0 0.0
    %3585 = vmatprep.subr.mxu0 0.0
    %3586 = vmatpush1.msra.mxu0 0.0
    %3587 = vmatprep.subr.mxu0 0.0
    %3588 = vmatpush1.msra.mxu0 0.0
    %3589 = vmatprep.subr.mxu0 0.0
    %3590 = vmatpush1.msra.mxu0 0.0
    %3591 = vmatprep.subr.mxu0 0.0
    %3592 = vmatpush1.msra.mxu0 0.0
    %3593 = vmatprep.subr.mxu0 0.0
    %3594 = vmatpush1.msra.mxu0 0.0
    %3595 = vmatprep.subr.mxu0 0.0
    %3596 = vmatpush1.msra.mxu0 0.0
    %3597 = vmatprep.subr.mxu0 0.0
    %3598 = vmatpush1.msra.mxu0 0.0
    %3599 = vmatprep.subr.mxu0 0.0
    %3600 = vmatpush1.msra.mxu0 0.0
    %3601 = vmatprep.subr.mxu0 0.0
    %3602 = vmatpush1.msra.mxu0 0.0
    %3603 = vmatprep.subr.mxu0 0.0
    %3604 = vmatpush1.msra.mxu0 0.0
    %3605 = vmatprep.subr.mxu0 0.0
    %3606 = vmatpush1.msra.mxu0 0.0
    %3607 = vmatprep.subr.mxu0 0.0
    %3608 = vmatpush1.msra.mxu0 0.0
    %3609 = vmatprep.subr.mxu0 0.0
    %3610 = vmatpush1.msra.mxu0 0.0
    %3611 = vmatprep.subr.mxu0 0.0
    %3612 = vmatpush1.msra.mxu0 0.0
    %3613 = vmatprep.subr.mxu0 0.0
    %3614 = vmatpush1.msra.mxu0 0.0
    %3615 = vmatprep.subr.mxu0 0.0
    %3616 = vmatpush1.msra.mxu0 0.0
    %3617 = vmatprep.subr.mxu0 0.0
    %3618 = vmatpush1.msra.mxu0 0.0
    %3619 = vmatprep.subr.mxu0 0.0
    %3620 = vmatpush1.msra.mxu0 0.0
    %3621 = vmatprep.subr.mxu0 0.0
    %3622 = vmatpush1.msra.mxu0 0.0
    %3623 = vmatprep.subr.mxu0 0.0
    %3624 = vmatpush1.msra.mxu0 0.0
    %3625 = vmatprep.subr.mxu0 0.0
    %3626 = vmatpush1.msra.mxu0 0.0
    %3627 = vmatprep.subr.mxu0 0.0
    %3628 = vmatpush1.msra.mxu0 0.0
    %3629 = vmatprep.subr.mxu0 0.0
    %3630 = vmatpush1.msra.mxu0 0.0
    %3631 = vmatprep.subr.mxu0 0.0
    %3632 = vmatpush1.msra.mxu0 0.0
    %3633 = vmatprep.subr.mxu0 0.0
    %3634 = vmatpush1.msra.mxu0 0.0
    %3635 = vmatprep.subr.mxu0 0.0
    %3636 = vmatpush1.msra.mxu0 0.0
    %3637 = vmatprep.subr.mxu0 0.0
    %3638 = vmatpush1.msra.mxu0 0.0
    %3639 = vmatprep.mubr.f32.mxu0 0.0
    %v3640 = vand.u32 %v3145, 4294901760
    %3641 = vmatmul.mubr.f32.gmra.mrb[0].mxu0 %v3640
    %v3642 = vpop.f32.mrb[0].mxu0
    %v3643 = vadd.f32 %v3564, %v3642
    %v3644 = vpop.f32.mrb[0].mxu0
    %3645 = vmatprep.mubr.f32.mxu0 0.0
    %v3646 = vand.u32 %v3148, 4294901760
    %3647 = vmatmul.mubr.f32.gmra.mrb[0].mxu0 %v3646
    %v3648 = vpop.f32.mrb[0].mxu0
    %v3649 = vadd.f32 %v3570, %v3648
    %v3650 = vpop.f32.mrb[0].mxu0
    %3651 = vdwg.mxu0
    %v3652 = vadd.f32 %v3137, %v3643
    %v3653 = vadd.f32 %v3138, %v3649
    %v3654 = vxor.u32 %v3652, 2147483648
    %v3655 = vxor.u32 %v3653, 2147483648
    %v3656 = vmul.f32 %v3654, 1.442695
    %v3657 = vpow.pop %v3656
    %v3658 = vmul.f32 %v3655, 1.442695
    %v3659 = vpow.pop %v3658
    %v3660 = vadd.f32 %v3657, 1.0
    %v3661 = vadd.f32 %v3659, 1.0
    %v3662 = vrcp.pop %v3660
    %v3663 = vmul.f32 1.0, %v3662
    %v3664 = vrcp.pop %v3661
    %v3665 = vmul.f32 1.0, %v3664
    %v3666 = vmul.f32 %v40, %v3663
    %v3667 = vmul.f32 %v41, %v3665
    %3668 = vst.msk [vmem:[#allocation8] sm:$0xff] %vm49, %v3666
    %3669 = vst.msk [vmem:[#allocation8 + $0x8] sm:$0xff] %vm49, %v3667
    %s3670 = scalar_lea.vmem [#allocation2], 24
    %v3671 = vld [vmem:[%s3670] sm:$0xff]
    %v3672 = vld [vmem:[%s3670 + $0x8] sm:$0xff]
    %v3673 = vld [vmem:[#allocation6] sm:$0xff]
    %v3674 = vld [vmem:[#allocation6 + $0x8] sm:$0xff]
    %v3675 = vld [vmem:[%s3670 + $0x1] sm:$0xff]
    %v3676 = vld [vmem:[%s3670 + $0x9] sm:$0xff]
    %v3677 = vld [vmem:[%s60] sm:$0xff]
    %v3678 = vld [vmem:[%s60 + $0x8] sm:$0xff]
    %v3680 = vsel %vm49, %v3675, 0
    %v3683 = vsel %vm49, %v3676, 0
    %3685 = vmatprep.subr.mxu0 0.0
    %v3686 = vand.u32 %v3677, 4294901760
    %3687 = vmatpush1.msra.mxu0 %v3686
    %3688 = vmatprep.subr.mxu0 0.0
    %v3689 = vand.u32 %v3678, 4294901760
    %3690 = vmatpush1.msra.mxu0 %v3689
    %3691 = vmatprep.subr.mxu0 0.0
    %3692 = vmatpush1.msra.mxu0 0.0
    %3693 = vmatprep.subr.mxu0 0.0
    %3694 = vmatpush1.msra.mxu0 0.0
    %3695 = vmatprep.subr.mxu0 0.0
    %3696 = vmatpush1.msra.mxu0 0.0
    %3697 = vmatprep.subr.mxu0 0.0
    %3698 = vmatpush1.msra.mxu0 0.0
    %3699 = vmatprep.subr.mxu0 0.0
    %3700 = vmatpush1.msra.mxu0 0.0
    %3701 = vmatprep.subr.mxu0 0.0
    %3702 = vmatpush1.msra.mxu0 0.0
    %3703 = vmatprep.subr.mxu0 0.0
    %3704 = vmatpush1.msra.mxu0 0.0
    %3705 = vmatprep.subr.mxu0 0.0
    %3706 = vmatpush1.msra.mxu0 0.0
    %3707 = vmatprep.subr.mxu0 0.0
    %3708 = vmatpush1.msra.mxu0 0.0
    %3709 = vmatprep.subr.mxu0 0.0
    %3710 = vmatpush1.msra.mxu0 0.0
    %3711 = vmatprep.subr.mxu0 0.0
    %3712 = vmatpush1.msra.mxu0 0.0
    %3713 = vmatprep.subr.mxu0 0.0
    %3714 = vmatpush1.msra.mxu0 0.0
    %3715 = vmatprep.subr.mxu0 0.0
    %3716 = vmatpush1.msra.mxu0 0.0
    %3717 = vmatprep.subr.mxu0 0.0
    %3718 = vmatpush1.msra.mxu0 0.0
    %3719 = vmatprep.subr.mxu0 0.0
    %3720 = vmatpush1.msra.mxu0 0.0
    %3721 = vmatprep.subr.mxu0 0.0
    %3722 = vmatpush1.msra.mxu0 0.0
    %3723 = vmatprep.subr.mxu0 0.0
    %3724 = vmatpush1.msra.mxu0 0.0
    %3725 = vmatprep.subr.mxu0 0.0
    %3726 = vmatpush1.msra.mxu0 0.0
    %3727 = vmatprep.subr.mxu0 0.0
    %3728 = vmatpush1.msra.mxu0 0.0
    %3729 = vmatprep.subr.mxu0 0.0
    %3730 = vmatpush1.msra.mxu0 0.0
    %3731 = vmatprep.subr.mxu0 0.0
    %3732 = vmatpush1.msra.mxu0 0.0
    %3733 = vmatprep.subr.mxu0 0.0
    %3734 = vmatpush1.msra.mxu0 0.0
    %3735 = vmatprep.subr.mxu0 0.0
    %3736 = vmatpush1.msra.mxu0 0.0
    %3737 = vmatprep.subr.mxu0 0.0
    %3738 = vmatpush1.msra.mxu0 0.0
    %3739 = vmatprep.subr.mxu0 0.0
    %3740 = vmatpush1.msra.mxu0 0.0
    %3741 = vmatprep.subr.mxu0 0.0
    %3742 = vmatpush1.msra.mxu0 0.0
    %3743 = vmatprep.subr.mxu0 0.0
    %3744 = vmatpush1.msra.mxu0 0.0
    %3745 = vmatprep.subr.mxu0 0.0
    %3746 = vmatpush1.msra.mxu0 0.0
    %3747 = vmatprep.subr.mxu0 0.0
    %3748 = vmatpush1.msra.mxu0 0.0
    %3749 = vmatprep.subr.mxu0 0.0
    %3750 = vmatpush1.msra.mxu0 0.0
    %3751 = vmatprep.mubr.f32.mxu0 0.0
    %v3752 = vand.u32 %v3680, 4294901760
    %v3753 = vsub.f32 %v3680, %v3752
    %v3754 = vand.u32 %v3753, 4294901760
    %v3755 = vsub.f32 %v3753, %v3754
    %v3756 = vand.u32 %v3755, 4294901760
    %3757 = vmatmul.mubr.f32.gmra.mrb[0].mxu0 %v3756
    %v3758 = vpop.f32.mrb[0].mxu0
    %v3759 = vadd.f32 0.0, %v3758
    %v3760 = vpop.f32.mrb[0].mxu0
    %3761 = vmatprep.mubr.f32.mxu0 0.0
    %v3762 = vand.u32 %v3683, 4294901760
    %v3763 = vsub.f32 %v3683, %v3762
    %v3764 = vand.u32 %v3763, 4294901760
    %v3765 = vsub.f32 %v3763, %v3764
    %v3766 = vand.u32 %v3765, 4294901760
    %3767 = vmatmul.mubr.f32.gmra.mrb[0].mxu0 %v3766
    %v3768 = vpop.f32.mrb[0].mxu0
    %v3769 = vadd.f32 0.0, %v3768
    %v3770 = vpop.f32.mrb[0].mxu0
    %3771 = vdwg.mxu0
    %3772 = vmatprep.subr.mxu0 0.0
    %v3773 = vand.u32 %v3677, 4294901760
    %v3774 = vsub.f32 %v3677, %v3773
    %v3775 = vand.u32 %v3774, 4294901760
    %v3776 = vsub.f32 %v3774, %v3775
    %v3777 = vand.u32 %v3776, 4294901760
    %3778 = vmatpush1.msra.mxu0 %v3777
    %3779 = vmatprep.subr.mxu0 0.0
    %v3780 = vand.u32 %v3678, 4294901760
    %v3781 = vsub.f32 %v3678, %v3780
    %v3782 = vand.u32 %v3781, 4294901760
    %v3783 = vsub.f32 %v3781, %v3782
    %v3784 = vand.u32 %v3783, 4294901760
    %3785 = vmatpush1.msra.mxu0 %v3784
    %3786 = vmatprep.subr.mxu0 0.0
    %3787 = vmatpush1.msra.mxu0 0.0
    %3788 = vmatprep.subr.mxu0 0.0
    %3789 = vmatpush1.msra.mxu0 0.0
    %3790 = vmatprep.subr.mxu0 0.0
    %3791 = vmatpush1.msra.mxu0 0.0
    %3792 = vmatprep.subr.mxu0 0.0
    %3793 = vmatpush1.msra.mxu0 0.0
    %3794 = vmatprep.subr.mxu0 0.0
    %3795 = vmatpush1.msra.mxu0 0.0
    %3796 = vmatprep.subr.mxu0 0.0
    %3797 = vmatpush1.msra.mxu0 0.0
    %3798 = vmatprep.subr.mxu0 0.0
    %3799 = vmatpush1.msra.mxu0 0.0
    %3800 = vmatprep.subr.mxu0 0.0
    %3801 = vmatpush1.msra.mxu0 0.0
    %3802 = vmatprep.subr.mxu0 0.0
    %3803 = vmatpush1.msra.mxu0 0.0
    %3804 = vmatprep.subr.mxu0 0.0
    %3805 = vmatpush1.msra.mxu0 0.0
    %3806 = vmatprep.subr.mxu0 0.0
    %3807 = vmatpush1.msra.mxu0 0.0
    %3808 = vmatprep.subr.mxu0 0.0
    %3809 = vmatpush1.msra.mxu0 0.0
    %3810 = vmatprep.subr.mxu0 0.0
    %3811 = vmatpush1.msra.mxu0 0.0
    %3812 = vmatprep.subr.mxu0 0.0
    %3813 = vmatpush1.msra.mxu0 0.0
    %3814 = vmatprep.subr.mxu0 0.0
    %3815 = vmatpush1.msra.mxu0 0.0
    %3816 = vmatprep.subr.mxu0 0.0
    %3817 = vmatpush1.msra.mxu0 0.0
    %3818 = vmatprep.subr.mxu0 0.0
    %3819 = vmatpush1.msra.mxu0 0.0
    %3820 = vmatprep.subr.mxu0 0.0
    %3821 = vmatpush1.msra.mxu0 0.0
    %3822 = vmatprep.subr.mxu0 0.0
    %3823 = vmatpush1.msra.mxu0 0.0
    %3824 = vmatprep.subr.mxu0 0.0
    %3825 = vmatpush1.msra.mxu0 0.0
    %3826 = vmatprep.subr.mxu0 0.0
    %3827 = vmatpush1.msra.mxu0 0.0
    %3828 = vmatprep.subr.mxu0 0.0
    %3829 = vmatpush1.msra.mxu0 0.0
    %3830 = vmatprep.subr.mxu0 0.0
    %3831 = vmatpush1.msra.mxu0 0.0
    %3832 = vmatprep.subr.mxu0 0.0
    %3833 = vmatpush1.msra.mxu0 0.0
    %3834 = vmatprep.subr.mxu0 0.0
    %3835 = vmatpush1.msra.mxu0 0.0
    %3836 = vmatprep.subr.mxu0 0.0
    %3837 = vmatpush1.msra.mxu0 0.0
    %3838 = vmatprep.subr.mxu0 0.0
    %3839 = vmatpush1.msra.mxu0 0.0
    %3840 = vmatprep.subr.mxu0 0.0
    %3841 = vmatpush1.msra.mxu0 0.0
    %3842 = vmatprep.subr.mxu0 0.0
    %3843 = vmatpush1.msra.mxu0 0.0
    %3844 = vmatprep.subr.mxu0 0.0
    %3845 = vmatpush1.msra.mxu0 0.0
    %3846 = vmatprep.mubr.f32.mxu0 0.0
    %v3847 = vand.u32 %v3680, 4294901760
    %3848 = vmatmul.mubr.f32.gmra.mrb[0].mxu0 %v3847
    %v3849 = vpop.f32.mrb[0].mxu0
    %v3850 = vadd.f32 %v3759, %v3849
    %v3851 = vpop.f32.mrb[0].mxu0
    %3852 = vmatprep.mubr.f32.mxu0 0.0
    %v3853 = vand.u32 %v3683, 4294901760
    %3854 = vmatmul.mubr.f32.gmra.mrb[0].mxu0 %v3853
    %v3855 = vpop.f32.mrb[0].mxu0
    %v3856 = vadd.f32 %v3769, %v3855
    %v3857 = vpop.f32.mrb[0].mxu0
    %3858 = vdwg.mxu0
    %3859 = vmatprep.subr.mxu0 0.0
    %v3860 = vand.u32 %v3677, 4294901760
    %v3861 = vsub.f32 %v3677, %v3860
    %3862 = vmatpush1.msra.mxu0 %v3861
    %3863 = vmatprep.subr.mxu0 0.0
    %v3864 = vand.u32 %v3678, 4294901760
    %v3865 = vsub.f32 %v3678, %v3864
    %3866 = vmatpush1.msra.mxu0 %v3865
    %3867 = vmatprep.subr.mxu0 0.0
    %3868 = vmatpush1.msra.mxu0 0.0
    %3869 = vmatprep.subr.mxu0 0.0
    %3870 = vmatpush1.msra.mxu0 0.0
    %3871 = vmatprep.subr.mxu0 0.0
    %3872 = vmatpush1.msra.mxu0 0.0
    %3873 = vmatprep.subr.mxu0 0.0
    %3874 = vmatpush1.msra.mxu0 0.0
    %3875 = vmatprep.subr.mxu0 0.0
    %3876 = vmatpush1.msra.mxu0 0.0
    %3877 = vmatprep.subr.mxu0 0.0
    %3878 = vmatpush1.msra.mxu0 0.0
    %3879 = vmatprep.subr.mxu0 0.0
    %3880 = vmatpush1.msra.mxu0 0.0
    %3881 = vmatprep.subr.mxu0 0.0
    %3882 = vmatpush1.msra.mxu0 0.0
    %3883 = vmatprep.subr.mxu0 0.0
    %3884 = vmatpush1.msra.mxu0 0.0
    %3885 = vmatprep.subr.mxu0 0.0
    %3886 = vmatpush1.msra.mxu0 0.0
    %3887 = vmatprep.subr.mxu0 0.0
    %3888 = vmatpush1.msra.mxu0 0.0
    %3889 = vmatprep.subr.mxu0 0.0
    %3890 = vmatpush1.msra.mxu0 0.0
    %3891 = vmatprep.subr.mxu0 0.0
    %3892 = vmatpush1.msra.mxu0 0.0
    %3893 = vmatprep.subr.mxu0 0.0
    %3894 = vmatpush1.msra.mxu0 0.0
    %3895 = vmatprep.subr.mxu0 0.0
    %3896 = vmatpush1.msra.mxu0 0.0
    %3897 = vmatprep.subr.mxu0 0.0
    %3898 = vmatpush1.msra.mxu0 0.0
    %3899 = vmatprep.subr.mxu0 0.0
    %3900 = vmatpush1.msra.mxu0 0.0
    %3901 = vmatprep.subr.mxu0 0.0
    %3902 = vmatpush1.msra.mxu0 0.0
    %3903 = vmatprep.subr.mxu0 0.0
    %3904 = vmatpush1.msra.mxu0 0.0
    %3905 = vmatprep.subr.mxu0 0.0
    %3906 = vmatpush1.msra.mxu0 0.0
    %3907 = vmatprep.subr.mxu0 0.0
    %3908 = vmatpush1.msra.mxu0 0.0
    %3909 = vmatprep.subr.mxu0 0.0
    %3910 = vmatpush1.msra.mxu0 0.0
    %3911 = vmatprep.subr.mxu0 0.0
    %3912 = vmatpush1.msra.mxu0 0.0
    %3913 = vmatprep.subr.mxu0 0.0
    %3914 = vmatpush1.msra.mxu0 0.0
    %3915 = vmatprep.subr.mxu0 0.0
    %3916 = vmatpush1.msra.mxu0 0.0
    %3917 = vmatprep.subr.mxu0 0.0
    %3918 = vmatpush1.msra.mxu0 0.0
    %3919 = vmatprep.subr.mxu0 0.0
    %3920 = vmatpush1.msra.mxu0 0.0
    %3921 = vmatprep.subr.mxu0 0.0
    %3922 = vmatpush1.msra.mxu0 0.0
    %3923 = vmatprep.subr.mxu0 0.0
    %3924 = vmatpush1.msra.mxu0 0.0
    %3925 = vmatprep.subr.mxu0 0.0
    %3926 = vmatpush1.msra.mxu0 0.0
    %3927 = vmatprep.mubr.f32.mxu0 0.0
    %v3928 = vand.u32 %v3680, 4294901760
    %v3929 = vsub.f32 %v3680, %v3928
    %3930 = vmatmul.mubr.f32.gmra.mrb[0].mxu0 %v3929
    %v3931 = vpop.f32.mrb[0].mxu0
    %v3932 = vadd.f32 %v3850, %v3931
    %v3933 = vpop.f32.mrb[0].mxu0
    %3934 = vmatprep.mubr.f32.mxu0 0.0
    %v3935 = vand.u32 %v3683, 4294901760
    %v3936 = vsub.f32 %v3683, %v3935
    %3937 = vmatmul.mubr.f32.gmra.mrb[0].mxu0 %v3936
    %v3938 = vpop.f32.mrb[0].mxu0
    %v3939 = vadd.f32 %v3856, %v3938
    %v3940 = vpop.f32.mrb[0].mxu0
    %3941 = vdwg.mxu0
    %3942 = vmatprep.subr.mxu0 0.0
    %v3943 = vand.u32 %v3677, 4294901760
    %3944 = vmatpush1.msra.mxu0 %v3943
    %3945 = vmatprep.subr.mxu0 0.0
    %v3946 = vand.u32 %v3678, 4294901760
    %3947 = vmatpush1.msra.mxu0 %v3946
    %3948 = vmatprep.subr.mxu0 0.0
    %3949 = vmatpush1.msra.mxu0 0.0
    %3950 = vmatprep.subr.mxu0 0.0
    %3951 = vmatpush1.msra.mxu0 0.0
    %3952 = vmatprep.subr.mxu0 0.0
    %3953 = vmatpush1.msra.mxu0 0.0
    %3954 = vmatprep.subr.mxu0 0.0
    %3955 = vmatpush1.msra.mxu0 0.0
    %3956 = vmatprep.subr.mxu0 0.0
    %3957 = vmatpush1.msra.mxu0 0.0
    %3958 = vmatprep.subr.mxu0 0.0
    %3959 = vmatpush1.msra.mxu0 0.0
    %3960 = vmatprep.subr.mxu0 0.0
    %3961 = vmatpush1.msra.mxu0 0.0
    %3962 = vmatprep.subr.mxu0 0.0
    %3963 = vmatpush1.msra.mxu0 0.0
    %3964 = vmatprep.subr.mxu0 0.0
    %3965 = vmatpush1.msra.mxu0 0.0
    %3966 = vmatprep.subr.mxu0 0.0
    %3967 = vmatpush1.msra.mxu0 0.0
    %3968 = vmatprep.subr.mxu0 0.0
    %3969 = vmatpush1.msra.mxu0 0.0
    %3970 = vmatprep.subr.mxu0 0.0
    %3971 = vmatpush1.msra.mxu0 0.0
    %3972 = vmatprep.subr.mxu0 0.0
    %3973 = vmatpush1.msra.mxu0 0.0
    %3974 = vmatprep.subr.mxu0 0.0
    %3975 = vmatpush1.msra.mxu0 0.0
    %3976 = vmatprep.subr.mxu0 0.0
    %3977 = vmatpush1.msra.mxu0 0.0
    %3978 = vmatprep.subr.mxu0 0.0
    %3979 = vmatpush1.msra.mxu0 0.0
    %3980 = vmatprep.subr.mxu0 0.0
    %3981 = vmatpush1.msra.mxu0 0.0
    %3982 = vmatprep.subr.mxu0 0.0
    %3983 = vmatpush1.msra.mxu0 0.0
    %3984 = vmatprep.subr.mxu0 0.0
    %3985 = vmatpush1.msra.mxu0 0.0
    %3986 = vmatprep.subr.mxu0 0.0
    %3987 = vmatpush1.msra.mxu0 0.0
    %3988 = vmatprep.subr.mxu0 0.0
    %3989 = vmatpush1.msra.mxu0 0.0
    %3990 = vmatprep.subr.mxu0 0.0
    %3991 = vmatpush1.msra.mxu0 0.0
    %3992 = vmatprep.subr.mxu0 0.0
    %3993 = vmatpush1.msra.mxu0 0.0
    %3994 = vmatprep.subr.mxu0 0.0
    %3995 = vmatpush1.msra.mxu0 0.0
    %3996 = vmatprep.subr.mxu0 0.0
    %3997 = vmatpush1.msra.mxu0 0.0
    %3998 = vmatprep.subr.mxu0 0.0
    %3999 = vmatpush1.msra.mxu0 0.0
    %4000 = vmatprep.subr.mxu0 0.0
    %4001 = vmatpush1.msra.mxu0 0.0
    %4002 = vmatprep.subr.mxu0 0.0
    %4003 = vmatpush1.msra.mxu0 0.0
    %4004 = vmatprep.subr.mxu0 0.0
    %4005 = vmatpush1.msra.mxu0 0.0
    %4006 = vmatprep.subr.mxu0 0.0
    %4007 = vmatpush1.msra.mxu0 0.0
    %4008 = vmatprep.mubr.f32.mxu0 0.0
    %v4009 = vand.u32 %v3680, 4294901760
    %v4010 = vsub.f32 %v3680, %v4009
    %v4011 = vand.u32 %v4010, 4294901760
    %4012 = vmatmul.mubr.f32.gmra.mrb[0].mxu0 %v4011
    %v4013 = vpop.f32.mrb[0].mxu0
    %v4014 = vadd.f32 %v3932, %v4013
    %v4015 = vpop.f32.mrb[0].mxu0
    %4016 = vmatprep.mubr.f32.mxu0 0.0
    %v4017 = vand.u32 %v3683, 4294901760
    %v4018 = vsub.f32 %v3683, %v4017
    %v4019 = vand.u32 %v4018, 4294901760
    %4020 = vmatmul.mubr.f32.gmra.mrb[0].mxu0 %v4019
    %v4021 = vpop.f32.mrb[0].mxu0
    %v4022 = vadd.f32 %v3939, %v4021
    %v4023 = vpop.f32.mrb[0].mxu0
    %4024 = vdwg.mxu0
    %4025 = vmatprep.subr.mxu0 0.0
    %v4026 = vand.u32 %v3677, 4294901760
    %v4027 = vsub.f32 %v3677, %v4026
    %v4028 = vand.u32 %v4027, 4294901760
    %4029 = vmatpush1.msra.mxu0 %v4028
    %4030 = vmatprep.subr.mxu0 0.0
    %v4031 = vand.u32 %v3678, 4294901760
    %v4032 = vsub.f32 %v3678, %v4031
    %v4033 = vand.u32 %v4032, 4294901760
    %4034 = vmatpush1.msra.mxu0 %v4033
    %4035 = vmatprep.subr.mxu0 0.0
    %4036 = vmatpush1.msra.mxu0 0.0
    %4037 = vmatprep.subr.mxu0 0.0
    %4038 = vmatpush1.msra.mxu0 0.0
    %4039 = vmatprep.subr.mxu0 0.0
    %4040 = vmatpush1.msra.mxu0 0.0
    %4041 = vmatprep.subr.mxu0 0.0
    %4042 = vmatpush1.msra.mxu0 0.0
    %4043 = vmatprep.subr.mxu0 0.0
    %4044 = vmatpush1.msra.mxu0 0.0
    %4045 = vmatprep.subr.mxu0 0.0
    %4046 = vmatpush1.msra.mxu0 0.0
    %4047 = vmatprep.subr.mxu0 0.0
    %4048 = vmatpush1.msra.mxu0 0.0
    %4049 = vmatprep.subr.mxu0 0.0
    %4050 = vmatpush1.msra.mxu0 0.0
    %4051 = vmatprep.subr.mxu0 0.0
    %4052 = vmatpush1.msra.mxu0 0.0
    %4053 = vmatprep.subr.mxu0 0.0
    %4054 = vmatpush1.msra.mxu0 0.0
    %4055 = vmatprep.subr.mxu0 0.0
    %4056 = vmatpush1.msra.mxu0 0.0
    %4057 = vmatprep.subr.mxu0 0.0
    %4058 = vmatpush1.msra.mxu0 0.0
    %4059 = vmatprep.subr.mxu0 0.0
    %4060 = vmatpush1.msra.mxu0 0.0
    %4061 = vmatprep.subr.mxu0 0.0
    %4062 = vmatpush1.msra.mxu0 0.0
    %4063 = vmatprep.subr.mxu0 0.0
    %4064 = vmatpush1.msra.mxu0 0.0
    %4065 = vmatprep.subr.mxu0 0.0
    %4066 = vmatpush1.msra.mxu0 0.0
    %4067 = vmatprep.subr.mxu0 0.0
    %4068 = vmatpush1.msra.mxu0 0.0
    %4069 = vmatprep.subr.mxu0 0.0
    %4070 = vmatpush1.msra.mxu0 0.0
    %4071 = vmatprep.subr.mxu0 0.0
    %4072 = vmatpush1.msra.mxu0 0.0
    %4073 = vmatprep.subr.mxu0 0.0
    %4074 = vmatpush1.msra.mxu0 0.0
    %4075 = vmatprep.subr.mxu0 0.0
    %4076 = vmatpush1.msra.mxu0 0.0
    %4077 = vmatprep.subr.mxu0 0.0
    %4078 = vmatpush1.msra.mxu0 0.0
    %4079 = vmatprep.subr.mxu0 0.0
    %4080 = vmatpush1.msra.mxu0 0.0
    %4081 = vmatprep.subr.mxu0 0.0
    %4082 = vmatpush1.msra.mxu0 0.0
    %4083 = vmatprep.subr.mxu0 0.0
    %4084 = vmatpush1.msra.mxu0 0.0
    %4085 = vmatprep.subr.mxu0 0.0
    %4086 = vmatpush1.msra.mxu0 0.0
    %4087 = vmatprep.subr.mxu0 0.0
    %4088 = vmatpush1.msra.mxu0 0.0
    %4089 = vmatprep.subr.mxu0 0.0
    %4090 = vmatpush1.msra.mxu0 0.0
    %4091 = vmatprep.subr.mxu0 0.0
    %4092 = vmatpush1.msra.mxu0 0.0
    %4093 = vmatprep.subr.mxu0 0.0
    %4094 = vmatpush1.msra.mxu0 0.0
    %4095 = vmatprep.mubr.f32.mxu0 0.0
    %v4096 = vand.u32 %v3680, 4294901760
    %4097 = vmatmul.mubr.f32.gmra.mrb[0].mxu0 %v4096
    %v4098 = vpop.f32.mrb[0].mxu0
    %v4099 = vadd.f32 %v4014, %v4098
    %v4100 = vpop.f32.mrb[0].mxu0
    %4101 = vmatprep.mubr.f32.mxu0 0.0
    %v4102 = vand.u32 %v3683, 4294901760
    %4103 = vmatmul.mubr.f32.gmra.mrb[0].mxu0 %v4102
    %v4104 = vpop.f32.mrb[0].mxu0
    %v4105 = vadd.f32 %v4022, %v4104
    %v4106 = vpop.f32.mrb[0].mxu0
    %4107 = vdwg.mxu0
    %4108 = vmatprep.subr.mxu0 0.0
    %v4109 = vand.u32 %v3677, 4294901760
    %4110 = vmatpush1.msra.mxu0 %v4109
    %4111 = vmatprep.subr.mxu0 0.0
    %v4112 = vand.u32 %v3678, 4294901760
    %4113 = vmatpush1.msra.mxu0 %v4112
    %4114 = vmatprep.subr.mxu0 0.0
    %4115 = vmatpush1.msra.mxu0 0.0
    %4116 = vmatprep.subr.mxu0 0.0
    %4117 = vmatpush1.msra.mxu0 0.0
    %4118 = vmatprep.subr.mxu0 0.0
    %4119 = vmatpush1.msra.mxu0 0.0
    %4120 = vmatprep.subr.mxu0 0.0
    %4121 = vmatpush1.msra.mxu0 0.0
    %4122 = vmatprep.subr.mxu0 0.0
    %4123 = vmatpush1.msra.mxu0 0.0
    %4124 = vmatprep.subr.mxu0 0.0
    %4125 = vmatpush1.msra.mxu0 0.0
    %4126 = vmatprep.subr.mxu0 0.0
    %4127 = vmatpush1.msra.mxu0 0.0
    %4128 = vmatprep.subr.mxu0 0.0
    %4129 = vmatpush1.msra.mxu0 0.0
    %4130 = vmatprep.subr.mxu0 0.0
    %4131 = vmatpush1.msra.mxu0 0.0
    %4132 = vmatprep.subr.mxu0 0.0
    %4133 = vmatpush1.msra.mxu0 0.0
    %4134 = vmatprep.subr.mxu0 0.0
    %4135 = vmatpush1.msra.mxu0 0.0
    %4136 = vmatprep.subr.mxu0 0.0
    %4137 = vmatpush1.msra.mxu0 0.0
    %4138 = vmatprep.subr.mxu0 0.0
    %4139 = vmatpush1.msra.mxu0 0.0
    %4140 = vmatprep.subr.mxu0 0.0
    %4141 = vmatpush1.msra.mxu0 0.0
    %4142 = vmatprep.subr.mxu0 0.0
    %4143 = vmatpush1.msra.mxu0 0.0
    %4144 = vmatprep.subr.mxu0 0.0
    %4145 = vmatpush1.msra.mxu0 0.0
    %4146 = vmatprep.subr.mxu0 0.0
    %4147 = vmatpush1.msra.mxu0 0.0
    %4148 = vmatprep.subr.mxu0 0.0
    %4149 = vmatpush1.msra.mxu0 0.0
    %4150 = vmatprep.subr.mxu0 0.0
    %4151 = vmatpush1.msra.mxu0 0.0
    %4152 = vmatprep.subr.mxu0 0.0
    %4153 = vmatpush1.msra.mxu0 0.0
    %4154 = vmatprep.subr.mxu0 0.0
    %4155 = vmatpush1.msra.mxu0 0.0
    %4156 = vmatprep.subr.mxu0 0.0
    %4157 = vmatpush1.msra.mxu0 0.0
    %4158 = vmatprep.subr.mxu0 0.0
    %4159 = vmatpush1.msra.mxu0 0.0
    %4160 = vmatprep.subr.mxu0 0.0
    %4161 = vmatpush1.msra.mxu0 0.0
    %4162 = vmatprep.subr.mxu0 0.0
    %4163 = vmatpush1.msra.mxu0 0.0
    %4164 = vmatprep.subr.mxu0 0.0
    %4165 = vmatpush1.msra.mxu0 0.0
    %4166 = vmatprep.subr.mxu0 0.0
    %4167 = vmatpush1.msra.mxu0 0.0
    %4168 = vmatprep.subr.mxu0 0.0
    %4169 = vmatpush1.msra.mxu0 0.0
    %4170 = vmatprep.subr.mxu0 0.0
    %4171 = vmatpush1.msra.mxu0 0.0
    %4172 = vmatprep.subr.mxu0 0.0
    %4173 = vmatpush1.msra.mxu0 0.0
    %4174 = vmatprep.mubr.f32.mxu0 0.0
    %v4175 = vand.u32 %v3680, 4294901760
    %4176 = vmatmul.mubr.f32.gmra.mrb[0].mxu0 %v4175
    %v4177 = vpop.f32.mrb[0].mxu0
    %v4178 = vadd.f32 %v4099, %v4177
    %v4179 = vpop.f32.mrb[0].mxu0
    %4180 = vmatprep.mubr.f32.mxu0 0.0
    %v4181 = vand.u32 %v3683, 4294901760
    %4182 = vmatmul.mubr.f32.gmra.mrb[0].mxu0 %v4181
    %v4183 = vpop.f32.mrb[0].mxu0
    %v4184 = vadd.f32 %v4105, %v4183
    %v4185 = vpop.f32.mrb[0].mxu0
    %4186 = vdwg.mxu0
    %v4188 = vsel %vm49, %v3671, 0
    %v4191 = vsel %vm49, %v3672, 0
    %4193 = vmatprep.subr.mxu0 0.0
    %v4194 = vand.u32 %v3673, 4294901760
    %4195 = vmatpush1.msra.mxu0 %v4194
    %4196 = vmatprep.subr.mxu0 0.0
    %v4197 = vand.u32 %v3674, 4294901760
    %4198 = vmatpush1.msra.mxu0 %v4197
    %4199 = vmatprep.subr.mxu0 0.0
    %4200 = vmatpush1.msra.mxu0 0.0
    %4201 = vmatprep.subr.mxu0 0.0
    %4202 = vmatpush1.msra.mxu0 0.0
    %4203 = vmatprep.subr.mxu0 0.0
    %4204 = vmatpush1.msra.mxu0 0.0
    %4205 = vmatprep.subr.mxu0 0.0
    %4206 = vmatpush1.msra.mxu0 0.0
    %4207 = vmatprep.subr.mxu0 0.0
    %4208 = vmatpush1.msra.mxu0 0.0
    %4209 = vmatprep.subr.mxu0 0.0
    %4210 = vmatpush1.msra.mxu0 0.0
    %4211 = vmatprep.subr.mxu0 0.0
    %4212 = vmatpush1.msra.mxu0 0.0
    %4213 = vmatprep.subr.mxu0 0.0
    %4214 = vmatpush1.msra.mxu0 0.0
    %4215 = vmatprep.subr.mxu0 0.0
    %4216 = vmatpush1.msra.mxu0 0.0
    %4217 = vmatprep.subr.mxu0 0.0
    %4218 = vmatpush1.msra.mxu0 0.0
    %4219 = vmatprep.subr.mxu0 0.0
    %4220 = vmatpush1.msra.mxu0 0.0
    %4221 = vmatprep.subr.mxu0 0.0
    %4222 = vmatpush1.msra.mxu0 0.0
    %4223 = vmatprep.subr.mxu0 0.0
    %4224 = vmatpush1.msra.mxu0 0.0
    %4225 = vmatprep.subr.mxu0 0.0
    %4226 = vmatpush1.msra.mxu0 0.0
    %4227 = vmatprep.subr.mxu0 0.0
    %4228 = vmatpush1.msra.mxu0 0.0
    %4229 = vmatprep.subr.mxu0 0.0
    %4230 = vmatpush1.msra.mxu0 0.0
    %4231 = vmatprep.subr.mxu0 0.0
    %4232 = vmatpush1.msra.mxu0 0.0
    %4233 = vmatprep.subr.mxu0 0.0
    %4234 = vmatpush1.msra.mxu0 0.0
    %4235 = vmatprep.subr.mxu0 0.0
    %4236 = vmatpush1.msra.mxu0 0.0
    %4237 = vmatprep.subr.mxu0 0.0
    %4238 = vmatpush1.msra.mxu0 0.0
    %4239 = vmatprep.subr.mxu0 0.0
    %4240 = vmatpush1.msra.mxu0 0.0
    %4241 = vmatprep.subr.mxu0 0.0
    %4242 = vmatpush1.msra.mxu0 0.0
    %4243 = vmatprep.subr.mxu0 0.0
    %4244 = vmatpush1.msra.mxu0 0.0
    %4245 = vmatprep.subr.mxu0 0.0
    %4246 = vmatpush1.msra.mxu0 0.0
    %4247 = vmatprep.subr.mxu0 0.0
    %4248 = vmatpush1.msra.mxu0 0.0
    %4249 = vmatprep.subr.mxu0 0.0
    %4250 = vmatpush1.msra.mxu0 0.0
    %4251 = vmatprep.subr.mxu0 0.0
    %4252 = vmatpush1.msra.mxu0 0.0
    %4253 = vmatprep.subr.mxu0 0.0
    %4254 = vmatpush1.msra.mxu0 0.0
    %4255 = vmatprep.subr.mxu0 0.0
    %4256 = vmatpush1.msra.mxu0 0.0
    %4257 = vmatprep.subr.mxu0 0.0
    %4258 = vmatpush1.msra.mxu0 0.0
    %4259 = vmatprep.mubr.f32.mxu0 0.0
    %v4260 = vand.u32 %v4188, 4294901760
    %v4261 = vsub.f32 %v4188, %v4260
    %v4262 = vand.u32 %v4261, 4294901760
    %v4263 = vsub.f32 %v4261, %v4262
    %v4264 = vand.u32 %v4263, 4294901760
    %4265 = vmatmul.mubr.f32.gmra.mrb[0].mxu0 %v4264
    %v4266 = vpop.f32.mrb[0].mxu0
    %v4267 = vadd.f32 %v4178, %v4266
    %v4268 = vpop.f32.mrb[0].mxu0
    %4269 = vmatprep.mubr.f32.mxu0 0.0
    %v4270 = vand.u32 %v4191, 4294901760
    %v4271 = vsub.f32 %v4191, %v4270
    %v4272 = vand.u32 %v4271, 4294901760
    %v4273 = vsub.f32 %v4271, %v4272
    %v4274 = vand.u32 %v4273, 4294901760
    %4275 = vmatmul.mubr.f32.gmra.mrb[0].mxu0 %v4274
    %v4276 = vpop.f32.mrb[0].mxu0
    %v4277 = vadd.f32 %v4184, %v4276
    %v4278 = vpop.f32.mrb[0].mxu0
    %4279 = vdwg.mxu0
    %4280 = vmatprep.subr.mxu0 0.0
    %v4281 = vand.u32 %v3673, 4294901760
    %v4282 = vsub.f32 %v3673, %v4281
    %v4283 = vand.u32 %v4282, 4294901760
    %v4284 = vsub.f32 %v4282, %v4283
    %v4285 = vand.u32 %v4284, 4294901760
    %4286 = vmatpush1.msra.mxu0 %v4285
    %4287 = vmatprep.subr.mxu0 0.0
    %v4288 = vand.u32 %v3674, 4294901760
    %v4289 = vsub.f32 %v3674, %v4288
    %v4290 = vand.u32 %v4289, 4294901760
    %v4291 = vsub.f32 %v4289, %v4290
    %v4292 = vand.u32 %v4291, 4294901760
    %4293 = vmatpush1.msra.mxu0 %v4292
    %4294 = vmatprep.subr.mxu0 0.0
    %4295 = vmatpush1.msra.mxu0 0.0
    %4296 = vmatprep.subr.mxu0 0.0
    %4297 = vmatpush1.msra.mxu0 0.0
    %4298 = vmatprep.subr.mxu0 0.0
    %4299 = vmatpush1.msra.mxu0 0.0
    %4300 = vmatprep.subr.mxu0 0.0
    %4301 = vmatpush1.msra.mxu0 0.0
    %4302 = vmatprep.subr.mxu0 0.0
    %4303 = vmatpush1.msra.mxu0 0.0
    %4304 = vmatprep.subr.mxu0 0.0
    %4305 = vmatpush1.msra.mxu0 0.0
    %4306 = vmatprep.subr.mxu0 0.0
    %4307 = vmatpush1.msra.mxu0 0.0
    %4308 = vmatprep.subr.mxu0 0.0
    %4309 = vmatpush1.msra.mxu0 0.0
    %4310 = vmatprep.subr.mxu0 0.0
    %4311 = vmatpush1.msra.mxu0 0.0
    %4312 = vmatprep.subr.mxu0 0.0
    %4313 = vmatpush1.msra.mxu0 0.0
    %4314 = vmatprep.subr.mxu0 0.0
    %4315 = vmatpush1.msra.mxu0 0.0
    %4316 = vmatprep.subr.mxu0 0.0
    %4317 = vmatpush1.msra.mxu0 0.0
    %4318 = vmatprep.subr.mxu0 0.0
    %4319 = vmatpush1.msra.mxu0 0.0
    %4320 = vmatprep.subr.mxu0 0.0
    %4321 = vmatpush1.msra.mxu0 0.0
    %4322 = vmatprep.subr.mxu0 0.0
    %4323 = vmatpush1.msra.mxu0 0.0
    %4324 = vmatprep.subr.mxu0 0.0
    %4325 = vmatpush1.msra.mxu0 0.0
    %4326 = vmatprep.subr.mxu0 0.0
    %4327 = vmatpush1.msra.mxu0 0.0
    %4328 = vmatprep.subr.mxu0 0.0
    %4329 = vmatpush1.msra.mxu0 0.0
    %4330 = vmatprep.subr.mxu0 0.0
    %4331 = vmatpush1.msra.mxu0 0.0
    %4332 = vmatprep.subr.mxu0 0.0
    %4333 = vmatpush1.msra.mxu0 0.0
    %4334 = vmatprep.subr.mxu0 0.0
    %4335 = vmatpush1.msra.mxu0 0.0
    %4336 = vmatprep.subr.mxu0 0.0
    %4337 = vmatpush1.msra.mxu0 0.0
    %4338 = vmatprep.subr.mxu0 0.0
    %4339 = vmatpush1.msra.mxu0 0.0
    %4340 = vmatprep.subr.mxu0 0.0
    %4341 = vmatpush1.msra.mxu0 0.0
    %4342 = vmatprep.subr.mxu0 0.0
    %4343 = vmatpush1.msra.mxu0 0.0
    %4344 = vmatprep.subr.mxu0 0.0
    %4345 = vmatpush1.msra.mxu0 0.0
    %4346 = vmatprep.subr.mxu0 0.0
    %4347 = vmatpush1.msra.mxu0 0.0
    %4348 = vmatprep.subr.mxu0 0.0
    %4349 = vmatpush1.msra.mxu0 0.0
    %4350 = vmatprep.subr.mxu0 0.0
    %4351 = vmatpush1.msra.mxu0 0.0
    %4352 = vmatprep.subr.mxu0 0.0
    %4353 = vmatpush1.msra.mxu0 0.0
    %4354 = vmatprep.mubr.f32.mxu0 0.0
    %v4355 = vand.u32 %v4188, 4294901760
    %4356 = vmatmul.mubr.f32.gmra.mrb[0].mxu0 %v4355
    %v4357 = vpop.f32.mrb[0].mxu0
    %v4358 = vadd.f32 %v4267, %v4357
    %v4359 = vpop.f32.mrb[0].mxu0
    %4360 = vmatprep.mubr.f32.mxu0 0.0
    %v4361 = vand.u32 %v4191, 4294901760
    %4362 = vmatmul.mubr.f32.gmra.mrb[0].mxu0 %v4361
    %v4363 = vpop.f32.mrb[0].mxu0
    %v4364 = vadd.f32 %v4277, %v4363
    %v4365 = vpop.f32.mrb[0].mxu0
    %4366 = vdwg.mxu0
    %4367 = vmatprep.subr.mxu0 0.0
    %v4368 = vand.u32 %v3673, 4294901760
    %v4369 = vsub.f32 %v3673, %v4368
    %4370 = vmatpush1.msra.mxu0 %v4369
    %4371 = vmatprep.subr.mxu0 0.0
    %v4372 = vand.u32 %v3674, 4294901760
    %v4373 = vsub.f32 %v3674, %v4372
    %4374 = vmatpush1.msra.mxu0 %v4373
    %4375 = vmatprep.subr.mxu0 0.0
    %4376 = vmatpush1.msra.mxu0 0.0
    %4377 = vmatprep.subr.mxu0 0.0
    %4378 = vmatpush1.msra.mxu0 0.0
    %4379 = vmatprep.subr.mxu0 0.0
    %4380 = vmatpush1.msra.mxu0 0.0
    %4381 = vmatprep.subr.mxu0 0.0
    %4382 = vmatpush1.msra.mxu0 0.0
    %4383 = vmatprep.subr.mxu0 0.0
    %4384 = vmatpush1.msra.mxu0 0.0
    %4385 = vmatprep.subr.mxu0 0.0
    %4386 = vmatpush1.msra.mxu0 0.0
    %4387 = vmatprep.subr.mxu0 0.0
    %4388 = vmatpush1.msra.mxu0 0.0
    %4389 = vmatprep.subr.mxu0 0.0
    %4390 = vmatpush1.msra.mxu0 0.0
    %4391 = vmatprep.subr.mxu0 0.0
    %4392 = vmatpush1.msra.mxu0 0.0
    %4393 = vmatprep.subr.mxu0 0.0
    %4394 = vmatpush1.msra.mxu0 0.0
    %4395 = vmatprep.subr.mxu0 0.0
    %4396 = vmatpush1.msra.mxu0 0.0
    %4397 = vmatprep.subr.mxu0 0.0
    %4398 = vmatpush1.msra.mxu0 0.0
    %4399 = vmatprep.subr.mxu0 0.0
    %4400 = vmatpush1.msra.mxu0 0.0
    %4401 = vmatprep.subr.mxu0 0.0
    %4402 = vmatpush1.msra.mxu0 0.0
    %4403 = vmatprep.subr.mxu0 0.0
    %4404 = vmatpush1.msra.mxu0 0.0
    %4405 = vmatprep.subr.mxu0 0.0
    %4406 = vmatpush1.msra.mxu0 0.0
    %4407 = vmatprep.subr.mxu0 0.0
    %4408 = vmatpush1.msra.mxu0 0.0
    %4409 = vmatprep.subr.mxu0 0.0
    %4410 = vmatpush1.msra.mxu0 0.0
    %4411 = vmatprep.subr.mxu0 0.0
    %4412 = vmatpush1.msra.mxu0 0.0
    %4413 = vmatprep.subr.mxu0 0.0
    %4414 = vmatpush1.msra.mxu0 0.0
    %4415 = vmatprep.subr.mxu0 0.0
    %4416 = vmatpush1.msra.mxu0 0.0
    %4417 = vmatprep.subr.mxu0 0.0
    %4418 = vmatpush1.msra.mxu0 0.0
    %4419 = vmatprep.subr.mxu0 0.0
    %4420 = vmatpush1.msra.mxu0 0.0
    %4421 = vmatprep.subr.mxu0 0.0
    %4422 = vmatpush1.msra.mxu0 0.0
    %4423 = vmatprep.subr.mxu0 0.0
    %4424 = vmatpush1.msra.mxu0 0.0
    %4425 = vmatprep.subr.mxu0 0.0
    %4426 = vmatpush1.msra.mxu0 0.0
    %4427 = vmatprep.subr.mxu0 0.0
    %4428 = vmatpush1.msra.mxu0 0.0
    %4429 = vmatprep.subr.mxu0 0.0
    %4430 = vmatpush1.msra.mxu0 0.0
    %4431 = vmatprep.subr.mxu0 0.0
    %4432 = vmatpush1.msra.mxu0 0.0
    %4433 = vmatprep.subr.mxu0 0.0
    %4434 = vmatpush1.msra.mxu0 0.0
    %4435 = vmatprep.mubr.f32.mxu0 0.0
    %v4436 = vand.u32 %v4188, 4294901760
    %v4437 = vsub.f32 %v4188, %v4436
    %4438 = vmatmul.mubr.f32.gmra.mrb[0].mxu0 %v4437
    %v4439 = vpop.f32.mrb[0].mxu0
    %v4440 = vadd.f32 %v4358, %v4439
    %v4441 = vpop.f32.mrb[0].mxu0
    %4442 = vmatprep.mubr.f32.mxu0 0.0
    %v4443 = vand.u32 %v4191, 4294901760
    %v4444 = vsub.f32 %v4191, %v4443
    %4445 = vmatmul.mubr.f32.gmra.mrb[0].mxu0 %v4444
    %v4446 = vpop.f32.mrb[0].mxu0
    %v4447 = vadd.f32 %v4364, %v4446
    %v4448 = vpop.f32.mrb[0].mxu0
    %4449 = vdwg.mxu0
    %4450 = vmatprep.subr.mxu0 0.0
    %v4451 = vand.u32 %v3673, 4294901760
    %4452 = vmatpush1.msra.mxu0 %v4451
    %4453 = vmatprep.subr.mxu0 0.0
    %v4454 = vand.u32 %v3674, 4294901760
    %4455 = vmatpush1.msra.mxu0 %v4454
    %4456 = vmatprep.subr.mxu0 0.0
    %4457 = vmatpush1.msra.mxu0 0.0
    %4458 = vmatprep.subr.mxu0 0.0
    %4459 = vmatpush1.msra.mxu0 0.0
    %4460 = vmatprep.subr.mxu0 0.0
    %4461 = vmatpush1.msra.mxu0 0.0
    %4462 = vmatprep.subr.mxu0 0.0
    %4463 = vmatpush1.msra.mxu0 0.0
    %4464 = vmatprep.subr.mxu0 0.0
    %4465 = vmatpush1.msra.mxu0 0.0
    %4466 = vmatprep.subr.mxu0 0.0
    %4467 = vmatpush1.msra.mxu0 0.0
    %4468 = vmatprep.subr.mxu0 0.0
    %4469 = vmatpush1.msra.mxu0 0.0
    %4470 = vmatprep.subr.mxu0 0.0
    %4471 = vmatpush1.msra.mxu0 0.0
    %4472 = vmatprep.subr.mxu0 0.0
    %4473 = vmatpush1.msra.mxu0 0.0
    %4474 = vmatprep.subr.mxu0 0.0
    %4475 = vmatpush1.msra.mxu0 0.0
    %4476 = vmatprep.subr.mxu0 0.0
    %4477 = vmatpush1.msra.mxu0 0.0
    %4478 = vmatprep.subr.mxu0 0.0
    %4479 = vmatpush1.msra.mxu0 0.0
    %4480 = vmatprep.subr.mxu0 0.0
    %4481 = vmatpush1.msra.mxu0 0.0
    %4482 = vmatprep.subr.mxu0 0.0
    %4483 = vmatpush1.msra.mxu0 0.0
    %4484 = vmatprep.subr.mxu0 0.0
    %4485 = vmatpush1.msra.mxu0 0.0
    %4486 = vmatprep.subr.mxu0 0.0
    %4487 = vmatpush1.msra.mxu0 0.0
    %4488 = vmatprep.subr.mxu0 0.0
    %4489 = vmatpush1.msra.mxu0 0.0
    %4490 = vmatprep.subr.mxu0 0.0
    %4491 = vmatpush1.msra.mxu0 0.0
    %4492 = vmatprep.subr.mxu0 0.0
    %4493 = vmatpush1.msra.mxu0 0.0
    %4494 = vmatprep.subr.mxu0 0.0
    %4495 = vmatpush1.msra.mxu0 0.0
    %4496 = vmatprep.subr.mxu0 0.0
    %4497 = vmatpush1.msra.mxu0 0.0
    %4498 = vmatprep.subr.mxu0 0.0
    %4499 = vmatpush1.msra.mxu0 0.0
    %4500 = vmatprep.subr.mxu0 0.0
    %4501 = vmatpush1.msra.mxu0 0.0
    %4502 = vmatprep.subr.mxu0 0.0
    %4503 = vmatpush1.msra.mxu0 0.0
    %4504 = vmatprep.subr.mxu0 0.0
    %4505 = vmatpush1.msra.mxu0 0.0
    %4506 = vmatprep.subr.mxu0 0.0
    %4507 = vmatpush1.msra.mxu0 0.0
    %4508 = vmatprep.subr.mxu0 0.0
    %4509 = vmatpush1.msra.mxu0 0.0
    %4510 = vmatprep.subr.mxu0 0.0
    %4511 = vmatpush1.msra.mxu0 0.0
    %4512 = vmatprep.subr.mxu0 0.0
    %4513 = vmatpush1.msra.mxu0 0.0
    %4514 = vmatprep.subr.mxu0 0.0
    %4515 = vmatpush1.msra.mxu0 0.0
    %4516 = vmatprep.mubr.f32.mxu0 0.0
    %v4517 = vand.u32 %v4188, 4294901760
    %v4518 = vsub.f32 %v4188, %v4517
    %v4519 = vand.u32 %v4518, 4294901760
    %4520 = vmatmul.mubr.f32.gmra.mrb[0].mxu0 %v4519
    %v4521 = vpop.f32.mrb[0].mxu0
    %v4522 = vadd.f32 %v4440, %v4521
    %v4523 = vpop.f32.mrb[0].mxu0
    %4524 = vmatprep.mubr.f32.mxu0 0.0
    %v4525 = vand.u32 %v4191, 4294901760
    %v4526 = vsub.f32 %v4191, %v4525
    %v4527 = vand.u32 %v4526, 4294901760
    %4528 = vmatmul.mubr.f32.gmra.mrb[0].mxu0 %v4527
    %v4529 = vpop.f32.mrb[0].mxu0
    %v4530 = vadd.f32 %v4447, %v4529
    %v4531 = vpop.f32.mrb[0].mxu0
    %4532 = vdwg.mxu0
    %4533 = vmatprep.subr.mxu0 0.0
    %v4534 = vand.u32 %v3673, 4294901760
    %v4535 = vsub.f32 %v3673, %v4534
    %v4536 = vand.u32 %v4535, 4294901760
    %4537 = vmatpush1.msra.mxu0 %v4536
    %4538 = vmatprep.subr.mxu0 0.0
    %v4539 = vand.u32 %v3674, 4294901760
    %v4540 = vsub.f32 %v3674, %v4539
    %v4541 = vand.u32 %v4540, 4294901760
    %4542 = vmatpush1.msra.mxu0 %v4541
    %4543 = vmatprep.subr.mxu0 0.0
    %4544 = vmatpush1.msra.mxu0 0.0
    %4545 = vmatprep.subr.mxu0 0.0
    %4546 = vmatpush1.msra.mxu0 0.0
    %4547 = vmatprep.subr.mxu0 0.0
    %4548 = vmatpush1.msra.mxu0 0.0
    %4549 = vmatprep.subr.mxu0 0.0
    %4550 = vmatpush1.msra.mxu0 0.0
    %4551 = vmatprep.subr.mxu0 0.0
    %4552 = vmatpush1.msra.mxu0 0.0
    %4553 = vmatprep.subr.mxu0 0.0
    %4554 = vmatpush1.msra.mxu0 0.0
    %4555 = vmatprep.subr.mxu0 0.0
    %4556 = vmatpush1.msra.mxu0 0.0
    %4557 = vmatprep.subr.mxu0 0.0
    %4558 = vmatpush1.msra.mxu0 0.0
    %4559 = vmatprep.subr.mxu0 0.0
    %4560 = vmatpush1.msra.mxu0 0.0
    %4561 = vmatprep.subr.mxu0 0.0
    %4562 = vmatpush1.msra.mxu0 0.0
    %4563 = vmatprep.subr.mxu0 0.0
    %4564 = vmatpush1.msra.mxu0 0.0
    %4565 = vmatprep.subr.mxu0 0.0
    %4566 = vmatpush1.msra.mxu0 0.0
    %4567 = vmatprep.subr.mxu0 0.0
    %4568 = vmatpush1.msra.mxu0 0.0
    %4569 = vmatprep.subr.mxu0 0.0
    %4570 = vmatpush1.msra.mxu0 0.0
    %4571 = vmatprep.subr.mxu0 0.0
    %4572 = vmatpush1.msra.mxu0 0.0
    %4573 = vmatprep.subr.mxu0 0.0
    %4574 = vmatpush1.msra.mxu0 0.0
    %4575 = vmatprep.subr.mxu0 0.0
    %4576 = vmatpush1.msra.mxu0 0.0
    %4577 = vmatprep.subr.mxu0 0.0
    %4578 = vmatpush1.msra.mxu0 0.0
    %4579 = vmatprep.subr.mxu0 0.0
    %4580 = vmatpush1.msra.mxu0 0.0
    %4581 = vmatprep.subr.mxu0 0.0
    %4582 = vmatpush1.msra.mxu0 0.0
    %4583 = vmatprep.subr.mxu0 0.0
    %4584 = vmatpush1.msra.mxu0 0.0
    %4585 = vmatprep.subr.mxu0 0.0
    %4586 = vmatpush1.msra.mxu0 0.0
    %4587 = vmatprep.subr.mxu0 0.0
    %4588 = vmatpush1.msra.mxu0 0.0
    %4589 = vmatprep.subr.mxu0 0.0
    %4590 = vmatpush1.msra.mxu0 0.0
    %4591 = vmatprep.subr.mxu0 0.0
    %4592 = vmatpush1.msra.mxu0 0.0
    %4593 = vmatprep.subr.mxu0 0.0
    %4594 = vmatpush1.msra.mxu0 0.0
    %4595 = vmatprep.subr.mxu0 0.0
    %4596 = vmatpush1.msra.mxu0 0.0
    %4597 = vmatprep.subr.mxu0 0.0
    %4598 = vmatpush1.msra.mxu0 0.0
    %4599 = vmatprep.subr.mxu0 0.0
    %4600 = vmatpush1.msra.mxu0 0.0
    %4601 = vmatprep.subr.mxu0 0.0
    %4602 = vmatpush1.msra.mxu0 0.0
    %4603 = vmatprep.mubr.f32.mxu0 0.0
    %v4604 = vand.u32 %v4188, 4294901760
    %4605 = vmatmul.mubr.f32.gmra.mrb[0].mxu0 %v4604
    %v4606 = vpop.f32.mrb[0].mxu0
    %v4607 = vadd.f32 %v4522, %v4606
    %v4608 = vpop.f32.mrb[0].mxu0
    %4609 = vmatprep.mubr.f32.mxu0 0.0
    %v4610 = vand.u32 %v4191, 4294901760
    %4611 = vmatmul.mubr.f32.gmra.mrb[0].mxu0 %v4610
    %v4612 = vpop.f32.mrb[0].mxu0
    %v4613 = vadd.f32 %v4530, %v4612
    %v4614 = vpop.f32.mrb[0].mxu0
    %4615 = vdwg.mxu0
    %4616 = vmatprep.subr.mxu0 0.0
    %v4617 = vand.u32 %v3673, 4294901760
    %4618 = vmatpush1.msra.mxu0 %v4617
    %4619 = vmatprep.subr.mxu0 0.0
    %v4620 = vand.u32 %v3674, 4294901760
    %4621 = vmatpush1.msra.mxu0 %v4620
    %4622 = vmatprep.subr.mxu0 0.0
    %4623 = vmatpush1.msra.mxu0 0.0
    %4624 = vmatprep.subr.mxu0 0.0
    %4625 = vmatpush1.msra.mxu0 0.0
    %4626 = vmatprep.subr.mxu0 0.0
    %4627 = vmatpush1.msra.mxu0 0.0
    %4628 = vmatprep.subr.mxu0 0.0
    %4629 = vmatpush1.msra.mxu0 0.0
    %4630 = vmatprep.subr.mxu0 0.0
    %4631 = vmatpush1.msra.mxu0 0.0
    %4632 = vmatprep.subr.mxu0 0.0
    %4633 = vmatpush1.msra.mxu0 0.0
    %4634 = vmatprep.subr.mxu0 0.0
    %4635 = vmatpush1.msra.mxu0 0.0
    %4636 = vmatprep.subr.mxu0 0.0
    %4637 = vmatpush1.msra.mxu0 0.0
    %4638 = vmatprep.subr.mxu0 0.0
    %4639 = vmatpush1.msra.mxu0 0.0
    %4640 = vmatprep.subr.mxu0 0.0
    %4641 = vmatpush1.msra.mxu0 0.0
    %4642 = vmatprep.subr.mxu0 0.0
    %4643 = vmatpush1.msra.mxu0 0.0
    %4644 = vmatprep.subr.mxu0 0.0
    %4645 = vmatpush1.msra.mxu0 0.0
    %4646 = vmatprep.subr.mxu0 0.0
    %4647 = vmatpush1.msra.mxu0 0.0
    %4648 = vmatprep.subr.mxu0 0.0
    %4649 = vmatpush1.msra.mxu0 0.0
    %4650 = vmatprep.subr.mxu0 0.0
    %4651 = vmatpush1.msra.mxu0 0.0
    %4652 = vmatprep.subr.mxu0 0.0
    %4653 = vmatpush1.msra.mxu0 0.0
    %4654 = vmatprep.subr.mxu0 0.0
    %4655 = vmatpush1.msra.mxu0 0.0
    %4656 = vmatprep.subr.mxu0 0.0
    %4657 = vmatpush1.msra.mxu0 0.0
    %4658 = vmatprep.subr.mxu0 0.0
    %4659 = vmatpush1.msra.mxu0 0.0
    %4660 = vmatprep.subr.mxu0 0.0
    %4661 = vmatpush1.msra.mxu0 0.0
    %4662 = vmatprep.subr.mxu0 0.0
    %4663 = vmatpush1.msra.mxu0 0.0
    %4664 = vmatprep.subr.mxu0 0.0
    %4665 = vmatpush1.msra.mxu0 0.0
    %4666 = vmatprep.subr.mxu0 0.0
    %4667 = vmatpush1.msra.mxu0 0.0
    %4668 = vmatprep.subr.mxu0 0.0
    %4669 = vmatpush1.msra.mxu0 0.0
    %4670 = vmatprep.subr.mxu0 0.0
    %4671 = vmatpush1.msra.mxu0 0.0
    %4672 = vmatprep.subr.mxu0 0.0
    %4673 = vmatpush1.msra.mxu0 0.0
    %4674 = vmatprep.subr.mxu0 0.0
    %4675 = vmatpush1.msra.mxu0 0.0
    %4676 = vmatprep.subr.mxu0 0.0
    %4677 = vmatpush1.msra.mxu0 0.0
    %4678 = vmatprep.subr.mxu0 0.0
    %4679 = vmatpush1.msra.mxu0 0.0
    %4680 = vmatprep.subr.mxu0 0.0
    %4681 = vmatpush1.msra.mxu0 0.0
    %4682 = vmatprep.mubr.f32.mxu0 0.0
    %v4683 = vand.u32 %v4188, 4294901760
    %4684 = vmatmul.mubr.f32.gmra.mrb[0].mxu0 %v4683
    %v4685 = vpop.f32.mrb[0].mxu0
    %v4686 = vadd.f32 %v4607, %v4685
    %v4687 = vpop.f32.mrb[0].mxu0
    %4688 = vmatprep.mubr.f32.mxu0 0.0
    %v4689 = vand.u32 %v4191, 4294901760
    %4690 = vmatmul.mubr.f32.gmra.mrb[0].mxu0 %v4689
    %v4691 = vpop.f32.mrb[0].mxu0
    %v4692 = vadd.f32 %v4613, %v4691
    %v4693 = vpop.f32.mrb[0].mxu0
    %4694 = vdwg.mxu0
    %v4695 = vld [vmem:[%s3670 + $0x2] sm:$0xff]
    %v4696 = vld [vmem:[%s3670 + $0xa] sm:$0xff]
    %v4697 = vld [vmem:[%s1081] sm:$0xff]
    %v4698 = vld [vmem:[%s1081 + $0x8] sm:$0xff]
    %v4700 = vsel %vm49, %v4695, 0
    %v4703 = vsel %vm49, %v4696, 0
    %4705 = vmatprep.subr.mxu0 0.0
    %v4706 = vand.u32 %v4697, 4294901760
    %4707 = vmatpush1.msra.mxu0 %v4706
    %4708 = vmatprep.subr.mxu0 0.0
    %v4709 = vand.u32 %v4698, 4294901760
    %4710 = vmatpush1.msra.mxu0 %v4709
    %4711 = vmatprep.subr.mxu0 0.0
    %4712 = vmatpush1.msra.mxu0 0.0
    %4713 = vmatprep.subr.mxu0 0.0
    %4714 = vmatpush1.msra.mxu0 0.0
    %4715 = vmatprep.subr.mxu0 0.0
    %4716 = vmatpush1.msra.mxu0 0.0
    %4717 = vmatprep.subr.mxu0 0.0
    %4718 = vmatpush1.msra.mxu0 0.0
    %4719 = vmatprep.subr.mxu0 0.0
    %4720 = vmatpush1.msra.mxu0 0.0
    %4721 = vmatprep.subr.mxu0 0.0
    %4722 = vmatpush1.msra.mxu0 0.0
    %4723 = vmatprep.subr.mxu0 0.0
    %4724 = vmatpush1.msra.mxu0 0.0
    %4725 = vmatprep.subr.mxu0 0.0
    %4726 = vmatpush1.msra.mxu0 0.0
    %4727 = vmatprep.subr.mxu0 0.0
    %4728 = vmatpush1.msra.mxu0 0.0
    %4729 = vmatprep.subr.mxu0 0.0
    %4730 = vmatpush1.msra.mxu0 0.0
    %4731 = vmatprep.subr.mxu0 0.0
    %4732 = vmatpush1.msra.mxu0 0.0
    %4733 = vmatprep.subr.mxu0 0.0
    %4734 = vmatpush1.msra.mxu0 0.0
    %4735 = vmatprep.subr.mxu0 0.0
    %4736 = vmatpush1.msra.mxu0 0.0
    %4737 = vmatprep.subr.mxu0 0.0
    %4738 = vmatpush1.msra.mxu0 0.0
    %4739 = vmatprep.subr.mxu0 0.0
    %4740 = vmatpush1.msra.mxu0 0.0
    %4741 = vmatprep.subr.mxu0 0.0
    %4742 = vmatpush1.msra.mxu0 0.0
    %4743 = vmatprep.subr.mxu0 0.0
    %4744 = vmatpush1.msra.mxu0 0.0
    %4745 = vmatprep.subr.mxu0 0.0
    %4746 = vmatpush1.msra.mxu0 0.0
    %4747 = vmatprep.subr.mxu0 0.0
    %4748 = vmatpush1.msra.mxu0 0.0
    %4749 = vmatprep.subr.mxu0 0.0
    %4750 = vmatpush1.msra.mxu0 0.0
    %4751 = vmatprep.subr.mxu0 0.0
    %4752 = vmatpush1.msra.mxu0 0.0
    %4753 = vmatprep.subr.mxu0 0.0
    %4754 = vmatpush1.msra.mxu0 0.0
    %4755 = vmatprep.subr.mxu0 0.0
    %4756 = vmatpush1.msra.mxu0 0.0
    %4757 = vmatprep.subr.mxu0 0.0
    %4758 = vmatpush1.msra.mxu0 0.0
    %4759 = vmatprep.subr.mxu0 0.0
    %4760 = vmatpush1.msra.mxu0 0.0
    %4761 = vmatprep.subr.mxu0 0.0
    %4762 = vmatpush1.msra.mxu0 0.0
    %4763 = vmatprep.subr.mxu0 0.0
    %4764 = vmatpush1.msra.mxu0 0.0
    %4765 = vmatprep.subr.mxu0 0.0
    %4766 = vmatpush1.msra.mxu0 0.0
    %4767 = vmatprep.subr.mxu0 0.0
    %4768 = vmatpush1.msra.mxu0 0.0
    %4769 = vmatprep.subr.mxu0 0.0
    %4770 = vmatpush1.msra.mxu0 0.0
    %4771 = vmatprep.mubr.f32.mxu0 0.0
    %v4772 = vand.u32 %v4700, 4294901760
    %v4773 = vsub.f32 %v4700, %v4772
    %v4774 = vand.u32 %v4773, 4294901760
    %v4775 = vsub.f32 %v4773, %v4774
    %v4776 = vand.u32 %v4775, 4294901760
    %4777 = vmatmul.mubr.f32.gmra.mrb[0].mxu0 %v4776
    %v4778 = vpop.f32.mrb[0].mxu0
    %v4779 = vadd.f32 0.0, %v4778
    %v4780 = vpop.f32.mrb[0].mxu0
    %4781 = vmatprep.mubr.f32.mxu0 0.0
    %v4782 = vand.u32 %v4703, 4294901760
    %v4783 = vsub.f32 %v4703, %v4782
    %v4784 = vand.u32 %v4783, 4294901760
    %v4785 = vsub.f32 %v4783, %v4784
    %v4786 = vand.u32 %v4785, 4294901760
    %4787 = vmatmul.mubr.f32.gmra.mrb[0].mxu0 %v4786
    %v4788 = vpop.f32.mrb[0].mxu0
    %v4789 = vadd.f32 0.0, %v4788
    %v4790 = vpop.f32.mrb[0].mxu0
    %4791 = vdwg.mxu0
    %4792 = vmatprep.subr.mxu0 0.0
    %v4793 = vand.u32 %v4697, 4294901760
    %v4794 = vsub.f32 %v4697, %v4793
    %v4795 = vand.u32 %v4794, 4294901760
    %v4796 = vsub.f32 %v4794, %v4795
    %v4797 = vand.u32 %v4796, 4294901760
    %4798 = vmatpush1.msra.mxu0 %v4797
    %4799 = vmatprep.subr.mxu0 0.0
    %v4800 = vand.u32 %v4698, 4294901760
    %v4801 = vsub.f32 %v4698, %v4800
    %v4802 = vand.u32 %v4801, 4294901760
    %v4803 = vsub.f32 %v4801, %v4802
    %v4804 = vand.u32 %v4803, 4294901760
    %4805 = vmatpush1.msra.mxu0 %v4804
    %4806 = vmatprep.subr.mxu0 0.0
    %4807 = vmatpush1.msra.mxu0 0.0
    %4808 = vmatprep.subr.mxu0 0.0
    %4809 = vmatpush1.msra.mxu0 0.0
    %4810 = vmatprep.subr.mxu0 0.0
    %4811 = vmatpush1.msra.mxu0 0.0
    %4812 = vmatprep.subr.mxu0 0.0
    %4813 = vmatpush1.msra.mxu0 0.0
    %4814 = vmatprep.subr.mxu0 0.0
    %4815 = vmatpush1.msra.mxu0 0.0
    %4816 = vmatprep.subr.mxu0 0.0
    %4817 = vmatpush1.msra.mxu0 0.0
    %4818 = vmatprep.subr.mxu0 0.0
    %4819 = vmatpush1.msra.mxu0 0.0
    %4820 = vmatprep.subr.mxu0 0.0
    %4821 = vmatpush1.msra.mxu0 0.0
    %4822 = vmatprep.subr.mxu0 0.0
    %4823 = vmatpush1.msra.mxu0 0.0
    %4824 = vmatprep.subr.mxu0 0.0
    %4825 = vmatpush1.msra.mxu0 0.0
    %4826 = vmatprep.subr.mxu0 0.0
    %4827 = vmatpush1.msra.mxu0 0.0
    %4828 = vmatprep.subr.mxu0 0.0
    %4829 = vmatpush1.msra.mxu0 0.0
    %4830 = vmatprep.subr.mxu0 0.0
    %4831 = vmatpush1.msra.mxu0 0.0
    %4832 = vmatprep.subr.mxu0 0.0
    %4833 = vmatpush1.msra.mxu0 0.0
    %4834 = vmatprep.subr.mxu0 0.0
    %4835 = vmatpush1.msra.mxu0 0.0
    %4836 = vmatprep.subr.mxu0 0.0
    %4837 = vmatpush1.msra.mxu0 0.0
    %4838 = vmatprep.subr.mxu0 0.0
    %4839 = vmatpush1.msra.mxu0 0.0
    %4840 = vmatprep.subr.mxu0 0.0
    %4841 = vmatpush1.msra.mxu0 0.0
    %4842 = vmatprep.subr.mxu0 0.0
    %4843 = vmatpush1.msra.mxu0 0.0
    %4844 = vmatprep.subr.mxu0 0.0
    %4845 = vmatpush1.msra.mxu0 0.0
    %4846 = vmatprep.subr.mxu0 0.0
    %4847 = vmatpush1.msra.mxu0 0.0
    %4848 = vmatprep.subr.mxu0 0.0
    %4849 = vmatpush1.msra.mxu0 0.0
    %4850 = vmatprep.subr.mxu0 0.0
    %4851 = vmatpush1.msra.mxu0 0.0
    %4852 = vmatprep.subr.mxu0 0.0
    %4853 = vmatpush1.msra.mxu0 0.0
    %4854 = vmatprep.subr.mxu0 0.0
    %4855 = vmatpush1.msra.mxu0 0.0
    %4856 = vmatprep.subr.mxu0 0.0
    %4857 = vmatpush1.msra.mxu0 0.0
    %4858 = vmatprep.subr.mxu0 0.0
    %4859 = vmatpush1.msra.mxu0 0.0
    %4860 = vmatprep.subr.mxu0 0.0
    %4861 = vmatpush1.msra.mxu0 0.0
    %4862 = vmatprep.subr.mxu0 0.0
    %4863 = vmatpush1.msra.mxu0 0.0
    %4864 = vmatprep.subr.mxu0 0.0
    %4865 = vmatpush1.msra.mxu0 0.0
    %4866 = vmatprep.mubr.f32.mxu0 0.0
    %v4867 = vand.u32 %v4700, 4294901760
    %4868 = vmatmul.mubr.f32.gmra.mrb[0].mxu0 %v4867
    %v4869 = vpop.f32.mrb[0].mxu0
    %v4870 = vadd.f32 %v4779, %v4869
    %v4871 = vpop.f32.mrb[0].mxu0
    %4872 = vmatprep.mubr.f32.mxu0 0.0
    %v4873 = vand.u32 %v4703, 4294901760
    %4874 = vmatmul.mubr.f32.gmra.mrb[0].mxu0 %v4873
    %v4875 = vpop.f32.mrb[0].mxu0
    %v4876 = vadd.f32 %v4789, %v4875
    %v4877 = vpop.f32.mrb[0].mxu0
    %4878 = vdwg.mxu0
    %4879 = vmatprep.subr.mxu0 0.0
    %v4880 = vand.u32 %v4697, 4294901760
    %v4881 = vsub.f32 %v4697, %v4880
    %4882 = vmatpush1.msra.mxu0 %v4881
    %4883 = vmatprep.subr.mxu0 0.0
    %v4884 = vand.u32 %v4698, 4294901760
    %v4885 = vsub.f32 %v4698, %v4884
    %4886 = vmatpush1.msra.mxu0 %v4885
    %4887 = vmatprep.subr.mxu0 0.0
    %4888 = vmatpush1.msra.mxu0 0.0
    %4889 = vmatprep.subr.mxu0 0.0
    %4890 = vmatpush1.msra.mxu0 0.0
    %4891 = vmatprep.subr.mxu0 0.0
    %4892 = vmatpush1.msra.mxu0 0.0
    %4893 = vmatprep.subr.mxu0 0.0
    %4894 = vmatpush1.msra.mxu0 0.0
    %4895 = vmatprep.subr.mxu0 0.0
    %4896 = vmatpush1.msra.mxu0 0.0
    %4897 = vmatprep.subr.mxu0 0.0
    %4898 = vmatpush1.msra.mxu0 0.0
    %4899 = vmatprep.subr.mxu0 0.0
    %4900 = vmatpush1.msra.mxu0 0.0
    %4901 = vmatprep.subr.mxu0 0.0
    %4902 = vmatpush1.msra.mxu0 0.0
    %4903 = vmatprep.subr.mxu0 0.0
    %4904 = vmatpush1.msra.mxu0 0.0
    %4905 = vmatprep.subr.mxu0 0.0
    %4906 = vmatpush1.msra.mxu0 0.0
    %4907 = vmatprep.subr.mxu0 0.0
    %4908 = vmatpush1.msra.mxu0 0.0
    %4909 = vmatprep.subr.mxu0 0.0
    %4910 = vmatpush1.msra.mxu0 0.0
    %4911 = vmatprep.subr.mxu0 0.0
    %4912 = vmatpush1.msra.mxu0 0.0
    %4913 = vmatprep.subr.mxu0 0.0
    %4914 = vmatpush1.msra.mxu0 0.0
    %4915 = vmatprep.subr.mxu0 0.0
    %4916 = vmatpush1.msra.mxu0 0.0
    %4917 = vmatprep.subr.mxu0 0.0
    %4918 = vmatpush1.msra.mxu0 0.0
    %4919 = vmatprep.subr.mxu0 0.0
    %4920 = vmatpush1.msra.mxu0 0.0
    %4921 = vmatprep.subr.mxu0 0.0
    %4922 = vmatpush1.msra.mxu0 0.0
    %4923 = vmatprep.subr.mxu0 0.0
    %4924 = vmatpush1.msra.mxu0 0.0
    %4925 = vmatprep.subr.mxu0 0.0
    %4926 = vmatpush1.msra.mxu0 0.0
    %4927 = vmatprep.subr.mxu0 0.0
    %4928 = vmatpush1.msra.mxu0 0.0
    %4929 = vmatprep.subr.mxu0 0.0
    %4930 = vmatpush1.msra.mxu0 0.0
    %4931 = vmatprep.subr.mxu0 0.0
    %4932 = vmatpush1.msra.mxu0 0.0
    %4933 = vmatprep.subr.mxu0 0.0
    %4934 = vmatpush1.msra.mxu0 0.0
    %4935 = vmatprep.subr.mxu0 0.0
    %4936 = vmatpush1.msra.mxu0 0.0
    %4937 = vmatprep.subr.mxu0 0.0
    %4938 = vmatpush1.msra.mxu0 0.0
    %4939 = vmatprep.subr.mxu0 0.0
    %4940 = vmatpush1.msra.mxu0 0.0
    %4941 = vmatprep.subr.mxu0 0.0
    %4942 = vmatpush1.msra.mxu0 0.0
    %4943 = vmatprep.subr.mxu0 0.0
    %4944 = vmatpush1.msra.mxu0 0.0
    %4945 = vmatprep.subr.mxu0 0.0
    %4946 = vmatpush1.msra.mxu0 0.0
    %4947 = vmatprep.mubr.f32.mxu0 0.0
    %v4948 = vand.u32 %v4700, 4294901760
    %v4949 = vsub.f32 %v4700, %v4948
    %4950 = vmatmul.mubr.f32.gmra.mrb[0].mxu0 %v4949
    %v4951 = vpop.f32.mrb[0].mxu0
    %v4952 = vadd.f32 %v4870, %v4951
    %v4953 = vpop.f32.mrb[0].mxu0
    %4954 = vmatprep.mubr.f32.mxu0 0.0
    %v4955 = vand.u32 %v4703, 4294901760
    %v4956 = vsub.f32 %v4703, %v4955
    %4957 = vmatmul.mubr.f32.gmra.mrb[0].mxu0 %v4956
    %v4958 = vpop.f32.mrb[0].mxu0
    %v4959 = vadd.f32 %v4876, %v4958
    %v4960 = vpop.f32.mrb[0].mxu0
    %4961 = vdwg.mxu0
    %4962 = vmatprep.subr.mxu0 0.0
    %v4963 = vand.u32 %v4697, 4294901760
    %4964 = vmatpush1.msra.mxu0 %v4963
    %4965 = vmatprep.subr.mxu0 0.0
    %v4966 = vand.u32 %v4698, 4294901760
    %4967 = vmatpush1.msra.mxu0 %v4966
    %4968 = vmatprep.subr.mxu0 0.0
    %4969 = vmatpush1.msra.mxu0 0.0
    %4970 = vmatprep.subr.mxu0 0.0
    %4971 = vmatpush1.msra.mxu0 0.0
    %4972 = vmatprep.subr.mxu0 0.0
    %4973 = vmatpush1.msra.mxu0 0.0
    %4974 = vmatprep.subr.mxu0 0.0
    %4975 = vmatpush1.msra.mxu0 0.0
    %4976 = vmatprep.subr.mxu0 0.0
    %4977 = vmatpush1.msra.mxu0 0.0
    %4978 = vmatprep.subr.mxu0 0.0
    %4979 = vmatpush1.msra.mxu0 0.0
    %4980 = vmatprep.subr.mxu0 0.0
    %4981 = vmatpush1.msra.mxu0 0.0
    %4982 = vmatprep.subr.mxu0 0.0
    %4983 = vmatpush1.msra.mxu0 0.0
    %4984 = vmatprep.subr.mxu0 0.0
    %4985 = vmatpush1.msra.mxu0 0.0
    %4986 = vmatprep.subr.mxu0 0.0
    %4987 = vmatpush1.msra.mxu0 0.0
    %4988 = vmatprep.subr.mxu0 0.0
    %4989 = vmatpush1.msra.mxu0 0.0
    %4990 = vmatprep.subr.mxu0 0.0
    %4991 = vmatpush1.msra.mxu0 0.0
    %4992 = vmatprep.subr.mxu0 0.0
    %4993 = vmatpush1.msra.mxu0 0.0
    %4994 = vmatprep.subr.mxu0 0.0
    %4995 = vmatpush1.msra.mxu0 0.0
    %4996 = vmatprep.subr.mxu0 0.0
    %4997 = vmatpush1.msra.mxu0 0.0
    %4998 = vmatprep.subr.mxu0 0.0
    %4999 = vmatpush1.msra.mxu0 0.0
    %5000 = vmatprep.subr.mxu0 0.0
    %5001 = vmatpush1.msra.mxu0 0.0
    %5002 = vmatprep.subr.mxu0 0.0
    %5003 = vmatpush1.msra.mxu0 0.0
    %5004 = vmatprep.subr.mxu0 0.0
    %5005 = vmatpush1.msra.mxu0 0.0
    %5006 = vmatprep.subr.mxu0 0.0
    %5007 = vmatpush1.msra.mxu0 0.0
    %5008 = vmatprep.subr.mxu0 0.0
    %5009 = vmatpush1.msra.mxu0 0.0
    %5010 = vmatprep.subr.mxu0 0.0
    %5011 = vmatpush1.msra.mxu0 0.0
    %5012 = vmatprep.subr.mxu0 0.0
    %5013 = vmatpush1.msra.mxu0 0.0
    %5014 = vmatprep.subr.mxu0 0.0
    %5015 = vmatpush1.msra.mxu0 0.0
    %5016 = vmatprep.subr.mxu0 0.0
    %5017 = vmatpush1.msra.mxu0 0.0
    %5018 = vmatprep.subr.mxu0 0.0
    %5019 = vmatpush1.msra.mxu0 0.0
    %5020 = vmatprep.subr.mxu0 0.0
    %5021 = vmatpush1.msra.mxu0 0.0
    %5022 = vmatprep.subr.mxu0 0.0
    %5023 = vmatpush1.msra.mxu0 0.0
    %5024 = vmatprep.subr.mxu0 0.0
    %5025 = vmatpush1.msra.mxu0 0.0
    %5026 = vmatprep.subr.mxu0 0.0
    %5027 = vmatpush1.msra.mxu0 0.0
    %5028 = vmatprep.mubr.f32.mxu0 0.0
    %v5029 = vand.u32 %v4700, 4294901760
    %v5030 = vsub.f32 %v4700, %v5029
    %v5031 = vand.u32 %v5030, 4294901760
    %5032 = vmatmul.mubr.f32.gmra.mrb[0].mxu0 %v5031
    %v5033 = vpop.f32.mrb[0].mxu0
    %v5034 = vadd.f32 %v4952, %v5033
    %v5035 = vpop.f32.mrb[0].mxu0
    %5036 = vmatprep.mubr.f32.mxu0 0.0
    %v5037 = vand.u32 %v4703, 4294901760
    %v5038 = vsub.f32 %v4703, %v5037
    %v5039 = vand.u32 %v5038, 4294901760
    %5040 = vmatmul.mubr.f32.gmra.mrb[0].mxu0 %v5039
    %v5041 = vpop.f32.mrb[0].mxu0
    %v5042 = vadd.f32 %v4959, %v5041
    %v5043 = vpop.f32.mrb[0].mxu0
    %5044 = vdwg.mxu0
    %5045 = vmatprep.subr.mxu0 0.0
    %v5046 = vand.u32 %v4697, 4294901760
    %v5047 = vsub.f32 %v4697, %v5046
    %v5048 = vand.u32 %v5047, 4294901760
    %5049 = vmatpush1.msra.mxu0 %v5048
    %5050 = vmatprep.subr.mxu0 0.0
    %v5051 = vand.u32 %v4698, 4294901760
    %v5052 = vsub.f32 %v4698, %v5051
    %v5053 = vand.u32 %v5052, 4294901760
    %5054 = vmatpush1.msra.mxu0 %v5053
    %5055 = vmatprep.subr.mxu0 0.0
    %5056 = vmatpush1.msra.mxu0 0.0
    %5057 = vmatprep.subr.mxu0 0.0
    %5058 = vmatpush1.msra.mxu0 0.0
    %5059 = vmatprep.subr.mxu0 0.0
    %5060 = vmatpush1.msra.mxu0 0.0
    %5061 = vmatprep.subr.mxu0 0.0
    %5062 = vmatpush1.msra.mxu0 0.0
    %5063 = vmatprep.subr.mxu0 0.0
    %5064 = vmatpush1.msra.mxu0 0.0
    %5065 = vmatprep.subr.mxu0 0.0
    %5066 = vmatpush1.msra.mxu0 0.0
    %5067 = vmatprep.subr.mxu0 0.0
    %5068 = vmatpush1.msra.mxu0 0.0
    %5069 = vmatprep.subr.mxu0 0.0
    %5070 = vmatpush1.msra.mxu0 0.0
    %5071 = vmatprep.subr.mxu0 0.0
    %5072 = vmatpush1.msra.mxu0 0.0
    %5073 = vmatprep.subr.mxu0 0.0
    %5074 = vmatpush1.msra.mxu0 0.0
    %5075 = vmatprep.subr.mxu0 0.0
    %5076 = vmatpush1.msra.mxu0 0.0
    %5077 = vmatprep.subr.mxu0 0.0
    %5078 = vmatpush1.msra.mxu0 0.0
    %5079 = vmatprep.subr.mxu0 0.0
    %5080 = vmatpush1.msra.mxu0 0.0
    %5081 = vmatprep.subr.mxu0 0.0
    %5082 = vmatpush1.msra.mxu0 0.0
    %5083 = vmatprep.subr.mxu0 0.0
    %5084 = vmatpush1.msra.mxu0 0.0
    %5085 = vmatprep.subr.mxu0 0.0
    %5086 = vmatpush1.msra.mxu0 0.0
    %5087 = vmatprep.subr.mxu0 0.0
    %5088 = vmatpush1.msra.mxu0 0.0
    %5089 = vmatprep.subr.mxu0 0.0
    %5090 = vmatpush1.msra.mxu0 0.0
    %5091 = vmatprep.subr.mxu0 0.0
    %5092 = vmatpush1.msra.mxu0 0.0
    %5093 = vmatprep.subr.mxu0 0.0
    %5094 = vmatpush1.msra.mxu0 0.0
    %5095 = vmatprep.subr.mxu0 0.0
    %5096 = vmatpush1.msra.mxu0 0.0
    %5097 = vmatprep.subr.mxu0 0.0
    %5098 = vmatpush1.msra.mxu0 0.0
    %5099 = vmatprep.subr.mxu0 0.0
    %5100 = vmatpush1.msra.mxu0 0.0
    %5101 = vmatprep.subr.mxu0 0.0
    %5102 = vmatpush1.msra.mxu0 0.0
    %5103 = vmatprep.subr.mxu0 0.0
    %5104 = vmatpush1.msra.mxu0 0.0
    %5105 = vmatprep.subr.mxu0 0.0
    %5106 = vmatpush1.msra.mxu0 0.0
    %5107 = vmatprep.subr.mxu0 0.0
    %5108 = vmatpush1.msra.mxu0 0.0
    %5109 = vmatprep.subr.mxu0 0.0
    %5110 = vmatpush1.msra.mxu0 0.0
    %5111 = vmatprep.subr.mxu0 0.0
    %5112 = vmatpush1.msra.mxu0 0.0
    %5113 = vmatprep.subr.mxu0 0.0
    %5114 = vmatpush1.msra.mxu0 0.0
    %5115 = vmatprep.mubr.f32.mxu0 0.0
    %v5116 = vand.u32 %v4700, 4294901760
    %5117 = vmatmul.mubr.f32.gmra.mrb[0].mxu0 %v5116
    %v5118 = vpop.f32.mrb[0].mxu0
    %v5119 = vadd.f32 %v5034, %v5118
    %v5120 = vpop.f32.mrb[0].mxu0
    %5121 = vmatprep.mubr.f32.mxu0 0.0
    %v5122 = vand.u32 %v4703, 4294901760
    %5123 = vmatmul.mubr.f32.gmra.mrb[0].mxu0 %v5122
    %v5124 = vpop.f32.mrb[0].mxu0
    %v5125 = vadd.f32 %v5042, %v5124
    %v5126 = vpop.f32.mrb[0].mxu0
    %5127 = vdwg.mxu0
    %5128 = vmatprep.subr.mxu0 0.0
    %v5129 = vand.u32 %v4697, 4294901760
    %5130 = vmatpush1.msra.mxu0 %v5129
    %5131 = vmatprep.subr.mxu0 0.0
    %v5132 = vand.u32 %v4698, 4294901760
    %5133 = vmatpush1.msra.mxu0 %v5132
    %5134 = vmatprep.subr.mxu0 0.0
    %5135 = vmatpush1.msra.mxu0 0.0
    %5136 = vmatprep.subr.mxu0 0.0
    %5137 = vmatpush1.msra.mxu0 0.0
    %5138 = vmatprep.subr.mxu0 0.0
    %5139 = vmatpush1.msra.mxu0 0.0
    %5140 = vmatprep.subr.mxu0 0.0
    %5141 = vmatpush1.msra.mxu0 0.0
    %5142 = vmatprep.subr.mxu0 0.0
    %5143 = vmatpush1.msra.mxu0 0.0
    %5144 = vmatprep.subr.mxu0 0.0
    %5145 = vmatpush1.msra.mxu0 0.0
    %5146 = vmatprep.subr.mxu0 0.0
    %5147 = vmatpush1.msra.mxu0 0.0
    %5148 = vmatprep.subr.mxu0 0.0
    %5149 = vmatpush1.msra.mxu0 0.0
    %5150 = vmatprep.subr.mxu0 0.0
    %5151 = vmatpush1.msra.mxu0 0.0
    %5152 = vmatprep.subr.mxu0 0.0
    %5153 = vmatpush1.msra.mxu0 0.0
    %5154 = vmatprep.subr.mxu0 0.0
    %5155 = vmatpush1.msra.mxu0 0.0
    %5156 = vmatprep.subr.mxu0 0.0
    %5157 = vmatpush1.msra.mxu0 0.0
    %5158 = vmatprep.subr.mxu0 0.0
    %5159 = vmatpush1.msra.mxu0 0.0
    %5160 = vmatprep.subr.mxu0 0.0
    %5161 = vmatpush1.msra.mxu0 0.0
    %5162 = vmatprep.subr.mxu0 0.0
    %5163 = vmatpush1.msra.mxu0 0.0
    %5164 = vmatprep.subr.mxu0 0.0
    %5165 = vmatpush1.msra.mxu0 0.0
    %5166 = vmatprep.subr.mxu0 0.0
    %5167 = vmatpush1.msra.mxu0 0.0
    %5168 = vmatprep.subr.mxu0 0.0
    %5169 = vmatpush1.msra.mxu0 0.0
    %5170 = vmatprep.subr.mxu0 0.0
    %5171 = vmatpush1.msra.mxu0 0.0
    %5172 = vmatprep.subr.mxu0 0.0
    %5173 = vmatpush1.msra.mxu0 0.0
    %5174 = vmatprep.subr.mxu0 0.0
    %5175 = vmatpush1.msra.mxu0 0.0
    %5176 = vmatprep.subr.mxu0 0.0
    %5177 = vmatpush1.msra.mxu0 0.0
    %5178 = vmatprep.subr.mxu0 0.0
    %5179 = vmatpush1.msra.mxu0 0.0
    %5180 = vmatprep.subr.mxu0 0.0
    %5181 = vmatpush1.msra.mxu0 0.0
    %5182 = vmatprep.subr.mxu0 0.0
    %5183 = vmatpush1.msra.mxu0 0.0
    %5184 = vmatprep.subr.mxu0 0.0
    %5185 = vmatpush1.msra.mxu0 0.0
    %5186 = vmatprep.subr.mxu0 0.0
    %5187 = vmatpush1.msra.mxu0 0.0
    %5188 = vmatprep.subr.mxu0 0.0
    %5189 = vmatpush1.msra.mxu0 0.0
    %5190 = vmatprep.subr.mxu0 0.0
    %5191 = vmatpush1.msra.mxu0 0.0
    %5192 = vmatprep.subr.mxu0 0.0
    %5193 = vmatpush1.msra.mxu0 0.0
    %5194 = vmatprep.mubr.f32.mxu0 0.0
    %v5195 = vand.u32 %v4700, 4294901760
    %5196 = vmatmul.mubr.f32.gmra.mrb[0].mxu0 %v5195
    %v5197 = vpop.f32.mrb[0].mxu0
    %v5198 = vadd.f32 %v5119, %v5197
    %v5199 = vpop.f32.mrb[0].mxu0
    %5200 = vmatprep.mubr.f32.mxu0 0.0
    %v5201 = vand.u32 %v4703, 4294901760
    %5202 = vmatmul.mubr.f32.gmra.mrb[0].mxu0 %v5201
    %v5203 = vpop.f32.mrb[0].mxu0
    %v5204 = vadd.f32 %v5125, %v5203
    %v5205 = vpop.f32.mrb[0].mxu0
    %5206 = vdwg.mxu0
    %v5207 = vadd.f32 %v4686, %v5198
    %v5208 = vadd.f32 %v4692, %v5204
    %v5209 = vld [vmem:[%s3670 + $0x3] sm:$0xff]
    %v5210 = vld [vmem:[%s3670 + $0xb] sm:$0xff]
    %v5211 = vld [vmem:[%s1596] sm:$0xff]
    %v5212 = vld [vmem:[%s1596 + $0x8] sm:$0xff]
    %v5214 = vsel %vm49, %v5209, 0
    %v5217 = vsel %vm49, %v5210, 0
    %5219 = vmatprep.subr.mxu0 0.0
    %v5220 = vand.u32 %v5211, 4294901760
    %5221 = vmatpush1.msra.mxu0 %v5220
    %5222 = vmatprep.subr.mxu0 0.0
    %v5223 = vand.u32 %v5212, 4294901760
    %5224 = vmatpush1.msra.mxu0 %v5223
    %5225 = vmatprep.subr.mxu0 0.0
    %5226 = vmatpush1.msra.mxu0 0.0
    %5227 = vmatprep.subr.mxu0 0.0
    %5228 = vmatpush1.msra.mxu0 0.0
    %5229 = vmatprep.subr.mxu0 0.0
    %5230 = vmatpush1.msra.mxu0 0.0
    %5231 = vmatprep.subr.mxu0 0.0
    %5232 = vmatpush1.msra.mxu0 0.0
    %5233 = vmatprep.subr.mxu0 0.0
    %5234 = vmatpush1.msra.mxu0 0.0
    %5235 = vmatprep.subr.mxu0 0.0
    %5236 = vmatpush1.msra.mxu0 0.0
    %5237 = vmatprep.subr.mxu0 0.0
    %5238 = vmatpush1.msra.mxu0 0.0
    %5239 = vmatprep.subr.mxu0 0.0
    %5240 = vmatpush1.msra.mxu0 0.0
    %5241 = vmatprep.subr.mxu0 0.0
    %5242 = vmatpush1.msra.mxu0 0.0
    %5243 = vmatprep.subr.mxu0 0.0
    %5244 = vmatpush1.msra.mxu0 0.0
    %5245 = vmatprep.subr.mxu0 0.0
    %5246 = vmatpush1.msra.mxu0 0.0
    %5247 = vmatprep.subr.mxu0 0.0
    %5248 = vmatpush1.msra.mxu0 0.0
    %5249 = vmatprep.subr.mxu0 0.0
    %5250 = vmatpush1.msra.mxu0 0.0
    %5251 = vmatprep.subr.mxu0 0.0
    %5252 = vmatpush1.msra.mxu0 0.0
    %5253 = vmatprep.subr.mxu0 0.0
    %5254 = vmatpush1.msra.mxu0 0.0
    %5255 = vmatprep.subr.mxu0 0.0
    %5256 = vmatpush1.msra.mxu0 0.0
    %5257 = vmatprep.subr.mxu0 0.0
    %5258 = vmatpush1.msra.mxu0 0.0
    %5259 = vmatprep.subr.mxu0 0.0
    %5260 = vmatpush1.msra.mxu0 0.0
    %5261 = vmatprep.subr.mxu0 0.0
    %5262 = vmatpush1.msra.mxu0 0.0
    %5263 = vmatprep.subr.mxu0 0.0
    %5264 = vmatpush1.msra.mxu0 0.0
    %5265 = vmatprep.subr.mxu0 0.0
    %5266 = vmatpush1.msra.mxu0 0.0
    %5267 = vmatprep.subr.mxu0 0.0
    %5268 = vmatpush1.msra.mxu0 0.0
    %5269 = vmatprep.subr.mxu0 0.0
    %5270 = vmatpush1.msra.mxu0 0.0
    %5271 = vmatprep.subr.mxu0 0.0
    %5272 = vmatpush1.msra.mxu0 0.0
    %5273 = vmatprep.subr.mxu0 0.0
    %5274 = vmatpush1.msra.mxu0 0.0
    %5275 = vmatprep.subr.mxu0 0.0
    %5276 = vmatpush1.msra.mxu0 0.0
    %5277 = vmatprep.subr.mxu0 0.0
    %5278 = vmatpush1.msra.mxu0 0.0
    %5279 = vmatprep.subr.mxu0 0.0
    %5280 = vmatpush1.msra.mxu0 0.0
    %5281 = vmatprep.subr.mxu0 0.0
    %5282 = vmatpush1.msra.mxu0 0.0
    %5283 = vmatprep.subr.mxu0 0.0
    %5284 = vmatpush1.msra.mxu0 0.0
    %5285 = vmatprep.mubr.f32.mxu0 0.0
    %v5286 = vand.u32 %v5214, 4294901760
    %v5287 = vsub.f32 %v5214, %v5286
    %v5288 = vand.u32 %v5287, 4294901760
    %v5289 = vsub.f32 %v5287, %v5288
    %v5290 = vand.u32 %v5289, 4294901760
    %5291 = vmatmul.mubr.f32.gmra.mrb[0].mxu0 %v5290
    %v5292 = vpop.f32.mrb[0].mxu0
    %v5293 = vadd.f32 0.0, %v5292
    %v5294 = vpop.f32.mrb[0].mxu0
    %5295 = vmatprep.mubr.f32.mxu0 0.0
    %v5296 = vand.u32 %v5217, 4294901760
    %v5297 = vsub.f32 %v5217, %v5296
    %v5298 = vand.u32 %v5297, 4294901760
    %v5299 = vsub.f32 %v5297, %v5298
    %v5300 = vand.u32 %v5299, 4294901760
    %5301 = vmatmul.mubr.f32.gmra.mrb[0].mxu0 %v5300
    %v5302 = vpop.f32.mrb[0].mxu0
    %v5303 = vadd.f32 0.0, %v5302
    %v5304 = vpop.f32.mrb[0].mxu0
    %5305 = vdwg.mxu0
    %5306 = vmatprep.subr.mxu0 0.0
    %v5307 = vand.u32 %v5211, 4294901760
    %v5308 = vsub.f32 %v5211, %v5307
    %v5309 = vand.u32 %v5308, 4294901760
    %v5310 = vsub.f32 %v5308, %v5309
    %v5311 = vand.u32 %v5310, 4294901760
    %5312 = vmatpush1.msra.mxu0 %v5311
    %5313 = vmatprep.subr.mxu0 0.0
    %v5314 = vand.u32 %v5212, 4294901760
    %v5315 = vsub.f32 %v5212, %v5314
    %v5316 = vand.u32 %v5315, 4294901760
    %v5317 = vsub.f32 %v5315, %v5316
    %v5318 = vand.u32 %v5317, 4294901760
    %5319 = vmatpush1.msra.mxu0 %v5318
    %5320 = vmatprep.subr.mxu0 0.0
    %5321 = vmatpush1.msra.mxu0 0.0
    %5322 = vmatprep.subr.mxu0 0.0
    %5323 = vmatpush1.msra.mxu0 0.0
    %5324 = vmatprep.subr.mxu0 0.0
    %5325 = vmatpush1.msra.mxu0 0.0
    %5326 = vmatprep.subr.mxu0 0.0
    %5327 = vmatpush1.msra.mxu0 0.0
    %5328 = vmatprep.subr.mxu0 0.0
    %5329 = vmatpush1.msra.mxu0 0.0
    %5330 = vmatprep.subr.mxu0 0.0
    %5331 = vmatpush1.msra.mxu0 0.0
    %5332 = vmatprep.subr.mxu0 0.0
    %5333 = vmatpush1.msra.mxu0 0.0
    %5334 = vmatprep.subr.mxu0 0.0
    %5335 = vmatpush1.msra.mxu0 0.0
    %5336 = vmatprep.subr.mxu0 0.0
    %5337 = vmatpush1.msra.mxu0 0.0
    %5338 = vmatprep.subr.mxu0 0.0
    %5339 = vmatpush1.msra.mxu0 0.0
    %5340 = vmatprep.subr.mxu0 0.0
    %5341 = vmatpush1.msra.mxu0 0.0
    %5342 = vmatprep.subr.mxu0 0.0
    %5343 = vmatpush1.msra.mxu0 0.0
    %5344 = vmatprep.subr.mxu0 0.0
    %5345 = vmatpush1.msra.mxu0 0.0
    %5346 = vmatprep.subr.mxu0 0.0
    %5347 = vmatpush1.msra.mxu0 0.0
    %5348 = vmatprep.subr.mxu0 0.0
    %5349 = vmatpush1.msra.mxu0 0.0
    %5350 = vmatprep.subr.mxu0 0.0
    %5351 = vmatpush1.msra.mxu0 0.0
    %5352 = vmatprep.subr.mxu0 0.0
    %5353 = vmatpush1.msra.mxu0 0.0
    %5354 = vmatprep.subr.mxu0 0.0
    %5355 = vmatpush1.msra.mxu0 0.0
    %5356 = vmatprep.subr.mxu0 0.0
    %5357 = vmatpush1.msra.mxu0 0.0
    %5358 = vmatprep.subr.mxu0 0.0
    %5359 = vmatpush1.msra.mxu0 0.0
    %5360 = vmatprep.subr.mxu0 0.0
    %5361 = vmatpush1.msra.mxu0 0.0
    %5362 = vmatprep.subr.mxu0 0.0
    %5363 = vmatpush1.msra.mxu0 0.0
    %5364 = vmatprep.subr.mxu0 0.0
    %5365 = vmatpush1.msra.mxu0 0.0
    %5366 = vmatprep.subr.mxu0 0.0
    %5367 = vmatpush1.msra.mxu0 0.0
    %5368 = vmatprep.subr.mxu0 0.0
    %5369 = vmatpush1.msra.mxu0 0.0
    %5370 = vmatprep.subr.mxu0 0.0
    %5371 = vmatpush1.msra.mxu0 0.0
    %5372 = vmatprep.subr.mxu0 0.0
    %5373 = vmatpush1.msra.mxu0 0.0
    %5374 = vmatprep.subr.mxu0 0.0
    %5375 = vmatpush1.msra.mxu0 0.0
    %5376 = vmatprep.subr.mxu0 0.0
    %5377 = vmatpush1.msra.mxu0 0.0
    %5378 = vmatprep.subr.mxu0 0.0
    %5379 = vmatpush1.msra.mxu0 0.0
    %5380 = vmatprep.mubr.f32.mxu0 0.0
    %v5381 = vand.u32 %v5214, 4294901760
    %5382 = vmatmul.mubr.f32.gmra.mrb[0].mxu0 %v5381
    %v5383 = vpop.f32.mrb[0].mxu0
    %v5384 = vadd.f32 %v5293, %v5383
    %v5385 = vpop.f32.mrb[0].mxu0
    %5386 = vmatprep.mubr.f32.mxu0 0.0
    %v5387 = vand.u32 %v5217, 4294901760
    %5388 = vmatmul.mubr.f32.gmra.mrb[0].mxu0 %v5387
    %v5389 = vpop.f32.mrb[0].mxu0
    %v5390 = vadd.f32 %v5303, %v5389
    %v5391 = vpop.f32.mrb[0].mxu0
    %5392 = vdwg.mxu0
    %5393 = vmatprep.subr.mxu0 0.0
    %v5394 = vand.u32 %v5211, 4294901760
    %v5395 = vsub.f32 %v5211, %v5394
    %5396 = vmatpush1.msra.mxu0 %v5395
    %5397 = vmatprep.subr.mxu0 0.0
    %v5398 = vand.u32 %v5212, 4294901760
    %v5399 = vsub.f32 %v5212, %v5398
    %5400 = vmatpush1.msra.mxu0 %v5399
    %5401 = vmatprep.subr.mxu0 0.0
    %5402 = vmatpush1.msra.mxu0 0.0
    %5403 = vmatprep.subr.mxu0 0.0
    %5404 = vmatpush1.msra.mxu0 0.0
    %5405 = vmatprep.subr.mxu0 0.0
    %5406 = vmatpush1.msra.mxu0 0.0
    %5407 = vmatprep.subr.mxu0 0.0
    %5408 = vmatpush1.msra.mxu0 0.0
    %5409 = vmatprep.subr.mxu0 0.0
    %5410 = vmatpush1.msra.mxu0 0.0
    %5411 = vmatprep.subr.mxu0 0.0
    %5412 = vmatpush1.msra.mxu0 0.0
    %5413 = vmatprep.subr.mxu0 0.0
    %5414 = vmatpush1.msra.mxu0 0.0
    %5415 = vmatprep.subr.mxu0 0.0
    %5416 = vmatpush1.msra.mxu0 0.0
    %5417 = vmatprep.subr.mxu0 0.0
    %5418 = vmatpush1.msra.mxu0 0.0
    %5419 = vmatprep.subr.mxu0 0.0
    %5420 = vmatpush1.msra.mxu0 0.0
    %5421 = vmatprep.subr.mxu0 0.0
    %5422 = vmatpush1.msra.mxu0 0.0
    %5423 = vmatprep.subr.mxu0 0.0
    %5424 = vmatpush1.msra.mxu0 0.0
    %5425 = vmatprep.subr.mxu0 0.0
    %5426 = vmatpush1.msra.mxu0 0.0
    %5427 = vmatprep.subr.mxu0 0.0
    %5428 = vmatpush1.msra.mxu0 0.0
    %5429 = vmatprep.subr.mxu0 0.0
    %5430 = vmatpush1.msra.mxu0 0.0
    %5431 = vmatprep.subr.mxu0 0.0
    %5432 = vmatpush1.msra.mxu0 0.0
    %5433 = vmatprep.subr.mxu0 0.0
    %5434 = vmatpush1.msra.mxu0 0.0
    %5435 = vmatprep.subr.mxu0 0.0
    %5436 = vmatpush1.msra.mxu0 0.0
    %5437 = vmatprep.subr.mxu0 0.0
    %5438 = vmatpush1.msra.mxu0 0.0
    %5439 = vmatprep.subr.mxu0 0.0
    %5440 = vmatpush1.msra.mxu0 0.0
    %5441 = vmatprep.subr.mxu0 0.0
    %5442 = vmatpush1.msra.mxu0 0.0
    %5443 = vmatprep.subr.mxu0 0.0
    %5444 = vmatpush1.msra.mxu0 0.0
    %5445 = vmatprep.subr.mxu0 0.0
    %5446 = vmatpush1.msra.mxu0 0.0
    %5447 = vmatprep.subr.mxu0 0.0
    %5448 = vmatpush1.msra.mxu0 0.0
    %5449 = vmatprep.subr.mxu0 0.0
    %5450 = vmatpush1.msra.mxu0 0.0
    %5451 = vmatprep.subr.mxu0 0.0
    %5452 = vmatpush1.msra.mxu0 0.0
    %5453 = vmatprep.subr.mxu0 0.0
    %5454 = vmatpush1.msra.mxu0 0.0
    %5455 = vmatprep.subr.mxu0 0.0
    %5456 = vmatpush1.msra.mxu0 0.0
    %5457 = vmatprep.subr.mxu0 0.0
    %5458 = vmatpush1.msra.mxu0 0.0
    %5459 = vmatprep.subr.mxu0 0.0
    %5460 = vmatpush1.msra.mxu0 0.0
    %5461 = vmatprep.mubr.f32.mxu0 0.0
    %v5462 = vand.u32 %v5214, 4294901760
    %v5463 = vsub.f32 %v5214, %v5462
    %5464 = vmatmul.mubr.f32.gmra.mrb[0].mxu0 %v5463
    %v5465 = vpop.f32.mrb[0].mxu0
    %v5466 = vadd.f32 %v5384, %v5465
    %v5467 = vpop.f32.mrb[0].mxu0
    %5468 = vmatprep.mubr.f32.mxu0 0.0
    %v5469 = vand.u32 %v5217, 4294901760
    %v5470 = vsub.f32 %v5217, %v5469
    %5471 = vmatmul.mubr.f32.gmra.mrb[0].mxu0 %v5470
    %v5472 = vpop.f32.mrb[0].mxu0
    %v5473 = vadd.f32 %v5390, %v5472
    %v5474 = vpop.f32.mrb[0].mxu0
    %5475 = vdwg.mxu0
    %5476 = vmatprep.subr.mxu0 0.0
    %v5477 = vand.u32 %v5211, 4294901760
    %5478 = vmatpush1.msra.mxu0 %v5477
    %5479 = vmatprep.subr.mxu0 0.0
    %v5480 = vand.u32 %v5212, 4294901760
    %5481 = vmatpush1.msra.mxu0 %v5480
    %5482 = vmatprep.subr.mxu0 0.0
    %5483 = vmatpush1.msra.mxu0 0.0
    %5484 = vmatprep.subr.mxu0 0.0
    %5485 = vmatpush1.msra.mxu0 0.0
    %5486 = vmatprep.subr.mxu0 0.0
    %5487 = vmatpush1.msra.mxu0 0.0
    %5488 = vmatprep.subr.mxu0 0.0
    %5489 = vmatpush1.msra.mxu0 0.0
    %5490 = vmatprep.subr.mxu0 0.0
    %5491 = vmatpush1.msra.mxu0 0.0
    %5492 = vmatprep.subr.mxu0 0.0
    %5493 = vmatpush1.msra.mxu0 0.0
    %5494 = vmatprep.subr.mxu0 0.0
    %5495 = vmatpush1.msra.mxu0 0.0
    %5496 = vmatprep.subr.mxu0 0.0
    %5497 = vmatpush1.msra.mxu0 0.0
    %5498 = vmatprep.subr.mxu0 0.0
    %5499 = vmatpush1.msra.mxu0 0.0
    %5500 = vmatprep.subr.mxu0 0.0
    %5501 = vmatpush1.msra.mxu0 0.0
    %5502 = vmatprep.subr.mxu0 0.0
    %5503 = vmatpush1.msra.mxu0 0.0
    %5504 = vmatprep.subr.mxu0 0.0
    %5505 = vmatpush1.msra.mxu0 0.0
    %5506 = vmatprep.subr.mxu0 0.0
    %5507 = vmatpush1.msra.mxu0 0.0
    %5508 = vmatprep.subr.mxu0 0.0
    %5509 = vmatpush1.msra.mxu0 0.0
    %5510 = vmatprep.subr.mxu0 0.0
    %5511 = vmatpush1.msra.mxu0 0.0
    %5512 = vmatprep.subr.mxu0 0.0
    %5513 = vmatpush1.msra.mxu0 0.0
    %5514 = vmatprep.subr.mxu0 0.0
    %5515 = vmatpush1.msra.mxu0 0.0
    %5516 = vmatprep.subr.mxu0 0.0
    %5517 = vmatpush1.msra.mxu0 0.0
    %5518 = vmatprep.subr.mxu0 0.0
    %5519 = vmatpush1.msra.mxu0 0.0
    %5520 = vmatprep.subr.mxu0 0.0
    %5521 = vmatpush1.msra.mxu0 0.0
    %5522 = vmatprep.subr.mxu0 0.0
    %5523 = vmatpush1.msra.mxu0 0.0
    %5524 = vmatprep.subr.mxu0 0.0
    %5525 = vmatpush1.msra.mxu0 0.0
    %5526 = vmatprep.subr.mxu0 0.0
    %5527 = vmatpush1.msra.mxu0 0.0
    %5528 = vmatprep.subr.mxu0 0.0
    %5529 = vmatpush1.msra.mxu0 0.0
    %5530 = vmatprep.subr.mxu0 0.0
    %5531 = vmatpush1.msra.mxu0 0.0
    %5532 = vmatprep.subr.mxu0 0.0
    %5533 = vmatpush1.msra.mxu0 0.0
    %5534 = vmatprep.subr.mxu0 0.0
    %5535 = vmatpush1.msra.mxu0 0.0
    %5536 = vmatprep.subr.mxu0 0.0
    %5537 = vmatpush1.msra.mxu0 0.0
    %5538 = vmatprep.subr.mxu0 0.0
    %5539 = vmatpush1.msra.mxu0 0.0
    %5540 = vmatprep.subr.mxu0 0.0
    %5541 = vmatpush1.msra.mxu0 0.0
    %5542 = vmatprep.mubr.f32.mxu0 0.0
    %v5543 = vand.u32 %v5214, 4294901760
    %v5544 = vsub.f32 %v5214, %v5543
    %v5545 = vand.u32 %v5544, 4294901760
    %5546 = vmatmul.mubr.f32.gmra.mrb[0].mxu0 %v5545
    %v5547 = vpop.f32.mrb[0].mxu0
    %v5548 = vadd.f32 %v5466, %v5547
    %v5549 = vpop.f32.mrb[0].mxu0
    %5550 = vmatprep.mubr.f32.mxu0 0.0
    %v5551 = vand.u32 %v5217, 4294901760
    %v5552 = vsub.f32 %v5217, %v5551
    %v5553 = vand.u32 %v5552, 4294901760
    %5554 = vmatmul.mubr.f32.gmra.mrb[0].mxu0 %v5553
    %v5555 = vpop.f32.mrb[0].mxu0
    %v5556 = vadd.f32 %v5473, %v5555
    %v5557 = vpop.f32.mrb[0].mxu0
    %5558 = vdwg.mxu0
    %5559 = vmatprep.subr.mxu0 0.0
    %v5560 = vand.u32 %v5211, 4294901760
    %v5561 = vsub.f32 %v5211, %v5560
    %v5562 = vand.u32 %v5561, 4294901760
    %5563 = vmatpush1.msra.mxu0 %v5562
    %5564 = vmatprep.subr.mxu0 0.0
    %v5565 = vand.u32 %v5212, 4294901760
    %v5566 = vsub.f32 %v5212, %v5565
    %v5567 = vand.u32 %v5566, 4294901760
    %5568 = vmatpush1.msra.mxu0 %v5567
    %5569 = vmatprep.subr.mxu0 0.0
    %5570 = vmatpush1.msra.mxu0 0.0
    %5571 = vmatprep.subr.mxu0 0.0
    %5572 = vmatpush1.msra.mxu0 0.0
    %5573 = vmatprep.subr.mxu0 0.0
    %5574 = vmatpush1.msra.mxu0 0.0
    %5575 = vmatprep.subr.mxu0 0.0
    %5576 = vmatpush1.msra.mxu0 0.0
    %5577 = vmatprep.subr.mxu0 0.0
    %5578 = vmatpush1.msra.mxu0 0.0
    %5579 = vmatprep.subr.mxu0 0.0
    %5580 = vmatpush1.msra.mxu0 0.0
    %5581 = vmatprep.subr.mxu0 0.0
    %5582 = vmatpush1.msra.mxu0 0.0
    %5583 = vmatprep.subr.mxu0 0.0
    %5584 = vmatpush1.msra.mxu0 0.0
    %5585 = vmatprep.subr.mxu0 0.0
    %5586 = vmatpush1.msra.mxu0 0.0
    %5587 = vmatprep.subr.mxu0 0.0
    %5588 = vmatpush1.msra.mxu0 0.0
    %5589 = vmatprep.subr.mxu0 0.0
    %5590 = vmatpush1.msra.mxu0 0.0
    %5591 = vmatprep.subr.mxu0 0.0
    %5592 = vmatpush1.msra.mxu0 0.0
    %5593 = vmatprep.subr.mxu0 0.0
    %5594 = vmatpush1.msra.mxu0 0.0
    %5595 = vmatprep.subr.mxu0 0.0
    %5596 = vmatpush1.msra.mxu0 0.0
    %5597 = vmatprep.subr.mxu0 0.0
    %5598 = vmatpush1.msra.mxu0 0.0
    %5599 = vmatprep.subr.mxu0 0.0
    %5600 = vmatpush1.msra.mxu0 0.0
    %5601 = vmatprep.subr.mxu0 0.0
    %5602 = vmatpush1.msra.mxu0 0.0
    %5603 = vmatprep.subr.mxu0 0.0
    %5604 = vmatpush1.msra.mxu0 0.0
    %5605 = vmatprep.subr.mxu0 0.0
    %5606 = vmatpush1.msra.mxu0 0.0
    %5607 = vmatprep.subr.mxu0 0.0
    %5608 = vmatpush1.msra.mxu0 0.0
    %5609 = vmatprep.subr.mxu0 0.0
    %5610 = vmatpush1.msra.mxu0 0.0
    %5611 = vmatprep.subr.mxu0 0.0
    %5612 = vmatpush1.msra.mxu0 0.0
    %5613 = vmatprep.subr.mxu0 0.0
    %5614 = vmatpush1.msra.mxu0 0.0
    %5615 = vmatprep.subr.mxu0 0.0
    %5616 = vmatpush1.msra.mxu0 0.0
    %5617 = vmatprep.subr.mxu0 0.0
    %5618 = vmatpush1.msra.mxu0 0.0
    %5619 = vmatprep.subr.mxu0 0.0
    %5620 = vmatpush1.msra.mxu0 0.0
    %5621 = vmatprep.subr.mxu0 0.0
    %5622 = vmatpush1.msra.mxu0 0.0
    %5623 = vmatprep.subr.mxu0 0.0
    %5624 = vmatpush1.msra.mxu0 0.0
    %5625 = vmatprep.subr.mxu0 0.0
    %5626 = vmatpush1.msra.mxu0 0.0
    %5627 = vmatprep.subr.mxu0 0.0
    %5628 = vmatpush1.msra.mxu0 0.0
    %5629 = vmatprep.mubr.f32.mxu0 0.0
    %v5630 = vand.u32 %v5214, 4294901760
    %5631 = vmatmul.mubr.f32.gmra.mrb[0].mxu0 %v5630
    %v5632 = vpop.f32.mrb[0].mxu0
    %v5633 = vadd.f32 %v5548, %v5632
    %v5634 = vpop.f32.mrb[0].mxu0
    %5635 = vmatprep.mubr.f32.mxu0 0.0
    %v5636 = vand.u32 %v5217, 4294901760
    %5637 = vmatmul.mubr.f32.gmra.mrb[0].mxu0 %v5636
    %v5638 = vpop.f32.mrb[0].mxu0
    %v5639 = vadd.f32 %v5556, %v5638
    %v5640 = vpop.f32.mrb[0].mxu0
    %5641 = vdwg.mxu0
    %5642 = vmatprep.subr.mxu0 0.0
    %v5643 = vand.u32 %v5211, 4294901760
    %5644 = vmatpush1.msra.mxu0 %v5643
    %5645 = vmatprep.subr.mxu0 0.0
    %v5646 = vand.u32 %v5212, 4294901760
    %5647 = vmatpush1.msra.mxu0 %v5646
    %5648 = vmatprep.subr.mxu0 0.0
    %5649 = vmatpush1.msra.mxu0 0.0
    %5650 = vmatprep.subr.mxu0 0.0
    %5651 = vmatpush1.msra.mxu0 0.0
    %5652 = vmatprep.subr.mxu0 0.0
    %5653 = vmatpush1.msra.mxu0 0.0
    %5654 = vmatprep.subr.mxu0 0.0
    %5655 = vmatpush1.msra.mxu0 0.0
    %5656 = vmatprep.subr.mxu0 0.0
    %5657 = vmatpush1.msra.mxu0 0.0
    %5658 = vmatprep.subr.mxu0 0.0
    %5659 = vmatpush1.msra.mxu0 0.0
    %5660 = vmatprep.subr.mxu0 0.0
    %5661 = vmatpush1.msra.mxu0 0.0
    %5662 = vmatprep.subr.mxu0 0.0
    %5663 = vmatpush1.msra.mxu0 0.0
    %5664 = vmatprep.subr.mxu0 0.0
    %5665 = vmatpush1.msra.mxu0 0.0
    %5666 = vmatprep.subr.mxu0 0.0
    %5667 = vmatpush1.msra.mxu0 0.0
    %5668 = vmatprep.subr.mxu0 0.0
    %5669 = vmatpush1.msra.mxu0 0.0
    %5670 = vmatprep.subr.mxu0 0.0
    %5671 = vmatpush1.msra.mxu0 0.0
    %5672 = vmatprep.subr.mxu0 0.0
    %5673 = vmatpush1.msra.mxu0 0.0
    %5674 = vmatprep.subr.mxu0 0.0
    %5675 = vmatpush1.msra.mxu0 0.0
    %5676 = vmatprep.subr.mxu0 0.0
    %5677 = vmatpush1.msra.mxu0 0.0
    %5678 = vmatprep.subr.mxu0 0.0
    %5679 = vmatpush1.msra.mxu0 0.0
    %5680 = vmatprep.subr.mxu0 0.0
    %5681 = vmatpush1.msra.mxu0 0.0
    %5682 = vmatprep.subr.mxu0 0.0
    %5683 = vmatpush1.msra.mxu0 0.0
    %5684 = vmatprep.subr.mxu0 0.0
    %5685 = vmatpush1.msra.mxu0 0.0
    %5686 = vmatprep.subr.mxu0 0.0
    %5687 = vmatpush1.msra.mxu0 0.0
    %5688 = vmatprep.subr.mxu0 0.0
    %5689 = vmatpush1.msra.mxu0 0.0
    %5690 = vmatprep.subr.mxu0 0.0
    %5691 = vmatpush1.msra.mxu0 0.0
    %5692 = vmatprep.subr.mxu0 0.0
    %5693 = vmatpush1.msra.mxu0 0.0
    %5694 = vmatprep.subr.mxu0 0.0
    %5695 = vmatpush1.msra.mxu0 0.0
    %5696 = vmatprep.subr.mxu0 0.0
    %5697 = vmatpush1.msra.mxu0 0.0
    %5698 = vmatprep.subr.mxu0 0.0
    %5699 = vmatpush1.msra.mxu0 0.0
    %5700 = vmatprep.subr.mxu0 0.0
    %5701 = vmatpush1.msra.mxu0 0.0
    %5702 = vmatprep.subr.mxu0 0.0
    %5703 = vmatpush1.msra.mxu0 0.0
    %5704 = vmatprep.subr.mxu0 0.0
    %5705 = vmatpush1.msra.mxu0 0.0
    %5706 = vmatprep.subr.mxu0 0.0
    %5707 = vmatpush1.msra.mxu0 0.0
    %5708 = vmatprep.mubr.f32.mxu0 0.0
    %v5709 = vand.u32 %v5214, 4294901760
    %5710 = vmatmul.mubr.f32.gmra.mrb[0].mxu0 %v5709
    %v5711 = vpop.f32.mrb[0].mxu0
    %v5712 = vadd.f32 %v5633, %v5711
    %v5713 = vpop.f32.mrb[0].mxu0
    %5714 = vmatprep.mubr.f32.mxu0 0.0
    %v5715 = vand.u32 %v5217, 4294901760
    %5716 = vmatmul.mubr.f32.gmra.mrb[0].mxu0 %v5715
    %v5717 = vpop.f32.mrb[0].mxu0
    %v5718 = vadd.f32 %v5639, %v5717
    %v5719 = vpop.f32.mrb[0].mxu0
    %5720 = vdwg.mxu0
    %v5721 = vadd.f32 %v5207, %v5712
    %v5722 = vadd.f32 %v5208, %v5718
    %v5723 = vld [vmem:[%s3670 + $0x4] sm:$0xff]
    %v5724 = vld [vmem:[%s3670 + $0xc] sm:$0xff]
    %v5725 = vld [vmem:[%s2111] sm:$0xff]
    %v5726 = vld [vmem:[%s2111 + $0x8] sm:$0xff]
    %v5728 = vsel %vm49, %v5723, 0
    %v5731 = vsel %vm49, %v5724, 0
    %5733 = vmatprep.subr.mxu0 0.0
    %v5734 = vand.u32 %v5725, 4294901760
    %5735 = vmatpush1.msra.mxu0 %v5734
    %5736 = vmatprep.subr.mxu0 0.0
    %v5737 = vand.u32 %v5726, 4294901760
    %5738 = vmatpush1.msra.mxu0 %v5737
    %5739 = vmatprep.subr.mxu0 0.0
    %5740 = vmatpush1.msra.mxu0 0.0
    %5741 = vmatprep.subr.mxu0 0.0
    %5742 = vmatpush1.msra.mxu0 0.0
    %5743 = vmatprep.subr.mxu0 0.0
    %5744 = vmatpush1.msra.mxu0 0.0
    %5745 = vmatprep.subr.mxu0 0.0
    %5746 = vmatpush1.msra.mxu0 0.0
    %5747 = vmatprep.subr.mxu0 0.0
    %5748 = vmatpush1.msra.mxu0 0.0
    %5749 = vmatprep.subr.mxu0 0.0
    %5750 = vmatpush1.msra.mxu0 0.0
    %5751 = vmatprep.subr.mxu0 0.0
    %5752 = vmatpush1.msra.mxu0 0.0
    %5753 = vmatprep.subr.mxu0 0.0
    %5754 = vmatpush1.msra.mxu0 0.0
    %5755 = vmatprep.subr.mxu0 0.0
    %5756 = vmatpush1.msra.mxu0 0.0
    %5757 = vmatprep.subr.mxu0 0.0
    %5758 = vmatpush1.msra.mxu0 0.0
    %5759 = vmatprep.subr.mxu0 0.0
    %5760 = vmatpush1.msra.mxu0 0.0
    %5761 = vmatprep.subr.mxu0 0.0
    %5762 = vmatpush1.msra.mxu0 0.0
    %5763 = vmatprep.subr.mxu0 0.0
    %5764 = vmatpush1.msra.mxu0 0.0
    %5765 = vmatprep.subr.mxu0 0.0
    %5766 = vmatpush1.msra.mxu0 0.0
    %5767 = vmatprep.subr.mxu0 0.0
    %5768 = vmatpush1.msra.mxu0 0.0
    %5769 = vmatprep.subr.mxu0 0.0
    %5770 = vmatpush1.msra.mxu0 0.0
    %5771 = vmatprep.subr.mxu0 0.0
    %5772 = vmatpush1.msra.mxu0 0.0
    %5773 = vmatprep.subr.mxu0 0.0
    %5774 = vmatpush1.msra.mxu0 0.0
    %5775 = vmatprep.subr.mxu0 0.0
    %5776 = vmatpush1.msra.mxu0 0.0
    %5777 = vmatprep.subr.mxu0 0.0
    %5778 = vmatpush1.msra.mxu0 0.0
    %5779 = vmatprep.subr.mxu0 0.0
    %5780 = vmatpush1.msra.mxu0 0.0
    %5781 = vmatprep.subr.mxu0 0.0
    %5782 = vmatpush1.msra.mxu0 0.0
    %5783 = vmatprep.subr.mxu0 0.0
    %5784 = vmatpush1.msra.mxu0 0.0
    %5785 = vmatprep.subr.mxu0 0.0
    %5786 = vmatpush1.msra.mxu0 0.0
    %5787 = vmatprep.subr.mxu0 0.0
    %5788 = vmatpush1.msra.mxu0 0.0
    %5789 = vmatprep.subr.mxu0 0.0
    %5790 = vmatpush1.msra.mxu0 0.0
    %5791 = vmatprep.subr.mxu0 0.0
    %5792 = vmatpush1.msra.mxu0 0.0
    %5793 = vmatprep.subr.mxu0 0.0
    %5794 = vmatpush1.msra.mxu0 0.0
    %5795 = vmatprep.subr.mxu0 0.0
    %5796 = vmatpush1.msra.mxu0 0.0
    %5797 = vmatprep.subr.mxu0 0.0
    %5798 = vmatpush1.msra.mxu0 0.0
    %5799 = vmatprep.mubr.f32.mxu0 0.0
    %v5800 = vand.u32 %v5728, 4294901760
    %v5801 = vsub.f32 %v5728, %v5800
    %v5802 = vand.u32 %v5801, 4294901760
    %v5803 = vsub.f32 %v5801, %v5802
    %v5804 = vand.u32 %v5803, 4294901760
    %5805 = vmatmul.mubr.f32.gmra.mrb[0].mxu0 %v5804
    %v5806 = vpop.f32.mrb[0].mxu0
    %v5807 = vadd.f32 0.0, %v5806
    %v5808 = vpop.f32.mrb[0].mxu0
    %5809 = vmatprep.mubr.f32.mxu0 0.0
    %v5810 = vand.u32 %v5731, 4294901760
    %v5811 = vsub.f32 %v5731, %v5810
    %v5812 = vand.u32 %v5811, 4294901760
    %v5813 = vsub.f32 %v5811, %v5812
    %v5814 = vand.u32 %v5813, 4294901760
    %5815 = vmatmul.mubr.f32.gmra.mrb[0].mxu0 %v5814
    %v5816 = vpop.f32.mrb[0].mxu0
    %v5817 = vadd.f32 0.0, %v5816
    %v5818 = vpop.f32.mrb[0].mxu0
    %5819 = vdwg.mxu0
    %5820 = vmatprep.subr.mxu0 0.0
    %v5821 = vand.u32 %v5725, 4294901760
    %v5822 = vsub.f32 %v5725, %v5821
    %v5823 = vand.u32 %v5822, 4294901760
    %v5824 = vsub.f32 %v5822, %v5823
    %v5825 = vand.u32 %v5824, 4294901760
    %5826 = vmatpush1.msra.mxu0 %v5825
    %5827 = vmatprep.subr.mxu0 0.0
    %v5828 = vand.u32 %v5726, 4294901760
    %v5829 = vsub.f32 %v5726, %v5828
    %v5830 = vand.u32 %v5829, 4294901760
    %v5831 = vsub.f32 %v5829, %v5830
    %v5832 = vand.u32 %v5831, 4294901760
    %5833 = vmatpush1.msra.mxu0 %v5832
    %5834 = vmatprep.subr.mxu0 0.0
    %5835 = vmatpush1.msra.mxu0 0.0
    %5836 = vmatprep.subr.mxu0 0.0
    %5837 = vmatpush1.msra.mxu0 0.0
    %5838 = vmatprep.subr.mxu0 0.0
    %5839 = vmatpush1.msra.mxu0 0.0
    %5840 = vmatprep.subr.mxu0 0.0
    %5841 = vmatpush1.msra.mxu0 0.0
    %5842 = vmatprep.subr.mxu0 0.0
    %5843 = vmatpush1.msra.mxu0 0.0
    %5844 = vmatprep.subr.mxu0 0.0
    %5845 = vmatpush1.msra.mxu0 0.0
    %5846 = vmatprep.subr.mxu0 0.0
    %5847 = vmatpush1.msra.mxu0 0.0
    %5848 = vmatprep.subr.mxu0 0.0
    %5849 = vmatpush1.msra.mxu0 0.0
    %5850 = vmatprep.subr.mxu0 0.0
    %5851 = vmatpush1.msra.mxu0 0.0
    %5852 = vmatprep.subr.mxu0 0.0
    %5853 = vmatpush1.msra.mxu0 0.0
    %5854 = vmatprep.subr.mxu0 0.0
    %5855 = vmatpush1.msra.mxu0 0.0
    %5856 = vmatprep.subr.mxu0 0.0
    %5857 = vmatpush1.msra.mxu0 0.0
    %5858 = vmatprep.subr.mxu0 0.0
    %5859 = vmatpush1.msra.mxu0 0.0
    %5860 = vmatprep.subr.mxu0 0.0
    %5861 = vmatpush1.msra.mxu0 0.0
    %5862 = vmatprep.subr.mxu0 0.0
    %5863 = vmatpush1.msra.mxu0 0.0
    %5864 = vmatprep.subr.mxu0 0.0
    %5865 = vmatpush1.msra.mxu0 0.0
    %5866 = vmatprep.subr.mxu0 0.0
    %5867 = vmatpush1.msra.mxu0 0.0
    %5868 = vmatprep.subr.mxu0 0.0
    %5869 = vmatpush1.msra.mxu0 0.0
    %5870 = vmatprep.subr.mxu0 0.0
    %5871 = vmatpush1.msra.mxu0 0.0
    %5872 = vmatprep.subr.mxu0 0.0
    %5873 = vmatpush1.msra.mxu0 0.0
    %5874 = vmatprep.subr.mxu0 0.0
    %5875 = vmatpush1.msra.mxu0 0.0
    %5876 = vmatprep.subr.mxu0 0.0
    %5877 = vmatpush1.msra.mxu0 0.0
    %5878 = vmatprep.subr.mxu0 0.0
    %5879 = vmatpush1.msra.mxu0 0.0
    %5880 = vmatprep.subr.mxu0 0.0
    %5881 = vmatpush1.msra.mxu0 0.0
    %5882 = vmatprep.subr.mxu0 0.0
    %5883 = vmatpush1.msra.mxu0 0.0
    %5884 = vmatprep.subr.mxu0 0.0
    %5885 = vmatpush1.msra.mxu0 0.0
    %5886 = vmatprep.subr.mxu0 0.0
    %5887 = vmatpush1.msra.mxu0 0.0
    %5888 = vmatprep.subr.mxu0 0.0
    %5889 = vmatpush1.msra.mxu0 0.0
    %5890 = vmatprep.subr.mxu0 0.0
    %5891 = vmatpush1.msra.mxu0 0.0
    %5892 = vmatprep.subr.mxu0 0.0
    %5893 = vmatpush1.msra.mxu0 0.0
    %5894 = vmatprep.mubr.f32.mxu0 0.0
    %v5895 = vand.u32 %v5728, 4294901760
    %5896 = vmatmul.mubr.f32.gmra.mrb[0].mxu0 %v5895
    %v5897 = vpop.f32.mrb[0].mxu0
    %v5898 = vadd.f32 %v5807, %v5897
    %v5899 = vpop.f32.mrb[0].mxu0
    %5900 = vmatprep.mubr.f32.mxu0 0.0
    %v5901 = vand.u32 %v5731, 4294901760
    %5902 = vmatmul.mubr.f32.gmra.mrb[0].mxu0 %v5901
    %v5903 = vpop.f32.mrb[0].mxu0
    %v5904 = vadd.f32 %v5817, %v5903
    %v5905 = vpop.f32.mrb[0].mxu0
    %5906 = vdwg.mxu0
    %5907 = vmatprep.subr.mxu0 0.0
    %v5908 = vand.u32 %v5725, 4294901760
    %v5909 = vsub.f32 %v5725, %v5908
    %5910 = vmatpush1.msra.mxu0 %v5909
    %5911 = vmatprep.subr.mxu0 0.0
    %v5912 = vand.u32 %v5726, 4294901760
    %v5913 = vsub.f32 %v5726, %v5912
    %5914 = vmatpush1.msra.mxu0 %v5913
    %5915 = vmatprep.subr.mxu0 0.0
    %5916 = vmatpush1.msra.mxu0 0.0
    %5917 = vmatprep.subr.mxu0 0.0
    %5918 = vmatpush1.msra.mxu0 0.0
    %5919 = vmatprep.subr.mxu0 0.0
    %5920 = vmatpush1.msra.mxu0 0.0
    %5921 = vmatprep.subr.mxu0 0.0
    %5922 = vmatpush1.msra.mxu0 0.0
    %5923 = vmatprep.subr.mxu0 0.0
    %5924 = vmatpush1.msra.mxu0 0.0
    %5925 = vmatprep.subr.mxu0 0.0
    %5926 = vmatpush1.msra.mxu0 0.0
    %5927 = vmatprep.subr.mxu0 0.0
    %5928 = vmatpush1.msra.mxu0 0.0
    %5929 = vmatprep.subr.mxu0 0.0
    %5930 = vmatpush1.msra.mxu0 0.0
    %5931 = vmatprep.subr.mxu0 0.0
    %5932 = vmatpush1.msra.mxu0 0.0
    %5933 = vmatprep.subr.mxu0 0.0
    %5934 = vmatpush1.msra.mxu0 0.0
    %5935 = vmatprep.subr.mxu0 0.0
    %5936 = vmatpush1.msra.mxu0 0.0
    %5937 = vmatprep.subr.mxu0 0.0
    %5938 = vmatpush1.msra.mxu0 0.0
    %5939 = vmatprep.subr.mxu0 0.0
    %5940 = vmatpush1.msra.mxu0 0.0
    %5941 = vmatprep.subr.mxu0 0.0
    %5942 = vmatpush1.msra.mxu0 0.0
    %5943 = vmatprep.subr.mxu0 0.0
    %5944 = vmatpush1.msra.mxu0 0.0
    %5945 = vmatprep.subr.mxu0 0.0
    %5946 = vmatpush1.msra.mxu0 0.0
    %5947 = vmatprep.subr.mxu0 0.0
    %5948 = vmatpush1.msra.mxu0 0.0
    %5949 = vmatprep.subr.mxu0 0.0
    %5950 = vmatpush1.msra.mxu0 0.0
    %5951 = vmatprep.subr.mxu0 0.0
    %5952 = vmatpush1.msra.mxu0 0.0
    %5953 = vmatprep.subr.mxu0 0.0
    %5954 = vmatpush1.msra.mxu0 0.0
    %5955 = vmatprep.subr.mxu0 0.0
    %5956 = vmatpush1.msra.mxu0 0.0
    %5957 = vmatprep.subr.mxu0 0.0
    %5958 = vmatpush1.msra.mxu0 0.0
    %5959 = vmatprep.subr.mxu0 0.0
    %5960 = vmatpush1.msra.mxu0 0.0
    %5961 = vmatprep.subr.mxu0 0.0
    %5962 = vmatpush1.msra.mxu0 0.0
    %5963 = vmatprep.subr.mxu0 0.0
    %5964 = vmatpush1.msra.mxu0 0.0
    %5965 = vmatprep.subr.mxu0 0.0
    %5966 = vmatpush1.msra.mxu0 0.0
    %5967 = vmatprep.subr.mxu0 0.0
    %5968 = vmatpush1.msra.mxu0 0.0
    %5969 = vmatprep.subr.mxu0 0.0
    %5970 = vmatpush1.msra.mxu0 0.0
    %5971 = vmatprep.subr.mxu0 0.0
    %5972 = vmatpush1.msra.mxu0 0.0
    %5973 = vmatprep.subr.mxu0 0.0
    %5974 = vmatpush1.msra.mxu0 0.0
    %5975 = vmatprep.mubr.f32.mxu0 0.0
    %v5976 = vand.u32 %v5728, 4294901760
    %v5977 = vsub.f32 %v5728, %v5976
    %5978 = vmatmul.mubr.f32.gmra.mrb[0].mxu0 %v5977
    %v5979 = vpop.f32.mrb[0].mxu0
    %v5980 = vadd.f32 %v5898, %v5979
    %v5981 = vpop.f32.mrb[0].mxu0
    %5982 = vmatprep.mubr.f32.mxu0 0.0
    %v5983 = vand.u32 %v5731, 4294901760
    %v5984 = vsub.f32 %v5731, %v5983
    %5985 = vmatmul.mubr.f32.gmra.mrb[0].mxu0 %v5984
    %v5986 = vpop.f32.mrb[0].mxu0
    %v5987 = vadd.f32 %v5904, %v5986
    %v5988 = vpop.f32.mrb[0].mxu0
    %5989 = vdwg.mxu0
    %5990 = vmatprep.subr.mxu0 0.0
    %v5991 = vand.u32 %v5725, 4294901760
    %5992 = vmatpush1.msra.mxu0 %v5991
    %5993 = vmatprep.subr.mxu0 0.0
    %v5994 = vand.u32 %v5726, 4294901760
    %5995 = vmatpush1.msra.mxu0 %v5994
    %5996 = vmatprep.subr.mxu0 0.0
    %5997 = vmatpush1.msra.mxu0 0.0
    %5998 = vmatprep.subr.mxu0 0.0
    %5999 = vmatpush1.msra.mxu0 0.0
    %6000 = vmatprep.subr.mxu0 0.0
    %6001 = vmatpush1.msra.mxu0 0.0
    %6002 = vmatprep.subr.mxu0 0.0
    %6003 = vmatpush1.msra.mxu0 0.0
    %6004 = vmatprep.subr.mxu0 0.0
    %6005 = vmatpush1.msra.mxu0 0.0
    %6006 = vmatprep.subr.mxu0 0.0
    %6007 = vmatpush1.msra.mxu0 0.0
    %6008 = vmatprep.subr.mxu0 0.0
    %6009 = vmatpush1.msra.mxu0 0.0
    %6010 = vmatprep.subr.mxu0 0.0
    %6011 = vmatpush1.msra.mxu0 0.0
    %6012 = vmatprep.subr.mxu0 0.0
    %6013 = vmatpush1.msra.mxu0 0.0
    %6014 = vmatprep.subr.mxu0 0.0
    %6015 = vmatpush1.msra.mxu0 0.0
    %6016 = vmatprep.subr.mxu0 0.0
    %6017 = vmatpush1.msra.mxu0 0.0
    %6018 = vmatprep.subr.mxu0 0.0
    %6019 = vmatpush1.msra.mxu0 0.0
    %6020 = vmatprep.subr.mxu0 0.0
    %6021 = vmatpush1.msra.mxu0 0.0
    %6022 = vmatprep.subr.mxu0 0.0
    %6023 = vmatpush1.msra.mxu0 0.0
    %6024 = vmatprep.subr.mxu0 0.0
    %6025 = vmatpush1.msra.mxu0 0.0
    %6026 = vmatprep.subr.mxu0 0.0
    %6027 = vmatpush1.msra.mxu0 0.0
    %6028 = vmatprep.subr.mxu0 0.0
    %6029 = vmatpush1.msra.mxu0 0.0
    %6030 = vmatprep.subr.mxu0 0.0
    %6031 = vmatpush1.msra.mxu0 0.0
    %6032 = vmatprep.subr.mxu0 0.0
    %6033 = vmatpush1.msra.mxu0 0.0
    %6034 = vmatprep.subr.mxu0 0.0
    %6035 = vmatpush1.msra.mxu0 0.0
    %6036 = vmatprep.subr.mxu0 0.0
    %6037 = vmatpush1.msra.mxu0 0.0
    %6038 = vmatprep.subr.mxu0 0.0
    %6039 = vmatpush1.msra.mxu0 0.0
    %6040 = vmatprep.subr.mxu0 0.0
    %6041 = vmatpush1.msra.mxu0 0.0
    %6042 = vmatprep.subr.mxu0 0.0
    %6043 = vmatpush1.msra.mxu0 0.0
    %6044 = vmatprep.subr.mxu0 0.0
    %6045 = vmatpush1.msra.mxu0 0.0
    %6046 = vmatprep.subr.mxu0 0.0
    %6047 = vmatpush1.msra.mxu0 0.0
    %6048 = vmatprep.subr.mxu0 0.0
    %6049 = vmatpush1.msra.mxu0 0.0
    %6050 = vmatprep.subr.mxu0 0.0
    %6051 = vmatpush1.msra.mxu0 0.0
    %6052 = vmatprep.subr.mxu0 0.0
    %6053 = vmatpush1.msra.mxu0 0.0
    %6054 = vmatprep.subr.mxu0 0.0
    %6055 = vmatpush1.msra.mxu0 0.0
    %6056 = vmatprep.mubr.f32.mxu0 0.0
    %v6057 = vand.u32 %v5728, 4294901760
    %v6058 = vsub.f32 %v5728, %v6057
    %v6059 = vand.u32 %v6058, 4294901760
    %6060 = vmatmul.mubr.f32.gmra.mrb[0].mxu0 %v6059
    %v6061 = vpop.f32.mrb[0].mxu0
    %v6062 = vadd.f32 %v5980, %v6061
    %v6063 = vpop.f32.mrb[0].mxu0
    %6064 = vmatprep.mubr.f32.mxu0 0.0
    %v6065 = vand.u32 %v5731, 4294901760
    %v6066 = vsub.f32 %v5731, %v6065
    %v6067 = vand.u32 %v6066, 4294901760
    %6068 = vmatmul.mubr.f32.gmra.mrb[0].mxu0 %v6067
    %v6069 = vpop.f32.mrb[0].mxu0
    %v6070 = vadd.f32 %v5987, %v6069
    %v6071 = vpop.f32.mrb[0].mxu0
    %6072 = vdwg.mxu0
    %6073 = vmatprep.subr.mxu0 0.0
    %v6074 = vand.u32 %v5725, 4294901760
    %v6075 = vsub.f32 %v5725, %v6074
    %v6076 = vand.u32 %v6075, 4294901760
    %6077 = vmatpush1.msra.mxu0 %v6076
    %6078 = vmatprep.subr.mxu0 0.0
    %v6079 = vand.u32 %v5726, 4294901760
    %v6080 = vsub.f32 %v5726, %v6079
    %v6081 = vand.u32 %v6080, 4294901760
    %6082 = vmatpush1.msra.mxu0 %v6081
    %6083 = vmatprep.subr.mxu0 0.0
    %6084 = vmatpush1.msra.mxu0 0.0
    %6085 = vmatprep.subr.mxu0 0.0
    %6086 = vmatpush1.msra.mxu0 0.0
    %6087 = vmatprep.subr.mxu0 0.0
    %6088 = vmatpush1.msra.mxu0 0.0
    %6089 = vmatprep.subr.mxu0 0.0
    %6090 = vmatpush1.msra.mxu0 0.0
    %6091 = vmatprep.subr.mxu0 0.0
    %6092 = vmatpush1.msra.mxu0 0.0
    %6093 = vmatprep.subr.mxu0 0.0
    %6094 = vmatpush1.msra.mxu0 0.0
    %6095 = vmatprep.subr.mxu0 0.0
    %6096 = vmatpush1.msra.mxu0 0.0
    %6097 = vmatprep.subr.mxu0 0.0
    %6098 = vmatpush1.msra.mxu0 0.0
    %6099 = vmatprep.subr.mxu0 0.0
    %6100 = vmatpush1.msra.mxu0 0.0
    %6101 = vmatprep.subr.mxu0 0.0
    %6102 = vmatpush1.msra.mxu0 0.0
    %6103 = vmatprep.subr.mxu0 0.0
    %6104 = vmatpush1.msra.mxu0 0.0
    %6105 = vmatprep.subr.mxu0 0.0
    %6106 = vmatpush1.msra.mxu0 0.0
    %6107 = vmatprep.subr.mxu0 0.0
    %6108 = vmatpush1.msra.mxu0 0.0
    %6109 = vmatprep.subr.mxu0 0.0
    %6110 = vmatpush1.msra.mxu0 0.0
    %6111 = vmatprep.subr.mxu0 0.0
    %6112 = vmatpush1.msra.mxu0 0.0
    %6113 = vmatprep.subr.mxu0 0.0
    %6114 = vmatpush1.msra.mxu0 0.0
    %6115 = vmatprep.subr.mxu0 0.0
    %6116 = vmatpush1.msra.mxu0 0.0
    %6117 = vmatprep.subr.mxu0 0.0
    %6118 = vmatpush1.msra.mxu0 0.0
    %6119 = vmatprep.subr.mxu0 0.0
    %6120 = vmatpush1.msra.mxu0 0.0
    %6121 = vmatprep.subr.mxu0 0.0
    %6122 = vmatpush1.msra.mxu0 0.0
    %6123 = vmatprep.subr.mxu0 0.0
    %6124 = vmatpush1.msra.mxu0 0.0
    %6125 = vmatprep.subr.mxu0 0.0
    %6126 = vmatpush1.msra.mxu0 0.0
    %6127 = vmatprep.subr.mxu0 0.0
    %6128 = vmatpush1.msra.mxu0 0.0
    %6129 = vmatprep.subr.mxu0 0.0
    %6130 = vmatpush1.msra.mxu0 0.0
    %6131 = vmatprep.subr.mxu0 0.0
    %6132 = vmatpush1.msra.mxu0 0.0
    %6133 = vmatprep.subr.mxu0 0.0
    %6134 = vmatpush1.msra.mxu0 0.0
    %6135 = vmatprep.subr.mxu0 0.0
    %6136 = vmatpush1.msra.mxu0 0.0
    %6137 = vmatprep.subr.mxu0 0.0
    %6138 = vmatpush1.msra.mxu0 0.0
    %6139 = vmatprep.subr.mxu0 0.0
    %6140 = vmatpush1.msra.mxu0 0.0
    %6141 = vmatprep.subr.mxu0 0.0
    %6142 = vmatpush1.msra.mxu0 0.0
    %6143 = vmatprep.mubr.f32.mxu0 0.0
    %v6144 = vand.u32 %v5728, 4294901760
    %6145 = vmatmul.mubr.f32.gmra.mrb[0].mxu0 %v6144
    %v6146 = vpop.f32.mrb[0].mxu0
    %v6147 = vadd.f32 %v6062, %v6146
    %v6148 = vpop.f32.mrb[0].mxu0
    %6149 = vmatprep.mubr.f32.mxu0 0.0
    %v6150 = vand.u32 %v5731, 4294901760
    %6151 = vmatmul.mubr.f32.gmra.mrb[0].mxu0 %v6150
    %v6152 = vpop.f32.mrb[0].mxu0
    %v6153 = vadd.f32 %v6070, %v6152
    %v6154 = vpop.f32.mrb[0].mxu0
    %6155 = vdwg.mxu0
    %6156 = vmatprep.subr.mxu0 0.0
    %v6157 = vand.u32 %v5725, 4294901760
    %6158 = vmatpush1.msra.mxu0 %v6157
    %6159 = vmatprep.subr.mxu0 0.0
    %v6160 = vand.u32 %v5726, 4294901760
    %6161 = vmatpush1.msra.mxu0 %v6160
    %6162 = vmatprep.subr.mxu0 0.0
    %6163 = vmatpush1.msra.mxu0 0.0
    %6164 = vmatprep.subr.mxu0 0.0
    %6165 = vmatpush1.msra.mxu0 0.0
    %6166 = vmatprep.subr.mxu0 0.0
    %6167 = vmatpush1.msra.mxu0 0.0
    %6168 = vmatprep.subr.mxu0 0.0
    %6169 = vmatpush1.msra.mxu0 0.0
    %6170 = vmatprep.subr.mxu0 0.0
    %6171 = vmatpush1.msra.mxu0 0.0
    %6172 = vmatprep.subr.mxu0 0.0
    %6173 = vmatpush1.msra.mxu0 0.0
    %6174 = vmatprep.subr.mxu0 0.0
    %6175 = vmatpush1.msra.mxu0 0.0
    %6176 = vmatprep.subr.mxu0 0.0
    %6177 = vmatpush1.msra.mxu0 0.0
    %6178 = vmatprep.subr.mxu0 0.0
    %6179 = vmatpush1.msra.mxu0 0.0
    %6180 = vmatprep.subr.mxu0 0.0
    %6181 = vmatpush1.msra.mxu0 0.0
    %6182 = vmatprep.subr.mxu0 0.0
    %6183 = vmatpush1.msra.mxu0 0.0
    %6184 = vmatprep.subr.mxu0 0.0
    %6185 = vmatpush1.msra.mxu0 0.0
    %6186 = vmatprep.subr.mxu0 0.0
    %6187 = vmatpush1.msra.mxu0 0.0
    %6188 = vmatprep.subr.mxu0 0.0
    %6189 = vmatpush1.msra.mxu0 0.0
    %6190 = vmatprep.subr.mxu0 0.0
    %6191 = vmatpush1.msra.mxu0 0.0
    %6192 = vmatprep.subr.mxu0 0.0
    %6193 = vmatpush1.msra.mxu0 0.0
    %6194 = vmatprep.subr.mxu0 0.0
    %6195 = vmatpush1.msra.mxu0 0.0
    %6196 = vmatprep.subr.mxu0 0.0
    %6197 = vmatpush1.msra.mxu0 0.0
    %6198 = vmatprep.subr.mxu0 0.0
    %6199 = vmatpush1.msra.mxu0 0.0
    %6200 = vmatprep.subr.mxu0 0.0
    %6201 = vmatpush1.msra.mxu0 0.0
    %6202 = vmatprep.subr.mxu0 0.0
    %6203 = vmatpush1.msra.mxu0 0.0
    %6204 = vmatprep.subr.mxu0 0.0
    %6205 = vmatpush1.msra.mxu0 0.0
    %6206 = vmatprep.subr.mxu0 0.0
    %6207 = vmatpush1.msra.mxu0 0.0
    %6208 = vmatprep.subr.mxu0 0.0
    %6209 = vmatpush1.msra.mxu0 0.0
    %6210 = vmatprep.subr.mxu0 0.0
    %6211 = vmatpush1.msra.mxu0 0.0
    %6212 = vmatprep.subr.mxu0 0.0
    %6213 = vmatpush1.msra.mxu0 0.0
    %6214 = vmatprep.subr.mxu0 0.0
    %6215 = vmatpush1.msra.mxu0 0.0
    %6216 = vmatprep.subr.mxu0 0.0
    %6217 = vmatpush1.msra.mxu0 0.0
    %6218 = vmatprep.subr.mxu0 0.0
    %6219 = vmatpush1.msra.mxu0 0.0
    %6220 = vmatprep.subr.mxu0 0.0
    %6221 = vmatpush1.msra.mxu0 0.0
    %6222 = vmatprep.mubr.f32.mxu0 0.0
    %v6223 = vand.u32 %v5728, 4294901760
    %6224 = vmatmul.mubr.f32.gmra.mrb[0].mxu0 %v6223
    %v6225 = vpop.f32.mrb[0].mxu0
    %v6226 = vadd.f32 %v6147, %v6225
    %v6227 = vpop.f32.mrb[0].mxu0
    %6228 = vmatprep.mubr.f32.mxu0 0.0
    %v6229 = vand.u32 %v5731, 4294901760
    %6230 = vmatmul.mubr.f32.gmra.mrb[0].mxu0 %v6229
    %v6231 = vpop.f32.mrb[0].mxu0
    %v6232 = vadd.f32 %v6153, %v6231
    %v6233 = vpop.f32.mrb[0].mxu0
    %6234 = vdwg.mxu0
    %v6235 = vadd.f32 %v5721, %v6226
    %v6236 = vadd.f32 %v5722, %v6232
    %v6237 = vld [vmem:[%s3670 + $0x5] sm:$0xff]
    %v6238 = vld [vmem:[%s3670 + $0xd] sm:$0xff]
    %v6239 = vld [vmem:[%s2626] sm:$0xff]
    %v6240 = vld [vmem:[%s2626 + $0x8] sm:$0xff]
    %v6242 = vsel %vm49, %v6237, 0
    %v6245 = vsel %vm49, %v6238, 0
    %6247 = vmatprep.subr.mxu0 0.0
    %v6248 = vand.u32 %v6239, 4294901760
    %6249 = vmatpush1.msra.mxu0 %v6248
    %6250 = vmatprep.subr.mxu0 0.0
    %v6251 = vand.u32 %v6240, 4294901760
    %6252 = vmatpush1.msra.mxu0 %v6251
    %6253 = vmatprep.subr.mxu0 0.0
    %6254 = vmatpush1.msra.mxu0 0.0
    %6255 = vmatprep.subr.mxu0 0.0
    %6256 = vmatpush1.msra.mxu0 0.0
    %6257 = vmatprep.subr.mxu0 0.0
    %6258 = vmatpush1.msra.mxu0 0.0
    %6259 = vmatprep.subr.mxu0 0.0
    %6260 = vmatpush1.msra.mxu0 0.0
    %6261 = vmatprep.subr.mxu0 0.0
    %6262 = vmatpush1.msra.mxu0 0.0
    %6263 = vmatprep.subr.mxu0 0.0
    %6264 = vmatpush1.msra.mxu0 0.0
    %6265 = vmatprep.subr.mxu0 0.0
    %6266 = vmatpush1.msra.mxu0 0.0
    %6267 = vmatprep.subr.mxu0 0.0
    %6268 = vmatpush1.msra.mxu0 0.0
    %6269 = vmatprep.subr.mxu0 0.0
    %6270 = vmatpush1.msra.mxu0 0.0
    %6271 = vmatprep.subr.mxu0 0.0
    %6272 = vmatpush1.msra.mxu0 0.0
    %6273 = vmatprep.subr.mxu0 0.0
    %6274 = vmatpush1.msra.mxu0 0.0
    %6275 = vmatprep.subr.mxu0 0.0
    %6276 = vmatpush1.msra.mxu0 0.0
    %6277 = vmatprep.subr.mxu0 0.0
    %6278 = vmatpush1.msra.mxu0 0.0
    %6279 = vmatprep.subr.mxu0 0.0
    %6280 = vmatpush1.msra.mxu0 0.0
    %6281 = vmatprep.subr.mxu0 0.0
    %6282 = vmatpush1.msra.mxu0 0.0
    %6283 = vmatprep.subr.mxu0 0.0
    %6284 = vmatpush1.msra.mxu0 0.0
    %6285 = vmatprep.subr.mxu0 0.0
    %6286 = vmatpush1.msra.mxu0 0.0
    %6287 = vmatprep.subr.mxu0 0.0
    %6288 = vmatpush1.msra.mxu0 0.0
    %6289 = vmatprep.subr.mxu0 0.0
    %6290 = vmatpush1.msra.mxu0 0.0
    %6291 = vmatprep.subr.mxu0 0.0
    %6292 = vmatpush1.msra.mxu0 0.0
    %6293 = vmatprep.subr.mxu0 0.0
    %6294 = vmatpush1.msra.mxu0 0.0
    %6295 = vmatprep.subr.mxu0 0.0
    %6296 = vmatpush1.msra.mxu0 0.0
    %6297 = vmatprep.subr.mxu0 0.0
    %6298 = vmatpush1.msra.mxu0 0.0
    %6299 = vmatprep.subr.mxu0 0.0
    %6300 = vmatpush1.msra.mxu0 0.0
    %6301 = vmatprep.subr.mxu0 0.0
    %6302 = vmatpush1.msra.mxu0 0.0
    %6303 = vmatprep.subr.mxu0 0.0
    %6304 = vmatpush1.msra.mxu0 0.0
    %6305 = vmatprep.subr.mxu0 0.0
    %6306 = vmatpush1.msra.mxu0 0.0
    %6307 = vmatprep.subr.mxu0 0.0
    %6308 = vmatpush1.msra.mxu0 0.0
    %6309 = vmatprep.subr.mxu0 0.0
    %6310 = vmatpush1.msra.mxu0 0.0
    %6311 = vmatprep.subr.mxu0 0.0
    %6312 = vmatpush1.msra.mxu0 0.0
    %6313 = vmatprep.mubr.f32.mxu0 0.0
    %v6314 = vand.u32 %v6242, 4294901760
    %v6315 = vsub.f32 %v6242, %v6314
    %v6316 = vand.u32 %v6315, 4294901760
    %v6317 = vsub.f32 %v6315, %v6316
    %v6318 = vand.u32 %v6317, 4294901760
    %6319 = vmatmul.mubr.f32.gmra.mrb[0].mxu0 %v6318
    %v6320 = vpop.f32.mrb[0].mxu0
    %v6321 = vadd.f32 0.0, %v6320
    %v6322 = vpop.f32.mrb[0].mxu0
    %6323 = vmatprep.mubr.f32.mxu0 0.0
    %v6324 = vand.u32 %v6245, 4294901760
    %v6325 = vsub.f32 %v6245, %v6324
    %v6326 = vand.u32 %v6325, 4294901760
    %v6327 = vsub.f32 %v6325, %v6326
    %v6328 = vand.u32 %v6327, 4294901760
    %6329 = vmatmul.mubr.f32.gmra.mrb[0].mxu0 %v6328
    %v6330 = vpop.f32.mrb[0].mxu0
    %v6331 = vadd.f32 0.0, %v6330
    %v6332 = vpop.f32.mrb[0].mxu0
    %6333 = vdwg.mxu0
    %6334 = vmatprep.subr.mxu0 0.0
    %v6335 = vand.u32 %v6239, 4294901760
    %v6336 = vsub.f32 %v6239, %v6335
    %v6337 = vand.u32 %v6336, 4294901760
    %v6338 = vsub.f32 %v6336, %v6337
    %v6339 = vand.u32 %v6338, 4294901760
    %6340 = vmatpush1.msra.mxu0 %v6339
    %6341 = vmatprep.subr.mxu0 0.0
    %v6342 = vand.u32 %v6240, 4294901760
    %v6343 = vsub.f32 %v6240, %v6342
    %v6344 = vand.u32 %v6343, 4294901760
    %v6345 = vsub.f32 %v6343, %v6344
    %v6346 = vand.u32 %v6345, 4294901760
    %6347 = vmatpush1.msra.mxu0 %v6346
    %6348 = vmatprep.subr.mxu0 0.0
    %6349 = vmatpush1.msra.mxu0 0.0
    %6350 = vmatprep.subr.mxu0 0.0
    %6351 = vmatpush1.msra.mxu0 0.0
    %6352 = vmatprep.subr.mxu0 0.0
    %6353 = vmatpush1.msra.mxu0 0.0
    %6354 = vmatprep.subr.mxu0 0.0
    %6355 = vmatpush1.msra.mxu0 0.0
    %6356 = vmatprep.subr.mxu0 0.0
    %6357 = vmatpush1.msra.mxu0 0.0
    %6358 = vmatprep.subr.mxu0 0.0
    %6359 = vmatpush1.msra.mxu0 0.0
    %6360 = vmatprep.subr.mxu0 0.0
    %6361 = vmatpush1.msra.mxu0 0.0
    %6362 = vmatprep.subr.mxu0 0.0
    %6363 = vmatpush1.msra.mxu0 0.0
    %6364 = vmatprep.subr.mxu0 0.0
    %6365 = vmatpush1.msra.mxu0 0.0
    %6366 = vmatprep.subr.mxu0 0.0
    %6367 = vmatpush1.msra.mxu0 0.0
    %6368 = vmatprep.subr.mxu0 0.0
    %6369 = vmatpush1.msra.mxu0 0.0
    %6370 = vmatprep.subr.mxu0 0.0
    %6371 = vmatpush1.msra.mxu0 0.0
    %6372 = vmatprep.subr.mxu0 0.0
    %6373 = vmatpush1.msra.mxu0 0.0
    %6374 = vmatprep.subr.mxu0 0.0
    %6375 = vmatpush1.msra.mxu0 0.0
    %6376 = vmatprep.subr.mxu0 0.0
    %6377 = vmatpush1.msra.mxu0 0.0
    %6378 = vmatprep.subr.mxu0 0.0
    %6379 = vmatpush1.msra.mxu0 0.0
    %6380 = vmatprep.subr.mxu0 0.0
    %6381 = vmatpush1.msra.mxu0 0.0
    %6382 = vmatprep.subr.mxu0 0.0
    %6383 = vmatpush1.msra.mxu0 0.0
    %6384 = vmatprep.subr.mxu0 0.0
    %6385 = vmatpush1.msra.mxu0 0.0
    %6386 = vmatprep.subr.mxu0 0.0
    %6387 = vmatpush1.msra.mxu0 0.0
    %6388 = vmatprep.subr.mxu0 0.0
    %6389 = vmatpush1.msra.mxu0 0.0
    %6390 = vmatprep.subr.mxu0 0.0
    %6391 = vmatpush1.msra.mxu0 0.0
    %6392 = vmatprep.subr.mxu0 0.0
    %6393 = vmatpush1.msra.mxu0 0.0
    %6394 = vmatprep.subr.mxu0 0.0
    %6395 = vmatpush1.msra.mxu0 0.0
    %6396 = vmatprep.subr.mxu0 0.0
    %6397 = vmatpush1.msra.mxu0 0.0
    %6398 = vmatprep.subr.mxu0 0.0
    %6399 = vmatpush1.msra.mxu0 0.0
    %6400 = vmatprep.subr.mxu0 0.0
    %6401 = vmatpush1.msra.mxu0 0.0
    %6402 = vmatprep.subr.mxu0 0.0
    %6403 = vmatpush1.msra.mxu0 0.0
    %6404 = vmatprep.subr.mxu0 0.0
    %6405 = vmatpush1.msra.mxu0 0.0
    %6406 = vmatprep.subr.mxu0 0.0
    %6407 = vmatpush1.msra.mxu0 0.0
    %6408 = vmatprep.mubr.f32.mxu0 0.0
    %v6409 = vand.u32 %v6242, 4294901760
    %6410 = vmatmul.mubr.f32.gmra.mrb[0].mxu0 %v6409
    %v6411 = vpop.f32.mrb[0].mxu0
    %v6412 = vadd.f32 %v6321, %v6411
    %v6413 = vpop.f32.mrb[0].mxu0
    %6414 = vmatprep.mubr.f32.mxu0 0.0
    %v6415 = vand.u32 %v6245, 4294901760
    %6416 = vmatmul.mubr.f32.gmra.mrb[0].mxu0 %v6415
    %v6417 = vpop.f32.mrb[0].mxu0
    %v6418 = vadd.f32 %v6331, %v6417
    %v6419 = vpop.f32.mrb[0].mxu0
    %6420 = vdwg.mxu0
    %6421 = vmatprep.subr.mxu0 0.0
    %v6422 = vand.u32 %v6239, 4294901760
    %v6423 = vsub.f32 %v6239, %v6422
    %6424 = vmatpush1.msra.mxu0 %v6423
    %6425 = vmatprep.subr.mxu0 0.0
    %v6426 = vand.u32 %v6240, 4294901760
    %v6427 = vsub.f32 %v6240, %v6426
    %6428 = vmatpush1.msra.mxu0 %v6427
    %6429 = vmatprep.subr.mxu0 0.0
    %6430 = vmatpush1.msra.mxu0 0.0
    %6431 = vmatprep.subr.mxu0 0.0
    %6432 = vmatpush1.msra.mxu0 0.0
    %6433 = vmatprep.subr.mxu0 0.0
    %6434 = vmatpush1.msra.mxu0 0.0
    %6435 = vmatprep.subr.mxu0 0.0
    %6436 = vmatpush1.msra.mxu0 0.0
    %6437 = vmatprep.subr.mxu0 0.0
    %6438 = vmatpush1.msra.mxu0 0.0
    %6439 = vmatprep.subr.mxu0 0.0
    %6440 = vmatpush1.msra.mxu0 0.0
    %6441 = vmatprep.subr.mxu0 0.0
    %6442 = vmatpush1.msra.mxu0 0.0
    %6443 = vmatprep.subr.mxu0 0.0
    %6444 = vmatpush1.msra.mxu0 0.0
    %6445 = vmatprep.subr.mxu0 0.0
    %6446 = vmatpush1.msra.mxu0 0.0
    %6447 = vmatprep.subr.mxu0 0.0
    %6448 = vmatpush1.msra.mxu0 0.0
    %6449 = vmatprep.subr.mxu0 0.0
    %6450 = vmatpush1.msra.mxu0 0.0
    %6451 = vmatprep.subr.mxu0 0.0
    %6452 = vmatpush1.msra.mxu0 0.0
    %6453 = vmatprep.subr.mxu0 0.0
    %6454 = vmatpush1.msra.mxu0 0.0
    %6455 = vmatprep.subr.mxu0 0.0
    %6456 = vmatpush1.msra.mxu0 0.0
    %6457 = vmatprep.subr.mxu0 0.0
    %6458 = vmatpush1.msra.mxu0 0.0
    %6459 = vmatprep.subr.mxu0 0.0
    %6460 = vmatpush1.msra.mxu0 0.0
    %6461 = vmatprep.subr.mxu0 0.0
    %6462 = vmatpush1.msra.mxu0 0.0
    %6463 = vmatprep.subr.mxu0 0.0
    %6464 = vmatpush1.msra.mxu0 0.0
    %6465 = vmatprep.subr.mxu0 0.0
    %6466 = vmatpush1.msra.mxu0 0.0
    %6467 = vmatprep.subr.mxu0 0.0
    %6468 = vmatpush1.msra.mxu0 0.0
    %6469 = vmatprep.subr.mxu0 0.0
    %6470 = vmatpush1.msra.mxu0 0.0
    %6471 = vmatprep.subr.mxu0 0.0
    %6472 = vmatpush1.msra.mxu0 0.0
    %6473 = vmatprep.subr.mxu0 0.0
    %6474 = vmatpush1.msra.mxu0 0.0
    %6475 = vmatprep.subr.mxu0 0.0
    %6476 = vmatpush1.msra.mxu0 0.0
    %6477 = vmatprep.subr.mxu0 0.0
    %6478 = vmatpush1.msra.mxu0 0.0
    %6479 = vmatprep.subr.mxu0 0.0
    %6480 = vmatpush1.msra.mxu0 0.0
    %6481 = vmatprep.subr.mxu0 0.0
    %6482 = vmatpush1.msra.mxu0 0.0
    %6483 = vmatprep.subr.mxu0 0.0
    %6484 = vmatpush1.msra.mxu0 0.0
    %6485 = vmatprep.subr.mxu0 0.0
    %6486 = vmatpush1.msra.mxu0 0.0
    %6487 = vmatprep.subr.mxu0 0.0
    %6488 = vmatpush1.msra.mxu0 0.0
    %6489 = vmatprep.mubr.f32.mxu0 0.0
    %v6490 = vand.u32 %v6242, 4294901760
    %v6491 = vsub.f32 %v6242, %v6490
    %6492 = vmatmul.mubr.f32.gmra.mrb[0].mxu0 %v6491
    %v6493 = vpop.f32.mrb[0].mxu0
    %v6494 = vadd.f32 %v6412, %v6493
    %v6495 = vpop.f32.mrb[0].mxu0
    %6496 = vmatprep.mubr.f32.mxu0 0.0
    %v6497 = vand.u32 %v6245, 4294901760
    %v6498 = vsub.f32 %v6245, %v6497
    %6499 = vmatmul.mubr.f32.gmra.mrb[0].mxu0 %v6498
    %v6500 = vpop.f32.mrb[0].mxu0
    %v6501 = vadd.f32 %v6418, %v6500
    %v6502 = vpop.f32.mrb[0].mxu0
    %6503 = vdwg.mxu0
    %6504 = vmatprep.subr.mxu0 0.0
    %v6505 = vand.u32 %v6239, 4294901760
    %6506 = vmatpush1.msra.mxu0 %v6505
    %6507 = vmatprep.subr.mxu0 0.0
    %v6508 = vand.u32 %v6240, 4294901760
    %6509 = vmatpush1.msra.mxu0 %v6508
    %6510 = vmatprep.subr.mxu0 0.0
    %6511 = vmatpush1.msra.mxu0 0.0
    %6512 = vmatprep.subr.mxu0 0.0
    %6513 = vmatpush1.msra.mxu0 0.0
    %6514 = vmatprep.subr.mxu0 0.0
    %6515 = vmatpush1.msra.mxu0 0.0
    %6516 = vmatprep.subr.mxu0 0.0
    %6517 = vmatpush1.msra.mxu0 0.0
    %6518 = vmatprep.subr.mxu0 0.0
    %6519 = vmatpush1.msra.mxu0 0.0
    %6520 = vmatprep.subr.mxu0 0.0
    %6521 = vmatpush1.msra.mxu0 0.0
    %6522 = vmatprep.subr.mxu0 0.0
    %6523 = vmatpush1.msra.mxu0 0.0
    %6524 = vmatprep.subr.mxu0 0.0
    %6525 = vmatpush1.msra.mxu0 0.0
    %6526 = vmatprep.subr.mxu0 0.0
    %6527 = vmatpush1.msra.mxu0 0.0
    %6528 = vmatprep.subr.mxu0 0.0
    %6529 = vmatpush1.msra.mxu0 0.0
    %6530 = vmatprep.subr.mxu0 0.0
    %6531 = vmatpush1.msra.mxu0 0.0
    %6532 = vmatprep.subr.mxu0 0.0
    %6533 = vmatpush1.msra.mxu0 0.0
    %6534 = vmatprep.subr.mxu0 0.0
    %6535 = vmatpush1.msra.mxu0 0.0
    %6536 = vmatprep.subr.mxu0 0.0
    %6537 = vmatpush1.msra.mxu0 0.0
    %6538 = vmatprep.subr.mxu0 0.0
    %6539 = vmatpush1.msra.mxu0 0.0
    %6540 = vmatprep.subr.mxu0 0.0
    %6541 = vmatpush1.msra.mxu0 0.0
    %6542 = vmatprep.subr.mxu0 0.0
    %6543 = vmatpush1.msra.mxu0 0.0
    %6544 = vmatprep.subr.mxu0 0.0
    %6545 = vmatpush1.msra.mxu0 0.0
    %6546 = vmatprep.subr.mxu0 0.0
    %6547 = vmatpush1.msra.mxu0 0.0
    %6548 = vmatprep.subr.mxu0 0.0
    %6549 = vmatpush1.msra.mxu0 0.0
    %6550 = vmatprep.subr.mxu0 0.0
    %6551 = vmatpush1.msra.mxu0 0.0
    %6552 = vmatprep.subr.mxu0 0.0
    %6553 = vmatpush1.msra.mxu0 0.0
    %6554 = vmatprep.subr.mxu0 0.0
    %6555 = vmatpush1.msra.mxu0 0.0
    %6556 = vmatprep.subr.mxu0 0.0
    %6557 = vmatpush1.msra.mxu0 0.0
    %6558 = vmatprep.subr.mxu0 0.0
    %6559 = vmatpush1.msra.mxu0 0.0
    %6560 = vmatprep.subr.mxu0 0.0
    %6561 = vmatpush1.msra.mxu0 0.0
    %6562 = vmatprep.subr.mxu0 0.0
    %6563 = vmatpush1.msra.mxu0 0.0
    %6564 = vmatprep.subr.mxu0 0.0
    %6565 = vmatpush1.msra.mxu0 0.0
    %6566 = vmatprep.subr.mxu0 0.0
    %6567 = vmatpush1.msra.mxu0 0.0
    %6568 = vmatprep.subr.mxu0 0.0
    %6569 = vmatpush1.msra.mxu0 0.0
    %6570 = vmatprep.mubr.f32.mxu0 0.0
    %v6571 = vand.u32 %v6242, 4294901760
    %v6572 = vsub.f32 %v6242, %v6571
    %v6573 = vand.u32 %v6572, 4294901760
    %6574 = vmatmul.mubr.f32.gmra.mrb[0].mxu0 %v6573
    %v6575 = vpop.f32.mrb[0].mxu0
    %v6576 = vadd.f32 %v6494, %v6575
    %v6577 = vpop.f32.mrb[0].mxu0
    %6578 = vmatprep.mubr.f32.mxu0 0.0
    %v6579 = vand.u32 %v6245, 4294901760
    %v6580 = vsub.f32 %v6245, %v6579
    %v6581 = vand.u32 %v6580, 4294901760
    %6582 = vmatmul.mubr.f32.gmra.mrb[0].mxu0 %v6581
    %v6583 = vpop.f32.mrb[0].mxu0
    %v6584 = vadd.f32 %v6501, %v6583
    %v6585 = vpop.f32.mrb[0].mxu0
    %6586 = vdwg.mxu0
    %6587 = vmatprep.subr.mxu0 0.0
    %v6588 = vand.u32 %v6239, 4294901760
    %v6589 = vsub.f32 %v6239, %v6588
    %v6590 = vand.u32 %v6589, 4294901760
    %6591 = vmatpush1.msra.mxu0 %v6590
    %6592 = vmatprep.subr.mxu0 0.0
    %v6593 = vand.u32 %v6240, 4294901760
    %v6594 = vsub.f32 %v6240, %v6593
    %v6595 = vand.u32 %v6594, 4294901760
    %6596 = vmatpush1.msra.mxu0 %v6595
    %6597 = vmatprep.subr.mxu0 0.0
    %6598 = vmatpush1.msra.mxu0 0.0
    %6599 = vmatprep.subr.mxu0 0.0
    %6600 = vmatpush1.msra.mxu0 0.0
    %6601 = vmatprep.subr.mxu0 0.0
    %6602 = vmatpush1.msra.mxu0 0.0
    %6603 = vmatprep.subr.mxu0 0.0
    %6604 = vmatpush1.msra.mxu0 0.0
    %6605 = vmatprep.subr.mxu0 0.0
    %6606 = vmatpush1.msra.mxu0 0.0
    %6607 = vmatprep.subr.mxu0 0.0
    %6608 = vmatpush1.msra.mxu0 0.0
    %6609 = vmatprep.subr.mxu0 0.0
    %6610 = vmatpush1.msra.mxu0 0.0
    %6611 = vmatprep.subr.mxu0 0.0
    %6612 = vmatpush1.msra.mxu0 0.0
    %6613 = vmatprep.subr.mxu0 0.0
    %6614 = vmatpush1.msra.mxu0 0.0
    %6615 = vmatprep.subr.mxu0 0.0
    %6616 = vmatpush1.msra.mxu0 0.0
    %6617 = vmatprep.subr.mxu0 0.0
    %6618 = vmatpush1.msra.mxu0 0.0
    %6619 = vmatprep.subr.mxu0 0.0
    %6620 = vmatpush1.msra.mxu0 0.0
    %6621 = vmatprep.subr.mxu0 0.0
    %6622 = vmatpush1.msra.mxu0 0.0
    %6623 = vmatprep.subr.mxu0 0.0
    %6624 = vmatpush1.msra.mxu0 0.0
    %6625 = vmatprep.subr.mxu0 0.0
    %6626 = vmatpush1.msra.mxu0 0.0
    %6627 = vmatprep.subr.mxu0 0.0
    %6628 = vmatpush1.msra.mxu0 0.0
    %6629 = vmatprep.subr.mxu0 0.0
    %6630 = vmatpush1.msra.mxu0 0.0
    %6631 = vmatprep.subr.mxu0 0.0
    %6632 = vmatpush1.msra.mxu0 0.0
    %6633 = vmatprep.subr.mxu0 0.0
    %6634 = vmatpush1.msra.mxu0 0.0
    %6635 = vmatprep.subr.mxu0 0.0
    %6636 = vmatpush1.msra.mxu0 0.0
    %6637 = vmatprep.subr.mxu0 0.0
    %6638 = vmatpush1.msra.mxu0 0.0
    %6639 = vmatprep.subr.mxu0 0.0
    %6640 = vmatpush1.msra.mxu0 0.0
    %6641 = vmatprep.subr.mxu0 0.0
    %6642 = vmatpush1.msra.mxu0 0.0
    %6643 = vmatprep.subr.mxu0 0.0
    %6644 = vmatpush1.msra.mxu0 0.0
    %6645 = vmatprep.subr.mxu0 0.0
    %6646 = vmatpush1.msra.mxu0 0.0
    %6647 = vmatprep.subr.mxu0 0.0
    %6648 = vmatpush1.msra.mxu0 0.0
    %6649 = vmatprep.subr.mxu0 0.0
    %6650 = vmatpush1.msra.mxu0 0.0
    %6651 = vmatprep.subr.mxu0 0.0
    %6652 = vmatpush1.msra.mxu0 0.0
    %6653 = vmatprep.subr.mxu0 0.0
    %6654 = vmatpush1.msra.mxu0 0.0
    %6655 = vmatprep.subr.mxu0 0.0
    %6656 = vmatpush1.msra.mxu0 0.0
    %6657 = vmatprep.mubr.f32.mxu0 0.0
    %v6658 = vand.u32 %v6242, 4294901760
    %6659 = vmatmul.mubr.f32.gmra.mrb[0].mxu0 %v6658
    %v6660 = vpop.f32.mrb[0].mxu0
    %v6661 = vadd.f32 %v6576, %v6660
    %v6662 = vpop.f32.mrb[0].mxu0
    %6663 = vmatprep.mubr.f32.mxu0 0.0
    %v6664 = vand.u32 %v6245, 4294901760
    %6665 = vmatmul.mubr.f32.gmra.mrb[0].mxu0 %v6664
    %v6666 = vpop.f32.mrb[0].mxu0
    %v6667 = vadd.f32 %v6584, %v6666
    %v6668 = vpop.f32.mrb[0].mxu0
    %6669 = vdwg.mxu0
    %6670 = vmatprep.subr.mxu0 0.0
    %v6671 = vand.u32 %v6239, 4294901760
    %6672 = vmatpush1.msra.mxu0 %v6671
    %6673 = vmatprep.subr.mxu0 0.0
    %v6674 = vand.u32 %v6240, 4294901760
    %6675 = vmatpush1.msra.mxu0 %v6674
    %6676 = vmatprep.subr.mxu0 0.0
    %6677 = vmatpush1.msra.mxu0 0.0
    %6678 = vmatprep.subr.mxu0 0.0
    %6679 = vmatpush1.msra.mxu0 0.0
    %6680 = vmatprep.subr.mxu0 0.0
    %6681 = vmatpush1.msra.mxu0 0.0
    %6682 = vmatprep.subr.mxu0 0.0
    %6683 = vmatpush1.msra.mxu0 0.0
    %6684 = vmatprep.subr.mxu0 0.0
    %6685 = vmatpush1.msra.mxu0 0.0
    %6686 = vmatprep.subr.mxu0 0.0
    %6687 = vmatpush1.msra.mxu0 0.0
    %6688 = vmatprep.subr.mxu0 0.0
    %6689 = vmatpush1.msra.mxu0 0.0
    %6690 = vmatprep.subr.mxu0 0.0
    %6691 = vmatpush1.msra.mxu0 0.0
    %6692 = vmatprep.subr.mxu0 0.0
    %6693 = vmatpush1.msra.mxu0 0.0
    %6694 = vmatprep.subr.mxu0 0.0
    %6695 = vmatpush1.msra.mxu0 0.0
    %6696 = vmatprep.subr.mxu0 0.0
    %6697 = vmatpush1.msra.mxu0 0.0
    %6698 = vmatprep.subr.mxu0 0.0
    %6699 = vmatpush1.msra.mxu0 0.0
    %6700 = vmatprep.subr.mxu0 0.0
    %6701 = vmatpush1.msra.mxu0 0.0
    %6702 = vmatprep.subr.mxu0 0.0
    %6703 = vmatpush1.msra.mxu0 0.0
    %6704 = vmatprep.subr.mxu0 0.0
    %6705 = vmatpush1.msra.mxu0 0.0
    %6706 = vmatprep.subr.mxu0 0.0
    %6707 = vmatpush1.msra.mxu0 0.0
    %6708 = vmatprep.subr.mxu0 0.0
    %6709 = vmatpush1.msra.mxu0 0.0
    %6710 = vmatprep.subr.mxu0 0.0
    %6711 = vmatpush1.msra.mxu0 0.0
    %6712 = vmatprep.subr.mxu0 0.0
    %6713 = vmatpush1.msra.mxu0 0.0
    %6714 = vmatprep.subr.mxu0 0.0
    %6715 = vmatpush1.msra.mxu0 0.0
    %6716 = vmatprep.subr.mxu0 0.0
    %6717 = vmatpush1.msra.mxu0 0.0
    %6718 = vmatprep.subr.mxu0 0.0
    %6719 = vmatpush1.msra.mxu0 0.0
    %6720 = vmatprep.subr.mxu0 0.0
    %6721 = vmatpush1.msra.mxu0 0.0
    %6722 = vmatprep.subr.mxu0 0.0
    %6723 = vmatpush1.msra.mxu0 0.0
    %6724 = vmatprep.subr.mxu0 0.0
    %6725 = vmatpush1.msra.mxu0 0.0
    %6726 = vmatprep.subr.mxu0 0.0
    %6727 = vmatpush1.msra.mxu0 0.0
    %6728 = vmatprep.subr.mxu0 0.0
    %6729 = vmatpush1.msra.mxu0 0.0
    %6730 = vmatprep.subr.mxu0 0.0
    %6731 = vmatpush1.msra.mxu0 0.0
    %6732 = vmatprep.subr.mxu0 0.0
    %6733 = vmatpush1.msra.mxu0 0.0
    %6734 = vmatprep.subr.mxu0 0.0
    %6735 = vmatpush1.msra.mxu0 0.0
    %6736 = vmatprep.mubr.f32.mxu0 0.0
    %v6737 = vand.u32 %v6242, 4294901760
    %6738 = vmatmul.mubr.f32.gmra.mrb[0].mxu0 %v6737
    %v6739 = vpop.f32.mrb[0].mxu0
    %v6740 = vadd.f32 %v6661, %v6739
    %v6741 = vpop.f32.mrb[0].mxu0
    %6742 = vmatprep.mubr.f32.mxu0 0.0
    %v6743 = vand.u32 %v6245, 4294901760
    %6744 = vmatmul.mubr.f32.gmra.mrb[0].mxu0 %v6743
    %v6745 = vpop.f32.mrb[0].mxu0
    %v6746 = vadd.f32 %v6667, %v6745
    %v6747 = vpop.f32.mrb[0].mxu0
    %6748 = vdwg.mxu0
    %v6749 = vadd.f32 %v6235, %v6740
    %v6750 = vadd.f32 %v6236, %v6746
    %v6751 = vld [vmem:[%s3670 + $0x6] sm:$0xff]
    %v6752 = vld [vmem:[%s3670 + $0xe] sm:$0xff]
    %v6753 = vld [vmem:[%s3141] sm:$0xff]
    %v6754 = vld [vmem:[%s3141 + $0x8] sm:$0xff]
    %v6756 = vsel %vm49, %v6751, 0
    %v6759 = vsel %vm49, %v6752, 0
    %6761 = vmatprep.subr.mxu0 0.0
    %v6762 = vand.u32 %v6753, 4294901760
    %6763 = vmatpush1.msra.mxu0 %v6762
    %6764 = vmatprep.subr.mxu0 0.0
    %v6765 = vand.u32 %v6754, 4294901760
    %6766 = vmatpush1.msra.mxu0 %v6765
    %6767 = vmatprep.subr.mxu0 0.0
    %6768 = vmatpush1.msra.mxu0 0.0
    %6769 = vmatprep.subr.mxu0 0.0
    %6770 = vmatpush1.msra.mxu0 0.0
    %6771 = vmatprep.subr.mxu0 0.0
    %6772 = vmatpush1.msra.mxu0 0.0
    %6773 = vmatprep.subr.mxu0 0.0
    %6774 = vmatpush1.msra.mxu0 0.0
    %6775 = vmatprep.subr.mxu0 0.0
    %6776 = vmatpush1.msra.mxu0 0.0
    %6777 = vmatprep.subr.mxu0 0.0
    %6778 = vmatpush1.msra.mxu0 0.0
    %6779 = vmatprep.subr.mxu0 0.0
    %6780 = vmatpush1.msra.mxu0 0.0
    %6781 = vmatprep.subr.mxu0 0.0
    %6782 = vmatpush1.msra.mxu0 0.0
    %6783 = vmatprep.subr.mxu0 0.0
    %6784 = vmatpush1.msra.mxu0 0.0
    %6785 = vmatprep.subr.mxu0 0.0
    %6786 = vmatpush1.msra.mxu0 0.0
    %6787 = vmatprep.subr.mxu0 0.0
    %6788 = vmatpush1.msra.mxu0 0.0
    %6789 = vmatprep.subr.mxu0 0.0
    %6790 = vmatpush1.msra.mxu0 0.0
    %6791 = vmatprep.subr.mxu0 0.0
    %6792 = vmatpush1.msra.mxu0 0.0
    %6793 = vmatprep.subr.mxu0 0.0
    %6794 = vmatpush1.msra.mxu0 0.0
    %6795 = vmatprep.subr.mxu0 0.0
    %6796 = vmatpush1.msra.mxu0 0.0
    %6797 = vmatprep.subr.mxu0 0.0
    %6798 = vmatpush1.msra.mxu0 0.0
    %6799 = vmatprep.subr.mxu0 0.0
    %6800 = vmatpush1.msra.mxu0 0.0
    %6801 = vmatprep.subr.mxu0 0.0
    %6802 = vmatpush1.msra.mxu0 0.0
    %6803 = vmatprep.subr.mxu0 0.0
    %6804 = vmatpush1.msra.mxu0 0.0
    %6805 = vmatprep.subr.mxu0 0.0
    %6806 = vmatpush1.msra.mxu0 0.0
    %6807 = vmatprep.subr.mxu0 0.0
    %6808 = vmatpush1.msra.mxu0 0.0
    %6809 = vmatprep.subr.mxu0 0.0
    %6810 = vmatpush1.msra.mxu0 0.0
    %6811 = vmatprep.subr.mxu0 0.0
    %6812 = vmatpush1.msra.mxu0 0.0
    %6813 = vmatprep.subr.mxu0 0.0
    %6814 = vmatpush1.msra.mxu0 0.0
    %6815 = vmatprep.subr.mxu0 0.0
    %6816 = vmatpush1.msra.mxu0 0.0
    %6817 = vmatprep.subr.mxu0 0.0
    %6818 = vmatpush1.msra.mxu0 0.0
    %6819 = vmatprep.subr.mxu0 0.0
    %6820 = vmatpush1.msra.mxu0 0.0
    %6821 = vmatprep.subr.mxu0 0.0
    %6822 = vmatpush1.msra.mxu0 0.0
    %6823 = vmatprep.subr.mxu0 0.0
    %6824 = vmatpush1.msra.mxu0 0.0
    %6825 = vmatprep.subr.mxu0 0.0
    %6826 = vmatpush1.msra.mxu0 0.0
    %6827 = vmatprep.mubr.f32.mxu0 0.0
    %v6828 = vand.u32 %v6756, 4294901760
    %v6829 = vsub.f32 %v6756, %v6828
    %v6830 = vand.u32 %v6829, 4294901760
    %v6831 = vsub.f32 %v6829, %v6830
    %v6832 = vand.u32 %v6831, 4294901760
    %6833 = vmatmul.mubr.f32.gmra.mrb[0].mxu0 %v6832
    %v6834 = vpop.f32.mrb[0].mxu0
    %v6835 = vadd.f32 0.0, %v6834
    %v6836 = vpop.f32.mrb[0].mxu0
    %6837 = vmatprep.mubr.f32.mxu0 0.0
    %v6838 = vand.u32 %v6759, 4294901760
    %v6839 = vsub.f32 %v6759, %v6838
    %v6840 = vand.u32 %v6839, 4294901760
    %v6841 = vsub.f32 %v6839, %v6840
    %v6842 = vand.u32 %v6841, 4294901760
    %6843 = vmatmul.mubr.f32.gmra.mrb[0].mxu0 %v6842
    %v6844 = vpop.f32.mrb[0].mxu0
    %v6845 = vadd.f32 0.0, %v6844
    %v6846 = vpop.f32.mrb[0].mxu0
    %6847 = vdwg.mxu0
    %6848 = vmatprep.subr.mxu0 0.0
    %v6849 = vand.u32 %v6753, 4294901760
    %v6850 = vsub.f32 %v6753, %v6849
    %v6851 = vand.u32 %v6850, 4294901760
    %v6852 = vsub.f32 %v6850, %v6851
    %v6853 = vand.u32 %v6852, 4294901760
    %6854 = vmatpush1.msra.mxu0 %v6853
    %6855 = vmatprep.subr.mxu0 0.0
    %v6856 = vand.u32 %v6754, 4294901760
    %v6857 = vsub.f32 %v6754, %v6856
    %v6858 = vand.u32 %v6857, 4294901760
    %v6859 = vsub.f32 %v6857, %v6858
    %v6860 = vand.u32 %v6859, 4294901760
    %6861 = vmatpush1.msra.mxu0 %v6860
    %6862 = vmatprep.subr.mxu0 0.0
    %6863 = vmatpush1.msra.mxu0 0.0
    %6864 = vmatprep.subr.mxu0 0.0
    %6865 = vmatpush1.msra.mxu0 0.0
    %6866 = vmatprep.subr.mxu0 0.0
    %6867 = vmatpush1.msra.mxu0 0.0
    %6868 = vmatprep.subr.mxu0 0.0
    %6869 = vmatpush1.msra.mxu0 0.0
    %6870 = vmatprep.subr.mxu0 0.0
    %6871 = vmatpush1.msra.mxu0 0.0
    %6872 = vmatprep.subr.mxu0 0.0
    %6873 = vmatpush1.msra.mxu0 0.0
    %6874 = vmatprep.subr.mxu0 0.0
    %6875 = vmatpush1.msra.mxu0 0.0
    %6876 = vmatprep.subr.mxu0 0.0
    %6877 = vmatpush1.msra.mxu0 0.0
    %6878 = vmatprep.subr.mxu0 0.0
    %6879 = vmatpush1.msra.mxu0 0.0
    %6880 = vmatprep.subr.mxu0 0.0
    %6881 = vmatpush1.msra.mxu0 0.0
    %6882 = vmatprep.subr.mxu0 0.0
    %6883 = vmatpush1.msra.mxu0 0.0
    %6884 = vmatprep.subr.mxu0 0.0
    %6885 = vmatpush1.msra.mxu0 0.0
    %6886 = vmatprep.subr.mxu0 0.0
    %6887 = vmatpush1.msra.mxu0 0.0
    %6888 = vmatprep.subr.mxu0 0.0
    %6889 = vmatpush1.msra.mxu0 0.0
    %6890 = vmatprep.subr.mxu0 0.0
    %6891 = vmatpush1.msra.mxu0 0.0
    %6892 = vmatprep.subr.mxu0 0.0
    %6893 = vmatpush1.msra.mxu0 0.0
    %6894 = vmatprep.subr.mxu0 0.0
    %6895 = vmatpush1.msra.mxu0 0.0
    %6896 = vmatprep.subr.mxu0 0.0
    %6897 = vmatpush1.msra.mxu0 0.0
    %6898 = vmatprep.subr.mxu0 0.0
    %6899 = vmatpush1.msra.mxu0 0.0
    %6900 = vmatprep.subr.mxu0 0.0
    %6901 = vmatpush1.msra.mxu0 0.0
    %6902 = vmatprep.subr.mxu0 0.0
    %6903 = vmatpush1.msra.mxu0 0.0
    %6904 = vmatprep.subr.mxu0 0.0
    %6905 = vmatpush1.msra.mxu0 0.0
    %6906 = vmatprep.subr.mxu0 0.0
    %6907 = vmatpush1.msra.mxu0 0.0
    %6908 = vmatprep.subr.mxu0 0.0
    %6909 = vmatpush1.msra.mxu0 0.0
    %6910 = vmatprep.subr.mxu0 0.0
    %6911 = vmatpush1.msra.mxu0 0.0
    %6912 = vmatprep.subr.mxu0 0.0
    %6913 = vmatpush1.msra.mxu0 0.0
    %6914 = vmatprep.subr.mxu0 0.0
    %6915 = vmatpush1.msra.mxu0 0.0
    %6916 = vmatprep.subr.mxu0 0.0
    %6917 = vmatpush1.msra.mxu0 0.0
    %6918 = vmatprep.subr.mxu0 0.0
    %6919 = vmatpush1.msra.mxu0 0.0
    %6920 = vmatprep.subr.mxu0 0.0
    %6921 = vmatpush1.msra.mxu0 0.0
    %6922 = vmatprep.mubr.f32.mxu0 0.0
    %v6923 = vand.u32 %v6756, 4294901760
    %6924 = vmatmul.mubr.f32.gmra.mrb[0].mxu0 %v6923
    %v6925 = vpop.f32.mrb[0].mxu0
    %v6926 = vadd.f32 %v6835, %v6925
    %v6927 = vpop.f32.mrb[0].mxu0
    %6928 = vmatprep.mubr.f32.mxu0 0.0
    %v6929 = vand.u32 %v6759, 4294901760
    %6930 = vmatmul.mubr.f32.gmra.mrb[0].mxu0 %v6929
    %v6931 = vpop.f32.mrb[0].mxu0
    %v6932 = vadd.f32 %v6845, %v6931
    %v6933 = vpop.f32.mrb[0].mxu0
    %6934 = vdwg.mxu0
    %6935 = vmatprep.subr.mxu0 0.0
    %v6936 = vand.u32 %v6753, 4294901760
    %v6937 = vsub.f32 %v6753, %v6936
    %6938 = vmatpush1.msra.mxu0 %v6937
    %6939 = vmatprep.subr.mxu0 0.0
    %v6940 = vand.u32 %v6754, 4294901760
    %v6941 = vsub.f32 %v6754, %v6940
    %6942 = vmatpush1.msra.mxu0 %v6941
    %6943 = vmatprep.subr.mxu0 0.0
    %6944 = vmatpush1.msra.mxu0 0.0
    %6945 = vmatprep.subr.mxu0 0.0
    %6946 = vmatpush1.msra.mxu0 0.0
    %6947 = vmatprep.subr.mxu0 0.0
    %6948 = vmatpush1.msra.mxu0 0.0
    %6949 = vmatprep.subr.mxu0 0.0
    %6950 = vmatpush1.msra.mxu0 0.0
    %6951 = vmatprep.subr.mxu0 0.0
    %6952 = vmatpush1.msra.mxu0 0.0
    %6953 = vmatprep.subr.mxu0 0.0
    %6954 = vmatpush1.msra.mxu0 0.0
    %6955 = vmatprep.subr.mxu0 0.0
    %6956 = vmatpush1.msra.mxu0 0.0
    %6957 = vmatprep.subr.mxu0 0.0
    %6958 = vmatpush1.msra.mxu0 0.0
    %6959 = vmatprep.subr.mxu0 0.0
    %6960 = vmatpush1.msra.mxu0 0.0
    %6961 = vmatprep.subr.mxu0 0.0
    %6962 = vmatpush1.msra.mxu0 0.0
    %6963 = vmatprep.subr.mxu0 0.0
    %6964 = vmatpush1.msra.mxu0 0.0
    %6965 = vmatprep.subr.mxu0 0.0
    %6966 = vmatpush1.msra.mxu0 0.0
    %6967 = vmatprep.subr.mxu0 0.0
    %6968 = vmatpush1.msra.mxu0 0.0
    %6969 = vmatprep.subr.mxu0 0.0
    %6970 = vmatpush1.msra.mxu0 0.0
    %6971 = vmatprep.subr.mxu0 0.0
    %6972 = vmatpush1.msra.mxu0 0.0
    %6973 = vmatprep.subr.mxu0 0.0
    %6974 = vmatpush1.msra.mxu0 0.0
    %6975 = vmatprep.subr.mxu0 0.0
    %6976 = vmatpush1.msra.mxu0 0.0
    %6977 = vmatprep.subr.mxu0 0.0
    %6978 = vmatpush1.msra.mxu0 0.0
    %6979 = vmatprep.subr.mxu0 0.0
    %6980 = vmatpush1.msra.mxu0 0.0
    %6981 = vmatprep.subr.mxu0 0.0
    %6982 = vmatpush1.msra.mxu0 0.0
    %6983 = vmatprep.subr.mxu0 0.0
    %6984 = vmatpush1.msra.mxu0 0.0
    %6985 = vmatprep.subr.mxu0 0.0
    %6986 = vmatpush1.msra.mxu0 0.0
    %6987 = vmatprep.subr.mxu0 0.0
    %6988 = vmatpush1.msra.mxu0 0.0
    %6989 = vmatprep.subr.mxu0 0.0
    %6990 = vmatpush1.msra.mxu0 0.0
    %6991 = vmatprep.subr.mxu0 0.0
    %6992 = vmatpush1.msra.mxu0 0.0
    %6993 = vmatprep.subr.mxu0 0.0
    %6994 = vmatpush1.msra.mxu0 0.0
    %6995 = vmatprep.subr.mxu0 0.0
    %6996 = vmatpush1.msra.mxu0 0.0
    %6997 = vmatprep.subr.mxu0 0.0
    %6998 = vmatpush1.msra.mxu0 0.0
    %6999 = vmatprep.subr.mxu0 0.0
    %7000 = vmatpush1.msra.mxu0 0.0
    %7001 = vmatprep.subr.mxu0 0.0
    %7002 = vmatpush1.msra.mxu0 0.0
    %7003 = vmatprep.mubr.f32.mxu0 0.0
    %v7004 = vand.u32 %v6756, 4294901760
    %v7005 = vsub.f32 %v6756, %v7004
    %7006 = vmatmul.mubr.f32.gmra.mrb[0].mxu0 %v7005
    %v7007 = vpop.f32.mrb[0].mxu0
    %v7008 = vadd.f32 %v6926, %v7007
    %v7009 = vpop.f32.mrb[0].mxu0
    %7010 = vmatprep.mubr.f32.mxu0 0.0
    %v7011 = vand.u32 %v6759, 4294901760
    %v7012 = vsub.f32 %v6759, %v7011
    %7013 = vmatmul.mubr.f32.gmra.mrb[0].mxu0 %v7012
    %v7014 = vpop.f32.mrb[0].mxu0
    %v7015 = vadd.f32 %v6932, %v7014
    %v7016 = vpop.f32.mrb[0].mxu0
    %7017 = vdwg.mxu0
    %7018 = vmatprep.subr.mxu0 0.0
    %v7019 = vand.u32 %v6753, 4294901760
    %7020 = vmatpush1.msra.mxu0 %v7019
    %7021 = vmatprep.subr.mxu0 0.0
    %v7022 = vand.u32 %v6754, 4294901760
    %7023 = vmatpush1.msra.mxu0 %v7022
    %7024 = vmatprep.subr.mxu0 0.0
    %7025 = vmatpush1.msra.mxu0 0.0
    %7026 = vmatprep.subr.mxu0 0.0
    %7027 = vmatpush1.msra.mxu0 0.0
    %7028 = vmatprep.subr.mxu0 0.0
    %7029 = vmatpush1.msra.mxu0 0.0
    %7030 = vmatprep.subr.mxu0 0.0
    %7031 = vmatpush1.msra.mxu0 0.0
    %7032 = vmatprep.subr.mxu0 0.0
    %7033 = vmatpush1.msra.mxu0 0.0
    %7034 = vmatprep.subr.mxu0 0.0
    %7035 = vmatpush1.msra.mxu0 0.0
    %7036 = vmatprep.subr.mxu0 0.0
    %7037 = vmatpush1.msra.mxu0 0.0
    %7038 = vmatprep.subr.mxu0 0.0
    %7039 = vmatpush1.msra.mxu0 0.0
    %7040 = vmatprep.subr.mxu0 0.0
    %7041 = vmatpush1.msra.mxu0 0.0
    %7042 = vmatprep.subr.mxu0 0.0
    %7043 = vmatpush1.msra.mxu0 0.0
    %7044 = vmatprep.subr.mxu0 0.0
    %7045 = vmatpush1.msra.mxu0 0.0
    %7046 = vmatprep.subr.mxu0 0.0
    %7047 = vmatpush1.msra.mxu0 0.0
    %7048 = vmatprep.subr.mxu0 0.0
    %7049 = vmatpush1.msra.mxu0 0.0
    %7050 = vmatprep.subr.mxu0 0.0
    %7051 = vmatpush1.msra.mxu0 0.0
    %7052 = vmatprep.subr.mxu0 0.0
    %7053 = vmatpush1.msra.mxu0 0.0
    %7054 = vmatprep.subr.mxu0 0.0
    %7055 = vmatpush1.msra.mxu0 0.0
    %7056 = vmatprep.subr.mxu0 0.0
    %7057 = vmatpush1.msra.mxu0 0.0
    %7058 = vmatprep.subr.mxu0 0.0
    %7059 = vmatpush1.msra.mxu0 0.0
    %7060 = vmatprep.subr.mxu0 0.0
    %7061 = vmatpush1.msra.mxu0 0.0
    %7062 = vmatprep.subr.mxu0 0.0
    %7063 = vmatpush1.msra.mxu0 0.0
    %7064 = vmatprep.subr.mxu0 0.0
    %7065 = vmatpush1.msra.mxu0 0.0
    %7066 = vmatprep.subr.mxu0 0.0
    %7067 = vmatpush1.msra.mxu0 0.0
    %7068 = vmatprep.subr.mxu0 0.0
    %7069 = vmatpush1.msra.mxu0 0.0
    %7070 = vmatprep.subr.mxu0 0.0
    %7071 = vmatpush1.msra.mxu0 0.0
    %7072 = vmatprep.subr.mxu0 0.0
    %7073 = vmatpush1.msra.mxu0 0.0
    %7074 = vmatprep.subr.mxu0 0.0
    %7075 = vmatpush1.msra.mxu0 0.0
    %7076 = vmatprep.subr.mxu0 0.0
    %7077 = vmatpush1.msra.mxu0 0.0
    %7078 = vmatprep.subr.mxu0 0.0
    %7079 = vmatpush1.msra.mxu0 0.0
    %7080 = vmatprep.subr.mxu0 0.0
    %7081 = vmatpush1.msra.mxu0 0.0
    %7082 = vmatprep.subr.mxu0 0.0
    %7083 = vmatpush1.msra.mxu0 0.0
    %7084 = vmatprep.mubr.f32.mxu0 0.0
    %v7085 = vand.u32 %v6756, 4294901760
    %v7086 = vsub.f32 %v6756, %v7085
    %v7087 = vand.u32 %v7086, 4294901760
    %7088 = vmatmul.mubr.f32.gmra.mrb[0].mxu0 %v7087
    %v7089 = vpop.f32.mrb[0].mxu0
    %v7090 = vadd.f32 %v7008, %v7089
    %v7091 = vpop.f32.mrb[0].mxu0
    %7092 = vmatprep.mubr.f32.mxu0 0.0
    %v7093 = vand.u32 %v6759, 4294901760
    %v7094 = vsub.f32 %v6759, %v7093
    %v7095 = vand.u32 %v7094, 4294901760
    %7096 = vmatmul.mubr.f32.gmra.mrb[0].mxu0 %v7095
    %v7097 = vpop.f32.mrb[0].mxu0
    %v7098 = vadd.f32 %v7015, %v7097
    %v7099 = vpop.f32.mrb[0].mxu0
    %7100 = vdwg.mxu0
    %7101 = vmatprep.subr.mxu0 0.0
    %v7102 = vand.u32 %v6753, 4294901760
    %v7103 = vsub.f32 %v6753, %v7102
    %v7104 = vand.u32 %v7103, 4294901760
    %7105 = vmatpush1.msra.mxu0 %v7104
    %7106 = vmatprep.subr.mxu0 0.0
    %v7107 = vand.u32 %v6754, 4294901760
    %v7108 = vsub.f32 %v6754, %v7107
    %v7109 = vand.u32 %v7108, 4294901760
    %7110 = vmatpush1.msra.mxu0 %v7109
    %7111 = vmatprep.subr.mxu0 0.0
    %7112 = vmatpush1.msra.mxu0 0.0
    %7113 = vmatprep.subr.mxu0 0.0
    %7114 = vmatpush1.msra.mxu0 0.0
    %7115 = vmatprep.subr.mxu0 0.0
    %7116 = vmatpush1.msra.mxu0 0.0
    %7117 = vmatprep.subr.mxu0 0.0
    %7118 = vmatpush1.msra.mxu0 0.0
    %7119 = vmatprep.subr.mxu0 0.0
    %7120 = vmatpush1.msra.mxu0 0.0
    %7121 = vmatprep.subr.mxu0 0.0
    %7122 = vmatpush1.msra.mxu0 0.0
    %7123 = vmatprep.subr.mxu0 0.0
    %7124 = vmatpush1.msra.mxu0 0.0
    %7125 = vmatprep.subr.mxu0 0.0
    %7126 = vmatpush1.msra.mxu0 0.0
    %7127 = vmatprep.subr.mxu0 0.0
    %7128 = vmatpush1.msra.mxu0 0.0
    %7129 = vmatprep.subr.mxu0 0.0
    %7130 = vmatpush1.msra.mxu0 0.0
    %7131 = vmatprep.subr.mxu0 0.0
    %7132 = vmatpush1.msra.mxu0 0.0
    %7133 = vmatprep.subr.mxu0 0.0
    %7134 = vmatpush1.msra.mxu0 0.0
    %7135 = vmatprep.subr.mxu0 0.0
    %7136 = vmatpush1.msra.mxu0 0.0
    %7137 = vmatprep.subr.mxu0 0.0
    %7138 = vmatpush1.msra.mxu0 0.0
    %7139 = vmatprep.subr.mxu0 0.0
    %7140 = vmatpush1.msra.mxu0 0.0
    %7141 = vmatprep.subr.mxu0 0.0
    %7142 = vmatpush1.msra.mxu0 0.0
    %7143 = vmatprep.subr.mxu0 0.0
    %7144 = vmatpush1.msra.mxu0 0.0
    %7145 = vmatprep.subr.mxu0 0.0
    %7146 = vmatpush1.msra.mxu0 0.0
    %7147 = vmatprep.subr.mxu0 0.0
    %7148 = vmatpush1.msra.mxu0 0.0
    %7149 = vmatprep.subr.mxu0 0.0
    %7150 = vmatpush1.msra.mxu0 0.0
    %7151 = vmatprep.subr.mxu0 0.0
    %7152 = vmatpush1.msra.mxu0 0.0
    %7153 = vmatprep.subr.mxu0 0.0
    %7154 = vmatpush1.msra.mxu0 0.0
    %7155 = vmatprep.subr.mxu0 0.0
    %7156 = vmatpush1.msra.mxu0 0.0
    %7157 = vmatprep.subr.mxu0 0.0
    %7158 = vmatpush1.msra.mxu0 0.0
    %7159 = vmatprep.subr.mxu0 0.0
    %7160 = vmatpush1.msra.mxu0 0.0
    %7161 = vmatprep.subr.mxu0 0.0
    %7162 = vmatpush1.msra.mxu0 0.0
    %7163 = vmatprep.subr.mxu0 0.0
    %7164 = vmatpush1.msra.mxu0 0.0
    %7165 = vmatprep.subr.mxu0 0.0
    %7166 = vmatpush1.msra.mxu0 0.0
    %7167 = vmatprep.subr.mxu0 0.0
    %7168 = vmatpush1.msra.mxu0 0.0
    %7169 = vmatprep.subr.mxu0 0.0
    %7170 = vmatpush1.msra.mxu0 0.0
    %7171 = vmatprep.mubr.f32.mxu0 0.0
    %v7172 = vand.u32 %v6756, 4294901760
    %7173 = vmatmul.mubr.f32.gmra.mrb[0].mxu0 %v7172
    %v7174 = vpop.f32.mrb[0].mxu0
    %v7175 = vadd.f32 %v7090, %v7174
    %v7176 = vpop.f32.mrb[0].mxu0
    %7177 = vmatprep.mubr.f32.mxu0 0.0
    %v7178 = vand.u32 %v6759, 4294901760
    %7179 = vmatmul.mubr.f32.gmra.mrb[0].mxu0 %v7178
    %v7180 = vpop.f32.mrb[0].mxu0
    %v7181 = vadd.f32 %v7098, %v7180
    %v7182 = vpop.f32.mrb[0].mxu0
    %7183 = vdwg.mxu0
    %7184 = vmatprep.subr.mxu0 0.0
    %v7185 = vand.u32 %v6753, 4294901760
    %7186 = vmatpush1.msra.mxu0 %v7185
    %7187 = vmatprep.subr.mxu0 0.0
    %v7188 = vand.u32 %v6754, 4294901760
    %7189 = vmatpush1.msra.mxu0 %v7188
    %7190 = vmatprep.subr.mxu0 0.0
    %7191 = vmatpush1.msra.mxu0 0.0
    %7192 = vmatprep.subr.mxu0 0.0
    %7193 = vmatpush1.msra.mxu0 0.0
    %7194 = vmatprep.subr.mxu0 0.0
    %7195 = vmatpush1.msra.mxu0 0.0
    %7196 = vmatprep.subr.mxu0 0.0
    %7197 = vmatpush1.msra.mxu0 0.0
    %7198 = vmatprep.subr.mxu0 0.0
    %7199 = vmatpush1.msra.mxu0 0.0
    %7200 = vmatprep.subr.mxu0 0.0
    %7201 = vmatpush1.msra.mxu0 0.0
    %7202 = vmatprep.subr.mxu0 0.0
    %7203 = vmatpush1.msra.mxu0 0.0
    %7204 = vmatprep.subr.mxu0 0.0
    %7205 = vmatpush1.msra.mxu0 0.0
    %7206 = vmatprep.subr.mxu0 0.0
    %7207 = vmatpush1.msra.mxu0 0.0
    %7208 = vmatprep.subr.mxu0 0.0
    %7209 = vmatpush1.msra.mxu0 0.0
    %7210 = vmatprep.subr.mxu0 0.0
    %7211 = vmatpush1.msra.mxu0 0.0
    %7212 = vmatprep.subr.mxu0 0.0
    %7213 = vmatpush1.msra.mxu0 0.0
    %7214 = vmatprep.subr.mxu0 0.0
    %7215 = vmatpush1.msra.mxu0 0.0
    %7216 = vmatprep.subr.mxu0 0.0
    %7217 = vmatpush1.msra.mxu0 0.0
    %7218 = vmatprep.subr.mxu0 0.0
    %7219 = vmatpush1.msra.mxu0 0.0
    %7220 = vmatprep.subr.mxu0 0.0
    %7221 = vmatpush1.msra.mxu0 0.0
    %7222 = vmatprep.subr.mxu0 0.0
    %7223 = vmatpush1.msra.mxu0 0.0
    %7224 = vmatprep.subr.mxu0 0.0
    %7225 = vmatpush1.msra.mxu0 0.0
    %7226 = vmatprep.subr.mxu0 0.0
    %7227 = vmatpush1.msra.mxu0 0.0
    %7228 = vmatprep.subr.mxu0 0.0
    %7229 = vmatpush1.msra.mxu0 0.0
    %7230 = vmatprep.subr.mxu0 0.0
    %7231 = vmatpush1.msra.mxu0 0.0
    %7232 = vmatprep.subr.mxu0 0.0
    %7233 = vmatpush1.msra.mxu0 0.0
    %7234 = vmatprep.subr.mxu0 0.0
    %7235 = vmatpush1.msra.mxu0 0.0
    %7236 = vmatprep.subr.mxu0 0.0
    %7237 = vmatpush1.msra.mxu0 0.0
    %7238 = vmatprep.subr.mxu0 0.0
    %7239 = vmatpush1.msra.mxu0 0.0
    %7240 = vmatprep.subr.mxu0 0.0
    %7241 = vmatpush1.msra.mxu0 0.0
    %7242 = vmatprep.subr.mxu0 0.0
    %7243 = vmatpush1.msra.mxu0 0.0
    %7244 = vmatprep.subr.mxu0 0.0
    %7245 = vmatpush1.msra.mxu0 0.0
    %7246 = vmatprep.subr.mxu0 0.0
    %7247 = vmatpush1.msra.mxu0 0.0
    %7248 = vmatprep.subr.mxu0 0.0
    %7249 = vmatpush1.msra.mxu0 0.0
    %7250 = vmatprep.mubr.f32.mxu0 0.0
    %v7251 = vand.u32 %v6756, 4294901760
    %7252 = vmatmul.mubr.f32.gmra.mrb[0].mxu0 %v7251
    %v7253 = vpop.f32.mrb[0].mxu0
    %v7254 = vadd.f32 %v7175, %v7253
    %v7255 = vpop.f32.mrb[0].mxu0
    %7256 = vmatprep.mubr.f32.mxu0 0.0
    %v7257 = vand.u32 %v6759, 4294901760
    %7258 = vmatmul.mubr.f32.gmra.mrb[0].mxu0 %v7257
    %v7259 = vpop.f32.mrb[0].mxu0
    %v7260 = vadd.f32 %v7181, %v7259
    %v7261 = vpop.f32.mrb[0].mxu0
    %7262 = vdwg.mxu0
    %v7263 = vadd.f32 %v6749, %v7254
    %v7264 = vadd.f32 %v6750, %v7260
    %v7265 = vxor.u32 %v7263, 2147483648
    %v7266 = vxor.u32 %v7264, 2147483648
    %v7267 = vmul.f32 %v7265, 1.442695
    %v7268 = vpow.pop %v7267
    %v7269 = vmul.f32 %v7266, 1.442695
    %v7270 = vpow.pop %v7269
    %v7271 = vadd.f32 %v7268, 1.0
    %v7272 = vadd.f32 %v7270, 1.0
    %v7273 = vrcp.pop %v7271
    %v7274 = vmul.f32 1.0, %v7273
    %v7275 = vrcp.pop %v7272
    %v7276 = vmul.f32 1.0, %v7275
    %v7277 = vmul.f32 %v42, %v7274
    %v7278 = vmul.f32 %v43, %v7276
    %s7279 = scalar_lea.vmem [#allocation8], 16
    %7280 = vst.msk [vmem:[%s7279] sm:$0xff] %vm49, %v7277
    %7281 = vst.msk [vmem:[%s7279 + $0x8] sm:$0xff] %vm49, %v7278
    // Predicated region
    $region18: #{tpu_custom_call.1} parent=1 // pred_check
      _
    $region19: #{tpu_custom_call.1} parent=1 // pred_check_branch
      %7283 = sbr.rel (0) target = $region21
    $region20: #{tpu_custom_call.1} parent=1 // pred_region
      %s7285 = ssub.s32 512, 512
      %7286 = vsyncadd [#allocation5], %s7285
      %s7287 = sshll.u32 [#allocation8], 4
      %s7288 = int_to_ptr.vmem [resolvable:$true] %s7287
      %7293 = dma.vmem_to_hbm [thread:$0]  %s7288, 512, %s2, [#allocation5], 128, 128, 8
    $region21: #{tpu_custom_call.1} parent=1 // pred_fallthru
      _
    // Predicated region
    $region22: #{tpu_custom_call.1} parent=1 // pred_check
      _
    $region23: #{tpu_custom_call.1} parent=1 // pred_check_branch
      %7295 = sbr.rel (0) target = $region25
    $region24: #{tpu_custom_call.1} parent=1 // pred_region
      %7296 = dma.done [#allocation5], 512
    $region25: #{tpu_custom_call.1} parent=1 // pred_fallthru
      _
    %7297 = vsyncpa [#allocation4], 1
    %7298 = vsyncpa [#allocation7], 1
    %7299 = vsyncpa [#allocation5], 1

</llo_original>
